<compile_context>
chip_gen: v7x
topology: tpu7x:2x2x1
jax: 0.10.0
libtpu: 0.0.40
codegen_flags: <defaults>
</compile_context>

<pallas_src>
import numpy as np
import jax
import jax.numpy as jnp
from jax.experimental import pallas as pl
from jax.experimental.pallas import tpu as pltpu

SAMPLE_RATE = 16000
N_MELS = 40
N_FFT = 1024
HOP = 256
F_MIN = 0.0
F_MAX = 8000.0
N_FREQ = N_FFT // 2 + 1          # onesided rFFT bins = 513
N_RI = 2 * N_FREQ                # fused real|imag columns = 1026


# ---------------- deterministic "parameters" (window / fused DFT / stacked mel fb) ----------------

def _hann_window(n):
    # periodic Hann, matches torch.hann_window(n, periodic=True)
    i = np.arange(n)
    return 0.5 - 0.5 * np.cos(2.0 * np.pi * i / n)


def _fused_dft_matrix():
    # [window*cos | -window*sin] so  frames @ W = [Re(STFT) | Im(STFT)]
    n = np.arange(N_FFT)[:, None].astype(np.float64)
    k = np.arange(N_FREQ)[None, :].astype(np.float64)
    ang = 2.0 * np.pi * n * k / N_FFT
    w = _hann_window(N_FFT)[:, None]
    cos_m = w * np.cos(ang)
    sin_m = -w * np.sin(ang)
    return np.concatenate([cos_m, sin_m], axis=1).astype(np.float32)   # (n_fft, 2*n_freq)


def _stacked_mel_fbanks():
    # torchaudio.functional.melscale_fbanks(513, 0, 8000, 40, 16000, norm=None, "htk"),
    # stacked twice along the frequency axis so (re^2 | im^2) @ fb2 == power @ fb.
    all_freqs = np.linspace(0.0, SAMPLE_RATE // 2, N_FREQ)

    def hz_to_mel(f):
        return 2595.0 * np.log10(1.0 + f / 700.0)

    def mel_to_hz(m):
        return 700.0 * (10.0 ** (m / 2595.0) - 1.0)

    m_pts = np.linspace(hz_to_mel(F_MIN), hz_to_mel(F_MAX), N_MELS + 2)
    f_pts = mel_to_hz(m_pts)
    f_diff = f_pts[1:] - f_pts[:-1]
    slopes = f_pts[None, :] - all_freqs[:, None]          # (n_freq, n_mels + 2)
    down = -slopes[:, :-2] / f_diff[:-1]
    up = slopes[:, 2:] / f_diff[1:]
    fb = np.maximum(0.0, np.minimum(down, up))            # (n_freq, n_mels)
    return np.concatenate([fb, fb], axis=0).astype(np.float32)   # (2*n_freq, n_mels)


# ---------------- Pallas kernel: 2 bf16 MXU matmuls (f32 acc) + elementwise epilogue ----------------

def _logmel_kernel(frames_ref, w_ref, fb2_ref, out_ref):
    x = frames_ref[0]                                        # (tile_f, n_fft) bf16
    # Fused windowed rDFT: columns [:513]=Re, [513:]=Im  (f32 accumulation on MXU)
    y = jnp.dot(x, w_ref[...], preferred_element_type=jnp.float32)      # (tile_f, 1026)
    power = y * y                                            # re^2 | im^2
    # mel = re^2 @ fb + im^2 @ fb  via the row-stacked filterbank
    mel = jnp.dot(power.astype(jnp.bfloat16), fb2_ref[...],
                  preferred_element_type=jnp.float32)        # (tile_f, n_mels)
    log_mel = jnp.log(mel + 1e-9)
    mean = jnp.mean(log_mel, axis=-1, keepdims=True)
    centered = log_mel - mean
    # torch.std default is unbiased (divide by n_mels - 1)
    var = jnp.sum(centered * centered, axis=-1, keepdims=True) * (1.0 / (N_MELS - 1))
    out_ref[0] = centered * (1.0 / (jnp.sqrt(var) + 1e-9))


def _round_up(x, m):
    return (x + m - 1) // m * m


def log_mel_spectrogram(waveform):
    waveform = jnp.asarray(waveform, dtype=jnp.float32)
    B, T = waveform.shape
    pad = N_FFT // 2
    n_frames = 1 + T // HOP

    # center=True, pad_mode="reflect" (torch.stft defaults); cast to bf16 for the MXU.
    x = jnp.pad(waveform, ((0, 0), (pad, pad)), mode="reflect").astype(jnp.bfloat16)

    # Gather-free overlapping frame extraction: N_FFT is an exact multiple of HOP, so
    # each frame is the concatenation of 4 consecutive hop-sized chunks.
    r = N_FFT // HOP
    n_chunks = n_frames - 1 + r
    x = x[:, : n_chunks * HOP]
    chunks = x.reshape(B, n_chunks, HOP)
    frames = jnp.concatenate([chunks[:, k:k + n_frames, :] for k in range(r)], axis=2)

    # Tile the frame axis so per-step VMEM is bounded; pad frames with zeros (padded
    # rows produce finite values and are sliced away below).
    tile_f = min(256, _round_up(n_frames, 128))
    f_pad = _round_up(n_frames, tile_f)
    if f_pad != n_frames:
        frames = jnp.pad(frames, ((0, 0), (0, f_pad - n_frames), (0, 0)))

    w = jnp.asarray(_fused_dft_matrix(), dtype=jnp.bfloat16)        # (1024, 1026) ~2.1 MB
    fb2 = jnp.asarray(_stacked_mel_fbanks(), dtype=jnp.bfloat16)    # (1026, 40)

    out = pl.pallas_call(
        _logmel_kernel,
        out_shape=jax.ShapeDtypeStruct((B, f_pad, N_MELS), jnp.float32),
        grid_spec=pltpu.PrefetchScalarGridSpec(
            num_scalar_prefetch=0,
            grid=(B, f_pad // tile_f),
            in_specs=[
                pl.BlockSpec((1, tile_f, N_FFT), lambda b, f: (b, f, 0)),
                pl.BlockSpec((N_FFT, N_RI), lambda b, f: (0, 0)),     # invariant constant
                pl.BlockSpec((N_RI, N_MELS), lambda b, f: (0, 0)),    # invariant constant
            ],
            out_specs=pl.BlockSpec((1, tile_f, N_MELS), lambda b, f: (b, f, 0)),
        ),
        compiler_params=pltpu.CompilerParams(
            dimension_semantics=("parallel", "parallel"),
        ),
    )(frames, w, fb2)

    # Match PyTorch output layout: (batch, n_mels, time_frames)
    return jnp.transpose(out[:, :n_frames, :], (0, 2, 1))


if __name__ == "__main__":
    key = jax.random.PRNGKey(0)
    # batch=2, 2048 audio samples -> 1 + 2048/256 = 9 frames of 1024 samples each
    waveform = jax.random.normal(key, (2, 2048), dtype=jnp.float32)
    result = log_mel_spectrogram(waveform)
    jax.block_until_ready(result)
    assert result.shape == (2, N_MELS, 1 + 2048 // HOP)
    assert bool(jnp.all(jnp.isfinite(result)))
    print("KERNEL_OK")
</pallas_src>

<mosaic_0001>
module attributes {stable_mosaic.version = 11 : i64} {
  func.func @_logmel_kernel(%arg0: i32, %arg1: i32, %arg2: memref<1x128x1024xbf16, #tpu.memory_space<vmem>>, %arg3: memref<1024x1026xbf16, #tpu.memory_space<vmem>>, %arg4: memref<1026x40xbf16, #tpu.memory_space<vmem>>, %arg5: memref<1x128x40xf32, #tpu.memory_space<vmem>>) attributes {dimension_semantics = [#tpu.dimension_semantics<parallel>, #tpu.dimension_semantics<parallel>], iteration_bounds = array<i64: 2, 1>, scalar_prefetch = 0 : i64, scratch_operands = 0 : i64, tpu.core_type = #tpu.core_type<tc>, window_params = [{transform_indices = @transform_0, window_bounds = array<i64: 1, 128, 1024>}, {pipeline_mode = #tpu.pipeline_mode<synchronous>, transform_indices = @transform_1, window_bounds = array<i64: 1024, 1026>}, {pipeline_mode = #tpu.pipeline_mode<synchronous>, transform_indices = @transform_2, window_bounds = array<i64: 1026, 40>}, {transform_indices = @transform_3, window_bounds = array<i64: 1, 128, 40>}]} {
    %c0 = arith.constant 0 : index
    %c0_0 = arith.constant 0 : index
    %c0_1 = arith.constant 0 : index
    %0 = vector.load %arg2[%c0, %c0_0, %c0_1] : memref<1x128x1024xbf16, #tpu.memory_space<vmem>>, vector<1x128x1024xbf16>
    %1 = vector.shape_cast %0 : vector<1x128x1024xbf16> to vector<128x1024xbf16>
    %c0_2 = arith.constant 0 : index
    %c0_3 = arith.constant 0 : index
    %2 = vector.load %arg3[%c0_2, %c0_3] : memref<1024x1026xbf16, #tpu.memory_space<vmem>>, vector<1024x1026xbf16>
    %cst = arith.constant dense<0.000000e+00> : vector<128x1026xf32>
    %3 = tpu.matmul %1, %2, %cst {dimension_numbers = #tpu.dot_dimension_numbers<[1], [0], [0], [1], [0, 0, 1, 1], [], []>} : vector<128x1024xbf16>, vector<1024x1026xbf16>, vector<128x1026xf32> -> vector<128x1026xf32>
    %4 = arith.mulf %3, %3 : vector<128x1026xf32>
    %5 = arith.truncf %4 : vector<128x1026xf32> to vector<128x1026xbf16>
    %c0_4 = arith.constant 0 : index
    %c0_5 = arith.constant 0 : index
    %6 = vector.load %arg4[%c0_4, %c0_5] : memref<1026x40xbf16, #tpu.memory_space<vmem>>, vector<1026x40xbf16>
    %cst_6 = arith.constant dense<0.000000e+00> : vector<128x40xf32>
    %7 = tpu.matmul %5, %6, %cst_6 {dimension_numbers = #tpu.dot_dimension_numbers<[1], [0], [0], [1], [0, 0, 1, 1], [], []>} : vector<128x1026xbf16>, vector<1026x40xbf16>, vector<128x40xf32> -> vector<128x40xf32>
    %cst_7 = arith.constant 9.99999971E-10 : f32
    %8 = vector.broadcast %cst_7 : f32 to vector<128x40xf32>
    %9 = arith.addf %7, %8 : vector<128x40xf32>
    %10 = math.log %9 : vector<128x40xf32>
    %cst_8 = arith.constant dense<0.000000e+00> : vector<128xf32>
    %11 = vector.multi_reduction <add>, %10, %cst_8 [1] : vector<128x40xf32> to vector<128xf32>
    %12 = vector.shape_cast %11 : vector<128xf32> to vector<128x1xf32>
    %cst_9 = arith.constant 4.000000e+01 : f32
    %13 = vector.broadcast %cst_9 : f32 to vector<128x1xf32>
    %14 = arith.divf %12, %13 : vector<128x1xf32>
    %15 = vector.broadcast %14 : vector<128x1xf32> to vector<128x40xf32>
    %16 = arith.subf %10, %15 : vector<128x40xf32>
    %17 = arith.mulf %16, %16 : vector<128x40xf32>
    %cst_10 = arith.constant dense<0.000000e+00> : vector<128xf32>
    %18 = vector.multi_reduction <add>, %17, %cst_10 [1] : vector<128x40xf32> to vector<128xf32>
    %19 = vector.shape_cast %18 : vector<128xf32> to vector<128x1xf32>
    %cst_11 = arith.constant 0.025641026 : f32
    %20 = vector.broadcast %cst_11 : f32 to vector<128x1xf32>
    %21 = arith.mulf %19, %20 : vector<128x1xf32>
    %22 = math.sqrt %21 : vector<128x1xf32>
    %cst_12 = arith.constant 9.99999971E-10 : f32
    %23 = vector.broadcast %cst_12 : f32 to vector<128x1xf32>
    %24 = arith.addf %22, %23 : vector<128x1xf32>
    %cst_13 = arith.constant 1.000000e+00 : f32
    %25 = vector.broadcast %cst_13 : f32 to vector<128x1xf32>
    %26 = arith.divf %25, %24 : vector<128x1xf32>
    %27 = vector.broadcast %26 : vector<128x1xf32> to vector<128x40xf32>
    %28 = arith.mulf %16, %27 : vector<128x40xf32>
    %c0_14 = arith.constant 0 : index
    %c0_15 = arith.constant 0 : index
    %c0_16 = arith.constant 0 : index
    %29 = vector.load %arg5[%c0_14, %c0_15, %c0_16] : memref<1x128x40xf32, #tpu.memory_space<vmem>>, vector<1x128x40xf32>
    %30 = vector.shape_cast %29 : vector<1x128x40xf32> to vector<128x40xf32>
    %31 = vector.shape_cast %28 : vector<128x40xf32> to vector<1x128x40xf32>
    tpu.vector_store %arg5[%c0_14, %c0_15, %c0_16], %31 {strides = array<i32>} : memref<1x128x40xf32, #tpu.memory_space<vmem>>, vector<1x128x40xf32>,
    return
  }
  func.func @transform_0(%arg0: i32, %arg1: i32) -> (i32, i32, i32) {
    %c0_i32 = arith.constant 0 : i32
    %c0_i32_0 = arith.constant 0 : i32
    return %arg0, %arg1, %c0_i32 : i32, i32, i32
  }
  func.func @transform_1(%arg0: i32, %arg1: i32) -> (i32, i32) {
    %c0_i32 = arith.constant 0 : i32
    %c0_i32_0 = arith.constant 0 : i32
    %c0_i32_1 = arith.constant 0 : i32
    return %c0_i32, %c0_i32_0 : i32, i32
  }
  func.func @transform_2(%arg0: i32, %arg1: i32) -> (i32, i32) {
    %c0_i32 = arith.constant 0 : i32
    %c0_i32_0 = arith.constant 0 : i32
    %c0_i32_1 = arith.constant 0 : i32
    return %c0_i32, %c0_i32_0 : i32, i32
  }
  func.func @transform_3(%arg0: i32, %arg1: i32) -> (i32, i32, i32) {
    %c0_i32 = arith.constant 0 : i32
    %c0_i32_0 = arith.constant 0 : i32
    return %arg0, %arg1, %c0_i32 : i32, i32, i32
  }
}

</mosaic_0001>

<llo_original>
// kernel: tpu_custom_call.1
$region0: #{tpu_custom_call.1}
  #allocation0 [shape = 'u32[]', space=smem, size = 0x4, offset = 0x4, fixed_abs, tag = 'smem constant byte address 0x4 - core index']
  #allocation1 [shape = 'u32[144,128]{1,0:T(1,128)}', space=vmem, size = 0x12000, scoped, tag = 'internal scratch']
  %s0 = inlined_call_operand.vmem [shape: bf16[2,128,1024], index: 0, kind: input, shape index: {}]
  %s1 = inlined_call_operand.vmem [shape: bf16[1024,1026], index: 1, kind: input, shape index: {}]
  %s2 = inlined_call_operand.vmem [shape: bf16[1026,40], index: 2, kind: input, shape index: {}]
  %s3 = inlined_call_operand.vmem [shape: f32[2,128,40], index: 3, kind: output, shape index: {}]
  %s4 = sld [smem:[#allocation0]]
  $region45: #{tpu_custom_call.1} parent=0
    _
  %s6 = ssub.s32 1, %s4
  %s7 = scalar_select 0, %s6, %s4
  loop: start=0, step=1, limit=4
  $region2: #{tpu_custom_call.1} parent=0 // loop_pre_header
    _
  $region3: #{tpu_custom_call.1} parent=0 // loop_header
    %s9 = sphi 0, %s13
    %p10 = scmp.ge.s32.totalorder %s9, 4
    %s16 = sphi 0, %s28
    %s17 = sphi 0, %s24
    %s18 = sphi 0, %s16
    %s19 = sphi 0, %s17
    %s20 = sphi 0, %s18
    %s21 = sphi 0, %s19
    %s33 = sphi 0, %s35
    %s36 = sphi 0, %s33
    %s37 = sphi 0, %s36
    %s53 = sphi 0, %s37
    %s57 = sphi 0, %s57
    %s59 = sphi 0, %s57
    %s60 = sphi 0, %s59
    %s74 = sphi 0, %s60
    %s78 = sphi 0, %s78
    %s80 = sphi 0, %s78
    %s81 = sphi 0, %s80
    %s95 = sphi 0, %s81
    %s103 = sphi 0, %s105
    %s106 = sphi 0, %s103
    %s107 = sphi 0, %s106
    %s123 = sphi 0, %s107
  $region4: #{tpu_custom_call.1} parent=0 // loop_header_branch
    %12 = sbr.rel (%p10) target = $region8
  $region5: #{tpu_custom_call.1} parent=0 // loop_body
    %s14 = ssub.s32 %s9, 1
    %s15 = ssub.s32 %s9, 2
    %s22 = sadd.s32 1, %s17
    %p23 = scmp.ge.s32.totalorder %s22, 1
    %s24 = scalar_select %p23, 0, %s22
    %s25 = sadd.s32 1, %s16
    %s26 = scalar_select %p23, %s25, %s16
    %p27 = scmp.ge.s32.totalorder %s26, 2
    %s28 = scalar_select %p27, 0, %s26
    %s29 = ssub.s32 %s16, %s28
    %s30 = ssub.s32 %s17, %s24
    %s31 = sor.u32 %s29, %s30
    %p32 = scmp.eq.s32.totalorder %s31, 0
    %s34 = sadd.s32 %s33, 1
    %s35 = scalar_select %p32, %s33, %s34
    %p38 = pneg %p32
    %p39 = scmp.eq.s32.totalorder %s9, 1
    %p40 = por %p38, %p39
    %p41 = scmp.ne.s32.totalorder %s33, %s36
    %p42 = scmp.eq.s32.totalorder %s9, 0
    %p43 = por %p41, %p42
    %p44 = scmp.ne.s32.totalorder %s33, %s36
    %p45 = scmp.eq.s32.totalorder %s14, 1
    %p46 = por %p44, %p45
    %p47 = scmp.ne.s32.totalorder %s36, %s37
    %p48 = scmp.eq.s32.totalorder %s14, 0
    %p49 = por %p47, %p48
    %p50 = scmp.ne.s32.totalorder %s36, %s37
    %p51 = scmp.eq.s32.totalorder %s15, 1
    %p52 = por %p50, %p51
    %p54 = scmp.ne.s32.totalorder %s37, %s53
    %p55 = scmp.eq.s32.totalorder %s15, 0
    %p56 = por %p54, %p55
    %s58 = sadd.s32 %s57, 1
    %p61 = scmp.eq.s32.totalorder %s9, 1
    %p62 = scmp.ne.s32.totalorder %s57, %s59
    %p63 = scmp.eq.s32.totalorder %s9, 0
    %p64 = por %p62, %p63
    %p65 = scmp.ne.s32.totalorder %s57, %s59
    %p66 = scmp.eq.s32.totalorder %s14, 1
    %p67 = por %p65, %p66
    %p68 = scmp.ne.s32.totalorder %s59, %s60
    %p69 = scmp.eq.s32.totalorder %s14, 0
    %p70 = por %p68, %p69
    %p71 = scmp.ne.s32.totalorder %s59, %s60
    %p72 = scmp.eq.s32.totalorder %s15, 1
    %p73 = por %p71, %p72
    %p75 = scmp.ne.s32.totalorder %s60, %s74
    %p76 = scmp.eq.s32.totalorder %s15, 0
    %p77 = por %p75, %p76
    %s79 = sadd.s32 %s78, 1
    %p82 = scmp.eq.s32.totalorder %s9, 1
    %p83 = scmp.ne.s32.totalorder %s78, %s80
    %p84 = scmp.eq.s32.totalorder %s9, 0
    %p85 = por %p83, %p84
    %p86 = scmp.ne.s32.totalorder %s78, %s80
    %p87 = scmp.eq.s32.totalorder %s14, 1
    %p88 = por %p86, %p87
    %p89 = scmp.ne.s32.totalorder %s80, %s81
    %p90 = scmp.eq.s32.totalorder %s14, 0
    %p91 = por %p89, %p90
    %p92 = scmp.ne.s32.totalorder %s80, %s81
    %p93 = scmp.eq.s32.totalorder %s15, 1
    %p94 = por %p92, %p93
    %p96 = scmp.ne.s32.totalorder %s81, %s95
    %p97 = scmp.eq.s32.totalorder %s15, 0
    %p98 = por %p96, %p97
    %s99 = ssub.s32 %s16, %s28
    %s100 = ssub.s32 %s17, %s24
    %s101 = sor.u32 %s99, %s100
    %p102 = scmp.eq.s32.totalorder %s101, 0
    %s104 = sadd.s32 %s103, 1
    %s105 = scalar_select %p102, %s103, %s104
    %p108 = pneg %p102
    %p109 = scmp.eq.s32.totalorder %s9, 1
    %p110 = por %p108, %p109
    %p111 = scmp.ne.s32.totalorder %s103, %s106
    %p112 = scmp.eq.s32.totalorder %s9, 0
    %p113 = por %p111, %p112
    %p114 = scmp.ne.s32.totalorder %s103, %s106
    %p115 = scmp.eq.s32.totalorder %s14, 1
    %p116 = por %p114, %p115
    %p117 = scmp.ne.s32.totalorder %s106, %s107
    %p118 = scmp.eq.s32.totalorder %s14, 0
    %p119 = por %p117, %p118
    %p120 = scmp.ne.s32.totalorder %s106, %s107
    %p121 = scmp.eq.s32.totalorder %s15, 1
    %p122 = por %p120, %p121
    %p124 = scmp.ne.s32.totalorder %s107, %s123
    %p125 = scmp.eq.s32.totalorder %s15, 0
    %p126 = por %p124, %p125
    %p127 = scmp.le.s32.totalorder 1, %s9
    %p128 = scmp.lt.s32.totalorder %s9, 3
    %p129 = pnand %p127, %p128
    %p130 = pneg %p129
    // Predicated region
    $region9: #{tpu_custom_call.1} parent=5 // pred_check
      _
    $region10: #{tpu_custom_call.1} parent=5 // pred_check_branch
      %132 = sbr.rel (%p129) target = $region12
    $region11: #{tpu_custom_call.1} parent=5 // pred_region
      %s133 = ssub.s32 %s9, 1
      // Predicated region
      $region13: #{tpu_custom_call.1} parent=11 // pred_check
        %p134 = pneg %p70
      $region14: #{tpu_custom_call.1} parent=11 // pred_check_branch
        %136 = sbr.rel (%p134) target = $region16
      $region15: #{tpu_custom_call.1} parent=11 // pred_region
        _
      $region16: #{tpu_custom_call.1} parent=11 // pred_fallthru
        _
      // Predicated region
      $region17: #{tpu_custom_call.1} parent=11 // pred_check
        %p137 = pneg %p91
      $region18: #{tpu_custom_call.1} parent=11 // pred_check_branch
        %139 = sbr.rel (%p137) target = $region20
      $region19: #{tpu_custom_call.1} parent=11 // pred_region
        _
      $region20: #{tpu_custom_call.1} parent=11 // pred_fallthru
        _
    $region12: #{tpu_custom_call.1} parent=5 // pred_fallthru
      _
    %p140 = scmp.lt.s32.totalorder %s9, 2
    // Predicated region
    $region21: #{tpu_custom_call.1} parent=5 // pred_check
      %p141 = pneg %p140
    $region22: #{tpu_custom_call.1} parent=5 // pred_check_branch
      %143 = sbr.rel (%p141) target = $region24
    $region23: #{tpu_custom_call.1} parent=5 // pred_region
      // Predicated region
      $region25: #{tpu_custom_call.1} parent=23 // pred_check
        %p144 = pneg %p43
      $region26: #{tpu_custom_call.1} parent=23 // pred_check_branch
        %146 = sbr.rel (%p144) target = $region28
      $region27: #{tpu_custom_call.1} parent=23 // pred_region
        %s147 = smul.u32 16, %s17
        %p148 = scmp.lt.s32.totalorder %s16, 1
        %s149 = scalar_select %p148, %s16, 1
        %p150 = scmp.lt.s32.totalorder %s147, 15
        %s151 = scalar_select %p150, %s147, 15
        %s152 = smul.addr %s151, 8
        %s153 = smul.addr %s149, 128
        %s154 = sadd.s32 %s152, %s153
        %s155 = smul.addr %s154, 4
        %s156 = scalar_lea.vmem %s0, %s155
        %s157 = smul.u32 16, %s17
      $region28: #{tpu_custom_call.1} parent=23 // pred_fallthru
        _
    $region24: #{tpu_custom_call.1} parent=5 // pred_fallthru
      _
    %p158 = scmp.le.s32.totalorder 1, %s9
    %p159 = scmp.lt.s32.totalorder %s9, 3
    %p160 = pnand %p158, %p159
    %p161 = pneg %p160
    // Predicated region
    $region29: #{tpu_custom_call.1} parent=5 // pred_check
      _
    $region30: #{tpu_custom_call.1} parent=5 // pred_check_branch
      %163 = sbr.rel (%p160) target = $region32
    $region31: #{tpu_custom_call.1} parent=5 // pred_region
      %s164 = ssub.s32 %s9, 1
      %s165 = smul.u32 16, %s19
      %p166 = scmp.lt.s32.totalorder %s18, 1
      %s167 = scalar_select %p166, %s18, 1
      %p168 = scmp.lt.s32.totalorder %s165, 15
      %s169 = scalar_select %p168, %s165, 15
      %s170 = smul.addr %s169, 8
      %s171 = smul.addr %s167, 128
      %s172 = sadd.s32 %s170, %s171
      %s173 = smul.addr %s172, 4
      %s174 = scalar_lea.vmem %s0, %s173
      %p175 = pneg %p49
      %p176 = pneg %p46
      %p177 = pneg %p70
      %p178 = pneg %p67
      %p179 = pneg %p91
      %p180 = pneg %p88
      %p181 = pneg %p119
      %p182 = pneg %p116
      %s183 = smul.u32 16, %s19
      %p184 = scmp.lt.s32.totalorder %s18, 1
      %s185 = scalar_select %p184, %s18, 1
      %p186 = scmp.lt.s32.totalorder %s183, 15
      %s187 = scalar_select %p186, %s183, 15
      %s188 = smul.addr %s185, 16
      %s189 = sadd.s32 %s187, %s188
      %s190 = smul.addr %s189, 8
      %s191 = scalar_lea.vmem %s3, %s190
      %s192 = smul.u32 16, %s19
      %p193 = scmp.lt.s32.totalorder %s18, 1
      %s194 = scalar_select %p193, %s18, 1
      %p195 = scmp.lt.s32.totalorder %s192, 15
      %s196 = scalar_select %p195, %s192, 15
      %s197 = smul.addr %s196, 8
      %s198 = smul.addr %s194, 128
      %s199 = sadd.s32 %s197, %s198
      %s200 = smul.addr %s199, 4
      %s201 = scalar_lea.vmem %s0, %s200
      %s202 = smul.u32 16, %s19
      %s203 = smul.u32 16, %s19
      %p204 = scmp.lt.s32.totalorder %s18, 1
      %s205 = scalar_select %p204, %s18, 1
      %p206 = scmp.lt.s32.totalorder %s203, 15
      %s207 = scalar_select %p206, %s203, 15
      %s208 = smul.addr %s205, 16
      %s209 = sadd.s32 %s207, %s208
      %s210 = smul.addr %s209, 8
      %s211 = scalar_lea.vmem %s3, %s210
      %s212 = smul.u32 16, %s19
      %v214 = vld [vmem:[%s201] sm:$0xff]
      %v215 = vld [vmem:[%s201 + $0x8] sm:$0xff]
      %v216 = vld [vmem:[%s201 + $0x10] sm:$0xff]
      %v217 = vld [vmem:[%s201 + $0x18] sm:$0xff]
      %v218 = vld [vmem:[%s201 + $0x20] sm:$0xff]
      %v219 = vld [vmem:[%s201 + $0x28] sm:$0xff]
      %v220 = vld [vmem:[%s201 + $0x30] sm:$0xff]
      %v221 = vld [vmem:[%s201 + $0x38] sm:$0xff]
      %v222 = vld [vmem:[%s201 + $0x40] sm:$0xff]
      %v223 = vld [vmem:[%s201 + $0x48] sm:$0xff]
      %v224 = vld [vmem:[%s201 + $0x50] sm:$0xff]
      %v225 = vld [vmem:[%s201 + $0x58] sm:$0xff]
      %v226 = vld [vmem:[%s201 + $0x60] sm:$0xff]
      %v227 = vld [vmem:[%s201 + $0x68] sm:$0xff]
      %v228 = vld [vmem:[%s201 + $0x70] sm:$0xff]
      %v229 = vld [vmem:[%s201 + $0x78] sm:$0xff]
      %v230 = vld [vmem:[%s201 + $0x80] sm:$0xff]
      %v231 = vld [vmem:[%s201 + $0x88] sm:$0xff]
      %v232 = vld [vmem:[%s201 + $0x90] sm:$0xff]
      %v233 = vld [vmem:[%s201 + $0x98] sm:$0xff]
      %v234 = vld [vmem:[%s201 + $0xa0] sm:$0xff]
      %v235 = vld [vmem:[%s201 + $0xa8] sm:$0xff]
      %v236 = vld [vmem:[%s201 + $0xb0] sm:$0xff]
      %v237 = vld [vmem:[%s201 + $0xb8] sm:$0xff]
      %v238 = vld [vmem:[%s201 + $0xc0] sm:$0xff]
      %v239 = vld [vmem:[%s201 + $0xc8] sm:$0xff]
      %v240 = vld [vmem:[%s201 + $0xd0] sm:$0xff]
      %v241 = vld [vmem:[%s201 + $0xd8] sm:$0xff]
      %v242 = vld [vmem:[%s201 + $0xe0] sm:$0xff]
      %v243 = vld [vmem:[%s201 + $0xe8] sm:$0xff]
      %v244 = vld [vmem:[%s201 + $0xf0] sm:$0xff]
      %v245 = vld [vmem:[%s201 + $0xf8] sm:$0xff]
      %v246 = vld [vmem:[%s201 + $0x100] sm:$0xff]
      %v247 = vld [vmem:[%s201 + $0x108] sm:$0xff]
      %v248 = vld [vmem:[%s201 + $0x110] sm:$0xff]
      %v249 = vld [vmem:[%s201 + $0x118] sm:$0xff]
      %v250 = vld [vmem:[%s201 + $0x120] sm:$0xff]
      %v251 = vld [vmem:[%s201 + $0x128] sm:$0xff]
      %v252 = vld [vmem:[%s201 + $0x130] sm:$0xff]
      %v253 = vld [vmem:[%s201 + $0x138] sm:$0xff]
      %v254 = vld [vmem:[%s201 + $0x140] sm:$0xff]
      %v255 = vld [vmem:[%s201 + $0x148] sm:$0xff]
      %v256 = vld [vmem:[%s201 + $0x150] sm:$0xff]
      %v257 = vld [vmem:[%s201 + $0x158] sm:$0xff]
      %v258 = vld [vmem:[%s201 + $0x160] sm:$0xff]
      %v259 = vld [vmem:[%s201 + $0x168] sm:$0xff]
      %v260 = vld [vmem:[%s201 + $0x170] sm:$0xff]
      %v261 = vld [vmem:[%s201 + $0x178] sm:$0xff]
      %v262 = vld [vmem:[%s201 + $0x180] sm:$0xff]
      %v263 = vld [vmem:[%s201 + $0x188] sm:$0xff]
      %v264 = vld [vmem:[%s201 + $0x190] sm:$0xff]
      %v265 = vld [vmem:[%s201 + $0x198] sm:$0xff]
      %v266 = vld [vmem:[%s201 + $0x1a0] sm:$0xff]
      %v267 = vld [vmem:[%s201 + $0x1a8] sm:$0xff]
      %v268 = vld [vmem:[%s201 + $0x1b0] sm:$0xff]
      %v269 = vld [vmem:[%s201 + $0x1b8] sm:$0xff]
      %v270 = vld [vmem:[%s201 + $0x1c0] sm:$0xff]
      %v271 = vld [vmem:[%s201 + $0x1c8] sm:$0xff]
      %v272 = vld [vmem:[%s201 + $0x1d0] sm:$0xff]
      %v273 = vld [vmem:[%s201 + $0x1d8] sm:$0xff]
      %v274 = vld [vmem:[%s201 + $0x1e0] sm:$0xff]
      %v275 = vld [vmem:[%s201 + $0x1e8] sm:$0xff]
      %v276 = vld [vmem:[%s201 + $0x1f0] sm:$0xff]
      %v277 = vld [vmem:[%s201 + $0x1f8] sm:$0xff]
      %v278 = vld [vmem:[%s1] sm:$0xff]
      %v279 = vld [vmem:[%s1 + $0x8] sm:$0xff]
      %v280 = vld [vmem:[%s1 + $0x10] sm:$0xff]
      %v281 = vld [vmem:[%s1 + $0x18] sm:$0xff]
      %v282 = vld [vmem:[%s1 + $0x20] sm:$0xf]
      %v283 = vld [vmem:[%s1 + $0x24] sm:$0xff]
      %v284 = vld [vmem:[%s1 + $0x2c] sm:$0xff]
      %v285 = vld [vmem:[%s1 + $0x34] sm:$0xff]
      %v286 = vld [vmem:[%s1 + $0x3c] sm:$0xff]
      %v287 = vld [vmem:[%s1 + $0x44] sm:$0xf]
      %v288 = vld [vmem:[%s1 + $0x48] sm:$0xff]
      %v289 = vld [vmem:[%s1 + $0x50] sm:$0xff]
      %v290 = vld [vmem:[%s1 + $0x58] sm:$0xff]
      %v291 = vld [vmem:[%s1 + $0x60] sm:$0xff]
      %v292 = vld [vmem:[%s1 + $0x68] sm:$0xf]
      %v293 = vld [vmem:[%s1 + $0x6c] sm:$0xff]
      %v294 = vld [vmem:[%s1 + $0x74] sm:$0xff]
      %v295 = vld [vmem:[%s1 + $0x7c] sm:$0xff]
      %v296 = vld [vmem:[%s1 + $0x84] sm:$0xff]
      %v297 = vld [vmem:[%s1 + $0x8c] sm:$0xf]
      %v298 = vld [vmem:[%s1 + $0x90] sm:$0xff]
      %v299 = vld [vmem:[%s1 + $0x98] sm:$0xff]
      %v300 = vld [vmem:[%s1 + $0xa0] sm:$0xff]
      %v301 = vld [vmem:[%s1 + $0xa8] sm:$0xff]
      %v302 = vld [vmem:[%s1 + $0xb0] sm:$0xf]
      %v303 = vld [vmem:[%s1 + $0xb4] sm:$0xff]
      %v304 = vld [vmem:[%s1 + $0xbc] sm:$0xff]
      %v305 = vld [vmem:[%s1 + $0xc4] sm:$0xff]
      %v306 = vld [vmem:[%s1 + $0xcc] sm:$0xff]
      %v307 = vld [vmem:[%s1 + $0xd4] sm:$0xf]
      %v308 = vld [vmem:[%s1 + $0xd8] sm:$0xff]
      %v309 = vld [vmem:[%s1 + $0xe0] sm:$0xff]
      %v310 = vld [vmem:[%s1 + $0xe8] sm:$0xff]
      %v311 = vld [vmem:[%s1 + $0xf0] sm:$0xff]
      %v312 = vld [vmem:[%s1 + $0xf8] sm:$0xf]
      %v313 = vld [vmem:[%s1 + $0xfc] sm:$0xff]
      %v314 = vld [vmem:[%s1 + $0x104] sm:$0xff]
      %v315 = vld [vmem:[%s1 + $0x10c] sm:$0xff]
      %v316 = vld [vmem:[%s1 + $0x114] sm:$0xff]
      %v317 = vld [vmem:[%s1 + $0x11c] sm:$0xf]
      %v318 = vld [vmem:[%s1 + $0x120] sm:$0xff]
      %v319 = vld [vmem:[%s1 + $0x128] sm:$0xff]
      %v320 = vld [vmem:[%s1 + $0x130] sm:$0xff]
      %v321 = vld [vmem:[%s1 + $0x138] sm:$0xff]
      %v322 = vld [vmem:[%s1 + $0x140] sm:$0xf]
      %v323 = vld [vmem:[%s1 + $0x144] sm:$0xff]
      %v324 = vld [vmem:[%s1 + $0x14c] sm:$0xff]
      %v325 = vld [vmem:[%s1 + $0x154] sm:$0xff]
      %v326 = vld [vmem:[%s1 + $0x15c] sm:$0xff]
      %v327 = vld [vmem:[%s1 + $0x164] sm:$0xf]
      %v328 = vld [vmem:[%s1 + $0x168] sm:$0xff]
      %v329 = vld [vmem:[%s1 + $0x170] sm:$0xff]
      %v330 = vld [vmem:[%s1 + $0x178] sm:$0xff]
      %v331 = vld [vmem:[%s1 + $0x180] sm:$0xff]
      %v332 = vld [vmem:[%s1 + $0x188] sm:$0xf]
      %v333 = vld [vmem:[%s1 + $0x18c] sm:$0xff]
      %v334 = vld [vmem:[%s1 + $0x194] sm:$0xff]
      %v335 = vld [vmem:[%s1 + $0x19c] sm:$0xff]
      %v336 = vld [vmem:[%s1 + $0x1a4] sm:$0xff]
      %v337 = vld [vmem:[%s1 + $0x1ac] sm:$0xf]
      %v338 = vld [vmem:[%s1 + $0x1b0] sm:$0xff]
      %v339 = vld [vmem:[%s1 + $0x1b8] sm:$0xff]
      %v340 = vld [vmem:[%s1 + $0x1c0] sm:$0xff]
      %v341 = vld [vmem:[%s1 + $0x1c8] sm:$0xff]
      %v342 = vld [vmem:[%s1 + $0x1d0] sm:$0xf]
      %v343 = vld [vmem:[%s1 + $0x1d4] sm:$0xff]
      %v344 = vld [vmem:[%s1 + $0x1dc] sm:$0xff]
      %v345 = vld [vmem:[%s1 + $0x1e4] sm:$0xff]
      %v346 = vld [vmem:[%s1 + $0x1ec] sm:$0xff]
      %v347 = vld [vmem:[%s1 + $0x1f4] sm:$0xf]
      %v348 = vld [vmem:[%s1 + $0x1f8] sm:$0xff]
      %v349 = vld [vmem:[%s1 + $0x200] sm:$0xff]
      %v350 = vld [vmem:[%s1 + $0x208] sm:$0xff]
      %v351 = vld [vmem:[%s1 + $0x210] sm:$0xff]
      %v352 = vld [vmem:[%s1 + $0x218] sm:$0xf]
      %v353 = vld [vmem:[%s1 + $0x21c] sm:$0xff]
      %v354 = vld [vmem:[%s1 + $0x224] sm:$0xff]
      %v355 = vld [vmem:[%s1 + $0x22c] sm:$0xff]
      %v356 = vld [vmem:[%s1 + $0x234] sm:$0xff]
      %v357 = vld [vmem:[%s1 + $0x23c] sm:$0xf]
      %v358 = vld [vmem:[%s1 + $0x240] sm:$0xff]
      %v359 = vld [vmem:[%s1 + $0x248] sm:$0xff]
      %v360 = vld [vmem:[%s1 + $0x250] sm:$0xff]
      %v361 = vld [vmem:[%s1 + $0x258] sm:$0xff]
      %v362 = vld [vmem:[%s1 + $0x260] sm:$0xf]
      %v363 = vld [vmem:[%s1 + $0x264] sm:$0xff]
      %v364 = vld [vmem:[%s1 + $0x26c] sm:$0xff]
      %v365 = vld [vmem:[%s1 + $0x274] sm:$0xff]
      %v366 = vld [vmem:[%s1 + $0x27c] sm:$0xff]
      %v367 = vld [vmem:[%s1 + $0x284] sm:$0xf]
      %v368 = vld [vmem:[%s1 + $0x288] sm:$0xff]
      %v369 = vld [vmem:[%s1 + $0x290] sm:$0xff]
      %v370 = vld [vmem:[%s1 + $0x298] sm:$0xff]
      %v371 = vld [vmem:[%s1 + $0x2a0] sm:$0xff]
      %v372 = vld [vmem:[%s1 + $0x2a8] sm:$0xf]
      %v373 = vld [vmem:[%s1 + $0x2ac] sm:$0xff]
      %v374 = vld [vmem:[%s1 + $0x2b4] sm:$0xff]
      %v375 = vld [vmem:[%s1 + $0x2bc] sm:$0xff]
      %v376 = vld [vmem:[%s1 + $0x2c4] sm:$0xff]
      %v377 = vld [vmem:[%s1 + $0x2cc] sm:$0xf]
      %v378 = vld [vmem:[%s1 + $0x2d0] sm:$0xff]
      %v379 = vld [vmem:[%s1 + $0x2d8] sm:$0xff]
      %v380 = vld [vmem:[%s1 + $0x2e0] sm:$0xff]
      %v381 = vld [vmem:[%s1 + $0x2e8] sm:$0xff]
      %v382 = vld [vmem:[%s1 + $0x2f0] sm:$0xf]
      %v383 = vld [vmem:[%s1 + $0x2f4] sm:$0xff]
      %v384 = vld [vmem:[%s1 + $0x2fc] sm:$0xff]
      %v385 = vld [vmem:[%s1 + $0x304] sm:$0xff]
      %v386 = vld [vmem:[%s1 + $0x30c] sm:$0xff]
      %v387 = vld [vmem:[%s1 + $0x314] sm:$0xf]
      %v388 = vld [vmem:[%s1 + $0x318] sm:$0xff]
      %v389 = vld [vmem:[%s1 + $0x320] sm:$0xff]
      %v390 = vld [vmem:[%s1 + $0x328] sm:$0xff]
      %v391 = vld [vmem:[%s1 + $0x330] sm:$0xff]
      %v392 = vld [vmem:[%s1 + $0x338] sm:$0xf]
      %v393 = vld [vmem:[%s1 + $0x33c] sm:$0xff]
      %v394 = vld [vmem:[%s1 + $0x344] sm:$0xff]
      %v395 = vld [vmem:[%s1 + $0x34c] sm:$0xff]
      %v396 = vld [vmem:[%s1 + $0x354] sm:$0xff]
      %v397 = vld [vmem:[%s1 + $0x35c] sm:$0xf]
      %v398 = vld [vmem:[%s1 + $0x360] sm:$0xff]
      %v399 = vld [vmem:[%s1 + $0x368] sm:$0xff]
      %v400 = vld [vmem:[%s1 + $0x370] sm:$0xff]
      %v401 = vld [vmem:[%s1 + $0x378] sm:$0xff]
      %v402 = vld [vmem:[%s1 + $0x380] sm:$0xf]
      %v403 = vld [vmem:[%s1 + $0x384] sm:$0xff]
      %v404 = vld [vmem:[%s1 + $0x38c] sm:$0xff]
      %v405 = vld [vmem:[%s1 + $0x394] sm:$0xff]
      %v406 = vld [vmem:[%s1 + $0x39c] sm:$0xff]
      %v407 = vld [vmem:[%s1 + $0x3a4] sm:$0xf]
      %v408 = vld [vmem:[%s1 + $0x3a8] sm:$0xff]
      %v409 = vld [vmem:[%s1 + $0x3b0] sm:$0xff]
      %v410 = vld [vmem:[%s1 + $0x3b8] sm:$0xff]
      %v411 = vld [vmem:[%s1 + $0x3c0] sm:$0xff]
      %v412 = vld [vmem:[%s1 + $0x3c8] sm:$0xf]
      %v413 = vld [vmem:[%s1 + $0x3cc] sm:$0xff]
      %v414 = vld [vmem:[%s1 + $0x3d4] sm:$0xff]
      %v415 = vld [vmem:[%s1 + $0x3dc] sm:$0xff]
      %v416 = vld [vmem:[%s1 + $0x3e4] sm:$0xff]
      %v417 = vld [vmem:[%s1 + $0x3ec] sm:$0xf]
      %v418 = vld [vmem:[%s1 + $0x3f0] sm:$0xff]
      %v419 = vld [vmem:[%s1 + $0x3f8] sm:$0xff]
      %v420 = vld [vmem:[%s1 + $0x400] sm:$0xff]
      %v421 = vld [vmem:[%s1 + $0x408] sm:$0xff]
      %v422 = vld [vmem:[%s1 + $0x410] sm:$0xf]
      %v423 = vld [vmem:[%s1 + $0x414] sm:$0xff]
      %v424 = vld [vmem:[%s1 + $0x41c] sm:$0xff]
      %v425 = vld [vmem:[%s1 + $0x424] sm:$0xff]
      %v426 = vld [vmem:[%s1 + $0x42c] sm:$0xff]
      %v427 = vld [vmem:[%s1 + $0x434] sm:$0xf]
      %v428 = vld [vmem:[%s1 + $0x438] sm:$0xff]
      %v429 = vld [vmem:[%s1 + $0x440] sm:$0xff]
      %v430 = vld [vmem:[%s1 + $0x448] sm:$0xff]
      %v431 = vld [vmem:[%s1 + $0x450] sm:$0xff]
      %v432 = vld [vmem:[%s1 + $0x458] sm:$0xf]
      %v433 = vld [vmem:[%s1 + $0x45c] sm:$0xff]
      %v434 = vld [vmem:[%s1 + $0x464] sm:$0xff]
      %v435 = vld [vmem:[%s1 + $0x46c] sm:$0xff]
      %v436 = vld [vmem:[%s1 + $0x474] sm:$0xff]
      %v437 = vld [vmem:[%s1 + $0x47c] sm:$0xf]
      %v438 = vld [vmem:[%s1 + $0x480] sm:$0xff]
      %v439 = vld [vmem:[%s1 + $0x488] sm:$0xff]
      %v440 = vld [vmem:[%s1 + $0x490] sm:$0xff]
      %v441 = vld [vmem:[%s1 + $0x498] sm:$0xff]
      %v442 = vld [vmem:[%s1 + $0x4a0] sm:$0xf]
      %v443 = vld [vmem:[%s1 + $0x4a4] sm:$0xff]
      %v444 = vld [vmem:[%s1 + $0x4ac] sm:$0xff]
      %v445 = vld [vmem:[%s1 + $0x4b4] sm:$0xff]
      %v446 = vld [vmem:[%s1 + $0x4bc] sm:$0xff]
      %v447 = vld [vmem:[%s1 + $0x4c4] sm:$0xf]
      %v448 = vld [vmem:[%s1 + $0x4c8] sm:$0xff]
      %v449 = vld [vmem:[%s1 + $0x4d0] sm:$0xff]
      %v450 = vld [vmem:[%s1 + $0x4d8] sm:$0xff]
      %v451 = vld [vmem:[%s1 + $0x4e0] sm:$0xff]
      %v452 = vld [vmem:[%s1 + $0x4e8] sm:$0xf]
      %v453 = vld [vmem:[%s1 + $0x4ec] sm:$0xff]
      %v454 = vld [vmem:[%s1 + $0x4f4] sm:$0xff]
      %v455 = vld [vmem:[%s1 + $0x4fc] sm:$0xff]
      %v456 = vld [vmem:[%s1 + $0x504] sm:$0xff]
      %v457 = vld [vmem:[%s1 + $0x50c] sm:$0xf]
      %v458 = vld [vmem:[%s1 + $0x510] sm:$0xff]
      %v459 = vld [vmem:[%s1 + $0x518] sm:$0xff]
      %v460 = vld [vmem:[%s1 + $0x520] sm:$0xff]
      %v461 = vld [vmem:[%s1 + $0x528] sm:$0xff]
      %v462 = vld [vmem:[%s1 + $0x530] sm:$0xf]
      %v463 = vld [vmem:[%s1 + $0x534] sm:$0xff]
      %v464 = vld [vmem:[%s1 + $0x53c] sm:$0xff]
      %v465 = vld [vmem:[%s1 + $0x544] sm:$0xff]
      %v466 = vld [vmem:[%s1 + $0x54c] sm:$0xff]
      %v467 = vld [vmem:[%s1 + $0x554] sm:$0xf]
      %v468 = vld [vmem:[%s1 + $0x558] sm:$0xff]
      %v469 = vld [vmem:[%s1 + $0x560] sm:$0xff]
      %v470 = vld [vmem:[%s1 + $0x568] sm:$0xff]
      %v471 = vld [vmem:[%s1 + $0x570] sm:$0xff]
      %v472 = vld [vmem:[%s1 + $0x578] sm:$0xf]
      %v473 = vld [vmem:[%s1 + $0x57c] sm:$0xff]
      %v474 = vld [vmem:[%s1 + $0x584] sm:$0xff]
      %v475 = vld [vmem:[%s1 + $0x58c] sm:$0xff]
      %v476 = vld [vmem:[%s1 + $0x594] sm:$0xff]
      %v477 = vld [vmem:[%s1 + $0x59c] sm:$0xf]
      %v478 = vld [vmem:[%s1 + $0x5a0] sm:$0xff]
      %v479 = vld [vmem:[%s1 + $0x5a8] sm:$0xff]
      %v480 = vld [vmem:[%s1 + $0x5b0] sm:$0xff]
      %v481 = vld [vmem:[%s1 + $0x5b8] sm:$0xff]
      %v482 = vld [vmem:[%s1 + $0x5c0] sm:$0xf]
      %v483 = vld [vmem:[%s1 + $0x5c4] sm:$0xff]
      %v484 = vld [vmem:[%s1 + $0x5cc] sm:$0xff]
      %v485 = vld [vmem:[%s1 + $0x5d4] sm:$0xff]
      %v486 = vld [vmem:[%s1 + $0x5dc] sm:$0xff]
      %v487 = vld [vmem:[%s1 + $0x5e4] sm:$0xf]
      %v488 = vld [vmem:[%s1 + $0x5e8] sm:$0xff]
      %v489 = vld [vmem:[%s1 + $0x5f0] sm:$0xff]
      %v490 = vld [vmem:[%s1 + $0x5f8] sm:$0xff]
      %v491 = vld [vmem:[%s1 + $0x600] sm:$0xff]
      %v492 = vld [vmem:[%s1 + $0x608] sm:$0xf]
      %v493 = vld [vmem:[%s1 + $0x60c] sm:$0xff]
      %v494 = vld [vmem:[%s1 + $0x614] sm:$0xff]
      %v495 = vld [vmem:[%s1 + $0x61c] sm:$0xff]
      %v496 = vld [vmem:[%s1 + $0x624] sm:$0xff]
      %v497 = vld [vmem:[%s1 + $0x62c] sm:$0xf]
      %v498 = vld [vmem:[%s1 + $0x630] sm:$0xff]
      %v499 = vld [vmem:[%s1 + $0x638] sm:$0xff]
      %v500 = vld [vmem:[%s1 + $0x640] sm:$0xff]
      %v501 = vld [vmem:[%s1 + $0x648] sm:$0xff]
      %v502 = vld [vmem:[%s1 + $0x650] sm:$0xf]
      %v503 = vld [vmem:[%s1 + $0x654] sm:$0xff]
      %v504 = vld [vmem:[%s1 + $0x65c] sm:$0xff]
      %v505 = vld [vmem:[%s1 + $0x664] sm:$0xff]
      %v506 = vld [vmem:[%s1 + $0x66c] sm:$0xff]
      %v507 = vld [vmem:[%s1 + $0x674] sm:$0xf]
      %v508 = vld [vmem:[%s1 + $0x678] sm:$0xff]
      %v509 = vld [vmem:[%s1 + $0x680] sm:$0xff]
      %v510 = vld [vmem:[%s1 + $0x688] sm:$0xff]
      %v511 = vld [vmem:[%s1 + $0x690] sm:$0xff]
      %v512 = vld [vmem:[%s1 + $0x698] sm:$0xf]
      %v513 = vld [vmem:[%s1 + $0x69c] sm:$0xff]
      %v514 = vld [vmem:[%s1 + $0x6a4] sm:$0xff]
      %v515 = vld [vmem:[%s1 + $0x6ac] sm:$0xff]
      %v516 = vld [vmem:[%s1 + $0x6b4] sm:$0xff]
      %v517 = vld [vmem:[%s1 + $0x6bc] sm:$0xf]
      %v518 = vld [vmem:[%s1 + $0x6c0] sm:$0xff]
      %v519 = vld [vmem:[%s1 + $0x6c8] sm:$0xff]
      %v520 = vld [vmem:[%s1 + $0x6d0] sm:$0xff]
      %v521 = vld [vmem:[%s1 + $0x6d8] sm:$0xff]
      %v522 = vld [vmem:[%s1 + $0x6e0] sm:$0xf]
      %v523 = vld [vmem:[%s1 + $0x6e4] sm:$0xff]
      %v524 = vld [vmem:[%s1 + $0x6ec] sm:$0xff]
      %v525 = vld [vmem:[%s1 + $0x6f4] sm:$0xff]
      %v526 = vld [vmem:[%s1 + $0x6fc] sm:$0xff]
      %v527 = vld [vmem:[%s1 + $0x704] sm:$0xf]
      %v528 = vld [vmem:[%s1 + $0x708] sm:$0xff]
      %v529 = vld [vmem:[%s1 + $0x710] sm:$0xff]
      %v530 = vld [vmem:[%s1 + $0x718] sm:$0xff]
      %v531 = vld [vmem:[%s1 + $0x720] sm:$0xff]
      %v532 = vld [vmem:[%s1 + $0x728] sm:$0xf]
      %v533 = vld [vmem:[%s1 + $0x72c] sm:$0xff]
      %v534 = vld [vmem:[%s1 + $0x734] sm:$0xff]
      %v535 = vld [vmem:[%s1 + $0x73c] sm:$0xff]
      %v536 = vld [vmem:[%s1 + $0x744] sm:$0xff]
      %v537 = vld [vmem:[%s1 + $0x74c] sm:$0xf]
      %v538 = vld [vmem:[%s1 + $0x750] sm:$0xff]
      %v539 = vld [vmem:[%s1 + $0x758] sm:$0xff]
      %v540 = vld [vmem:[%s1 + $0x760] sm:$0xff]
      %v541 = vld [vmem:[%s1 + $0x768] sm:$0xff]
      %v542 = vld [vmem:[%s1 + $0x770] sm:$0xf]
      %v543 = vld [vmem:[%s1 + $0x774] sm:$0xff]
      %v544 = vld [vmem:[%s1 + $0x77c] sm:$0xff]
      %v545 = vld [vmem:[%s1 + $0x784] sm:$0xff]
      %v546 = vld [vmem:[%s1 + $0x78c] sm:$0xff]
      %v547 = vld [vmem:[%s1 + $0x794] sm:$0xf]
      %v548 = vld [vmem:[%s1 + $0x798] sm:$0xff]
      %v549 = vld [vmem:[%s1 + $0x7a0] sm:$0xff]
      %v550 = vld [vmem:[%s1 + $0x7a8] sm:$0xff]
      %v551 = vld [vmem:[%s1 + $0x7b0] sm:$0xff]
      %v552 = vld [vmem:[%s1 + $0x7b8] sm:$0xf]
      %v553 = vld [vmem:[%s1 + $0x7bc] sm:$0xff]
      %v554 = vld [vmem:[%s1 + $0x7c4] sm:$0xff]
      %v555 = vld [vmem:[%s1 + $0x7cc] sm:$0xff]
      %v556 = vld [vmem:[%s1 + $0x7d4] sm:$0xff]
      %v557 = vld [vmem:[%s1 + $0x7dc] sm:$0xf]
      %v558 = vld [vmem:[%s1 + $0x7e0] sm:$0xff]
      %v559 = vld [vmem:[%s1 + $0x7e8] sm:$0xff]
      %v560 = vld [vmem:[%s1 + $0x7f0] sm:$0xff]
      %v561 = vld [vmem:[%s1 + $0x7f8] sm:$0xff]
      %v562 = vld [vmem:[%s1 + $0x800] sm:$0xf]
      %v563 = vld [vmem:[%s1 + $0x804] sm:$0xff]
      %v564 = vld [vmem:[%s1 + $0x80c] sm:$0xff]
      %v565 = vld [vmem:[%s1 + $0x814] sm:$0xff]
      %v566 = vld [vmem:[%s1 + $0x81c] sm:$0xff]
      %v567 = vld [vmem:[%s1 + $0x824] sm:$0xf]
      %v568 = vld [vmem:[%s1 + $0x828] sm:$0xff]
      %v569 = vld [vmem:[%s1 + $0x830] sm:$0xff]
      %v570 = vld [vmem:[%s1 + $0x838] sm:$0xff]
      %v571 = vld [vmem:[%s1 + $0x840] sm:$0xff]
      %v572 = vld [vmem:[%s1 + $0x848] sm:$0xf]
      %v573 = vld [vmem:[%s1 + $0x84c] sm:$0xff]
      %v574 = vld [vmem:[%s1 + $0x854] sm:$0xff]
      %v575 = vld [vmem:[%s1 + $0x85c] sm:$0xff]
      %v576 = vld [vmem:[%s1 + $0x864] sm:$0xff]
      %v577 = vld [vmem:[%s1 + $0x86c] sm:$0xf]
      %v578 = vld [vmem:[%s1 + $0x870] sm:$0xff]
      %v579 = vld [vmem:[%s1 + $0x878] sm:$0xff]
      %v580 = vld [vmem:[%s1 + $0x880] sm:$0xff]
      %v581 = vld [vmem:[%s1 + $0x888] sm:$0xff]
      %v582 = vld [vmem:[%s1 + $0x890] sm:$0xf]
      %v583 = vld [vmem:[%s1 + $0x894] sm:$0xff]
      %v584 = vld [vmem:[%s1 + $0x89c] sm:$0xff]
      %v585 = vld [vmem:[%s1 + $0x8a4] sm:$0xff]
      %v586 = vld [vmem:[%s1 + $0x8ac] sm:$0xff]
      %v587 = vld [vmem:[%s1 + $0x8b4] sm:$0xf]
      %v588 = vld [vmem:[%s1 + $0x8b8] sm:$0xff]
      %v589 = vld [vmem:[%s1 + $0x8c0] sm:$0xff]
      %v590 = vld [vmem:[%s1 + $0x8c8] sm:$0xff]
      %v591 = vld [vmem:[%s1 + $0x8d0] sm:$0xff]
      %v592 = vld [vmem:[%s1 + $0x8d8] sm:$0xf]
      %v593 = vld [vmem:[%s1 + $0x8dc] sm:$0xff]
      %v594 = vld [vmem:[%s1 + $0x8e4] sm:$0xff]
      %v595 = vld [vmem:[%s1 + $0x8ec] sm:$0xff]
      %v596 = vld [vmem:[%s1 + $0x8f4] sm:$0xff]
      %v597 = vld [vmem:[%s1 + $0x8fc] sm:$0xf]
      %v598 = vld [vmem:[%s1 + $0x900] sm:$0xff]
      %v599 = vld [vmem:[%s1 + $0x908] sm:$0xff]
      %v600 = vld [vmem:[%s1 + $0x910] sm:$0xff]
      %v601 = vld [vmem:[%s1 + $0x918] sm:$0xff]
      %v602 = vld [vmem:[%s1 + $0x920] sm:$0xf]
      %v603 = vld [vmem:[%s1 + $0x924] sm:$0xff]
      %v604 = vld [vmem:[%s1 + $0x92c] sm:$0xff]
      %v605 = vld [vmem:[%s1 + $0x934] sm:$0xff]
      %v606 = vld [vmem:[%s1 + $0x93c] sm:$0xff]
      %v607 = vld [vmem:[%s1 + $0x944] sm:$0xf]
      %v608 = vld [vmem:[%s1 + $0x948] sm:$0xff]
      %v609 = vld [vmem:[%s1 + $0x950] sm:$0xff]
      %v610 = vld [vmem:[%s1 + $0x958] sm:$0xff]
      %v611 = vld [vmem:[%s1 + $0x960] sm:$0xff]
      %v612 = vld [vmem:[%s1 + $0x968] sm:$0xf]
      %v613 = vld [vmem:[%s1 + $0x96c] sm:$0xff]
      %v614 = vld [vmem:[%s1 + $0x974] sm:$0xff]
      %v615 = vld [vmem:[%s1 + $0x97c] sm:$0xff]
      %v616 = vld [vmem:[%s1 + $0x984] sm:$0xff]
      %v617 = vld [vmem:[%s1 + $0x98c] sm:$0xf]
      %v618 = vld [vmem:[%s1 + $0x990] sm:$0xff]
      %v619 = vld [vmem:[%s1 + $0x998] sm:$0xff]
      %v620 = vld [vmem:[%s1 + $0x9a0] sm:$0xff]
      %v621 = vld [vmem:[%s1 + $0x9a8] sm:$0xff]
      %v622 = vld [vmem:[%s1 + $0x9b0] sm:$0xf]
      %v623 = vld [vmem:[%s1 + $0x9b4] sm:$0xff]
      %v624 = vld [vmem:[%s1 + $0x9bc] sm:$0xff]
      %v625 = vld [vmem:[%s1 + $0x9c4] sm:$0xff]
      %v626 = vld [vmem:[%s1 + $0x9cc] sm:$0xff]
      %v627 = vld [vmem:[%s1 + $0x9d4] sm:$0xf]
      %v628 = vld [vmem:[%s1 + $0x9d8] sm:$0xff]
      %v629 = vld [vmem:[%s1 + $0x9e0] sm:$0xff]
      %v630 = vld [vmem:[%s1 + $0x9e8] sm:$0xff]
      %v631 = vld [vmem:[%s1 + $0x9f0] sm:$0xff]
      %v632 = vld [vmem:[%s1 + $0x9f8] sm:$0xf]
      %v633 = vld [vmem:[%s1 + $0x9fc] sm:$0xff]
      %v634 = vld [vmem:[%s1 + $0xa04] sm:$0xff]
      %v635 = vld [vmem:[%s1 + $0xa0c] sm:$0xff]
      %v636 = vld [vmem:[%s1 + $0xa14] sm:$0xff]
      %v637 = vld [vmem:[%s1 + $0xa1c] sm:$0xf]
      %v638 = vld [vmem:[%s1 + $0xa20] sm:$0xff]
      %v639 = vld [vmem:[%s1 + $0xa28] sm:$0xff]
      %v640 = vld [vmem:[%s1 + $0xa30] sm:$0xff]
      %v641 = vld [vmem:[%s1 + $0xa38] sm:$0xff]
      %v642 = vld [vmem:[%s1 + $0xa40] sm:$0xf]
      %v643 = vld [vmem:[%s1 + $0xa44] sm:$0xff]
      %v644 = vld [vmem:[%s1 + $0xa4c] sm:$0xff]
      %v645 = vld [vmem:[%s1 + $0xa54] sm:$0xff]
      %v646 = vld [vmem:[%s1 + $0xa5c] sm:$0xff]
      %v647 = vld [vmem:[%s1 + $0xa64] sm:$0xf]
      %v648 = vld [vmem:[%s1 + $0xa68] sm:$0xff]
      %v649 = vld [vmem:[%s1 + $0xa70] sm:$0xff]
      %v650 = vld [vmem:[%s1 + $0xa78] sm:$0xff]
      %v651 = vld [vmem:[%s1 + $0xa80] sm:$0xff]
      %v652 = vld [vmem:[%s1 + $0xa88] sm:$0xf]
      %v653 = vld [vmem:[%s1 + $0xa8c] sm:$0xff]
      %v654 = vld [vmem:[%s1 + $0xa94] sm:$0xff]
      %v655 = vld [vmem:[%s1 + $0xa9c] sm:$0xff]
      %v656 = vld [vmem:[%s1 + $0xaa4] sm:$0xff]
      %v657 = vld [vmem:[%s1 + $0xaac] sm:$0xf]
      %v658 = vld [vmem:[%s1 + $0xab0] sm:$0xff]
      %v659 = vld [vmem:[%s1 + $0xab8] sm:$0xff]
      %v660 = vld [vmem:[%s1 + $0xac0] sm:$0xff]
      %v661 = vld [vmem:[%s1 + $0xac8] sm:$0xff]
      %v662 = vld [vmem:[%s1 + $0xad0] sm:$0xf]
      %v663 = vld [vmem:[%s1 + $0xad4] sm:$0xff]
      %v664 = vld [vmem:[%s1 + $0xadc] sm:$0xff]
      %v665 = vld [vmem:[%s1 + $0xae4] sm:$0xff]
      %v666 = vld [vmem:[%s1 + $0xaec] sm:$0xff]
      %v667 = vld [vmem:[%s1 + $0xaf4] sm:$0xf]
      %v668 = vld [vmem:[%s1 + $0xaf8] sm:$0xff]
      %v669 = vld [vmem:[%s1 + $0xb00] sm:$0xff]
      %v670 = vld [vmem:[%s1 + $0xb08] sm:$0xff]
      %v671 = vld [vmem:[%s1 + $0xb10] sm:$0xff]
      %v672 = vld [vmem:[%s1 + $0xb18] sm:$0xf]
      %v673 = vld [vmem:[%s1 + $0xb1c] sm:$0xff]
      %v674 = vld [vmem:[%s1 + $0xb24] sm:$0xff]
      %v675 = vld [vmem:[%s1 + $0xb2c] sm:$0xff]
      %v676 = vld [vmem:[%s1 + $0xb34] sm:$0xff]
      %v677 = vld [vmem:[%s1 + $0xb3c] sm:$0xf]
      %v678 = vld [vmem:[%s1 + $0xb40] sm:$0xff]
      %v679 = vld [vmem:[%s1 + $0xb48] sm:$0xff]
      %v680 = vld [vmem:[%s1 + $0xb50] sm:$0xff]
      %v681 = vld [vmem:[%s1 + $0xb58] sm:$0xff]
      %v682 = vld [vmem:[%s1 + $0xb60] sm:$0xf]
      %v683 = vld [vmem:[%s1 + $0xb64] sm:$0xff]
      %v684 = vld [vmem:[%s1 + $0xb6c] sm:$0xff]
      %v685 = vld [vmem:[%s1 + $0xb74] sm:$0xff]
      %v686 = vld [vmem:[%s1 + $0xb7c] sm:$0xff]
      %v687 = vld [vmem:[%s1 + $0xb84] sm:$0xf]
      %v688 = vld [vmem:[%s1 + $0xb88] sm:$0xff]
      %v689 = vld [vmem:[%s1 + $0xb90] sm:$0xff]
      %v690 = vld [vmem:[%s1 + $0xb98] sm:$0xff]
      %v691 = vld [vmem:[%s1 + $0xba0] sm:$0xff]
      %v692 = vld [vmem:[%s1 + $0xba8] sm:$0xf]
      %v693 = vld [vmem:[%s1 + $0xbac] sm:$0xff]
      %v694 = vld [vmem:[%s1 + $0xbb4] sm:$0xff]
      %v695 = vld [vmem:[%s1 + $0xbbc] sm:$0xff]
      %v696 = vld [vmem:[%s1 + $0xbc4] sm:$0xff]
      %v697 = vld [vmem:[%s1 + $0xbcc] sm:$0xf]
      %v698 = vld [vmem:[%s1 + $0xbd0] sm:$0xff]
      %v699 = vld [vmem:[%s1 + $0xbd8] sm:$0xff]
      %v700 = vld [vmem:[%s1 + $0xbe0] sm:$0xff]
      %v701 = vld [vmem:[%s1 + $0xbe8] sm:$0xff]
      %v702 = vld [vmem:[%s1 + $0xbf0] sm:$0xf]
      %v703 = vld [vmem:[%s1 + $0xbf4] sm:$0xff]
      %v704 = vld [vmem:[%s1 + $0xbfc] sm:$0xff]
      %v705 = vld [vmem:[%s1 + $0xc04] sm:$0xff]
      %v706 = vld [vmem:[%s1 + $0xc0c] sm:$0xff]
      %v707 = vld [vmem:[%s1 + $0xc14] sm:$0xf]
      %v708 = vld [vmem:[%s1 + $0xc18] sm:$0xff]
      %v709 = vld [vmem:[%s1 + $0xc20] sm:$0xff]
      %v710 = vld [vmem:[%s1 + $0xc28] sm:$0xff]
      %v711 = vld [vmem:[%s1 + $0xc30] sm:$0xff]
      %v712 = vld [vmem:[%s1 + $0xc38] sm:$0xf]
      %v713 = vld [vmem:[%s1 + $0xc3c] sm:$0xff]
      %v714 = vld [vmem:[%s1 + $0xc44] sm:$0xff]
      %v715 = vld [vmem:[%s1 + $0xc4c] sm:$0xff]
      %v716 = vld [vmem:[%s1 + $0xc54] sm:$0xff]
      %v717 = vld [vmem:[%s1 + $0xc5c] sm:$0xf]
      %v718 = vld [vmem:[%s1 + $0xc60] sm:$0xff]
      %v719 = vld [vmem:[%s1 + $0xc68] sm:$0xff]
      %v720 = vld [vmem:[%s1 + $0xc70] sm:$0xff]
      %v721 = vld [vmem:[%s1 + $0xc78] sm:$0xff]
      %v722 = vld [vmem:[%s1 + $0xc80] sm:$0xf]
      %v723 = vld [vmem:[%s1 + $0xc84] sm:$0xff]
      %v724 = vld [vmem:[%s1 + $0xc8c] sm:$0xff]
      %v725 = vld [vmem:[%s1 + $0xc94] sm:$0xff]
      %v726 = vld [vmem:[%s1 + $0xc9c] sm:$0xff]
      %v727 = vld [vmem:[%s1 + $0xca4] sm:$0xf]
      %v728 = vld [vmem:[%s1 + $0xca8] sm:$0xff]
      %v729 = vld [vmem:[%s1 + $0xcb0] sm:$0xff]
      %v730 = vld [vmem:[%s1 + $0xcb8] sm:$0xff]
      %v731 = vld [vmem:[%s1 + $0xcc0] sm:$0xff]
      %v732 = vld [vmem:[%s1 + $0xcc8] sm:$0xf]
      %v733 = vld [vmem:[%s1 + $0xccc] sm:$0xff]
      %v734 = vld [vmem:[%s1 + $0xcd4] sm:$0xff]
      %v735 = vld [vmem:[%s1 + $0xcdc] sm:$0xff]
      %v736 = vld [vmem:[%s1 + $0xce4] sm:$0xff]
      %v737 = vld [vmem:[%s1 + $0xcec] sm:$0xf]
      %v738 = vld [vmem:[%s1 + $0xcf0] sm:$0xff]
      %v739 = vld [vmem:[%s1 + $0xcf8] sm:$0xff]
      %v740 = vld [vmem:[%s1 + $0xd00] sm:$0xff]
      %v741 = vld [vmem:[%s1 + $0xd08] sm:$0xff]
      %v742 = vld [vmem:[%s1 + $0xd10] sm:$0xf]
      %v743 = vld [vmem:[%s1 + $0xd14] sm:$0xff]
      %v744 = vld [vmem:[%s1 + $0xd1c] sm:$0xff]
      %v745 = vld [vmem:[%s1 + $0xd24] sm:$0xff]
      %v746 = vld [vmem:[%s1 + $0xd2c] sm:$0xff]
      %v747 = vld [vmem:[%s1 + $0xd34] sm:$0xf]
      %v748 = vld [vmem:[%s1 + $0xd38] sm:$0xff]
      %v749 = vld [vmem:[%s1 + $0xd40] sm:$0xff]
      %v750 = vld [vmem:[%s1 + $0xd48] sm:$0xff]
      %v751 = vld [vmem:[%s1 + $0xd50] sm:$0xff]
      %v752 = vld [vmem:[%s1 + $0xd58] sm:$0xf]
      %v753 = vld [vmem:[%s1 + $0xd5c] sm:$0xff]
      %v754 = vld [vmem:[%s1 + $0xd64] sm:$0xff]
      %v755 = vld [vmem:[%s1 + $0xd6c] sm:$0xff]
      %v756 = vld [vmem:[%s1 + $0xd74] sm:$0xff]
      %v757 = vld [vmem:[%s1 + $0xd7c] sm:$0xf]
      %v758 = vld [vmem:[%s1 + $0xd80] sm:$0xff]
      %v759 = vld [vmem:[%s1 + $0xd88] sm:$0xff]
      %v760 = vld [vmem:[%s1 + $0xd90] sm:$0xff]
      %v761 = vld [vmem:[%s1 + $0xd98] sm:$0xff]
      %v762 = vld [vmem:[%s1 + $0xda0] sm:$0xf]
      %v763 = vld [vmem:[%s1 + $0xda4] sm:$0xff]
      %v764 = vld [vmem:[%s1 + $0xdac] sm:$0xff]
      %v765 = vld [vmem:[%s1 + $0xdb4] sm:$0xff]
      %v766 = vld [vmem:[%s1 + $0xdbc] sm:$0xff]
      %v767 = vld [vmem:[%s1 + $0xdc4] sm:$0xf]
      %v768 = vld [vmem:[%s1 + $0xdc8] sm:$0xff]
      %v769 = vld [vmem:[%s1 + $0xdd0] sm:$0xff]
      %v770 = vld [vmem:[%s1 + $0xdd8] sm:$0xff]
      %v771 = vld [vmem:[%s1 + $0xde0] sm:$0xff]
      %v772 = vld [vmem:[%s1 + $0xde8] sm:$0xf]
      %v773 = vld [vmem:[%s1 + $0xdec] sm:$0xff]
      %v774 = vld [vmem:[%s1 + $0xdf4] sm:$0xff]
      %v775 = vld [vmem:[%s1 + $0xdfc] sm:$0xff]
      %v776 = vld [vmem:[%s1 + $0xe04] sm:$0xff]
      %v777 = vld [vmem:[%s1 + $0xe0c] sm:$0xf]
      %v778 = vld [vmem:[%s1 + $0xe10] sm:$0xff]
      %v779 = vld [vmem:[%s1 + $0xe18] sm:$0xff]
      %v780 = vld [vmem:[%s1 + $0xe20] sm:$0xff]
      %v781 = vld [vmem:[%s1 + $0xe28] sm:$0xff]
      %v782 = vld [vmem:[%s1 + $0xe30] sm:$0xf]
      %v783 = vld [vmem:[%s1 + $0xe34] sm:$0xff]
      %v784 = vld [vmem:[%s1 + $0xe3c] sm:$0xff]
      %v785 = vld [vmem:[%s1 + $0xe44] sm:$0xff]
      %v786 = vld [vmem:[%s1 + $0xe4c] sm:$0xff]
      %v787 = vld [vmem:[%s1 + $0xe54] sm:$0xf]
      %v788 = vld [vmem:[%s1 + $0xe58] sm:$0xff]
      %v789 = vld [vmem:[%s1 + $0xe60] sm:$0xff]
      %v790 = vld [vmem:[%s1 + $0xe68] sm:$0xff]
      %v791 = vld [vmem:[%s1 + $0xe70] sm:$0xff]
      %v792 = vld [vmem:[%s1 + $0xe78] sm:$0xf]
      %v793 = vld [vmem:[%s1 + $0xe7c] sm:$0xff]
      %v794 = vld [vmem:[%s1 + $0xe84] sm:$0xff]
      %v795 = vld [vmem:[%s1 + $0xe8c] sm:$0xff]
      %v796 = vld [vmem:[%s1 + $0xe94] sm:$0xff]
      %v797 = vld [vmem:[%s1 + $0xe9c] sm:$0xf]
      %v798 = vld [vmem:[%s1 + $0xea0] sm:$0xff]
      %v799 = vld [vmem:[%s1 + $0xea8] sm:$0xff]
      %v800 = vld [vmem:[%s1 + $0xeb0] sm:$0xff]
      %v801 = vld [vmem:[%s1 + $0xeb8] sm:$0xff]
      %v802 = vld [vmem:[%s1 + $0xec0] sm:$0xf]
      %v803 = vld [vmem:[%s1 + $0xec4] sm:$0xff]
      %v804 = vld [vmem:[%s1 + $0xecc] sm:$0xff]
      %v805 = vld [vmem:[%s1 + $0xed4] sm:$0xff]
      %v806 = vld [vmem:[%s1 + $0xedc] sm:$0xff]
      %v807 = vld [vmem:[%s1 + $0xee4] sm:$0xf]
      %v808 = vld [vmem:[%s1 + $0xee8] sm:$0xff]
      %v809 = vld [vmem:[%s1 + $0xef0] sm:$0xff]
      %v810 = vld [vmem:[%s1 + $0xef8] sm:$0xff]
      %v811 = vld [vmem:[%s1 + $0xf00] sm:$0xff]
      %v812 = vld [vmem:[%s1 + $0xf08] sm:$0xf]
      %v813 = vld [vmem:[%s1 + $0xf0c] sm:$0xff]
      %v814 = vld [vmem:[%s1 + $0xf14] sm:$0xff]
      %v815 = vld [vmem:[%s1 + $0xf1c] sm:$0xff]
      %v816 = vld [vmem:[%s1 + $0xf24] sm:$0xff]
      %v817 = vld [vmem:[%s1 + $0xf2c] sm:$0xf]
      %v818 = vld [vmem:[%s1 + $0xf30] sm:$0xff]
      %v819 = vld [vmem:[%s1 + $0xf38] sm:$0xff]
      %v820 = vld [vmem:[%s1 + $0xf40] sm:$0xff]
      %v821 = vld [vmem:[%s1 + $0xf48] sm:$0xff]
      %v822 = vld [vmem:[%s1 + $0xf50] sm:$0xf]
      %v823 = vld [vmem:[%s1 + $0xf54] sm:$0xff]
      %v824 = vld [vmem:[%s1 + $0xf5c] sm:$0xff]
      %v825 = vld [vmem:[%s1 + $0xf64] sm:$0xff]
      %v826 = vld [vmem:[%s1 + $0xf6c] sm:$0xff]
      %v827 = vld [vmem:[%s1 + $0xf74] sm:$0xf]
      %v828 = vld [vmem:[%s1 + $0xf78] sm:$0xff]
      %v829 = vld [vmem:[%s1 + $0xf80] sm:$0xff]
      %v830 = vld [vmem:[%s1 + $0xf88] sm:$0xff]
      %v831 = vld [vmem:[%s1 + $0xf90] sm:$0xff]
      %v832 = vld [vmem:[%s1 + $0xf98] sm:$0xf]
      %v833 = vld [vmem:[%s1 + $0xf9c] sm:$0xff]
      %v834 = vld [vmem:[%s1 + $0xfa4] sm:$0xff]
      %v835 = vld [vmem:[%s1 + $0xfac] sm:$0xff]
      %v836 = vld [vmem:[%s1 + $0xfb4] sm:$0xff]
      %v837 = vld [vmem:[%s1 + $0xfbc] sm:$0xf]
      %v838 = vld [vmem:[%s1 + $0xfc0] sm:$0xff]
      %v839 = vld [vmem:[%s1 + $0xfc8] sm:$0xff]
      %v840 = vld [vmem:[%s1 + $0xfd0] sm:$0xff]
      %v841 = vld [vmem:[%s1 + $0xfd8] sm:$0xff]
      %v842 = vld [vmem:[%s1 + $0xfe0] sm:$0xf]
      %v843 = vld [vmem:[%s1 + $0xfe4] sm:$0xff]
      %v844 = vld [vmem:[%s1 + $0xfec] sm:$0xff]
      %v845 = vld [vmem:[%s1 + $0xff4] sm:$0xff]
      %v846 = vld [vmem:[%s1 + $0xffc] sm:$0xff]
      %v847 = vld [vmem:[%s1 + $0x1004] sm:$0xf]
      %v848 = vld [vmem:[%s1 + $0x1008] sm:$0xff]
      %v849 = vld [vmem:[%s1 + $0x1010] sm:$0xff]
      %v850 = vld [vmem:[%s1 + $0x1018] sm:$0xff]
      %v851 = vld [vmem:[%s1 + $0x1020] sm:$0xff]
      %v852 = vld [vmem:[%s1 + $0x1028] sm:$0xf]
      %v853 = vld [vmem:[%s1 + $0x102c] sm:$0xff]
      %v854 = vld [vmem:[%s1 + $0x1034] sm:$0xff]
      %v855 = vld [vmem:[%s1 + $0x103c] sm:$0xff]
      %v856 = vld [vmem:[%s1 + $0x1044] sm:$0xff]
      %v857 = vld [vmem:[%s1 + $0x104c] sm:$0xf]
      %v858 = vld [vmem:[%s1 + $0x1050] sm:$0xff]
      %v859 = vld [vmem:[%s1 + $0x1058] sm:$0xff]
      %v860 = vld [vmem:[%s1 + $0x1060] sm:$0xff]
      %v861 = vld [vmem:[%s1 + $0x1068] sm:$0xff]
      %v862 = vld [vmem:[%s1 + $0x1070] sm:$0xf]
      %v863 = vld [vmem:[%s1 + $0x1074] sm:$0xff]
      %v864 = vld [vmem:[%s1 + $0x107c] sm:$0xff]
      %v865 = vld [vmem:[%s1 + $0x1084] sm:$0xff]
      %v866 = vld [vmem:[%s1 + $0x108c] sm:$0xff]
      %v867 = vld [vmem:[%s1 + $0x1094] sm:$0xf]
      %v868 = vld [vmem:[%s1 + $0x1098] sm:$0xff]
      %v869 = vld [vmem:[%s1 + $0x10a0] sm:$0xff]
      %v870 = vld [vmem:[%s1 + $0x10a8] sm:$0xff]
      %v871 = vld [vmem:[%s1 + $0x10b0] sm:$0xff]
      %v872 = vld [vmem:[%s1 + $0x10b8] sm:$0xf]
      %v873 = vld [vmem:[%s1 + $0x10bc] sm:$0xff]
      %v874 = vld [vmem:[%s1 + $0x10c4] sm:$0xff]
      %v875 = vld [vmem:[%s1 + $0x10cc] sm:$0xff]
      %v876 = vld [vmem:[%s1 + $0x10d4] sm:$0xff]
      %v877 = vld [vmem:[%s1 + $0x10dc] sm:$0xf]
      %v878 = vld [vmem:[%s1 + $0x10e0] sm:$0xff]
      %v879 = vld [vmem:[%s1 + $0x10e8] sm:$0xff]
      %v880 = vld [vmem:[%s1 + $0x10f0] sm:$0xff]
      %v881 = vld [vmem:[%s1 + $0x10f8] sm:$0xff]
      %v882 = vld [vmem:[%s1 + $0x1100] sm:$0xf]
      %v883 = vld [vmem:[%s1 + $0x1104] sm:$0xff]
      %v884 = vld [vmem:[%s1 + $0x110c] sm:$0xff]
      %v885 = vld [vmem:[%s1 + $0x1114] sm:$0xff]
      %v886 = vld [vmem:[%s1 + $0x111c] sm:$0xff]
      %v887 = vld [vmem:[%s1 + $0x1124] sm:$0xf]
      %v888 = vld [vmem:[%s1 + $0x1128] sm:$0xff]
      %v889 = vld [vmem:[%s1 + $0x1130] sm:$0xff]
      %v890 = vld [vmem:[%s1 + $0x1138] sm:$0xff]
      %v891 = vld [vmem:[%s1 + $0x1140] sm:$0xff]
      %v892 = vld [vmem:[%s1 + $0x1148] sm:$0xf]
      %v893 = vld [vmem:[%s1 + $0x114c] sm:$0xff]
      %v894 = vld [vmem:[%s1 + $0x1154] sm:$0xff]
      %v895 = vld [vmem:[%s1 + $0x115c] sm:$0xff]
      %v896 = vld [vmem:[%s1 + $0x1164] sm:$0xff]
      %v897 = vld [vmem:[%s1 + $0x116c] sm:$0xf]
      %v898 = vld [vmem:[%s1 + $0x1170] sm:$0xff]
      %v899 = vld [vmem:[%s1 + $0x1178] sm:$0xff]
      %v900 = vld [vmem:[%s1 + $0x1180] sm:$0xff]
      %v901 = vld [vmem:[%s1 + $0x1188] sm:$0xff]
      %v902 = vld [vmem:[%s1 + $0x1190] sm:$0xf]
      %v903 = vld [vmem:[%s1 + $0x1194] sm:$0xff]
      %v904 = vld [vmem:[%s1 + $0x119c] sm:$0xff]
      %v905 = vld [vmem:[%s1 + $0x11a4] sm:$0xff]
      %v906 = vld [vmem:[%s1 + $0x11ac] sm:$0xff]
      %v907 = vld [vmem:[%s1 + $0x11b4] sm:$0xf]
      %v908 = vld [vmem:[%s1 + $0x11b8] sm:$0xff]
      %v909 = vld [vmem:[%s1 + $0x11c0] sm:$0xff]
      %v910 = vld [vmem:[%s1 + $0x11c8] sm:$0xff]
      %v911 = vld [vmem:[%s1 + $0x11d0] sm:$0xff]
      %v912 = vld [vmem:[%s1 + $0x11d8] sm:$0xf]
      %v913 = vld [vmem:[%s1 + $0x11dc] sm:$0xff]
      %v914 = vld [vmem:[%s1 + $0x11e4] sm:$0xff]
      %v915 = vld [vmem:[%s1 + $0x11ec] sm:$0xff]
      %v916 = vld [vmem:[%s1 + $0x11f4] sm:$0xff]
      %v917 = vld [vmem:[%s1 + $0x11fc] sm:$0xf]
      %v982 = vunpack.c.l.b16 %v214
      %v983 = vunpack.c.h.b16 %v214
      %v984 = vunpack.c.l.b16 %v215
      %v985 = vunpack.c.h.b16 %v215
      %v986 = vunpack.c.l.b16 %v216
      %v987 = vunpack.c.h.b16 %v216
      %v988 = vunpack.c.l.b16 %v217
      %v989 = vunpack.c.h.b16 %v217
      %v990 = vunpack.c.l.b16 %v218
      %v991 = vunpack.c.h.b16 %v218
      %v992 = vunpack.c.l.b16 %v219
      %v993 = vunpack.c.h.b16 %v219
      %v994 = vunpack.c.l.b16 %v220
      %v995 = vunpack.c.h.b16 %v220
      %v996 = vunpack.c.l.b16 %v221
      %v997 = vunpack.c.h.b16 %v221
      %v998 = vunpack.c.l.b16 %v222
      %v999 = vunpack.c.h.b16 %v222
      %v1000 = vunpack.c.l.b16 %v223
      %v1001 = vunpack.c.h.b16 %v223
      %v1002 = vunpack.c.l.b16 %v224
      %v1003 = vunpack.c.h.b16 %v224
      %v1004 = vunpack.c.l.b16 %v225
      %v1005 = vunpack.c.h.b16 %v225
      %v1006 = vunpack.c.l.b16 %v226
      %v1007 = vunpack.c.h.b16 %v226
      %v1008 = vunpack.c.l.b16 %v227
      %v1009 = vunpack.c.h.b16 %v227
      %v1010 = vunpack.c.l.b16 %v228
      %v1011 = vunpack.c.h.b16 %v228
      %v1012 = vunpack.c.l.b16 %v229
      %v1013 = vunpack.c.h.b16 %v229
      %v1014 = vunpack.c.l.b16 %v230
      %v1015 = vunpack.c.h.b16 %v230
      %v1016 = vunpack.c.l.b16 %v231
      %v1017 = vunpack.c.h.b16 %v231
      %v1018 = vunpack.c.l.b16 %v232
      %v1019 = vunpack.c.h.b16 %v232
      %v1020 = vunpack.c.l.b16 %v233
      %v1021 = vunpack.c.h.b16 %v233
      %v1022 = vunpack.c.l.b16 %v234
      %v1023 = vunpack.c.h.b16 %v234
      %v1024 = vunpack.c.l.b16 %v235
      %v1025 = vunpack.c.h.b16 %v235
      %v1026 = vunpack.c.l.b16 %v236
      %v1027 = vunpack.c.h.b16 %v236
      %v1028 = vunpack.c.l.b16 %v237
      %v1029 = vunpack.c.h.b16 %v237
      %v1030 = vunpack.c.l.b16 %v238
      %v1031 = vunpack.c.h.b16 %v238
      %v1032 = vunpack.c.l.b16 %v239
      %v1033 = vunpack.c.h.b16 %v239
      %v1034 = vunpack.c.l.b16 %v240
      %v1035 = vunpack.c.h.b16 %v240
      %v1036 = vunpack.c.l.b16 %v241
      %v1037 = vunpack.c.h.b16 %v241
      %v1038 = vunpack.c.l.b16 %v242
      %v1039 = vunpack.c.h.b16 %v242
      %v1040 = vunpack.c.l.b16 %v243
      %v1041 = vunpack.c.h.b16 %v243
      %v1042 = vunpack.c.l.b16 %v244
      %v1043 = vunpack.c.h.b16 %v244
      %v1044 = vunpack.c.l.b16 %v245
      %v1045 = vunpack.c.h.b16 %v245
      %v1046 = vunpack.c.l.b16 %v246
      %v1047 = vunpack.c.h.b16 %v246
      %v1048 = vunpack.c.l.b16 %v247
      %v1049 = vunpack.c.h.b16 %v247
      %v1050 = vunpack.c.l.b16 %v248
      %v1051 = vunpack.c.h.b16 %v248
      %v1052 = vunpack.c.l.b16 %v249
      %v1053 = vunpack.c.h.b16 %v249
      %v1054 = vunpack.c.l.b16 %v250
      %v1055 = vunpack.c.h.b16 %v250
      %v1056 = vunpack.c.l.b16 %v251
      %v1057 = vunpack.c.h.b16 %v251
      %v1058 = vunpack.c.l.b16 %v252
      %v1059 = vunpack.c.h.b16 %v252
      %v1060 = vunpack.c.l.b16 %v253
      %v1061 = vunpack.c.h.b16 %v253
      %v1062 = vunpack.c.l.b16 %v254
      %v1063 = vunpack.c.h.b16 %v254
      %v1064 = vunpack.c.l.b16 %v255
      %v1065 = vunpack.c.h.b16 %v255
      %v1066 = vunpack.c.l.b16 %v256
      %v1067 = vunpack.c.h.b16 %v256
      %v1068 = vunpack.c.l.b16 %v257
      %v1069 = vunpack.c.h.b16 %v257
      %v1070 = vunpack.c.l.b16 %v258
      %v1071 = vunpack.c.h.b16 %v258
      %v1072 = vunpack.c.l.b16 %v259
      %v1073 = vunpack.c.h.b16 %v259
      %v1074 = vunpack.c.l.b16 %v260
      %v1075 = vunpack.c.h.b16 %v260
      %v1076 = vunpack.c.l.b16 %v261
      %v1077 = vunpack.c.h.b16 %v261
      %v1078 = vunpack.c.l.b16 %v262
      %v1079 = vunpack.c.h.b16 %v262
      %v1080 = vunpack.c.l.b16 %v263
      %v1081 = vunpack.c.h.b16 %v263
      %v1082 = vunpack.c.l.b16 %v264
      %v1083 = vunpack.c.h.b16 %v264
      %v1084 = vunpack.c.l.b16 %v265
      %v1085 = vunpack.c.h.b16 %v265
      %v1086 = vunpack.c.l.b16 %v266
      %v1087 = vunpack.c.h.b16 %v266
      %v1088 = vunpack.c.l.b16 %v267
      %v1089 = vunpack.c.h.b16 %v267
      %v1090 = vunpack.c.l.b16 %v268
      %v1091 = vunpack.c.h.b16 %v268
      %v1092 = vunpack.c.l.b16 %v269
      %v1093 = vunpack.c.h.b16 %v269
      %v1094 = vunpack.c.l.b16 %v270
      %v1095 = vunpack.c.h.b16 %v270
      %v1096 = vunpack.c.l.b16 %v271
      %v1097 = vunpack.c.h.b16 %v271
      %v1098 = vunpack.c.l.b16 %v272
      %v1099 = vunpack.c.h.b16 %v272
      %v1100 = vunpack.c.l.b16 %v273
      %v1101 = vunpack.c.h.b16 %v273
      %v1102 = vunpack.c.l.b16 %v274
      %v1103 = vunpack.c.h.b16 %v274
      %v1104 = vunpack.c.l.b16 %v275
      %v1105 = vunpack.c.h.b16 %v275
      %v1106 = vunpack.c.l.b16 %v276
      %v1107 = vunpack.c.h.b16 %v276
      %v1108 = vunpack.c.l.b16 %v277
      %v1109 = vunpack.c.h.b16 %v277
      %v1110 = vpack.c.b16 %v990, %v982
      %v1111 = vpack.c.b16 %v991, %v983
      %v1112 = vpack.c.b16 %v992, %v984
      %v1113 = vpack.c.b16 %v993, %v985
      %v1114 = vpack.c.b16 %v994, %v986
      %v1115 = vpack.c.b16 %v995, %v987
      %v1116 = vpack.c.b16 %v996, %v988
      %v1117 = vpack.c.b16 %v997, %v989
      %v1118 = vpack.c.b16 %v1006, %v998
      %v1119 = vpack.c.b16 %v1007, %v999
      %v1120 = vpack.c.b16 %v1008, %v1000
      %v1121 = vpack.c.b16 %v1009, %v1001
      %v1122 = vpack.c.b16 %v1010, %v1002
      %v1123 = vpack.c.b16 %v1011, %v1003
      %v1124 = vpack.c.b16 %v1012, %v1004
      %v1125 = vpack.c.b16 %v1013, %v1005
      %v1126 = vpack.c.b16 %v1022, %v1014
      %v1127 = vpack.c.b16 %v1023, %v1015
      %v1128 = vpack.c.b16 %v1024, %v1016
      %v1129 = vpack.c.b16 %v1025, %v1017
      %v1130 = vpack.c.b16 %v1026, %v1018
      %v1131 = vpack.c.b16 %v1027, %v1019
      %v1132 = vpack.c.b16 %v1028, %v1020
      %v1133 = vpack.c.b16 %v1029, %v1021
      %v1134 = vpack.c.b16 %v1038, %v1030
      %v1135 = vpack.c.b16 %v1039, %v1031
      %v1136 = vpack.c.b16 %v1040, %v1032
      %v1137 = vpack.c.b16 %v1041, %v1033
      %v1138 = vpack.c.b16 %v1042, %v1034
      %v1139 = vpack.c.b16 %v1043, %v1035
      %v1140 = vpack.c.b16 %v1044, %v1036
      %v1141 = vpack.c.b16 %v1045, %v1037
      %v1142 = vpack.c.b16 %v1054, %v1046
      %v1143 = vpack.c.b16 %v1055, %v1047
      %v1144 = vpack.c.b16 %v1056, %v1048
      %v1145 = vpack.c.b16 %v1057, %v1049
      %v1146 = vpack.c.b16 %v1058, %v1050
      %v1147 = vpack.c.b16 %v1059, %v1051
      %v1148 = vpack.c.b16 %v1060, %v1052
      %v1149 = vpack.c.b16 %v1061, %v1053
      %v1150 = vpack.c.b16 %v1070, %v1062
      %v1151 = vpack.c.b16 %v1071, %v1063
      %v1152 = vpack.c.b16 %v1072, %v1064
      %v1153 = vpack.c.b16 %v1073, %v1065
      %v1154 = vpack.c.b16 %v1074, %v1066
      %v1155 = vpack.c.b16 %v1075, %v1067
      %v1156 = vpack.c.b16 %v1076, %v1068
      %v1157 = vpack.c.b16 %v1077, %v1069
      %v1158 = vpack.c.b16 %v1086, %v1078
      %v1159 = vpack.c.b16 %v1087, %v1079
      %v1160 = vpack.c.b16 %v1088, %v1080
      %v1161 = vpack.c.b16 %v1089, %v1081
      %v1162 = vpack.c.b16 %v1090, %v1082
      %v1163 = vpack.c.b16 %v1091, %v1083
      %v1164 = vpack.c.b16 %v1092, %v1084
      %v1165 = vpack.c.b16 %v1093, %v1085
      %v1166 = vpack.c.b16 %v1102, %v1094
      %v1167 = vpack.c.b16 %v1103, %v1095
      %v1168 = vpack.c.b16 %v1104, %v1096
      %v1169 = vpack.c.b16 %v1105, %v1097
      %v1170 = vpack.c.b16 %v1106, %v1098
      %v1171 = vpack.c.b16 %v1107, %v1099
      %v1172 = vpack.c.b16 %v1108, %v1100
      %v1173 = vpack.c.b16 %v1109, %v1101
      %v1878 = vunpack.c.l.b16 %v278
      %v1879 = vunpack.c.h.b16 %v278
      %v1880 = vunpack.c.l.b16 %v279
      %v1881 = vunpack.c.h.b16 %v279
      %v1882 = vunpack.c.l.b16 %v280
      %v1883 = vunpack.c.h.b16 %v280
      %v1884 = vunpack.c.l.b16 %v281
      %v1885 = vunpack.c.h.b16 %v281
      %v1886 = vunpack.c.l.b16 %v282
      %v1887 = vunpack.c.l.b16 %v283
      %v1888 = vunpack.c.h.b16 %v283
      %v1889 = vunpack.c.l.b16 %v284
      %v1890 = vunpack.c.h.b16 %v284
      %v1891 = vunpack.c.l.b16 %v285
      %v1892 = vunpack.c.h.b16 %v285
      %v1893 = vunpack.c.l.b16 %v286
      %v1894 = vunpack.c.h.b16 %v286
      %v1895 = vunpack.c.l.b16 %v287
      %v1896 = vunpack.c.l.b16 %v288
      %v1897 = vunpack.c.h.b16 %v288
      %v1898 = vunpack.c.l.b16 %v289
      %v1899 = vunpack.c.h.b16 %v289
      %v1900 = vunpack.c.l.b16 %v290
      %v1901 = vunpack.c.h.b16 %v290
      %v1902 = vunpack.c.l.b16 %v291
      %v1903 = vunpack.c.h.b16 %v291
      %v1904 = vunpack.c.l.b16 %v292
      %v1905 = vunpack.c.l.b16 %v293
      %v1906 = vunpack.c.h.b16 %v293
      %v1907 = vunpack.c.l.b16 %v294
      %v1908 = vunpack.c.h.b16 %v294
      %v1909 = vunpack.c.l.b16 %v295
      %v1910 = vunpack.c.h.b16 %v295
      %v1911 = vunpack.c.l.b16 %v296
      %v1912 = vunpack.c.h.b16 %v296
      %v1913 = vunpack.c.l.b16 %v297
      %v1914 = vunpack.c.l.b16 %v298
      %v1915 = vunpack.c.h.b16 %v298
      %v1916 = vunpack.c.l.b16 %v299
      %v1917 = vunpack.c.h.b16 %v299
      %v1918 = vunpack.c.l.b16 %v300
      %v1919 = vunpack.c.h.b16 %v300
      %v1920 = vunpack.c.l.b16 %v301
      %v1921 = vunpack.c.h.b16 %v301
      %v1922 = vunpack.c.l.b16 %v302
      %v1923 = vunpack.c.l.b16 %v303
      %v1924 = vunpack.c.h.b16 %v303
      %v1925 = vunpack.c.l.b16 %v304
      %v1926 = vunpack.c.h.b16 %v304
      %v1927 = vunpack.c.l.b16 %v305
      %v1928 = vunpack.c.h.b16 %v305
      %v1929 = vunpack.c.l.b16 %v306
      %v1930 = vunpack.c.h.b16 %v306
      %v1931 = vunpack.c.l.b16 %v307
      %v1932 = vunpack.c.l.b16 %v308
      %v1933 = vunpack.c.h.b16 %v308
      %v1934 = vunpack.c.l.b16 %v309
      %v1935 = vunpack.c.h.b16 %v309
      %v1936 = vunpack.c.l.b16 %v310
      %v1937 = vunpack.c.h.b16 %v310
      %v1938 = vunpack.c.l.b16 %v311
      %v1939 = vunpack.c.h.b16 %v311
      %v1940 = vunpack.c.l.b16 %v312
      %v1941 = vunpack.c.l.b16 %v313
      %v1942 = vunpack.c.h.b16 %v313
      %v1943 = vunpack.c.l.b16 %v314
      %v1944 = vunpack.c.h.b16 %v314
      %v1945 = vunpack.c.l.b16 %v315
      %v1946 = vunpack.c.h.b16 %v315
      %v1947 = vunpack.c.l.b16 %v316
      %v1948 = vunpack.c.h.b16 %v316
      %v1949 = vunpack.c.l.b16 %v317
      %v1950 = vunpack.c.l.b16 %v318
      %v1951 = vunpack.c.h.b16 %v318
      %v1952 = vunpack.c.l.b16 %v319
      %v1953 = vunpack.c.h.b16 %v319
      %v1954 = vunpack.c.l.b16 %v320
      %v1955 = vunpack.c.h.b16 %v320
      %v1956 = vunpack.c.l.b16 %v321
      %v1957 = vunpack.c.h.b16 %v321
      %v1958 = vunpack.c.l.b16 %v322
      %v1959 = vunpack.c.l.b16 %v323
      %v1960 = vunpack.c.h.b16 %v323
      %v1961 = vunpack.c.l.b16 %v324
      %v1962 = vunpack.c.h.b16 %v324
      %v1963 = vunpack.c.l.b16 %v325
      %v1964 = vunpack.c.h.b16 %v325
      %v1965 = vunpack.c.l.b16 %v326
      %v1966 = vunpack.c.h.b16 %v326
      %v1967 = vunpack.c.l.b16 %v327
      %v1968 = vunpack.c.l.b16 %v328
      %v1969 = vunpack.c.h.b16 %v328
      %v1970 = vunpack.c.l.b16 %v329
      %v1971 = vunpack.c.h.b16 %v329
      %v1972 = vunpack.c.l.b16 %v330
      %v1973 = vunpack.c.h.b16 %v330
      %v1974 = vunpack.c.l.b16 %v331
      %v1975 = vunpack.c.h.b16 %v331
      %v1976 = vunpack.c.l.b16 %v332
      %v1977 = vunpack.c.l.b16 %v333
      %v1978 = vunpack.c.h.b16 %v333
      %v1979 = vunpack.c.l.b16 %v334
      %v1980 = vunpack.c.h.b16 %v334
      %v1981 = vunpack.c.l.b16 %v335
      %v1982 = vunpack.c.h.b16 %v335
      %v1983 = vunpack.c.l.b16 %v336
      %v1984 = vunpack.c.h.b16 %v336
      %v1985 = vunpack.c.l.b16 %v337
      %v1986 = vunpack.c.l.b16 %v338
      %v1987 = vunpack.c.h.b16 %v338
      %v1988 = vunpack.c.l.b16 %v339
      %v1989 = vunpack.c.h.b16 %v339
      %v1990 = vunpack.c.l.b16 %v340
      %v1991 = vunpack.c.h.b16 %v340
      %v1992 = vunpack.c.l.b16 %v341
      %v1993 = vunpack.c.h.b16 %v341
      %v1994 = vunpack.c.l.b16 %v342
      %v1995 = vunpack.c.l.b16 %v343
      %v1996 = vunpack.c.h.b16 %v343
      %v1997 = vunpack.c.l.b16 %v344
      %v1998 = vunpack.c.h.b16 %v344
      %v1999 = vunpack.c.l.b16 %v345
      %v2000 = vunpack.c.h.b16 %v345
      %v2001 = vunpack.c.l.b16 %v346
      %v2002 = vunpack.c.h.b16 %v346
      %v2003 = vunpack.c.l.b16 %v347
      %v2004 = vunpack.c.l.b16 %v348
      %v2005 = vunpack.c.h.b16 %v348
      %v2006 = vunpack.c.l.b16 %v349
      %v2007 = vunpack.c.h.b16 %v349
      %v2008 = vunpack.c.l.b16 %v350
      %v2009 = vunpack.c.h.b16 %v350
      %v2010 = vunpack.c.l.b16 %v351
      %v2011 = vunpack.c.h.b16 %v351
      %v2012 = vunpack.c.l.b16 %v352
      %v2013 = vunpack.c.l.b16 %v353
      %v2014 = vunpack.c.h.b16 %v353
      %v2015 = vunpack.c.l.b16 %v354
      %v2016 = vunpack.c.h.b16 %v354
      %v2017 = vunpack.c.l.b16 %v355
      %v2018 = vunpack.c.h.b16 %v355
      %v2019 = vunpack.c.l.b16 %v356
      %v2020 = vunpack.c.h.b16 %v356
      %v2021 = vunpack.c.l.b16 %v357
      %v2022 = vunpack.c.l.b16 %v358
      %v2023 = vunpack.c.h.b16 %v358
      %v2024 = vunpack.c.l.b16 %v359
      %v2025 = vunpack.c.h.b16 %v359
      %v2026 = vunpack.c.l.b16 %v360
      %v2027 = vunpack.c.h.b16 %v360
      %v2028 = vunpack.c.l.b16 %v361
      %v2029 = vunpack.c.h.b16 %v361
      %v2030 = vunpack.c.l.b16 %v362
      %v2031 = vunpack.c.l.b16 %v363
      %v2032 = vunpack.c.h.b16 %v363
      %v2033 = vunpack.c.l.b16 %v364
      %v2034 = vunpack.c.h.b16 %v364
      %v2035 = vunpack.c.l.b16 %v365
      %v2036 = vunpack.c.h.b16 %v365
      %v2037 = vunpack.c.l.b16 %v366
      %v2038 = vunpack.c.h.b16 %v366
      %v2039 = vunpack.c.l.b16 %v367
      %v2040 = vunpack.c.l.b16 %v368
      %v2041 = vunpack.c.h.b16 %v368
      %v2042 = vunpack.c.l.b16 %v369
      %v2043 = vunpack.c.h.b16 %v369
      %v2044 = vunpack.c.l.b16 %v370
      %v2045 = vunpack.c.h.b16 %v370
      %v2046 = vunpack.c.l.b16 %v371
      %v2047 = vunpack.c.h.b16 %v371
      %v2048 = vunpack.c.l.b16 %v372
      %v2049 = vunpack.c.l.b16 %v373
      %v2050 = vunpack.c.h.b16 %v373
      %v2051 = vunpack.c.l.b16 %v374
      %v2052 = vunpack.c.h.b16 %v374
      %v2053 = vunpack.c.l.b16 %v375
      %v2054 = vunpack.c.h.b16 %v375
      %v2055 = vunpack.c.l.b16 %v376
      %v2056 = vunpack.c.h.b16 %v376
      %v2057 = vunpack.c.l.b16 %v377
      %v2058 = vunpack.c.l.b16 %v378
      %v2059 = vunpack.c.h.b16 %v378
      %v2060 = vunpack.c.l.b16 %v379
      %v2061 = vunpack.c.h.b16 %v379
      %v2062 = vunpack.c.l.b16 %v380
      %v2063 = vunpack.c.h.b16 %v380
      %v2064 = vunpack.c.l.b16 %v381
      %v2065 = vunpack.c.h.b16 %v381
      %v2066 = vunpack.c.l.b16 %v382
      %v2067 = vunpack.c.l.b16 %v383
      %v2068 = vunpack.c.h.b16 %v383
      %v2069 = vunpack.c.l.b16 %v384
      %v2070 = vunpack.c.h.b16 %v384
      %v2071 = vunpack.c.l.b16 %v385
      %v2072 = vunpack.c.h.b16 %v385
      %v2073 = vunpack.c.l.b16 %v386
      %v2074 = vunpack.c.h.b16 %v386
      %v2075 = vunpack.c.l.b16 %v387
      %v2076 = vunpack.c.l.b16 %v388
      %v2077 = vunpack.c.h.b16 %v388
      %v2078 = vunpack.c.l.b16 %v389
      %v2079 = vunpack.c.h.b16 %v389
      %v2080 = vunpack.c.l.b16 %v390
      %v2081 = vunpack.c.h.b16 %v390
      %v2082 = vunpack.c.l.b16 %v391
      %v2083 = vunpack.c.h.b16 %v391
      %v2084 = vunpack.c.l.b16 %v392
      %v2085 = vunpack.c.l.b16 %v393
      %v2086 = vunpack.c.h.b16 %v393
      %v2087 = vunpack.c.l.b16 %v394
      %v2088 = vunpack.c.h.b16 %v394
      %v2089 = vunpack.c.l.b16 %v395
      %v2090 = vunpack.c.h.b16 %v395
      %v2091 = vunpack.c.l.b16 %v396
      %v2092 = vunpack.c.h.b16 %v396
      %v2093 = vunpack.c.l.b16 %v397
      %v2094 = vunpack.c.l.b16 %v398
      %v2095 = vunpack.c.h.b16 %v398
      %v2096 = vunpack.c.l.b16 %v399
      %v2097 = vunpack.c.h.b16 %v399
      %v2098 = vunpack.c.l.b16 %v400
      %v2099 = vunpack.c.h.b16 %v400
      %v2100 = vunpack.c.l.b16 %v401
      %v2101 = vunpack.c.h.b16 %v401
      %v2102 = vunpack.c.l.b16 %v402
      %v2103 = vunpack.c.l.b16 %v403
      %v2104 = vunpack.c.h.b16 %v403
      %v2105 = vunpack.c.l.b16 %v404
      %v2106 = vunpack.c.h.b16 %v404
      %v2107 = vunpack.c.l.b16 %v405
      %v2108 = vunpack.c.h.b16 %v405
      %v2109 = vunpack.c.l.b16 %v406
      %v2110 = vunpack.c.h.b16 %v406
      %v2111 = vunpack.c.l.b16 %v407
      %v2112 = vunpack.c.l.b16 %v408
      %v2113 = vunpack.c.h.b16 %v408
      %v2114 = vunpack.c.l.b16 %v409
      %v2115 = vunpack.c.h.b16 %v409
      %v2116 = vunpack.c.l.b16 %v410
      %v2117 = vunpack.c.h.b16 %v410
      %v2118 = vunpack.c.l.b16 %v411
      %v2119 = vunpack.c.h.b16 %v411
      %v2120 = vunpack.c.l.b16 %v412
      %v2121 = vunpack.c.l.b16 %v413
      %v2122 = vunpack.c.h.b16 %v413
      %v2123 = vunpack.c.l.b16 %v414
      %v2124 = vunpack.c.h.b16 %v414
      %v2125 = vunpack.c.l.b16 %v415
      %v2126 = vunpack.c.h.b16 %v415
      %v2127 = vunpack.c.l.b16 %v416
      %v2128 = vunpack.c.h.b16 %v416
      %v2129 = vunpack.c.l.b16 %v417
      %v2130 = vunpack.c.l.b16 %v418
      %v2131 = vunpack.c.h.b16 %v418
      %v2132 = vunpack.c.l.b16 %v419
      %v2133 = vunpack.c.h.b16 %v419
      %v2134 = vunpack.c.l.b16 %v420
      %v2135 = vunpack.c.h.b16 %v420
      %v2136 = vunpack.c.l.b16 %v421
      %v2137 = vunpack.c.h.b16 %v421
      %v2138 = vunpack.c.l.b16 %v422
      %v2139 = vunpack.c.l.b16 %v423
      %v2140 = vunpack.c.h.b16 %v423
      %v2141 = vunpack.c.l.b16 %v424
      %v2142 = vunpack.c.h.b16 %v424
      %v2143 = vunpack.c.l.b16 %v425
      %v2144 = vunpack.c.h.b16 %v425
      %v2145 = vunpack.c.l.b16 %v426
      %v2146 = vunpack.c.h.b16 %v426
      %v2147 = vunpack.c.l.b16 %v427
      %v2148 = vunpack.c.l.b16 %v428
      %v2149 = vunpack.c.h.b16 %v428
      %v2150 = vunpack.c.l.b16 %v429
      %v2151 = vunpack.c.h.b16 %v429
      %v2152 = vunpack.c.l.b16 %v430
      %v2153 = vunpack.c.h.b16 %v430
      %v2154 = vunpack.c.l.b16 %v431
      %v2155 = vunpack.c.h.b16 %v431
      %v2156 = vunpack.c.l.b16 %v432
      %v2157 = vunpack.c.l.b16 %v433
      %v2158 = vunpack.c.h.b16 %v433
      %v2159 = vunpack.c.l.b16 %v434
      %v2160 = vunpack.c.h.b16 %v434
      %v2161 = vunpack.c.l.b16 %v435
      %v2162 = vunpack.c.h.b16 %v435
      %v2163 = vunpack.c.l.b16 %v436
      %v2164 = vunpack.c.h.b16 %v436
      %v2165 = vunpack.c.l.b16 %v437
      %v2166 = vunpack.c.l.b16 %v438
      %v2167 = vunpack.c.h.b16 %v438
      %v2168 = vunpack.c.l.b16 %v439
      %v2169 = vunpack.c.h.b16 %v439
      %v2170 = vunpack.c.l.b16 %v440
      %v2171 = vunpack.c.h.b16 %v440
      %v2172 = vunpack.c.l.b16 %v441
      %v2173 = vunpack.c.h.b16 %v441
      %v2174 = vunpack.c.l.b16 %v442
      %v2175 = vunpack.c.l.b16 %v443
      %v2176 = vunpack.c.h.b16 %v443
      %v2177 = vunpack.c.l.b16 %v444
      %v2178 = vunpack.c.h.b16 %v444
      %v2179 = vunpack.c.l.b16 %v445
      %v2180 = vunpack.c.h.b16 %v445
      %v2181 = vunpack.c.l.b16 %v446
      %v2182 = vunpack.c.h.b16 %v446
      %v2183 = vunpack.c.l.b16 %v447
      %v2184 = vunpack.c.l.b16 %v448
      %v2185 = vunpack.c.h.b16 %v448
      %v2186 = vunpack.c.l.b16 %v449
      %v2187 = vunpack.c.h.b16 %v449
      %v2188 = vunpack.c.l.b16 %v450
      %v2189 = vunpack.c.h.b16 %v450
      %v2190 = vunpack.c.l.b16 %v451
      %v2191 = vunpack.c.h.b16 %v451
      %v2192 = vunpack.c.l.b16 %v452
      %v2193 = vunpack.c.l.b16 %v453
      %v2194 = vunpack.c.h.b16 %v453
      %v2195 = vunpack.c.l.b16 %v454
      %v2196 = vunpack.c.h.b16 %v454
      %v2197 = vunpack.c.l.b16 %v455
      %v2198 = vunpack.c.h.b16 %v455
      %v2199 = vunpack.c.l.b16 %v456
      %v2200 = vunpack.c.h.b16 %v456
      %v2201 = vunpack.c.l.b16 %v457
      %v2202 = vunpack.c.l.b16 %v458
      %v2203 = vunpack.c.h.b16 %v458
      %v2204 = vunpack.c.l.b16 %v459
      %v2205 = vunpack.c.h.b16 %v459
      %v2206 = vunpack.c.l.b16 %v460
      %v2207 = vunpack.c.h.b16 %v460
      %v2208 = vunpack.c.l.b16 %v461
      %v2209 = vunpack.c.h.b16 %v461
      %v2210 = vunpack.c.l.b16 %v462
      %v2211 = vunpack.c.l.b16 %v463
      %v2212 = vunpack.c.h.b16 %v463
      %v2213 = vunpack.c.l.b16 %v464
      %v2214 = vunpack.c.h.b16 %v464
      %v2215 = vunpack.c.l.b16 %v465
      %v2216 = vunpack.c.h.b16 %v465
      %v2217 = vunpack.c.l.b16 %v466
      %v2218 = vunpack.c.h.b16 %v466
      %v2219 = vunpack.c.l.b16 %v467
      %v2220 = vunpack.c.l.b16 %v468
      %v2221 = vunpack.c.h.b16 %v468
      %v2222 = vunpack.c.l.b16 %v469
      %v2223 = vunpack.c.h.b16 %v469
      %v2224 = vunpack.c.l.b16 %v470
      %v2225 = vunpack.c.h.b16 %v470
      %v2226 = vunpack.c.l.b16 %v471
      %v2227 = vunpack.c.h.b16 %v471
      %v2228 = vunpack.c.l.b16 %v472
      %v2229 = vunpack.c.l.b16 %v473
      %v2230 = vunpack.c.h.b16 %v473
      %v2231 = vunpack.c.l.b16 %v474
      %v2232 = vunpack.c.h.b16 %v474
      %v2233 = vunpack.c.l.b16 %v475
      %v2234 = vunpack.c.h.b16 %v475
      %v2235 = vunpack.c.l.b16 %v476
      %v2236 = vunpack.c.h.b16 %v476
      %v2237 = vunpack.c.l.b16 %v477
      %v2238 = vunpack.c.l.b16 %v478
      %v2239 = vunpack.c.h.b16 %v478
      %v2240 = vunpack.c.l.b16 %v479
      %v2241 = vunpack.c.h.b16 %v479
      %v2242 = vunpack.c.l.b16 %v480
      %v2243 = vunpack.c.h.b16 %v480
      %v2244 = vunpack.c.l.b16 %v481
      %v2245 = vunpack.c.h.b16 %v481
      %v2246 = vunpack.c.l.b16 %v482
      %v2247 = vunpack.c.l.b16 %v483
      %v2248 = vunpack.c.h.b16 %v483
      %v2249 = vunpack.c.l.b16 %v484
      %v2250 = vunpack.c.h.b16 %v484
      %v2251 = vunpack.c.l.b16 %v485
      %v2252 = vunpack.c.h.b16 %v485
      %v2253 = vunpack.c.l.b16 %v486
      %v2254 = vunpack.c.h.b16 %v486
      %v2255 = vunpack.c.l.b16 %v487
      %v2256 = vunpack.c.l.b16 %v488
      %v2257 = vunpack.c.h.b16 %v488
      %v2258 = vunpack.c.l.b16 %v489
      %v2259 = vunpack.c.h.b16 %v489
      %v2260 = vunpack.c.l.b16 %v490
      %v2261 = vunpack.c.h.b16 %v490
      %v2262 = vunpack.c.l.b16 %v491
      %v2263 = vunpack.c.h.b16 %v491
      %v2264 = vunpack.c.l.b16 %v492
      %v2265 = vunpack.c.l.b16 %v493
      %v2266 = vunpack.c.h.b16 %v493
      %v2267 = vunpack.c.l.b16 %v494
      %v2268 = vunpack.c.h.b16 %v494
      %v2269 = vunpack.c.l.b16 %v495
      %v2270 = vunpack.c.h.b16 %v495
      %v2271 = vunpack.c.l.b16 %v496
      %v2272 = vunpack.c.h.b16 %v496
      %v2273 = vunpack.c.l.b16 %v497
      %v2274 = vunpack.c.l.b16 %v498
      %v2275 = vunpack.c.h.b16 %v498
      %v2276 = vunpack.c.l.b16 %v499
      %v2277 = vunpack.c.h.b16 %v499
      %v2278 = vunpack.c.l.b16 %v500
      %v2279 = vunpack.c.h.b16 %v500
      %v2280 = vunpack.c.l.b16 %v501
      %v2281 = vunpack.c.h.b16 %v501
      %v2282 = vunpack.c.l.b16 %v502
      %v2283 = vunpack.c.l.b16 %v503
      %v2284 = vunpack.c.h.b16 %v503
      %v2285 = vunpack.c.l.b16 %v504
      %v2286 = vunpack.c.h.b16 %v504
      %v2287 = vunpack.c.l.b16 %v505
      %v2288 = vunpack.c.h.b16 %v505
      %v2289 = vunpack.c.l.b16 %v506
      %v2290 = vunpack.c.h.b16 %v506
      %v2291 = vunpack.c.l.b16 %v507
      %v2292 = vunpack.c.l.b16 %v508
      %v2293 = vunpack.c.h.b16 %v508
      %v2294 = vunpack.c.l.b16 %v509
      %v2295 = vunpack.c.h.b16 %v509
      %v2296 = vunpack.c.l.b16 %v510
      %v2297 = vunpack.c.h.b16 %v510
      %v2298 = vunpack.c.l.b16 %v511
      %v2299 = vunpack.c.h.b16 %v511
      %v2300 = vunpack.c.l.b16 %v512
      %v2301 = vunpack.c.l.b16 %v513
      %v2302 = vunpack.c.h.b16 %v513
      %v2303 = vunpack.c.l.b16 %v514
      %v2304 = vunpack.c.h.b16 %v514
      %v2305 = vunpack.c.l.b16 %v515
      %v2306 = vunpack.c.h.b16 %v515
      %v2307 = vunpack.c.l.b16 %v516
      %v2308 = vunpack.c.h.b16 %v516
      %v2309 = vunpack.c.l.b16 %v517
      %v2310 = vunpack.c.l.b16 %v518
      %v2311 = vunpack.c.h.b16 %v518
      %v2312 = vunpack.c.l.b16 %v519
      %v2313 = vunpack.c.h.b16 %v519
      %v2314 = vunpack.c.l.b16 %v520
      %v2315 = vunpack.c.h.b16 %v520
      %v2316 = vunpack.c.l.b16 %v521
      %v2317 = vunpack.c.h.b16 %v521
      %v2318 = vunpack.c.l.b16 %v522
      %v2319 = vunpack.c.l.b16 %v523
      %v2320 = vunpack.c.h.b16 %v523
      %v2321 = vunpack.c.l.b16 %v524
      %v2322 = vunpack.c.h.b16 %v524
      %v2323 = vunpack.c.l.b16 %v525
      %v2324 = vunpack.c.h.b16 %v525
      %v2325 = vunpack.c.l.b16 %v526
      %v2326 = vunpack.c.h.b16 %v526
      %v2327 = vunpack.c.l.b16 %v527
      %v2328 = vunpack.c.l.b16 %v528
      %v2329 = vunpack.c.h.b16 %v528
      %v2330 = vunpack.c.l.b16 %v529
      %v2331 = vunpack.c.h.b16 %v529
      %v2332 = vunpack.c.l.b16 %v530
      %v2333 = vunpack.c.h.b16 %v530
      %v2334 = vunpack.c.l.b16 %v531
      %v2335 = vunpack.c.h.b16 %v531
      %v2336 = vunpack.c.l.b16 %v532
      %v2337 = vunpack.c.l.b16 %v533
      %v2338 = vunpack.c.h.b16 %v533
      %v2339 = vunpack.c.l.b16 %v534
      %v2340 = vunpack.c.h.b16 %v534
      %v2341 = vunpack.c.l.b16 %v535
      %v2342 = vunpack.c.h.b16 %v535
      %v2343 = vunpack.c.l.b16 %v536
      %v2344 = vunpack.c.h.b16 %v536
      %v2345 = vunpack.c.l.b16 %v537
      %v2346 = vunpack.c.l.b16 %v538
      %v2347 = vunpack.c.h.b16 %v538
      %v2348 = vunpack.c.l.b16 %v539
      %v2349 = vunpack.c.h.b16 %v539
      %v2350 = vunpack.c.l.b16 %v540
      %v2351 = vunpack.c.h.b16 %v540
      %v2352 = vunpack.c.l.b16 %v541
      %v2353 = vunpack.c.h.b16 %v541
      %v2354 = vunpack.c.l.b16 %v542
      %v2355 = vunpack.c.l.b16 %v543
      %v2356 = vunpack.c.h.b16 %v543
      %v2357 = vunpack.c.l.b16 %v544
      %v2358 = vunpack.c.h.b16 %v544
      %v2359 = vunpack.c.l.b16 %v545
      %v2360 = vunpack.c.h.b16 %v545
      %v2361 = vunpack.c.l.b16 %v546
      %v2362 = vunpack.c.h.b16 %v546
      %v2363 = vunpack.c.l.b16 %v547
      %v2364 = vunpack.c.l.b16 %v548
      %v2365 = vunpack.c.h.b16 %v548
      %v2366 = vunpack.c.l.b16 %v549
      %v2367 = vunpack.c.h.b16 %v549
      %v2368 = vunpack.c.l.b16 %v550
      %v2369 = vunpack.c.h.b16 %v550
      %v2370 = vunpack.c.l.b16 %v551
      %v2371 = vunpack.c.h.b16 %v551
      %v2372 = vunpack.c.l.b16 %v552
      %v2373 = vunpack.c.l.b16 %v553
      %v2374 = vunpack.c.h.b16 %v553
      %v2375 = vunpack.c.l.b16 %v554
      %v2376 = vunpack.c.h.b16 %v554
      %v2377 = vunpack.c.l.b16 %v555
      %v2378 = vunpack.c.h.b16 %v555
      %v2379 = vunpack.c.l.b16 %v556
      %v2380 = vunpack.c.h.b16 %v556
      %v2381 = vunpack.c.l.b16 %v557
      %v2382 = vunpack.c.l.b16 %v558
      %v2383 = vunpack.c.h.b16 %v558
      %v2384 = vunpack.c.l.b16 %v559
      %v2385 = vunpack.c.h.b16 %v559
      %v2386 = vunpack.c.l.b16 %v560
      %v2387 = vunpack.c.h.b16 %v560
      %v2388 = vunpack.c.l.b16 %v561
      %v2389 = vunpack.c.h.b16 %v561
      %v2390 = vunpack.c.l.b16 %v562
      %v2391 = vunpack.c.l.b16 %v563
      %v2392 = vunpack.c.h.b16 %v563
      %v2393 = vunpack.c.l.b16 %v564
      %v2394 = vunpack.c.h.b16 %v564
      %v2395 = vunpack.c.l.b16 %v565
      %v2396 = vunpack.c.h.b16 %v565
      %v2397 = vunpack.c.l.b16 %v566
      %v2398 = vunpack.c.h.b16 %v566
      %v2399 = vunpack.c.l.b16 %v567
      %v2400 = vunpack.c.l.b16 %v568
      %v2401 = vunpack.c.h.b16 %v568
      %v2402 = vunpack.c.l.b16 %v569
      %v2403 = vunpack.c.h.b16 %v569
      %v2404 = vunpack.c.l.b16 %v570
      %v2405 = vunpack.c.h.b16 %v570
      %v2406 = vunpack.c.l.b16 %v571
      %v2407 = vunpack.c.h.b16 %v571
      %v2408 = vunpack.c.l.b16 %v572
      %v2409 = vunpack.c.l.b16 %v573
      %v2410 = vunpack.c.h.b16 %v573
      %v2411 = vunpack.c.l.b16 %v574
      %v2412 = vunpack.c.h.b16 %v574
      %v2413 = vunpack.c.l.b16 %v575
      %v2414 = vunpack.c.h.b16 %v575
      %v2415 = vunpack.c.l.b16 %v576
      %v2416 = vunpack.c.h.b16 %v576
      %v2417 = vunpack.c.l.b16 %v577
      %v2418 = vunpack.c.l.b16 %v578
      %v2419 = vunpack.c.h.b16 %v578
      %v2420 = vunpack.c.l.b16 %v579
      %v2421 = vunpack.c.h.b16 %v579
      %v2422 = vunpack.c.l.b16 %v580
      %v2423 = vunpack.c.h.b16 %v580
      %v2424 = vunpack.c.l.b16 %v581
      %v2425 = vunpack.c.h.b16 %v581
      %v2426 = vunpack.c.l.b16 %v582
      %v2427 = vunpack.c.l.b16 %v583
      %v2428 = vunpack.c.h.b16 %v583
      %v2429 = vunpack.c.l.b16 %v584
      %v2430 = vunpack.c.h.b16 %v584
      %v2431 = vunpack.c.l.b16 %v585
      %v2432 = vunpack.c.h.b16 %v585
      %v2433 = vunpack.c.l.b16 %v586
      %v2434 = vunpack.c.h.b16 %v586
      %v2435 = vunpack.c.l.b16 %v587
      %v2436 = vunpack.c.l.b16 %v588
      %v2437 = vunpack.c.h.b16 %v588
      %v2438 = vunpack.c.l.b16 %v589
      %v2439 = vunpack.c.h.b16 %v589
      %v2440 = vunpack.c.l.b16 %v590
      %v2441 = vunpack.c.h.b16 %v590
      %v2442 = vunpack.c.l.b16 %v591
      %v2443 = vunpack.c.h.b16 %v591
      %v2444 = vunpack.c.l.b16 %v592
      %v2445 = vunpack.c.l.b16 %v593
      %v2446 = vunpack.c.h.b16 %v593
      %v2447 = vunpack.c.l.b16 %v594
      %v2448 = vunpack.c.h.b16 %v594
      %v2449 = vunpack.c.l.b16 %v595
      %v2450 = vunpack.c.h.b16 %v595
      %v2451 = vunpack.c.l.b16 %v596
      %v2452 = vunpack.c.h.b16 %v596
      %v2453 = vunpack.c.l.b16 %v597
      %v2454 = vunpack.c.l.b16 %v598
      %v2455 = vunpack.c.h.b16 %v598
      %v2456 = vunpack.c.l.b16 %v599
      %v2457 = vunpack.c.h.b16 %v599
      %v2458 = vunpack.c.l.b16 %v600
      %v2459 = vunpack.c.h.b16 %v600
      %v2460 = vunpack.c.l.b16 %v601
      %v2461 = vunpack.c.h.b16 %v601
      %v2462 = vunpack.c.l.b16 %v602
      %v2463 = vunpack.c.l.b16 %v603
      %v2464 = vunpack.c.h.b16 %v603
      %v2465 = vunpack.c.l.b16 %v604
      %v2466 = vunpack.c.h.b16 %v604
      %v2467 = vunpack.c.l.b16 %v605
      %v2468 = vunpack.c.h.b16 %v605
      %v2469 = vunpack.c.l.b16 %v606
      %v2470 = vunpack.c.h.b16 %v606
      %v2471 = vunpack.c.l.b16 %v607
      %v2472 = vunpack.c.l.b16 %v608
      %v2473 = vunpack.c.h.b16 %v608
      %v2474 = vunpack.c.l.b16 %v609
      %v2475 = vunpack.c.h.b16 %v609
      %v2476 = vunpack.c.l.b16 %v610
      %v2477 = vunpack.c.h.b16 %v610
      %v2478 = vunpack.c.l.b16 %v611
      %v2479 = vunpack.c.h.b16 %v611
      %v2480 = vunpack.c.l.b16 %v612
      %v2481 = vunpack.c.l.b16 %v613
      %v2482 = vunpack.c.h.b16 %v613
      %v2483 = vunpack.c.l.b16 %v614
      %v2484 = vunpack.c.h.b16 %v614
      %v2485 = vunpack.c.l.b16 %v615
      %v2486 = vunpack.c.h.b16 %v615
      %v2487 = vunpack.c.l.b16 %v616
      %v2488 = vunpack.c.h.b16 %v616
      %v2489 = vunpack.c.l.b16 %v617
      %v2490 = vunpack.c.l.b16 %v618
      %v2491 = vunpack.c.h.b16 %v618
      %v2492 = vunpack.c.l.b16 %v619
      %v2493 = vunpack.c.h.b16 %v619
      %v2494 = vunpack.c.l.b16 %v620
      %v2495 = vunpack.c.h.b16 %v620
      %v2496 = vunpack.c.l.b16 %v621
      %v2497 = vunpack.c.h.b16 %v621
      %v2498 = vunpack.c.l.b16 %v622
      %v2499 = vunpack.c.l.b16 %v623
      %v2500 = vunpack.c.h.b16 %v623
      %v2501 = vunpack.c.l.b16 %v624
      %v2502 = vunpack.c.h.b16 %v624
      %v2503 = vunpack.c.l.b16 %v625
      %v2504 = vunpack.c.h.b16 %v625
      %v2505 = vunpack.c.l.b16 %v626
      %v2506 = vunpack.c.h.b16 %v626
      %v2507 = vunpack.c.l.b16 %v627
      %v2508 = vunpack.c.l.b16 %v628
      %v2509 = vunpack.c.h.b16 %v628
      %v2510 = vunpack.c.l.b16 %v629
      %v2511 = vunpack.c.h.b16 %v629
      %v2512 = vunpack.c.l.b16 %v630
      %v2513 = vunpack.c.h.b16 %v630
      %v2514 = vunpack.c.l.b16 %v631
      %v2515 = vunpack.c.h.b16 %v631
      %v2516 = vunpack.c.l.b16 %v632
      %v2517 = vunpack.c.l.b16 %v633
      %v2518 = vunpack.c.h.b16 %v633
      %v2519 = vunpack.c.l.b16 %v634
      %v2520 = vunpack.c.h.b16 %v634
      %v2521 = vunpack.c.l.b16 %v635
      %v2522 = vunpack.c.h.b16 %v635
      %v2523 = vunpack.c.l.b16 %v636
      %v2524 = vunpack.c.h.b16 %v636
      %v2525 = vunpack.c.l.b16 %v637
      %v2526 = vunpack.c.l.b16 %v638
      %v2527 = vunpack.c.h.b16 %v638
      %v2528 = vunpack.c.l.b16 %v639
      %v2529 = vunpack.c.h.b16 %v639
      %v2530 = vunpack.c.l.b16 %v640
      %v2531 = vunpack.c.h.b16 %v640
      %v2532 = vunpack.c.l.b16 %v641
      %v2533 = vunpack.c.h.b16 %v641
      %v2534 = vunpack.c.l.b16 %v642
      %v2535 = vunpack.c.l.b16 %v643
      %v2536 = vunpack.c.h.b16 %v643
      %v2537 = vunpack.c.l.b16 %v644
      %v2538 = vunpack.c.h.b16 %v644
      %v2539 = vunpack.c.l.b16 %v645
      %v2540 = vunpack.c.h.b16 %v645
      %v2541 = vunpack.c.l.b16 %v646
      %v2542 = vunpack.c.h.b16 %v646
      %v2543 = vunpack.c.l.b16 %v647
      %v2544 = vunpack.c.l.b16 %v648
      %v2545 = vunpack.c.h.b16 %v648
      %v2546 = vunpack.c.l.b16 %v649
      %v2547 = vunpack.c.h.b16 %v649
      %v2548 = vunpack.c.l.b16 %v650
      %v2549 = vunpack.c.h.b16 %v650
      %v2550 = vunpack.c.l.b16 %v651
      %v2551 = vunpack.c.h.b16 %v651
      %v2552 = vunpack.c.l.b16 %v652
      %v2553 = vunpack.c.l.b16 %v653
      %v2554 = vunpack.c.h.b16 %v653
      %v2555 = vunpack.c.l.b16 %v654
      %v2556 = vunpack.c.h.b16 %v654
      %v2557 = vunpack.c.l.b16 %v655
      %v2558 = vunpack.c.h.b16 %v655
      %v2559 = vunpack.c.l.b16 %v656
      %v2560 = vunpack.c.h.b16 %v656
      %v2561 = vunpack.c.l.b16 %v657
      %v2562 = vunpack.c.l.b16 %v658
      %v2563 = vunpack.c.h.b16 %v658
      %v2564 = vunpack.c.l.b16 %v659
      %v2565 = vunpack.c.h.b16 %v659
      %v2566 = vunpack.c.l.b16 %v660
      %v2567 = vunpack.c.h.b16 %v660
      %v2568 = vunpack.c.l.b16 %v661
      %v2569 = vunpack.c.h.b16 %v661
      %v2570 = vunpack.c.l.b16 %v662
      %v2571 = vunpack.c.l.b16 %v663
      %v2572 = vunpack.c.h.b16 %v663
      %v2573 = vunpack.c.l.b16 %v664
      %v2574 = vunpack.c.h.b16 %v664
      %v2575 = vunpack.c.l.b16 %v665
      %v2576 = vunpack.c.h.b16 %v665
      %v2577 = vunpack.c.l.b16 %v666
      %v2578 = vunpack.c.h.b16 %v666
      %v2579 = vunpack.c.l.b16 %v667
      %v2580 = vunpack.c.l.b16 %v668
      %v2581 = vunpack.c.h.b16 %v668
      %v2582 = vunpack.c.l.b16 %v669
      %v2583 = vunpack.c.h.b16 %v669
      %v2584 = vunpack.c.l.b16 %v670
      %v2585 = vunpack.c.h.b16 %v670
      %v2586 = vunpack.c.l.b16 %v671
      %v2587 = vunpack.c.h.b16 %v671
      %v2588 = vunpack.c.l.b16 %v672
      %v2589 = vunpack.c.l.b16 %v673
      %v2590 = vunpack.c.h.b16 %v673
      %v2591 = vunpack.c.l.b16 %v674
      %v2592 = vunpack.c.h.b16 %v674
      %v2593 = vunpack.c.l.b16 %v675
      %v2594 = vunpack.c.h.b16 %v675
      %v2595 = vunpack.c.l.b16 %v676
      %v2596 = vunpack.c.h.b16 %v676
      %v2597 = vunpack.c.l.b16 %v677
      %v2598 = vunpack.c.l.b16 %v678
      %v2599 = vunpack.c.h.b16 %v678
      %v2600 = vunpack.c.l.b16 %v679
      %v2601 = vunpack.c.h.b16 %v679
      %v2602 = vunpack.c.l.b16 %v680
      %v2603 = vunpack.c.h.b16 %v680
      %v2604 = vunpack.c.l.b16 %v681
      %v2605 = vunpack.c.h.b16 %v681
      %v2606 = vunpack.c.l.b16 %v682
      %v2607 = vunpack.c.l.b16 %v683
      %v2608 = vunpack.c.h.b16 %v683
      %v2609 = vunpack.c.l.b16 %v684
      %v2610 = vunpack.c.h.b16 %v684
      %v2611 = vunpack.c.l.b16 %v685
      %v2612 = vunpack.c.h.b16 %v685
      %v2613 = vunpack.c.l.b16 %v686
      %v2614 = vunpack.c.h.b16 %v686
      %v2615 = vunpack.c.l.b16 %v687
      %v2616 = vunpack.c.l.b16 %v688
      %v2617 = vunpack.c.h.b16 %v688
      %v2618 = vunpack.c.l.b16 %v689
      %v2619 = vunpack.c.h.b16 %v689
      %v2620 = vunpack.c.l.b16 %v690
      %v2621 = vunpack.c.h.b16 %v690
      %v2622 = vunpack.c.l.b16 %v691
      %v2623 = vunpack.c.h.b16 %v691
      %v2624 = vunpack.c.l.b16 %v692
      %v2625 = vunpack.c.l.b16 %v693
      %v2626 = vunpack.c.h.b16 %v693
      %v2627 = vunpack.c.l.b16 %v694
      %v2628 = vunpack.c.h.b16 %v694
      %v2629 = vunpack.c.l.b16 %v695
      %v2630 = vunpack.c.h.b16 %v695
      %v2631 = vunpack.c.l.b16 %v696
      %v2632 = vunpack.c.h.b16 %v696
      %v2633 = vunpack.c.l.b16 %v697
      %v2634 = vunpack.c.l.b16 %v698
      %v2635 = vunpack.c.h.b16 %v698
      %v2636 = vunpack.c.l.b16 %v699
      %v2637 = vunpack.c.h.b16 %v699
      %v2638 = vunpack.c.l.b16 %v700
      %v2639 = vunpack.c.h.b16 %v700
      %v2640 = vunpack.c.l.b16 %v701
      %v2641 = vunpack.c.h.b16 %v701
      %v2642 = vunpack.c.l.b16 %v702
      %v2643 = vunpack.c.l.b16 %v703
      %v2644 = vunpack.c.h.b16 %v703
      %v2645 = vunpack.c.l.b16 %v704
      %v2646 = vunpack.c.h.b16 %v704
      %v2647 = vunpack.c.l.b16 %v705
      %v2648 = vunpack.c.h.b16 %v705
      %v2649 = vunpack.c.l.b16 %v706
      %v2650 = vunpack.c.h.b16 %v706
      %v2651 = vunpack.c.l.b16 %v707
      %v2652 = vunpack.c.l.b16 %v708
      %v2653 = vunpack.c.h.b16 %v708
      %v2654 = vunpack.c.l.b16 %v709
      %v2655 = vunpack.c.h.b16 %v709
      %v2656 = vunpack.c.l.b16 %v710
      %v2657 = vunpack.c.h.b16 %v710
      %v2658 = vunpack.c.l.b16 %v711
      %v2659 = vunpack.c.h.b16 %v711
      %v2660 = vunpack.c.l.b16 %v712
      %v2661 = vunpack.c.l.b16 %v713
      %v2662 = vunpack.c.h.b16 %v713
      %v2663 = vunpack.c.l.b16 %v714
      %v2664 = vunpack.c.h.b16 %v714
      %v2665 = vunpack.c.l.b16 %v715
      %v2666 = vunpack.c.h.b16 %v715
      %v2667 = vunpack.c.l.b16 %v716
      %v2668 = vunpack.c.h.b16 %v716
      %v2669 = vunpack.c.l.b16 %v717
      %v2670 = vunpack.c.l.b16 %v718
      %v2671 = vunpack.c.h.b16 %v718
      %v2672 = vunpack.c.l.b16 %v719
      %v2673 = vunpack.c.h.b16 %v719
      %v2674 = vunpack.c.l.b16 %v720
      %v2675 = vunpack.c.h.b16 %v720
      %v2676 = vunpack.c.l.b16 %v721
      %v2677 = vunpack.c.h.b16 %v721
      %v2678 = vunpack.c.l.b16 %v722
      %v2679 = vunpack.c.l.b16 %v723
      %v2680 = vunpack.c.h.b16 %v723
      %v2681 = vunpack.c.l.b16 %v724
      %v2682 = vunpack.c.h.b16 %v724
      %v2683 = vunpack.c.l.b16 %v725
      %v2684 = vunpack.c.h.b16 %v725
      %v2685 = vunpack.c.l.b16 %v726
      %v2686 = vunpack.c.h.b16 %v726
      %v2687 = vunpack.c.l.b16 %v727
      %v2688 = vunpack.c.l.b16 %v728
      %v2689 = vunpack.c.h.b16 %v728
      %v2690 = vunpack.c.l.b16 %v729
      %v2691 = vunpack.c.h.b16 %v729
      %v2692 = vunpack.c.l.b16 %v730
      %v2693 = vunpack.c.h.b16 %v730
      %v2694 = vunpack.c.l.b16 %v731
      %v2695 = vunpack.c.h.b16 %v731
      %v2696 = vunpack.c.l.b16 %v732
      %v2697 = vunpack.c.l.b16 %v733
      %v2698 = vunpack.c.h.b16 %v733
      %v2699 = vunpack.c.l.b16 %v734
      %v2700 = vunpack.c.h.b16 %v734
      %v2701 = vunpack.c.l.b16 %v735
      %v2702 = vunpack.c.h.b16 %v735
      %v2703 = vunpack.c.l.b16 %v736
      %v2704 = vunpack.c.h.b16 %v736
      %v2705 = vunpack.c.l.b16 %v737
      %v2706 = vunpack.c.l.b16 %v738
      %v2707 = vunpack.c.h.b16 %v738
      %v2708 = vunpack.c.l.b16 %v739
      %v2709 = vunpack.c.h.b16 %v739
      %v2710 = vunpack.c.l.b16 %v740
      %v2711 = vunpack.c.h.b16 %v740
      %v2712 = vunpack.c.l.b16 %v741
      %v2713 = vunpack.c.h.b16 %v741
      %v2714 = vunpack.c.l.b16 %v742
      %v2715 = vunpack.c.l.b16 %v743
      %v2716 = vunpack.c.h.b16 %v743
      %v2717 = vunpack.c.l.b16 %v744
      %v2718 = vunpack.c.h.b16 %v744
      %v2719 = vunpack.c.l.b16 %v745
      %v2720 = vunpack.c.h.b16 %v745
      %v2721 = vunpack.c.l.b16 %v746
      %v2722 = vunpack.c.h.b16 %v746
      %v2723 = vunpack.c.l.b16 %v747
      %v2724 = vunpack.c.l.b16 %v748
      %v2725 = vunpack.c.h.b16 %v748
      %v2726 = vunpack.c.l.b16 %v749
      %v2727 = vunpack.c.h.b16 %v749
      %v2728 = vunpack.c.l.b16 %v750
      %v2729 = vunpack.c.h.b16 %v750
      %v2730 = vunpack.c.l.b16 %v751
      %v2731 = vunpack.c.h.b16 %v751
      %v2732 = vunpack.c.l.b16 %v752
      %v2733 = vunpack.c.l.b16 %v753
      %v2734 = vunpack.c.h.b16 %v753
      %v2735 = vunpack.c.l.b16 %v754
      %v2736 = vunpack.c.h.b16 %v754
      %v2737 = vunpack.c.l.b16 %v755
      %v2738 = vunpack.c.h.b16 %v755
      %v2739 = vunpack.c.l.b16 %v756
      %v2740 = vunpack.c.h.b16 %v756
      %v2741 = vunpack.c.l.b16 %v757
      %v2742 = vunpack.c.l.b16 %v758
      %v2743 = vunpack.c.h.b16 %v758
      %v2744 = vunpack.c.l.b16 %v759
      %v2745 = vunpack.c.h.b16 %v759
      %v2746 = vunpack.c.l.b16 %v760
      %v2747 = vunpack.c.h.b16 %v760
      %v2748 = vunpack.c.l.b16 %v761
      %v2749 = vunpack.c.h.b16 %v761
      %v2750 = vunpack.c.l.b16 %v762
      %v2751 = vunpack.c.l.b16 %v763
      %v2752 = vunpack.c.h.b16 %v763
      %v2753 = vunpack.c.l.b16 %v764
      %v2754 = vunpack.c.h.b16 %v764
      %v2755 = vunpack.c.l.b16 %v765
      %v2756 = vunpack.c.h.b16 %v765
      %v2757 = vunpack.c.l.b16 %v766
      %v2758 = vunpack.c.h.b16 %v766
      %v2759 = vunpack.c.l.b16 %v767
      %v2760 = vunpack.c.l.b16 %v768
      %v2761 = vunpack.c.h.b16 %v768
      %v2762 = vunpack.c.l.b16 %v769
      %v2763 = vunpack.c.h.b16 %v769
      %v2764 = vunpack.c.l.b16 %v770
      %v2765 = vunpack.c.h.b16 %v770
      %v2766 = vunpack.c.l.b16 %v771
      %v2767 = vunpack.c.h.b16 %v771
      %v2768 = vunpack.c.l.b16 %v772
      %v2769 = vunpack.c.l.b16 %v773
      %v2770 = vunpack.c.h.b16 %v773
      %v2771 = vunpack.c.l.b16 %v774
      %v2772 = vunpack.c.h.b16 %v774
      %v2773 = vunpack.c.l.b16 %v775
      %v2774 = vunpack.c.h.b16 %v775
      %v2775 = vunpack.c.l.b16 %v776
      %v2776 = vunpack.c.h.b16 %v776
      %v2777 = vunpack.c.l.b16 %v777
      %v2778 = vunpack.c.l.b16 %v778
      %v2779 = vunpack.c.h.b16 %v778
      %v2780 = vunpack.c.l.b16 %v779
      %v2781 = vunpack.c.h.b16 %v779
      %v2782 = vunpack.c.l.b16 %v780
      %v2783 = vunpack.c.h.b16 %v780
      %v2784 = vunpack.c.l.b16 %v781
      %v2785 = vunpack.c.h.b16 %v781
      %v2786 = vunpack.c.l.b16 %v782
      %v2787 = vunpack.c.l.b16 %v783
      %v2788 = vunpack.c.h.b16 %v783
      %v2789 = vunpack.c.l.b16 %v784
      %v2790 = vunpack.c.h.b16 %v784
      %v2791 = vunpack.c.l.b16 %v785
      %v2792 = vunpack.c.h.b16 %v785
      %v2793 = vunpack.c.l.b16 %v786
      %v2794 = vunpack.c.h.b16 %v786
      %v2795 = vunpack.c.l.b16 %v787
      %v2796 = vunpack.c.l.b16 %v788
      %v2797 = vunpack.c.h.b16 %v788
      %v2798 = vunpack.c.l.b16 %v789
      %v2799 = vunpack.c.h.b16 %v789
      %v2800 = vunpack.c.l.b16 %v790
      %v2801 = vunpack.c.h.b16 %v790
      %v2802 = vunpack.c.l.b16 %v791
      %v2803 = vunpack.c.h.b16 %v791
      %v2804 = vunpack.c.l.b16 %v792
      %v2805 = vunpack.c.l.b16 %v793
      %v2806 = vunpack.c.h.b16 %v793
      %v2807 = vunpack.c.l.b16 %v794
      %v2808 = vunpack.c.h.b16 %v794
      %v2809 = vunpack.c.l.b16 %v795
      %v2810 = vunpack.c.h.b16 %v795
      %v2811 = vunpack.c.l.b16 %v796
      %v2812 = vunpack.c.h.b16 %v796
      %v2813 = vunpack.c.l.b16 %v797
      %v2814 = vunpack.c.l.b16 %v798
      %v2815 = vunpack.c.h.b16 %v798
      %v2816 = vunpack.c.l.b16 %v799
      %v2817 = vunpack.c.h.b16 %v799
      %v2818 = vunpack.c.l.b16 %v800
      %v2819 = vunpack.c.h.b16 %v800
      %v2820 = vunpack.c.l.b16 %v801
      %v2821 = vunpack.c.h.b16 %v801
      %v2822 = vunpack.c.l.b16 %v802
      %v2823 = vunpack.c.l.b16 %v803
      %v2824 = vunpack.c.h.b16 %v803
      %v2825 = vunpack.c.l.b16 %v804
      %v2826 = vunpack.c.h.b16 %v804
      %v2827 = vunpack.c.l.b16 %v805
      %v2828 = vunpack.c.h.b16 %v805
      %v2829 = vunpack.c.l.b16 %v806
      %v2830 = vunpack.c.h.b16 %v806
      %v2831 = vunpack.c.l.b16 %v807
      %v2832 = vunpack.c.l.b16 %v808
      %v2833 = vunpack.c.h.b16 %v808
      %v2834 = vunpack.c.l.b16 %v809
      %v2835 = vunpack.c.h.b16 %v809
      %v2836 = vunpack.c.l.b16 %v810
      %v2837 = vunpack.c.h.b16 %v810
      %v2838 = vunpack.c.l.b16 %v811
      %v2839 = vunpack.c.h.b16 %v811
      %v2840 = vunpack.c.l.b16 %v812
      %v2841 = vunpack.c.l.b16 %v813
      %v2842 = vunpack.c.h.b16 %v813
      %v2843 = vunpack.c.l.b16 %v814
      %v2844 = vunpack.c.h.b16 %v814
      %v2845 = vunpack.c.l.b16 %v815
      %v2846 = vunpack.c.h.b16 %v815
      %v2847 = vunpack.c.l.b16 %v816
      %v2848 = vunpack.c.h.b16 %v816
      %v2849 = vunpack.c.l.b16 %v817
      %v2850 = vunpack.c.l.b16 %v818
      %v2851 = vunpack.c.h.b16 %v818
      %v2852 = vunpack.c.l.b16 %v819
      %v2853 = vunpack.c.h.b16 %v819
      %v2854 = vunpack.c.l.b16 %v820
      %v2855 = vunpack.c.h.b16 %v820
      %v2856 = vunpack.c.l.b16 %v821
      %v2857 = vunpack.c.h.b16 %v821
      %v2858 = vunpack.c.l.b16 %v822
      %v2859 = vunpack.c.l.b16 %v823
      %v2860 = vunpack.c.h.b16 %v823
      %v2861 = vunpack.c.l.b16 %v824
      %v2862 = vunpack.c.h.b16 %v824
      %v2863 = vunpack.c.l.b16 %v825
      %v2864 = vunpack.c.h.b16 %v825
      %v2865 = vunpack.c.l.b16 %v826
      %v2866 = vunpack.c.h.b16 %v826
      %v2867 = vunpack.c.l.b16 %v827
      %v2868 = vunpack.c.l.b16 %v828
      %v2869 = vunpack.c.h.b16 %v828
      %v2870 = vunpack.c.l.b16 %v829
      %v2871 = vunpack.c.h.b16 %v829
      %v2872 = vunpack.c.l.b16 %v830
      %v2873 = vunpack.c.h.b16 %v830
      %v2874 = vunpack.c.l.b16 %v831
      %v2875 = vunpack.c.h.b16 %v831
      %v2876 = vunpack.c.l.b16 %v832
      %v2877 = vunpack.c.l.b16 %v833
      %v2878 = vunpack.c.h.b16 %v833
      %v2879 = vunpack.c.l.b16 %v834
      %v2880 = vunpack.c.h.b16 %v834
      %v2881 = vunpack.c.l.b16 %v835
      %v2882 = vunpack.c.h.b16 %v835
      %v2883 = vunpack.c.l.b16 %v836
      %v2884 = vunpack.c.h.b16 %v836
      %v2885 = vunpack.c.l.b16 %v837
      %v2886 = vunpack.c.l.b16 %v838
      %v2887 = vunpack.c.h.b16 %v838
      %v2888 = vunpack.c.l.b16 %v839
      %v2889 = vunpack.c.h.b16 %v839
      %v2890 = vunpack.c.l.b16 %v840
      %v2891 = vunpack.c.h.b16 %v840
      %v2892 = vunpack.c.l.b16 %v841
      %v2893 = vunpack.c.h.b16 %v841
      %v2894 = vunpack.c.l.b16 %v842
      %v2895 = vunpack.c.l.b16 %v843
      %v2896 = vunpack.c.h.b16 %v843
      %v2897 = vunpack.c.l.b16 %v844
      %v2898 = vunpack.c.h.b16 %v844
      %v2899 = vunpack.c.l.b16 %v845
      %v2900 = vunpack.c.h.b16 %v845
      %v2901 = vunpack.c.l.b16 %v846
      %v2902 = vunpack.c.h.b16 %v846
      %v2903 = vunpack.c.l.b16 %v847
      %v2904 = vunpack.c.l.b16 %v848
      %v2905 = vunpack.c.h.b16 %v848
      %v2906 = vunpack.c.l.b16 %v849
      %v2907 = vunpack.c.h.b16 %v849
      %v2908 = vunpack.c.l.b16 %v850
      %v2909 = vunpack.c.h.b16 %v850
      %v2910 = vunpack.c.l.b16 %v851
      %v2911 = vunpack.c.h.b16 %v851
      %v2912 = vunpack.c.l.b16 %v852
      %v2913 = vunpack.c.l.b16 %v853
      %v2914 = vunpack.c.h.b16 %v853
      %v2915 = vunpack.c.l.b16 %v854
      %v2916 = vunpack.c.h.b16 %v854
      %v2917 = vunpack.c.l.b16 %v855
      %v2918 = vunpack.c.h.b16 %v855
      %v2919 = vunpack.c.l.b16 %v856
      %v2920 = vunpack.c.h.b16 %v856
      %v2921 = vunpack.c.l.b16 %v857
      %v2922 = vunpack.c.l.b16 %v858
      %v2923 = vunpack.c.h.b16 %v858
      %v2924 = vunpack.c.l.b16 %v859
      %v2925 = vunpack.c.h.b16 %v859
      %v2926 = vunpack.c.l.b16 %v860
      %v2927 = vunpack.c.h.b16 %v860
      %v2928 = vunpack.c.l.b16 %v861
      %v2929 = vunpack.c.h.b16 %v861
      %v2930 = vunpack.c.l.b16 %v862
      %v2931 = vunpack.c.l.b16 %v863
      %v2932 = vunpack.c.h.b16 %v863
      %v2933 = vunpack.c.l.b16 %v864
      %v2934 = vunpack.c.h.b16 %v864
      %v2935 = vunpack.c.l.b16 %v865
      %v2936 = vunpack.c.h.b16 %v865
      %v2937 = vunpack.c.l.b16 %v866
      %v2938 = vunpack.c.h.b16 %v866
      %v2939 = vunpack.c.l.b16 %v867
      %v2940 = vunpack.c.l.b16 %v868
      %v2941 = vunpack.c.h.b16 %v868
      %v2942 = vunpack.c.l.b16 %v869
      %v2943 = vunpack.c.h.b16 %v869
      %v2944 = vunpack.c.l.b16 %v870
      %v2945 = vunpack.c.h.b16 %v870
      %v2946 = vunpack.c.l.b16 %v871
      %v2947 = vunpack.c.h.b16 %v871
      %v2948 = vunpack.c.l.b16 %v872
      %v2949 = vunpack.c.l.b16 %v873
      %v2950 = vunpack.c.h.b16 %v873
      %v2951 = vunpack.c.l.b16 %v874
      %v2952 = vunpack.c.h.b16 %v874
      %v2953 = vunpack.c.l.b16 %v875
      %v2954 = vunpack.c.h.b16 %v875
      %v2955 = vunpack.c.l.b16 %v876
      %v2956 = vunpack.c.h.b16 %v876
      %v2957 = vunpack.c.l.b16 %v877
      %v2958 = vunpack.c.l.b16 %v878
      %v2959 = vunpack.c.h.b16 %v878
      %v2960 = vunpack.c.l.b16 %v879
      %v2961 = vunpack.c.h.b16 %v879
      %v2962 = vunpack.c.l.b16 %v880
      %v2963 = vunpack.c.h.b16 %v880
      %v2964 = vunpack.c.l.b16 %v881
      %v2965 = vunpack.c.h.b16 %v881
      %v2966 = vunpack.c.l.b16 %v882
      %v2967 = vunpack.c.l.b16 %v883
      %v2968 = vunpack.c.h.b16 %v883
      %v2969 = vunpack.c.l.b16 %v884
      %v2970 = vunpack.c.h.b16 %v884
      %v2971 = vunpack.c.l.b16 %v885
      %v2972 = vunpack.c.h.b16 %v885
      %v2973 = vunpack.c.l.b16 %v886
      %v2974 = vunpack.c.h.b16 %v886
      %v2975 = vunpack.c.l.b16 %v887
      %v2976 = vunpack.c.l.b16 %v888
      %v2977 = vunpack.c.h.b16 %v888
      %v2978 = vunpack.c.l.b16 %v889
      %v2979 = vunpack.c.h.b16 %v889
      %v2980 = vunpack.c.l.b16 %v890
      %v2981 = vunpack.c.h.b16 %v890
      %v2982 = vunpack.c.l.b16 %v891
      %v2983 = vunpack.c.h.b16 %v891
      %v2984 = vunpack.c.l.b16 %v892
      %v2985 = vunpack.c.l.b16 %v893
      %v2986 = vunpack.c.h.b16 %v893
      %v2987 = vunpack.c.l.b16 %v894
      %v2988 = vunpack.c.h.b16 %v894
      %v2989 = vunpack.c.l.b16 %v895
      %v2990 = vunpack.c.h.b16 %v895
      %v2991 = vunpack.c.l.b16 %v896
      %v2992 = vunpack.c.h.b16 %v896
      %v2993 = vunpack.c.l.b16 %v897
      %v2994 = vunpack.c.l.b16 %v898
      %v2995 = vunpack.c.h.b16 %v898
      %v2996 = vunpack.c.l.b16 %v899
      %v2997 = vunpack.c.h.b16 %v899
      %v2998 = vunpack.c.l.b16 %v900
      %v2999 = vunpack.c.h.b16 %v900
      %v3000 = vunpack.c.l.b16 %v901
      %v3001 = vunpack.c.h.b16 %v901
      %v3002 = vunpack.c.l.b16 %v902
      %v3003 = vunpack.c.l.b16 %v903
      %v3004 = vunpack.c.h.b16 %v903
      %v3005 = vunpack.c.l.b16 %v904
      %v3006 = vunpack.c.h.b16 %v904
      %v3007 = vunpack.c.l.b16 %v905
      %v3008 = vunpack.c.h.b16 %v905
      %v3009 = vunpack.c.l.b16 %v906
      %v3010 = vunpack.c.h.b16 %v906
      %v3011 = vunpack.c.l.b16 %v907
      %v3012 = vunpack.c.l.b16 %v908
      %v3013 = vunpack.c.h.b16 %v908
      %v3014 = vunpack.c.l.b16 %v909
      %v3015 = vunpack.c.h.b16 %v909
      %v3016 = vunpack.c.l.b16 %v910
      %v3017 = vunpack.c.h.b16 %v910
      %v3018 = vunpack.c.l.b16 %v911
      %v3019 = vunpack.c.h.b16 %v911
      %v3020 = vunpack.c.l.b16 %v912
      %v3021 = vunpack.c.l.b16 %v913
      %v3022 = vunpack.c.h.b16 %v913
      %v3023 = vunpack.c.l.b16 %v914
      %v3024 = vunpack.c.h.b16 %v914
      %v3025 = vunpack.c.l.b16 %v915
      %v3026 = vunpack.c.h.b16 %v915
      %v3027 = vunpack.c.l.b16 %v916
      %v3028 = vunpack.c.h.b16 %v916
      %v3029 = vunpack.c.l.b16 %v917
      %v3030 = vpack.c.b16 %v1887, %v1878
      %v3031 = vpack.c.b16 %v1888, %v1879
      %v3032 = vpack.c.b16 %v1889, %v1880
      %v3033 = vpack.c.b16 %v1890, %v1881
      %v3034 = vpack.c.b16 %v1891, %v1882
      %v3035 = vpack.c.b16 %v1892, %v1883
      %v3036 = vpack.c.b16 %v1893, %v1884
      %v3037 = vpack.c.b16 %v1894, %v1885
      %v3038 = vpack.c.b16 %v1895, %v1886
      %v3039 = vpack.c.b16 %v1905, %v1896
      %v3040 = vpack.c.b16 %v1906, %v1897
      %v3041 = vpack.c.b16 %v1907, %v1898
      %v3042 = vpack.c.b16 %v1908, %v1899
      %v3043 = vpack.c.b16 %v1909, %v1900
      %v3044 = vpack.c.b16 %v1910, %v1901
      %v3045 = vpack.c.b16 %v1911, %v1902
      %v3046 = vpack.c.b16 %v1912, %v1903
      %v3047 = vpack.c.b16 %v1913, %v1904
      %v3048 = vpack.c.b16 %v1923, %v1914
      %v3049 = vpack.c.b16 %v1924, %v1915
      %v3050 = vpack.c.b16 %v1925, %v1916
      %v3051 = vpack.c.b16 %v1926, %v1917
      %v3052 = vpack.c.b16 %v1927, %v1918
      %v3053 = vpack.c.b16 %v1928, %v1919
      %v3054 = vpack.c.b16 %v1929, %v1920
      %v3055 = vpack.c.b16 %v1930, %v1921
      %v3056 = vpack.c.b16 %v1931, %v1922
      %v3057 = vpack.c.b16 %v1941, %v1932
      %v3058 = vpack.c.b16 %v1942, %v1933
      %v3059 = vpack.c.b16 %v1943, %v1934
      %v3060 = vpack.c.b16 %v1944, %v1935
      %v3061 = vpack.c.b16 %v1945, %v1936
      %v3062 = vpack.c.b16 %v1946, %v1937
      %v3063 = vpack.c.b16 %v1947, %v1938
      %v3064 = vpack.c.b16 %v1948, %v1939
      %v3065 = vpack.c.b16 %v1949, %v1940
      %v3066 = vpack.c.b16 %v1959, %v1950
      %v3067 = vpack.c.b16 %v1960, %v1951
      %v3068 = vpack.c.b16 %v1961, %v1952
      %v3069 = vpack.c.b16 %v1962, %v1953
      %v3070 = vpack.c.b16 %v1963, %v1954
      %v3071 = vpack.c.b16 %v1964, %v1955
      %v3072 = vpack.c.b16 %v1965, %v1956
      %v3073 = vpack.c.b16 %v1966, %v1957
      %v3074 = vpack.c.b16 %v1967, %v1958
      %v3075 = vpack.c.b16 %v1977, %v1968
      %v3076 = vpack.c.b16 %v1978, %v1969
      %v3077 = vpack.c.b16 %v1979, %v1970
      %v3078 = vpack.c.b16 %v1980, %v1971
      %v3079 = vpack.c.b16 %v1981, %v1972
      %v3080 = vpack.c.b16 %v1982, %v1973
      %v3081 = vpack.c.b16 %v1983, %v1974
      %v3082 = vpack.c.b16 %v1984, %v1975
      %v3083 = vpack.c.b16 %v1985, %v1976
      %v3084 = vpack.c.b16 %v1995, %v1986
      %v3085 = vpack.c.b16 %v1996, %v1987
      %v3086 = vpack.c.b16 %v1997, %v1988
      %v3087 = vpack.c.b16 %v1998, %v1989
      %v3088 = vpack.c.b16 %v1999, %v1990
      %v3089 = vpack.c.b16 %v2000, %v1991
      %v3090 = vpack.c.b16 %v2001, %v1992
      %v3091 = vpack.c.b16 %v2002, %v1993
      %v3092 = vpack.c.b16 %v2003, %v1994
      %v3093 = vpack.c.b16 %v2013, %v2004
      %v3094 = vpack.c.b16 %v2014, %v2005
      %v3095 = vpack.c.b16 %v2015, %v2006
      %v3096 = vpack.c.b16 %v2016, %v2007
      %v3097 = vpack.c.b16 %v2017, %v2008
      %v3098 = vpack.c.b16 %v2018, %v2009
      %v3099 = vpack.c.b16 %v2019, %v2010
      %v3100 = vpack.c.b16 %v2020, %v2011
      %v3101 = vpack.c.b16 %v2021, %v2012
      %v3102 = vpack.c.b16 %v2031, %v2022
      %v3103 = vpack.c.b16 %v2032, %v2023
      %v3104 = vpack.c.b16 %v2033, %v2024
      %v3105 = vpack.c.b16 %v2034, %v2025
      %v3106 = vpack.c.b16 %v2035, %v2026
      %v3107 = vpack.c.b16 %v2036, %v2027
      %v3108 = vpack.c.b16 %v2037, %v2028
      %v3109 = vpack.c.b16 %v2038, %v2029
      %v3110 = vpack.c.b16 %v2039, %v2030
      %v3111 = vpack.c.b16 %v2049, %v2040
      %v3112 = vpack.c.b16 %v2050, %v2041
      %v3113 = vpack.c.b16 %v2051, %v2042
      %v3114 = vpack.c.b16 %v2052, %v2043
      %v3115 = vpack.c.b16 %v2053, %v2044
      %v3116 = vpack.c.b16 %v2054, %v2045
      %v3117 = vpack.c.b16 %v2055, %v2046
      %v3118 = vpack.c.b16 %v2056, %v2047
      %v3119 = vpack.c.b16 %v2057, %v2048
      %v3120 = vpack.c.b16 %v2067, %v2058
      %v3121 = vpack.c.b16 %v2068, %v2059
      %v3122 = vpack.c.b16 %v2069, %v2060
      %v3123 = vpack.c.b16 %v2070, %v2061
      %v3124 = vpack.c.b16 %v2071, %v2062
      %v3125 = vpack.c.b16 %v2072, %v2063
      %v3126 = vpack.c.b16 %v2073, %v2064
      %v3127 = vpack.c.b16 %v2074, %v2065
      %v3128 = vpack.c.b16 %v2075, %v2066
      %v3129 = vpack.c.b16 %v2085, %v2076
      %v3130 = vpack.c.b16 %v2086, %v2077
      %v3131 = vpack.c.b16 %v2087, %v2078
      %v3132 = vpack.c.b16 %v2088, %v2079
      %v3133 = vpack.c.b16 %v2089, %v2080
      %v3134 = vpack.c.b16 %v2090, %v2081
      %v3135 = vpack.c.b16 %v2091, %v2082
      %v3136 = vpack.c.b16 %v2092, %v2083
      %v3137 = vpack.c.b16 %v2093, %v2084
      %v3138 = vpack.c.b16 %v2103, %v2094
      %v3139 = vpack.c.b16 %v2104, %v2095
      %v3140 = vpack.c.b16 %v2105, %v2096
      %v3141 = vpack.c.b16 %v2106, %v2097
      %v3142 = vpack.c.b16 %v2107, %v2098
      %v3143 = vpack.c.b16 %v2108, %v2099
      %v3144 = vpack.c.b16 %v2109, %v2100
      %v3145 = vpack.c.b16 %v2110, %v2101
      %v3146 = vpack.c.b16 %v2111, %v2102
      %v3147 = vpack.c.b16 %v2121, %v2112
      %v3148 = vpack.c.b16 %v2122, %v2113
      %v3149 = vpack.c.b16 %v2123, %v2114
      %v3150 = vpack.c.b16 %v2124, %v2115
      %v3151 = vpack.c.b16 %v2125, %v2116
      %v3152 = vpack.c.b16 %v2126, %v2117
      %v3153 = vpack.c.b16 %v2127, %v2118
      %v3154 = vpack.c.b16 %v2128, %v2119
      %v3155 = vpack.c.b16 %v2129, %v2120
      %v3156 = vpack.c.b16 %v2139, %v2130
      %v3157 = vpack.c.b16 %v2140, %v2131
      %v3158 = vpack.c.b16 %v2141, %v2132
      %v3159 = vpack.c.b16 %v2142, %v2133
      %v3160 = vpack.c.b16 %v2143, %v2134
      %v3161 = vpack.c.b16 %v2144, %v2135
      %v3162 = vpack.c.b16 %v2145, %v2136
      %v3163 = vpack.c.b16 %v2146, %v2137
      %v3164 = vpack.c.b16 %v2147, %v2138
      %v3165 = vpack.c.b16 %v2157, %v2148
      %v3166 = vpack.c.b16 %v2158, %v2149
      %v3167 = vpack.c.b16 %v2159, %v2150
      %v3168 = vpack.c.b16 %v2160, %v2151
      %v3169 = vpack.c.b16 %v2161, %v2152
      %v3170 = vpack.c.b16 %v2162, %v2153
      %v3171 = vpack.c.b16 %v2163, %v2154
      %v3172 = vpack.c.b16 %v2164, %v2155
      %v3173 = vpack.c.b16 %v2165, %v2156
      %v3174 = vpack.c.b16 %v2175, %v2166
      %v3175 = vpack.c.b16 %v2176, %v2167
      %v3176 = vpack.c.b16 %v2177, %v2168
      %v3177 = vpack.c.b16 %v2178, %v2169
      %v3178 = vpack.c.b16 %v2179, %v2170
      %v3179 = vpack.c.b16 %v2180, %v2171
      %v3180 = vpack.c.b16 %v2181, %v2172
      %v3181 = vpack.c.b16 %v2182, %v2173
      %v3182 = vpack.c.b16 %v2183, %v2174
      %v3183 = vpack.c.b16 %v2193, %v2184
      %v3184 = vpack.c.b16 %v2194, %v2185
      %v3185 = vpack.c.b16 %v2195, %v2186
      %v3186 = vpack.c.b16 %v2196, %v2187
      %v3187 = vpack.c.b16 %v2197, %v2188
      %v3188 = vpack.c.b16 %v2198, %v2189
      %v3189 = vpack.c.b16 %v2199, %v2190
      %v3190 = vpack.c.b16 %v2200, %v2191
      %v3191 = vpack.c.b16 %v2201, %v2192
      %v3192 = vpack.c.b16 %v2211, %v2202
      %v3193 = vpack.c.b16 %v2212, %v2203
      %v3194 = vpack.c.b16 %v2213, %v2204
      %v3195 = vpack.c.b16 %v2214, %v2205
      %v3196 = vpack.c.b16 %v2215, %v2206
      %v3197 = vpack.c.b16 %v2216, %v2207
      %v3198 = vpack.c.b16 %v2217, %v2208
      %v3199 = vpack.c.b16 %v2218, %v2209
      %v3200 = vpack.c.b16 %v2219, %v2210
      %v3201 = vpack.c.b16 %v2229, %v2220
      %v3202 = vpack.c.b16 %v2230, %v2221
      %v3203 = vpack.c.b16 %v2231, %v2222
      %v3204 = vpack.c.b16 %v2232, %v2223
      %v3205 = vpack.c.b16 %v2233, %v2224
      %v3206 = vpack.c.b16 %v2234, %v2225
      %v3207 = vpack.c.b16 %v2235, %v2226
      %v3208 = vpack.c.b16 %v2236, %v2227
      %v3209 = vpack.c.b16 %v2237, %v2228
      %v3210 = vpack.c.b16 %v2247, %v2238
      %v3211 = vpack.c.b16 %v2248, %v2239
      %v3212 = vpack.c.b16 %v2249, %v2240
      %v3213 = vpack.c.b16 %v2250, %v2241
      %v3214 = vpack.c.b16 %v2251, %v2242
      %v3215 = vpack.c.b16 %v2252, %v2243
      %v3216 = vpack.c.b16 %v2253, %v2244
      %v3217 = vpack.c.b16 %v2254, %v2245
      %v3218 = vpack.c.b16 %v2255, %v2246
      %v3219 = vpack.c.b16 %v2265, %v2256
      %v3220 = vpack.c.b16 %v2266, %v2257
      %v3221 = vpack.c.b16 %v2267, %v2258
      %v3222 = vpack.c.b16 %v2268, %v2259
      %v3223 = vpack.c.b16 %v2269, %v2260
      %v3224 = vpack.c.b16 %v2270, %v2261
      %v3225 = vpack.c.b16 %v2271, %v2262
      %v3226 = vpack.c.b16 %v2272, %v2263
      %v3227 = vpack.c.b16 %v2273, %v2264
      %v3228 = vpack.c.b16 %v2283, %v2274
      %v3229 = vpack.c.b16 %v2284, %v2275
      %v3230 = vpack.c.b16 %v2285, %v2276
      %v3231 = vpack.c.b16 %v2286, %v2277
      %v3232 = vpack.c.b16 %v2287, %v2278
      %v3233 = vpack.c.b16 %v2288, %v2279
      %v3234 = vpack.c.b16 %v2289, %v2280
      %v3235 = vpack.c.b16 %v2290, %v2281
      %v3236 = vpack.c.b16 %v2291, %v2282
      %v3237 = vpack.c.b16 %v2301, %v2292
      %v3238 = vpack.c.b16 %v2302, %v2293
      %v3239 = vpack.c.b16 %v2303, %v2294
      %v3240 = vpack.c.b16 %v2304, %v2295
      %v3241 = vpack.c.b16 %v2305, %v2296
      %v3242 = vpack.c.b16 %v2306, %v2297
      %v3243 = vpack.c.b16 %v2307, %v2298
      %v3244 = vpack.c.b16 %v2308, %v2299
      %v3245 = vpack.c.b16 %v2309, %v2300
      %v3246 = vpack.c.b16 %v2319, %v2310
      %v3247 = vpack.c.b16 %v2320, %v2311
      %v3248 = vpack.c.b16 %v2321, %v2312
      %v3249 = vpack.c.b16 %v2322, %v2313
      %v3250 = vpack.c.b16 %v2323, %v2314
      %v3251 = vpack.c.b16 %v2324, %v2315
      %v3252 = vpack.c.b16 %v2325, %v2316
      %v3253 = vpack.c.b16 %v2326, %v2317
      %v3254 = vpack.c.b16 %v2327, %v2318
      %v3255 = vpack.c.b16 %v2337, %v2328
      %v3256 = vpack.c.b16 %v2338, %v2329
      %v3257 = vpack.c.b16 %v2339, %v2330
      %v3258 = vpack.c.b16 %v2340, %v2331
      %v3259 = vpack.c.b16 %v2341, %v2332
      %v3260 = vpack.c.b16 %v2342, %v2333
      %v3261 = vpack.c.b16 %v2343, %v2334
      %v3262 = vpack.c.b16 %v2344, %v2335
      %v3263 = vpack.c.b16 %v2345, %v2336
      %v3264 = vpack.c.b16 %v2355, %v2346
      %v3265 = vpack.c.b16 %v2356, %v2347
      %v3266 = vpack.c.b16 %v2357, %v2348
      %v3267 = vpack.c.b16 %v2358, %v2349
      %v3268 = vpack.c.b16 %v2359, %v2350
      %v3269 = vpack.c.b16 %v2360, %v2351
      %v3270 = vpack.c.b16 %v2361, %v2352
      %v3271 = vpack.c.b16 %v2362, %v2353
      %v3272 = vpack.c.b16 %v2363, %v2354
      %v3273 = vpack.c.b16 %v2373, %v2364
      %v3274 = vpack.c.b16 %v2374, %v2365
      %v3275 = vpack.c.b16 %v2375, %v2366
      %v3276 = vpack.c.b16 %v2376, %v2367
      %v3277 = vpack.c.b16 %v2377, %v2368
      %v3278 = vpack.c.b16 %v2378, %v2369
      %v3279 = vpack.c.b16 %v2379, %v2370
      %v3280 = vpack.c.b16 %v2380, %v2371
      %v3281 = vpack.c.b16 %v2381, %v2372
      %v3282 = vpack.c.b16 %v2391, %v2382
      %v3283 = vpack.c.b16 %v2392, %v2383
      %v3284 = vpack.c.b16 %v2393, %v2384
      %v3285 = vpack.c.b16 %v2394, %v2385
      %v3286 = vpack.c.b16 %v2395, %v2386
      %v3287 = vpack.c.b16 %v2396, %v2387
      %v3288 = vpack.c.b16 %v2397, %v2388
      %v3289 = vpack.c.b16 %v2398, %v2389
      %v3290 = vpack.c.b16 %v2399, %v2390
      %v3291 = vpack.c.b16 %v2409, %v2400
      %v3292 = vpack.c.b16 %v2410, %v2401
      %v3293 = vpack.c.b16 %v2411, %v2402
      %v3294 = vpack.c.b16 %v2412, %v2403
      %v3295 = vpack.c.b16 %v2413, %v2404
      %v3296 = vpack.c.b16 %v2414, %v2405
      %v3297 = vpack.c.b16 %v2415, %v2406
      %v3298 = vpack.c.b16 %v2416, %v2407
      %v3299 = vpack.c.b16 %v2417, %v2408
      %v3300 = vpack.c.b16 %v2427, %v2418
      %v3301 = vpack.c.b16 %v2428, %v2419
      %v3302 = vpack.c.b16 %v2429, %v2420
      %v3303 = vpack.c.b16 %v2430, %v2421
      %v3304 = vpack.c.b16 %v2431, %v2422
      %v3305 = vpack.c.b16 %v2432, %v2423
      %v3306 = vpack.c.b16 %v2433, %v2424
      %v3307 = vpack.c.b16 %v2434, %v2425
      %v3308 = vpack.c.b16 %v2435, %v2426
      %v3309 = vpack.c.b16 %v2445, %v2436
      %v3310 = vpack.c.b16 %v2446, %v2437
      %v3311 = vpack.c.b16 %v2447, %v2438
      %v3312 = vpack.c.b16 %v2448, %v2439
      %v3313 = vpack.c.b16 %v2449, %v2440
      %v3314 = vpack.c.b16 %v2450, %v2441
      %v3315 = vpack.c.b16 %v2451, %v2442
      %v3316 = vpack.c.b16 %v2452, %v2443
      %v3317 = vpack.c.b16 %v2453, %v2444
      %v3318 = vpack.c.b16 %v2463, %v2454
      %v3319 = vpack.c.b16 %v2464, %v2455
      %v3320 = vpack.c.b16 %v2465, %v2456
      %v3321 = vpack.c.b16 %v2466, %v2457
      %v3322 = vpack.c.b16 %v2467, %v2458
      %v3323 = vpack.c.b16 %v2468, %v2459
      %v3324 = vpack.c.b16 %v2469, %v2460
      %v3325 = vpack.c.b16 %v2470, %v2461
      %v3326 = vpack.c.b16 %v2471, %v2462
      %v3327 = vpack.c.b16 %v2481, %v2472
      %v3328 = vpack.c.b16 %v2482, %v2473
      %v3329 = vpack.c.b16 %v2483, %v2474
      %v3330 = vpack.c.b16 %v2484, %v2475
      %v3331 = vpack.c.b16 %v2485, %v2476
      %v3332 = vpack.c.b16 %v2486, %v2477
      %v3333 = vpack.c.b16 %v2487, %v2478
      %v3334 = vpack.c.b16 %v2488, %v2479
      %v3335 = vpack.c.b16 %v2489, %v2480
      %v3336 = vpack.c.b16 %v2499, %v2490
      %v3337 = vpack.c.b16 %v2500, %v2491
      %v3338 = vpack.c.b16 %v2501, %v2492
      %v3339 = vpack.c.b16 %v2502, %v2493
      %v3340 = vpack.c.b16 %v2503, %v2494
      %v3341 = vpack.c.b16 %v2504, %v2495
      %v3342 = vpack.c.b16 %v2505, %v2496
      %v3343 = vpack.c.b16 %v2506, %v2497
      %v3344 = vpack.c.b16 %v2507, %v2498
      %v3345 = vpack.c.b16 %v2517, %v2508
      %v3346 = vpack.c.b16 %v2518, %v2509
      %v3347 = vpack.c.b16 %v2519, %v2510
      %v3348 = vpack.c.b16 %v2520, %v2511
      %v3349 = vpack.c.b16 %v2521, %v2512
      %v3350 = vpack.c.b16 %v2522, %v2513
      %v3351 = vpack.c.b16 %v2523, %v2514
      %v3352 = vpack.c.b16 %v2524, %v2515
      %v3353 = vpack.c.b16 %v2525, %v2516
      %v3354 = vpack.c.b16 %v2535, %v2526
      %v3355 = vpack.c.b16 %v2536, %v2527
      %v3356 = vpack.c.b16 %v2537, %v2528
      %v3357 = vpack.c.b16 %v2538, %v2529
      %v3358 = vpack.c.b16 %v2539, %v2530
      %v3359 = vpack.c.b16 %v2540, %v2531
      %v3360 = vpack.c.b16 %v2541, %v2532
      %v3361 = vpack.c.b16 %v2542, %v2533
      %v3362 = vpack.c.b16 %v2543, %v2534
      %v3363 = vpack.c.b16 %v2553, %v2544
      %v3364 = vpack.c.b16 %v2554, %v2545
      %v3365 = vpack.c.b16 %v2555, %v2546
      %v3366 = vpack.c.b16 %v2556, %v2547
      %v3367 = vpack.c.b16 %v2557, %v2548
      %v3368 = vpack.c.b16 %v2558, %v2549
      %v3369 = vpack.c.b16 %v2559, %v2550
      %v3370 = vpack.c.b16 %v2560, %v2551
      %v3371 = vpack.c.b16 %v2561, %v2552
      %v3372 = vpack.c.b16 %v2571, %v2562
      %v3373 = vpack.c.b16 %v2572, %v2563
      %v3374 = vpack.c.b16 %v2573, %v2564
      %v3375 = vpack.c.b16 %v2574, %v2565
      %v3376 = vpack.c.b16 %v2575, %v2566
      %v3377 = vpack.c.b16 %v2576, %v2567
      %v3378 = vpack.c.b16 %v2577, %v2568
      %v3379 = vpack.c.b16 %v2578, %v2569
      %v3380 = vpack.c.b16 %v2579, %v2570
      %v3381 = vpack.c.b16 %v2589, %v2580
      %v3382 = vpack.c.b16 %v2590, %v2581
      %v3383 = vpack.c.b16 %v2591, %v2582
      %v3384 = vpack.c.b16 %v2592, %v2583
      %v3385 = vpack.c.b16 %v2593, %v2584
      %v3386 = vpack.c.b16 %v2594, %v2585
      %v3387 = vpack.c.b16 %v2595, %v2586
      %v3388 = vpack.c.b16 %v2596, %v2587
      %v3389 = vpack.c.b16 %v2597, %v2588
      %v3390 = vpack.c.b16 %v2607, %v2598
      %v3391 = vpack.c.b16 %v2608, %v2599
      %v3392 = vpack.c.b16 %v2609, %v2600
      %v3393 = vpack.c.b16 %v2610, %v2601
      %v3394 = vpack.c.b16 %v2611, %v2602
      %v3395 = vpack.c.b16 %v2612, %v2603
      %v3396 = vpack.c.b16 %v2613, %v2604
      %v3397 = vpack.c.b16 %v2614, %v2605
      %v3398 = vpack.c.b16 %v2615, %v2606
      %v3399 = vpack.c.b16 %v2625, %v2616
      %v3400 = vpack.c.b16 %v2626, %v2617
      %v3401 = vpack.c.b16 %v2627, %v2618
      %v3402 = vpack.c.b16 %v2628, %v2619
      %v3403 = vpack.c.b16 %v2629, %v2620
      %v3404 = vpack.c.b16 %v2630, %v2621
      %v3405 = vpack.c.b16 %v2631, %v2622
      %v3406 = vpack.c.b16 %v2632, %v2623
      %v3407 = vpack.c.b16 %v2633, %v2624
      %v3408 = vpack.c.b16 %v2643, %v2634
      %v3409 = vpack.c.b16 %v2644, %v2635
      %v3410 = vpack.c.b16 %v2645, %v2636
      %v3411 = vpack.c.b16 %v2646, %v2637
      %v3412 = vpack.c.b16 %v2647, %v2638
      %v3413 = vpack.c.b16 %v2648, %v2639
      %v3414 = vpack.c.b16 %v2649, %v2640
      %v3415 = vpack.c.b16 %v2650, %v2641
      %v3416 = vpack.c.b16 %v2651, %v2642
      %v3417 = vpack.c.b16 %v2661, %v2652
      %v3418 = vpack.c.b16 %v2662, %v2653
      %v3419 = vpack.c.b16 %v2663, %v2654
      %v3420 = vpack.c.b16 %v2664, %v2655
      %v3421 = vpack.c.b16 %v2665, %v2656
      %v3422 = vpack.c.b16 %v2666, %v2657
      %v3423 = vpack.c.b16 %v2667, %v2658
      %v3424 = vpack.c.b16 %v2668, %v2659
      %v3425 = vpack.c.b16 %v2669, %v2660
      %v3426 = vpack.c.b16 %v2679, %v2670
      %v3427 = vpack.c.b16 %v2680, %v2671
      %v3428 = vpack.c.b16 %v2681, %v2672
      %v3429 = vpack.c.b16 %v2682, %v2673
      %v3430 = vpack.c.b16 %v2683, %v2674
      %v3431 = vpack.c.b16 %v2684, %v2675
      %v3432 = vpack.c.b16 %v2685, %v2676
      %v3433 = vpack.c.b16 %v2686, %v2677
      %v3434 = vpack.c.b16 %v2687, %v2678
      %v3435 = vpack.c.b16 %v2697, %v2688
      %v3436 = vpack.c.b16 %v2698, %v2689
      %v3437 = vpack.c.b16 %v2699, %v2690
      %v3438 = vpack.c.b16 %v2700, %v2691
      %v3439 = vpack.c.b16 %v2701, %v2692
      %v3440 = vpack.c.b16 %v2702, %v2693
      %v3441 = vpack.c.b16 %v2703, %v2694
      %v3442 = vpack.c.b16 %v2704, %v2695
      %v3443 = vpack.c.b16 %v2705, %v2696
      %v3444 = vpack.c.b16 %v2715, %v2706
      %v3445 = vpack.c.b16 %v2716, %v2707
      %v3446 = vpack.c.b16 %v2717, %v2708
      %v3447 = vpack.c.b16 %v2718, %v2709
      %v3448 = vpack.c.b16 %v2719, %v2710
      %v3449 = vpack.c.b16 %v2720, %v2711
      %v3450 = vpack.c.b16 %v2721, %v2712
      %v3451 = vpack.c.b16 %v2722, %v2713
      %v3452 = vpack.c.b16 %v2723, %v2714
      %v3453 = vpack.c.b16 %v2733, %v2724
      %v3454 = vpack.c.b16 %v2734, %v2725
      %v3455 = vpack.c.b16 %v2735, %v2726
      %v3456 = vpack.c.b16 %v2736, %v2727
      %v3457 = vpack.c.b16 %v2737, %v2728
      %v3458 = vpack.c.b16 %v2738, %v2729
      %v3459 = vpack.c.b16 %v2739, %v2730
      %v3460 = vpack.c.b16 %v2740, %v2731
      %v3461 = vpack.c.b16 %v2741, %v2732
      %v3462 = vpack.c.b16 %v2751, %v2742
      %v3463 = vpack.c.b16 %v2752, %v2743
      %v3464 = vpack.c.b16 %v2753, %v2744
      %v3465 = vpack.c.b16 %v2754, %v2745
      %v3466 = vpack.c.b16 %v2755, %v2746
      %v3467 = vpack.c.b16 %v2756, %v2747
      %v3468 = vpack.c.b16 %v2757, %v2748
      %v3469 = vpack.c.b16 %v2758, %v2749
      %v3470 = vpack.c.b16 %v2759, %v2750
      %v3471 = vpack.c.b16 %v2769, %v2760
      %v3472 = vpack.c.b16 %v2770, %v2761
      %v3473 = vpack.c.b16 %v2771, %v2762
      %v3474 = vpack.c.b16 %v2772, %v2763
      %v3475 = vpack.c.b16 %v2773, %v2764
      %v3476 = vpack.c.b16 %v2774, %v2765
      %v3477 = vpack.c.b16 %v2775, %v2766
      %v3478 = vpack.c.b16 %v2776, %v2767
      %v3479 = vpack.c.b16 %v2777, %v2768
      %v3480 = vpack.c.b16 %v2787, %v2778
      %v3481 = vpack.c.b16 %v2788, %v2779
      %v3482 = vpack.c.b16 %v2789, %v2780
      %v3483 = vpack.c.b16 %v2790, %v2781
      %v3484 = vpack.c.b16 %v2791, %v2782
      %v3485 = vpack.c.b16 %v2792, %v2783
      %v3486 = vpack.c.b16 %v2793, %v2784
      %v3487 = vpack.c.b16 %v2794, %v2785
      %v3488 = vpack.c.b16 %v2795, %v2786
      %v3489 = vpack.c.b16 %v2805, %v2796
      %v3490 = vpack.c.b16 %v2806, %v2797
      %v3491 = vpack.c.b16 %v2807, %v2798
      %v3492 = vpack.c.b16 %v2808, %v2799
      %v3493 = vpack.c.b16 %v2809, %v2800
      %v3494 = vpack.c.b16 %v2810, %v2801
      %v3495 = vpack.c.b16 %v2811, %v2802
      %v3496 = vpack.c.b16 %v2812, %v2803
      %v3497 = vpack.c.b16 %v2813, %v2804
      %v3498 = vpack.c.b16 %v2823, %v2814
      %v3499 = vpack.c.b16 %v2824, %v2815
      %v3500 = vpack.c.b16 %v2825, %v2816
      %v3501 = vpack.c.b16 %v2826, %v2817
      %v3502 = vpack.c.b16 %v2827, %v2818
      %v3503 = vpack.c.b16 %v2828, %v2819
      %v3504 = vpack.c.b16 %v2829, %v2820
      %v3505 = vpack.c.b16 %v2830, %v2821
      %v3506 = vpack.c.b16 %v2831, %v2822
      %v3507 = vpack.c.b16 %v2841, %v2832
      %v3508 = vpack.c.b16 %v2842, %v2833
      %v3509 = vpack.c.b16 %v2843, %v2834
      %v3510 = vpack.c.b16 %v2844, %v2835
      %v3511 = vpack.c.b16 %v2845, %v2836
      %v3512 = vpack.c.b16 %v2846, %v2837
      %v3513 = vpack.c.b16 %v2847, %v2838
      %v3514 = vpack.c.b16 %v2848, %v2839
      %v3515 = vpack.c.b16 %v2849, %v2840
      %v3516 = vpack.c.b16 %v2859, %v2850
      %v3517 = vpack.c.b16 %v2860, %v2851
      %v3518 = vpack.c.b16 %v2861, %v2852
      %v3519 = vpack.c.b16 %v2862, %v2853
      %v3520 = vpack.c.b16 %v2863, %v2854
      %v3521 = vpack.c.b16 %v2864, %v2855
      %v3522 = vpack.c.b16 %v2865, %v2856
      %v3523 = vpack.c.b16 %v2866, %v2857
      %v3524 = vpack.c.b16 %v2867, %v2858
      %v3525 = vpack.c.b16 %v2877, %v2868
      %v3526 = vpack.c.b16 %v2878, %v2869
      %v3527 = vpack.c.b16 %v2879, %v2870
      %v3528 = vpack.c.b16 %v2880, %v2871
      %v3529 = vpack.c.b16 %v2881, %v2872
      %v3530 = vpack.c.b16 %v2882, %v2873
      %v3531 = vpack.c.b16 %v2883, %v2874
      %v3532 = vpack.c.b16 %v2884, %v2875
      %v3533 = vpack.c.b16 %v2885, %v2876
      %v3534 = vpack.c.b16 %v2895, %v2886
      %v3535 = vpack.c.b16 %v2896, %v2887
      %v3536 = vpack.c.b16 %v2897, %v2888
      %v3537 = vpack.c.b16 %v2898, %v2889
      %v3538 = vpack.c.b16 %v2899, %v2890
      %v3539 = vpack.c.b16 %v2900, %v2891
      %v3540 = vpack.c.b16 %v2901, %v2892
      %v3541 = vpack.c.b16 %v2902, %v2893
      %v3542 = vpack.c.b16 %v2903, %v2894
      %v3543 = vpack.c.b16 %v2913, %v2904
      %v3544 = vpack.c.b16 %v2914, %v2905
      %v3545 = vpack.c.b16 %v2915, %v2906
      %v3546 = vpack.c.b16 %v2916, %v2907
      %v3547 = vpack.c.b16 %v2917, %v2908
      %v3548 = vpack.c.b16 %v2918, %v2909
      %v3549 = vpack.c.b16 %v2919, %v2910
      %v3550 = vpack.c.b16 %v2920, %v2911
      %v3551 = vpack.c.b16 %v2921, %v2912
      %v3552 = vpack.c.b16 %v2931, %v2922
      %v3553 = vpack.c.b16 %v2932, %v2923
      %v3554 = vpack.c.b16 %v2933, %v2924
      %v3555 = vpack.c.b16 %v2934, %v2925
      %v3556 = vpack.c.b16 %v2935, %v2926
      %v3557 = vpack.c.b16 %v2936, %v2927
      %v3558 = vpack.c.b16 %v2937, %v2928
      %v3559 = vpack.c.b16 %v2938, %v2929
      %v3560 = vpack.c.b16 %v2939, %v2930
      %v3561 = vpack.c.b16 %v2949, %v2940
      %v3562 = vpack.c.b16 %v2950, %v2941
      %v3563 = vpack.c.b16 %v2951, %v2942
      %v3564 = vpack.c.b16 %v2952, %v2943
      %v3565 = vpack.c.b16 %v2953, %v2944
      %v3566 = vpack.c.b16 %v2954, %v2945
      %v3567 = vpack.c.b16 %v2955, %v2946
      %v3568 = vpack.c.b16 %v2956, %v2947
      %v3569 = vpack.c.b16 %v2957, %v2948
      %v3570 = vpack.c.b16 %v2967, %v2958
      %v3571 = vpack.c.b16 %v2968, %v2959
      %v3572 = vpack.c.b16 %v2969, %v2960
      %v3573 = vpack.c.b16 %v2970, %v2961
      %v3574 = vpack.c.b16 %v2971, %v2962
      %v3575 = vpack.c.b16 %v2972, %v2963
      %v3576 = vpack.c.b16 %v2973, %v2964
      %v3577 = vpack.c.b16 %v2974, %v2965
      %v3578 = vpack.c.b16 %v2975, %v2966
      %v3579 = vpack.c.b16 %v2985, %v2976
      %v3580 = vpack.c.b16 %v2986, %v2977
      %v3581 = vpack.c.b16 %v2987, %v2978
      %v3582 = vpack.c.b16 %v2988, %v2979
      %v3583 = vpack.c.b16 %v2989, %v2980
      %v3584 = vpack.c.b16 %v2990, %v2981
      %v3585 = vpack.c.b16 %v2991, %v2982
      %v3586 = vpack.c.b16 %v2992, %v2983
      %v3587 = vpack.c.b16 %v2993, %v2984
      %v3588 = vpack.c.b16 %v3003, %v2994
      %v3589 = vpack.c.b16 %v3004, %v2995
      %v3590 = vpack.c.b16 %v3005, %v2996
      %v3591 = vpack.c.b16 %v3006, %v2997
      %v3592 = vpack.c.b16 %v3007, %v2998
      %v3593 = vpack.c.b16 %v3008, %v2999
      %v3594 = vpack.c.b16 %v3009, %v3000
      %v3595 = vpack.c.b16 %v3010, %v3001
      %v3596 = vpack.c.b16 %v3011, %v3002
      %v3597 = vpack.c.b16 %v3021, %v3012
      %v3598 = vpack.c.b16 %v3022, %v3013
      %v3599 = vpack.c.b16 %v3023, %v3014
      %v3600 = vpack.c.b16 %v3024, %v3015
      %v3601 = vpack.c.b16 %v3025, %v3016
      %v3602 = vpack.c.b16 %v3026, %v3017
      %v3603 = vpack.c.b16 %v3027, %v3018
      %v3604 = vpack.c.b16 %v3028, %v3019
      %v3605 = vpack.c.b16 %v3029, %v3020
      %4182 = vmatprep.subr.bf16.mxu0 %v3031
      %4183 = vmatpush1.bf16.msra.mxu0 %v3030
      %4184 = vmatprep.subr.bf16.mxu0 %v3040
      %4185 = vmatpush1.bf16.msra.mxu0 %v3039
      %4186 = vmatprep.subr.bf16.mxu0 %v3049
      %4187 = vmatpush1.bf16.msra.mxu0 %v3048
      %4188 = vmatprep.subr.bf16.mxu0 %v3058
      %4189 = vmatpush1.bf16.msra.mxu0 %v3057
      %4190 = vmatprep.subr.bf16.mxu0 %v3067
      %4191 = vmatpush1.bf16.msra.mxu0 %v3066
      %4192 = vmatprep.subr.bf16.mxu0 %v3076
      %4193 = vmatpush1.bf16.msra.mxu0 %v3075
      %4194 = vmatprep.subr.bf16.mxu0 %v3085
      %4195 = vmatpush1.bf16.msra.mxu0 %v3084
      %4196 = vmatprep.subr.bf16.mxu0 %v3094
      %4197 = vmatpush1.bf16.msra.mxu0 %v3093
      %4198 = vmatprep.subr.bf16.mxu0 %v3103
      %4199 = vmatpush1.bf16.msra.mxu0 %v3102
      %4200 = vmatprep.subr.bf16.mxu0 %v3112
      %4201 = vmatpush1.bf16.msra.mxu0 %v3111
      %4202 = vmatprep.subr.bf16.mxu0 %v3121
      %4203 = vmatpush1.bf16.msra.mxu0 %v3120
      %4204 = vmatprep.subr.bf16.mxu0 %v3130
      %4205 = vmatpush1.bf16.msra.mxu0 %v3129
      %4206 = vmatprep.subr.bf16.mxu0 %v3139
      %4207 = vmatpush1.bf16.msra.mxu0 %v3138
      %4208 = vmatprep.subr.bf16.mxu0 %v3148
      %4209 = vmatpush1.bf16.msra.mxu0 %v3147
      %4210 = vmatprep.subr.bf16.mxu0 %v3157
      %4211 = vmatpush1.bf16.msra.mxu0 %v3156
      %4212 = vmatprep.subr.bf16.mxu0 %v3166
      %4213 = vmatpush1.bf16.msra.mxu0 %v3165
      %4214 = vmatprep.mubr.bf16.mxu0 %v1111
      %4215 = vmatmul.mubr.bf16.gmra.mrb[0].mxu0 %v1110
      %v4216 = vpop.f32.mrb[0].mxu0
      %v4217 = vadd.f32 0.0, %v4216
      %v4218 = vpop.f32.mrb[0].mxu0
      %v4219 = vadd.f32 0.0, %v4218
      %v4220 = vpop.f32.mrb[0].mxu0
      %v4221 = vadd.f32 0.0, %v4220
      %v4222 = vpop.f32.mrb[0].mxu0
      %v4223 = vadd.f32 0.0, %v4222
      %4224 = vmatprep.mubr.bf16.mxu0 %v1119
      %4225 = vmatmul.mubr.bf16.gmra.mrb[0].mxu0 %v1118
      %v4226 = vpop.f32.mrb[0].mxu0
      %v4227 = vadd.f32 0.0, %v4226
      %v4228 = vpop.f32.mrb[0].mxu0
      %v4229 = vadd.f32 0.0, %v4228
      %v4230 = vpop.f32.mrb[0].mxu0
      %v4231 = vadd.f32 0.0, %v4230
      %v4232 = vpop.f32.mrb[0].mxu0
      %v4233 = vadd.f32 0.0, %v4232
      %4234 = vmatprep.mubr.bf16.mxu0 %v1127
      %4235 = vmatmul.mubr.bf16.gmra.mrb[0].mxu0 %v1126
      %v4236 = vpop.f32.mrb[0].mxu0
      %v4237 = vadd.f32 0.0, %v4236
      %v4238 = vpop.f32.mrb[0].mxu0
      %v4239 = vadd.f32 0.0, %v4238
      %v4240 = vpop.f32.mrb[0].mxu0
      %v4241 = vadd.f32 0.0, %v4240
      %v4242 = vpop.f32.mrb[0].mxu0
      %v4243 = vadd.f32 0.0, %v4242
      %4244 = vmatprep.mubr.bf16.mxu0 %v1135
      %4245 = vmatmul.mubr.bf16.gmra.mrb[0].mxu0 %v1134
      %v4246 = vpop.f32.mrb[0].mxu0
      %v4247 = vadd.f32 0.0, %v4246
      %v4248 = vpop.f32.mrb[0].mxu0
      %v4249 = vadd.f32 0.0, %v4248
      %v4250 = vpop.f32.mrb[0].mxu0
      %v4251 = vadd.f32 0.0, %v4250
      %v4252 = vpop.f32.mrb[0].mxu0
      %v4253 = vadd.f32 0.0, %v4252
      %4254 = vmatprep.mubr.bf16.mxu0 %v1143
      %4255 = vmatmul.mubr.bf16.gmra.mrb[0].mxu0 %v1142
      %v4256 = vpop.f32.mrb[0].mxu0
      %v4257 = vadd.f32 0.0, %v4256
      %v4258 = vpop.f32.mrb[0].mxu0
      %v4259 = vadd.f32 0.0, %v4258
      %v4260 = vpop.f32.mrb[0].mxu0
      %v4261 = vadd.f32 0.0, %v4260
      %v4262 = vpop.f32.mrb[0].mxu0
      %v4263 = vadd.f32 0.0, %v4262
      %4264 = vmatprep.mubr.bf16.mxu0 %v1151
      %4265 = vmatmul.mubr.bf16.gmra.mrb[0].mxu0 %v1150
      %v4266 = vpop.f32.mrb[0].mxu0
      %v4267 = vadd.f32 0.0, %v4266
      %v4268 = vpop.f32.mrb[0].mxu0
      %v4269 = vadd.f32 0.0, %v4268
      %v4270 = vpop.f32.mrb[0].mxu0
      %v4271 = vadd.f32 0.0, %v4270
      %v4272 = vpop.f32.mrb[0].mxu0
      %v4273 = vadd.f32 0.0, %v4272
      %4274 = vmatprep.mubr.bf16.mxu0 %v1159
      %4275 = vmatmul.mubr.bf16.gmra.mrb[0].mxu0 %v1158
      %v4276 = vpop.f32.mrb[0].mxu0
      %v4277 = vadd.f32 0.0, %v4276
      %v4278 = vpop.f32.mrb[0].mxu0
      %v4279 = vadd.f32 0.0, %v4278
      %v4280 = vpop.f32.mrb[0].mxu0
      %v4281 = vadd.f32 0.0, %v4280
      %v4282 = vpop.f32.mrb[0].mxu0
      %v4283 = vadd.f32 0.0, %v4282
      %4284 = vmatprep.mubr.bf16.mxu0 %v1167
      %4285 = vmatmul.mubr.bf16.gmra.mrb[0].mxu0 %v1166
      %v4286 = vpop.f32.mrb[0].mxu0
      %v4287 = vadd.f32 0.0, %v4286
      %v4288 = vpop.f32.mrb[0].mxu0
      %v4289 = vadd.f32 0.0, %v4288
      %v4290 = vpop.f32.mrb[0].mxu0
      %v4291 = vadd.f32 0.0, %v4290
      %v4292 = vpop.f32.mrb[0].mxu0
      %v4293 = vadd.f32 0.0, %v4292
      %4294 = vdwg.mxu0
      %4295 = vmatprep.subr.bf16.mxu0 %v3175
      %4296 = vmatpush1.bf16.msra.mxu0 %v3174
      %4297 = vmatprep.subr.bf16.mxu0 %v3184
      %4298 = vmatpush1.bf16.msra.mxu0 %v3183
      %4299 = vmatprep.subr.bf16.mxu0 %v3193
      %4300 = vmatpush1.bf16.msra.mxu0 %v3192
      %4301 = vmatprep.subr.bf16.mxu0 %v3202
      %4302 = vmatpush1.bf16.msra.mxu0 %v3201
      %4303 = vmatprep.subr.bf16.mxu0 %v3211
      %4304 = vmatpush1.bf16.msra.mxu0 %v3210
      %4305 = vmatprep.subr.bf16.mxu0 %v3220
      %4306 = vmatpush1.bf16.msra.mxu0 %v3219
      %4307 = vmatprep.subr.bf16.mxu0 %v3229
      %4308 = vmatpush1.bf16.msra.mxu0 %v3228
      %4309 = vmatprep.subr.bf16.mxu0 %v3238
      %4310 = vmatpush1.bf16.msra.mxu0 %v3237
      %4311 = vmatprep.subr.bf16.mxu0 %v3247
      %4312 = vmatpush1.bf16.msra.mxu0 %v3246
      %4313 = vmatprep.subr.bf16.mxu0 %v3256
      %4314 = vmatpush1.bf16.msra.mxu0 %v3255
      %4315 = vmatprep.subr.bf16.mxu0 %v3265
      %4316 = vmatpush1.bf16.msra.mxu0 %v3264
      %4317 = vmatprep.subr.bf16.mxu0 %v3274
      %4318 = vmatpush1.bf16.msra.mxu0 %v3273
      %4319 = vmatprep.subr.bf16.mxu0 %v3283
      %4320 = vmatpush1.bf16.msra.mxu0 %v3282
      %4321 = vmatprep.subr.bf16.mxu0 %v3292
      %4322 = vmatpush1.bf16.msra.mxu0 %v3291
      %4323 = vmatprep.subr.bf16.mxu0 %v3301
      %4324 = vmatpush1.bf16.msra.mxu0 %v3300
      %4325 = vmatprep.subr.bf16.mxu0 %v3310
      %4326 = vmatpush1.bf16.msra.mxu0 %v3309
      %4327 = vmatprep.mubr.bf16.mxu0 %v1113
      %4328 = vmatmul.mubr.bf16.gmra.mrb[0].mxu0 %v1112
      %v4329 = vpop.f32.mrb[0].mxu0
      %v4330 = vadd.f32 %v4217, %v4329
      %v4331 = vpop.f32.mrb[0].mxu0
      %v4332 = vadd.f32 %v4219, %v4331
      %v4333 = vpop.f32.mrb[0].mxu0
      %v4334 = vadd.f32 %v4221, %v4333
      %v4335 = vpop.f32.mrb[0].mxu0
      %v4336 = vadd.f32 %v4223, %v4335
      %4337 = vmatprep.mubr.bf16.mxu0 %v1121
      %4338 = vmatmul.mubr.bf16.gmra.mrb[0].mxu0 %v1120
      %v4339 = vpop.f32.mrb[0].mxu0
      %v4340 = vadd.f32 %v4227, %v4339
      %v4341 = vpop.f32.mrb[0].mxu0
      %v4342 = vadd.f32 %v4229, %v4341
      %v4343 = vpop.f32.mrb[0].mxu0
      %v4344 = vadd.f32 %v4231, %v4343
      %v4345 = vpop.f32.mrb[0].mxu0
      %v4346 = vadd.f32 %v4233, %v4345
      %4347 = vmatprep.mubr.bf16.mxu0 %v1129
      %4348 = vmatmul.mubr.bf16.gmra.mrb[0].mxu0 %v1128
      %v4349 = vpop.f32.mrb[0].mxu0
      %v4350 = vadd.f32 %v4237, %v4349
      %v4351 = vpop.f32.mrb[0].mxu0
      %v4352 = vadd.f32 %v4239, %v4351
      %v4353 = vpop.f32.mrb[0].mxu0
      %v4354 = vadd.f32 %v4241, %v4353
      %v4355 = vpop.f32.mrb[0].mxu0
      %v4356 = vadd.f32 %v4243, %v4355
      %4357 = vmatprep.mubr.bf16.mxu0 %v1137
      %4358 = vmatmul.mubr.bf16.gmra.mrb[0].mxu0 %v1136
      %v4359 = vpop.f32.mrb[0].mxu0
      %v4360 = vadd.f32 %v4247, %v4359
      %v4361 = vpop.f32.mrb[0].mxu0
      %v4362 = vadd.f32 %v4249, %v4361
      %v4363 = vpop.f32.mrb[0].mxu0
      %v4364 = vadd.f32 %v4251, %v4363
      %v4365 = vpop.f32.mrb[0].mxu0
      %v4366 = vadd.f32 %v4253, %v4365
      %4367 = vmatprep.mubr.bf16.mxu0 %v1145
      %4368 = vmatmul.mubr.bf16.gmra.mrb[0].mxu0 %v1144
      %v4369 = vpop.f32.mrb[0].mxu0
      %v4370 = vadd.f32 %v4257, %v4369
      %v4371 = vpop.f32.mrb[0].mxu0
      %v4372 = vadd.f32 %v4259, %v4371
      %v4373 = vpop.f32.mrb[0].mxu0
      %v4374 = vadd.f32 %v4261, %v4373
      %v4375 = vpop.f32.mrb[0].mxu0
      %v4376 = vadd.f32 %v4263, %v4375
      %4377 = vmatprep.mubr.bf16.mxu0 %v1153
      %4378 = vmatmul.mubr.bf16.gmra.mrb[0].mxu0 %v1152
      %v4379 = vpop.f32.mrb[0].mxu0
      %v4380 = vadd.f32 %v4267, %v4379
      %v4381 = vpop.f32.mrb[0].mxu0
      %v4382 = vadd.f32 %v4269, %v4381
      %v4383 = vpop.f32.mrb[0].mxu0
      %v4384 = vadd.f32 %v4271, %v4383
      %v4385 = vpop.f32.mrb[0].mxu0
      %v4386 = vadd.f32 %v4273, %v4385
      %4387 = vmatprep.mubr.bf16.mxu0 %v1161
      %4388 = vmatmul.mubr.bf16.gmra.mrb[0].mxu0 %v1160
      %v4389 = vpop.f32.mrb[0].mxu0
      %v4390 = vadd.f32 %v4277, %v4389
      %v4391 = vpop.f32.mrb[0].mxu0
      %v4392 = vadd.f32 %v4279, %v4391
      %v4393 = vpop.f32.mrb[0].mxu0
      %v4394 = vadd.f32 %v4281, %v4393
      %v4395 = vpop.f32.mrb[0].mxu0
      %v4396 = vadd.f32 %v4283, %v4395
      %4397 = vmatprep.mubr.bf16.mxu0 %v1169
      %4398 = vmatmul.mubr.bf16.gmra.mrb[0].mxu0 %v1168
      %v4399 = vpop.f32.mrb[0].mxu0
      %v4400 = vadd.f32 %v4287, %v4399
      %v4401 = vpop.f32.mrb[0].mxu0
      %v4402 = vadd.f32 %v4289, %v4401
      %v4403 = vpop.f32.mrb[0].mxu0
      %v4404 = vadd.f32 %v4291, %v4403
      %v4405 = vpop.f32.mrb[0].mxu0
      %v4406 = vadd.f32 %v4293, %v4405
      %4407 = vdwg.mxu0
      %4408 = vmatprep.subr.bf16.mxu0 %v3319
      %4409 = vmatpush1.bf16.msra.mxu0 %v3318
      %4410 = vmatprep.subr.bf16.mxu0 %v3328
      %4411 = vmatpush1.bf16.msra.mxu0 %v3327
      %4412 = vmatprep.subr.bf16.mxu0 %v3337
      %4413 = vmatpush1.bf16.msra.mxu0 %v3336
      %4414 = vmatprep.subr.bf16.mxu0 %v3346
      %4415 = vmatpush1.bf16.msra.mxu0 %v3345
      %4416 = vmatprep.subr.bf16.mxu0 %v3355
      %4417 = vmatpush1.bf16.msra.mxu0 %v3354
      %4418 = vmatprep.subr.bf16.mxu0 %v3364
      %4419 = vmatpush1.bf16.msra.mxu0 %v3363
      %4420 = vmatprep.subr.bf16.mxu0 %v3373
      %4421 = vmatpush1.bf16.msra.mxu0 %v3372
      %4422 = vmatprep.subr.bf16.mxu0 %v3382
      %4423 = vmatpush1.bf16.msra.mxu0 %v3381
      %4424 = vmatprep.subr.bf16.mxu0 %v3391
      %4425 = vmatpush1.bf16.msra.mxu0 %v3390
      %4426 = vmatprep.subr.bf16.mxu0 %v3400
      %4427 = vmatpush1.bf16.msra.mxu0 %v3399
      %4428 = vmatprep.subr.bf16.mxu0 %v3409
      %4429 = vmatpush1.bf16.msra.mxu0 %v3408
      %4430 = vmatprep.subr.bf16.mxu0 %v3418
      %4431 = vmatpush1.bf16.msra.mxu0 %v3417
      %4432 = vmatprep.subr.bf16.mxu0 %v3427
      %4433 = vmatpush1.bf16.msra.mxu0 %v3426
      %4434 = vmatprep.subr.bf16.mxu0 %v3436
      %4435 = vmatpush1.bf16.msra.mxu0 %v3435
      %4436 = vmatprep.subr.bf16.mxu0 %v3445
      %4437 = vmatpush1.bf16.msra.mxu0 %v3444
      %4438 = vmatprep.subr.bf16.mxu0 %v3454
      %4439 = vmatpush1.bf16.msra.mxu0 %v3453
      %4440 = vmatprep.mubr.bf16.mxu0 %v1115
      %4441 = vmatmul.mubr.bf16.gmra.mrb[0].mxu0 %v1114
      %v4442 = vpop.f32.mrb[0].mxu0
      %v4443 = vadd.f32 %v4330, %v4442
      %v4444 = vpop.f32.mrb[0].mxu0
      %v4445 = vadd.f32 %v4332, %v4444
      %v4446 = vpop.f32.mrb[0].mxu0
      %v4447 = vadd.f32 %v4334, %v4446
      %v4448 = vpop.f32.mrb[0].mxu0
      %v4449 = vadd.f32 %v4336, %v4448
      %4450 = vmatprep.mubr.bf16.mxu0 %v1123
      %4451 = vmatmul.mubr.bf16.gmra.mrb[0].mxu0 %v1122
      %v4452 = vpop.f32.mrb[0].mxu0
      %v4453 = vadd.f32 %v4340, %v4452
      %v4454 = vpop.f32.mrb[0].mxu0
      %v4455 = vadd.f32 %v4342, %v4454
      %v4456 = vpop.f32.mrb[0].mxu0
      %v4457 = vadd.f32 %v4344, %v4456
      %v4458 = vpop.f32.mrb[0].mxu0
      %v4459 = vadd.f32 %v4346, %v4458
      %4460 = vmatprep.mubr.bf16.mxu0 %v1131
      %4461 = vmatmul.mubr.bf16.gmra.mrb[0].mxu0 %v1130
      %v4462 = vpop.f32.mrb[0].mxu0
      %v4463 = vadd.f32 %v4350, %v4462
      %v4464 = vpop.f32.mrb[0].mxu0
      %v4465 = vadd.f32 %v4352, %v4464
      %v4466 = vpop.f32.mrb[0].mxu0
      %v4467 = vadd.f32 %v4354, %v4466
      %v4468 = vpop.f32.mrb[0].mxu0
      %v4469 = vadd.f32 %v4356, %v4468
      %4470 = vmatprep.mubr.bf16.mxu0 %v1139
      %4471 = vmatmul.mubr.bf16.gmra.mrb[0].mxu0 %v1138
      %v4472 = vpop.f32.mrb[0].mxu0
      %v4473 = vadd.f32 %v4360, %v4472
      %v4474 = vpop.f32.mrb[0].mxu0
      %v4475 = vadd.f32 %v4362, %v4474
      %v4476 = vpop.f32.mrb[0].mxu0
      %v4477 = vadd.f32 %v4364, %v4476
      %v4478 = vpop.f32.mrb[0].mxu0
      %v4479 = vadd.f32 %v4366, %v4478
      %4480 = vmatprep.mubr.bf16.mxu0 %v1147
      %4481 = vmatmul.mubr.bf16.gmra.mrb[0].mxu0 %v1146
      %v4482 = vpop.f32.mrb[0].mxu0
      %v4483 = vadd.f32 %v4370, %v4482
      %v4484 = vpop.f32.mrb[0].mxu0
      %v4485 = vadd.f32 %v4372, %v4484
      %v4486 = vpop.f32.mrb[0].mxu0
      %v4487 = vadd.f32 %v4374, %v4486
      %v4488 = vpop.f32.mrb[0].mxu0
      %v4489 = vadd.f32 %v4376, %v4488
      %4490 = vmatprep.mubr.bf16.mxu0 %v1155
      %4491 = vmatmul.mubr.bf16.gmra.mrb[0].mxu0 %v1154
      %v4492 = vpop.f32.mrb[0].mxu0
      %v4493 = vadd.f32 %v4380, %v4492
      %v4494 = vpop.f32.mrb[0].mxu0
      %v4495 = vadd.f32 %v4382, %v4494
      %v4496 = vpop.f32.mrb[0].mxu0
      %v4497 = vadd.f32 %v4384, %v4496
      %v4498 = vpop.f32.mrb[0].mxu0
      %v4499 = vadd.f32 %v4386, %v4498
      %4500 = vmatprep.mubr.bf16.mxu0 %v1163
      %4501 = vmatmul.mubr.bf16.gmra.mrb[0].mxu0 %v1162
      %v4502 = vpop.f32.mrb[0].mxu0
      %v4503 = vadd.f32 %v4390, %v4502
      %v4504 = vpop.f32.mrb[0].mxu0
      %v4505 = vadd.f32 %v4392, %v4504
      %v4506 = vpop.f32.mrb[0].mxu0
      %v4507 = vadd.f32 %v4394, %v4506
      %v4508 = vpop.f32.mrb[0].mxu0
      %v4509 = vadd.f32 %v4396, %v4508
      %4510 = vmatprep.mubr.bf16.mxu0 %v1171
      %4511 = vmatmul.mubr.bf16.gmra.mrb[0].mxu0 %v1170
      %v4512 = vpop.f32.mrb[0].mxu0
      %v4513 = vadd.f32 %v4400, %v4512
      %v4514 = vpop.f32.mrb[0].mxu0
      %v4515 = vadd.f32 %v4402, %v4514
      %v4516 = vpop.f32.mrb[0].mxu0
      %v4517 = vadd.f32 %v4404, %v4516
      %v4518 = vpop.f32.mrb[0].mxu0
      %v4519 = vadd.f32 %v4406, %v4518
      %4520 = vdwg.mxu0
      %4521 = vmatprep.subr.bf16.mxu0 %v3463
      %4522 = vmatpush1.bf16.msra.mxu0 %v3462
      %4523 = vmatprep.subr.bf16.mxu0 %v3472
      %4524 = vmatpush1.bf16.msra.mxu0 %v3471
      %4525 = vmatprep.subr.bf16.mxu0 %v3481
      %4526 = vmatpush1.bf16.msra.mxu0 %v3480
      %4527 = vmatprep.subr.bf16.mxu0 %v3490
      %4528 = vmatpush1.bf16.msra.mxu0 %v3489
      %4529 = vmatprep.subr.bf16.mxu0 %v3499
      %4530 = vmatpush1.bf16.msra.mxu0 %v3498
      %4531 = vmatprep.subr.bf16.mxu0 %v3508
      %4532 = vmatpush1.bf16.msra.mxu0 %v3507
      %4533 = vmatprep.subr.bf16.mxu0 %v3517
      %4534 = vmatpush1.bf16.msra.mxu0 %v3516
      %4535 = vmatprep.subr.bf16.mxu0 %v3526
      %4536 = vmatpush1.bf16.msra.mxu0 %v3525
      %4537 = vmatprep.subr.bf16.mxu0 %v3535
      %4538 = vmatpush1.bf16.msra.mxu0 %v3534
      %4539 = vmatprep.subr.bf16.mxu0 %v3544
      %4540 = vmatpush1.bf16.msra.mxu0 %v3543
      %4541 = vmatprep.subr.bf16.mxu0 %v3553
      %4542 = vmatpush1.bf16.msra.mxu0 %v3552
      %4543 = vmatprep.subr.bf16.mxu0 %v3562
      %4544 = vmatpush1.bf16.msra.mxu0 %v3561
      %4545 = vmatprep.subr.bf16.mxu0 %v3571
      %4546 = vmatpush1.bf16.msra.mxu0 %v3570
      %4547 = vmatprep.subr.bf16.mxu0 %v3580
      %4548 = vmatpush1.bf16.msra.mxu0 %v3579
      %4549 = vmatprep.subr.bf16.mxu0 %v3589
      %4550 = vmatpush1.bf16.msra.mxu0 %v3588
      %4551 = vmatprep.subr.bf16.mxu0 %v3598
      %4552 = vmatpush1.bf16.msra.mxu0 %v3597
      %4553 = vmatprep.mubr.bf16.mxu0 %v1117
      %4554 = vmatmul.mubr.bf16.gmra.mrb[0].mxu0 %v1116
      %v4555 = vpop.f32.mrb[0].mxu0
      %v4556 = vadd.f32 %v4443, %v4555
      %v4557 = vpop.f32.mrb[0].mxu0
      %v4558 = vadd.f32 %v4445, %v4557
      %v4559 = vpop.f32.mrb[0].mxu0
      %v4560 = vadd.f32 %v4447, %v4559
      %v4561 = vpop.f32.mrb[0].mxu0
      %v4562 = vadd.f32 %v4449, %v4561
      %4563 = vmatprep.mubr.bf16.mxu0 %v1125
      %4564 = vmatmul.mubr.bf16.gmra.mrb[0].mxu0 %v1124
      %v4565 = vpop.f32.mrb[0].mxu0
      %v4566 = vadd.f32 %v4453, %v4565
      %v4567 = vpop.f32.mrb[0].mxu0
      %v4568 = vadd.f32 %v4455, %v4567
      %v4569 = vpop.f32.mrb[0].mxu0
      %v4570 = vadd.f32 %v4457, %v4569
      %v4571 = vpop.f32.mrb[0].mxu0
      %v4572 = vadd.f32 %v4459, %v4571
      %4573 = vmatprep.mubr.bf16.mxu0 %v1133
      %4574 = vmatmul.mubr.bf16.gmra.mrb[0].mxu0 %v1132
      %v4575 = vpop.f32.mrb[0].mxu0
      %v4576 = vadd.f32 %v4463, %v4575
      %v4577 = vpop.f32.mrb[0].mxu0
      %v4578 = vadd.f32 %v4465, %v4577
      %v4579 = vpop.f32.mrb[0].mxu0
      %v4580 = vadd.f32 %v4467, %v4579
      %v4581 = vpop.f32.mrb[0].mxu0
      %v4582 = vadd.f32 %v4469, %v4581
      %4583 = vmatprep.mubr.bf16.mxu0 %v1141
      %4584 = vmatmul.mubr.bf16.gmra.mrb[0].mxu0 %v1140
      %v4585 = vpop.f32.mrb[0].mxu0
      %v4586 = vadd.f32 %v4473, %v4585
      %v4587 = vpop.f32.mrb[0].mxu0
      %v4588 = vadd.f32 %v4475, %v4587
      %v4589 = vpop.f32.mrb[0].mxu0
      %v4590 = vadd.f32 %v4477, %v4589
      %v4591 = vpop.f32.mrb[0].mxu0
      %v4592 = vadd.f32 %v4479, %v4591
      %4593 = vmatprep.mubr.bf16.mxu0 %v1149
      %4594 = vmatmul.mubr.bf16.gmra.mrb[0].mxu0 %v1148
      %v4595 = vpop.f32.mrb[0].mxu0
      %v4596 = vadd.f32 %v4483, %v4595
      %v4597 = vpop.f32.mrb[0].mxu0
      %v4598 = vadd.f32 %v4485, %v4597
      %v4599 = vpop.f32.mrb[0].mxu0
      %v4600 = vadd.f32 %v4487, %v4599
      %v4601 = vpop.f32.mrb[0].mxu0
      %v4602 = vadd.f32 %v4489, %v4601
      %4603 = vmatprep.mubr.bf16.mxu0 %v1157
      %4604 = vmatmul.mubr.bf16.gmra.mrb[0].mxu0 %v1156
      %v4605 = vpop.f32.mrb[0].mxu0
      %v4606 = vadd.f32 %v4493, %v4605
      %v4607 = vpop.f32.mrb[0].mxu0
      %v4608 = vadd.f32 %v4495, %v4607
      %v4609 = vpop.f32.mrb[0].mxu0
      %v4610 = vadd.f32 %v4497, %v4609
      %v4611 = vpop.f32.mrb[0].mxu0
      %v4612 = vadd.f32 %v4499, %v4611
      %4613 = vmatprep.mubr.bf16.mxu0 %v1165
      %4614 = vmatmul.mubr.bf16.gmra.mrb[0].mxu0 %v1164
      %v4615 = vpop.f32.mrb[0].mxu0
      %v4616 = vadd.f32 %v4503, %v4615
      %v4617 = vpop.f32.mrb[0].mxu0
      %v4618 = vadd.f32 %v4505, %v4617
      %v4619 = vpop.f32.mrb[0].mxu0
      %v4620 = vadd.f32 %v4507, %v4619
      %v4621 = vpop.f32.mrb[0].mxu0
      %v4622 = vadd.f32 %v4509, %v4621
      %4623 = vmatprep.mubr.bf16.mxu0 %v1173
      %4624 = vmatmul.mubr.bf16.gmra.mrb[0].mxu0 %v1172
      %v4625 = vpop.f32.mrb[0].mxu0
      %v4626 = vadd.f32 %v4513, %v4625
      %v4627 = vpop.f32.mrb[0].mxu0
      %v4628 = vadd.f32 %v4515, %v4627
      %v4629 = vpop.f32.mrb[0].mxu0
      %v4630 = vadd.f32 %v4517, %v4629
      %v4631 = vpop.f32.mrb[0].mxu0
      %v4632 = vadd.f32 %v4519, %v4631
      %4633 = vdwg.mxu0
      %4634 = vmatprep.subr.bf16.mxu0 %v3033
      %4635 = vmatpush1.bf16.msra.mxu0 %v3032
      %4636 = vmatprep.subr.bf16.mxu0 %v3042
      %4637 = vmatpush1.bf16.msra.mxu0 %v3041
      %4638 = vmatprep.subr.bf16.mxu0 %v3051
      %4639 = vmatpush1.bf16.msra.mxu0 %v3050
      %4640 = vmatprep.subr.bf16.mxu0 %v3060
      %4641 = vmatpush1.bf16.msra.mxu0 %v3059
      %4642 = vmatprep.subr.bf16.mxu0 %v3069
      %4643 = vmatpush1.bf16.msra.mxu0 %v3068
      %4644 = vmatprep.subr.bf16.mxu0 %v3078
      %4645 = vmatpush1.bf16.msra.mxu0 %v3077
      %4646 = vmatprep.subr.bf16.mxu0 %v3087
      %4647 = vmatpush1.bf16.msra.mxu0 %v3086
      %4648 = vmatprep.subr.bf16.mxu0 %v3096
      %4649 = vmatpush1.bf16.msra.mxu0 %v3095
      %4650 = vmatprep.subr.bf16.mxu0 %v3105
      %4651 = vmatpush1.bf16.msra.mxu0 %v3104
      %4652 = vmatprep.subr.bf16.mxu0 %v3114
      %4653 = vmatpush1.bf16.msra.mxu0 %v3113
      %4654 = vmatprep.subr.bf16.mxu0 %v3123
      %4655 = vmatpush1.bf16.msra.mxu0 %v3122
      %4656 = vmatprep.subr.bf16.mxu0 %v3132
      %4657 = vmatpush1.bf16.msra.mxu0 %v3131
      %4658 = vmatprep.subr.bf16.mxu0 %v3141
      %4659 = vmatpush1.bf16.msra.mxu0 %v3140
      %4660 = vmatprep.subr.bf16.mxu0 %v3150
      %4661 = vmatpush1.bf16.msra.mxu0 %v3149
      %4662 = vmatprep.subr.bf16.mxu0 %v3159
      %4663 = vmatpush1.bf16.msra.mxu0 %v3158
      %4664 = vmatprep.subr.bf16.mxu0 %v3168
      %4665 = vmatpush1.bf16.msra.mxu0 %v3167
      %4666 = vmatprep.mubr.bf16.mxu0 %v1111
      %4667 = vmatmul.mubr.bf16.gmra.mrb[0].mxu0 %v1110
      %v4668 = vpop.f32.mrb[0].mxu0
      %v4669 = vadd.f32 0.0, %v4668
      %v4670 = vpop.f32.mrb[0].mxu0
      %v4671 = vadd.f32 0.0, %v4670
      %v4672 = vpop.f32.mrb[0].mxu0
      %v4673 = vadd.f32 0.0, %v4672
      %v4674 = vpop.f32.mrb[0].mxu0
      %v4675 = vadd.f32 0.0, %v4674
      %4676 = vmatprep.mubr.bf16.mxu0 %v1119
      %4677 = vmatmul.mubr.bf16.gmra.mrb[0].mxu0 %v1118
      %v4678 = vpop.f32.mrb[0].mxu0
      %v4679 = vadd.f32 0.0, %v4678
      %v4680 = vpop.f32.mrb[0].mxu0
      %v4681 = vadd.f32 0.0, %v4680
      %v4682 = vpop.f32.mrb[0].mxu0
      %v4683 = vadd.f32 0.0, %v4682
      %v4684 = vpop.f32.mrb[0].mxu0
      %v4685 = vadd.f32 0.0, %v4684
      %4686 = vmatprep.mubr.bf16.mxu0 %v1127
      %4687 = vmatmul.mubr.bf16.gmra.mrb[0].mxu0 %v1126
      %v4688 = vpop.f32.mrb[0].mxu0
      %v4689 = vadd.f32 0.0, %v4688
      %v4690 = vpop.f32.mrb[0].mxu0
      %v4691 = vadd.f32 0.0, %v4690
      %v4692 = vpop.f32.mrb[0].mxu0
      %v4693 = vadd.f32 0.0, %v4692
      %v4694 = vpop.f32.mrb[0].mxu0
      %v4695 = vadd.f32 0.0, %v4694
      %4696 = vmatprep.mubr.bf16.mxu0 %v1135
      %4697 = vmatmul.mubr.bf16.gmra.mrb[0].mxu0 %v1134
      %v4698 = vpop.f32.mrb[0].mxu0
      %v4699 = vadd.f32 0.0, %v4698
      %v4700 = vpop.f32.mrb[0].mxu0
      %v4701 = vadd.f32 0.0, %v4700
      %v4702 = vpop.f32.mrb[0].mxu0
      %v4703 = vadd.f32 0.0, %v4702
      %v4704 = vpop.f32.mrb[0].mxu0
      %v4705 = vadd.f32 0.0, %v4704
      %4706 = vmatprep.mubr.bf16.mxu0 %v1143
      %4707 = vmatmul.mubr.bf16.gmra.mrb[0].mxu0 %v1142
      %v4708 = vpop.f32.mrb[0].mxu0
      %v4709 = vadd.f32 0.0, %v4708
      %v4710 = vpop.f32.mrb[0].mxu0
      %v4711 = vadd.f32 0.0, %v4710
      %v4712 = vpop.f32.mrb[0].mxu0
      %v4713 = vadd.f32 0.0, %v4712
      %v4714 = vpop.f32.mrb[0].mxu0
      %v4715 = vadd.f32 0.0, %v4714
      %4716 = vmatprep.mubr.bf16.mxu0 %v1151
      %4717 = vmatmul.mubr.bf16.gmra.mrb[0].mxu0 %v1150
      %v4718 = vpop.f32.mrb[0].mxu0
      %v4719 = vadd.f32 0.0, %v4718
      %v4720 = vpop.f32.mrb[0].mxu0
      %v4721 = vadd.f32 0.0, %v4720
      %v4722 = vpop.f32.mrb[0].mxu0
      %v4723 = vadd.f32 0.0, %v4722
      %v4724 = vpop.f32.mrb[0].mxu0
      %v4725 = vadd.f32 0.0, %v4724
      %4726 = vmatprep.mubr.bf16.mxu0 %v1159
      %4727 = vmatmul.mubr.bf16.gmra.mrb[0].mxu0 %v1158
      %v4728 = vpop.f32.mrb[0].mxu0
      %v4729 = vadd.f32 0.0, %v4728
      %v4730 = vpop.f32.mrb[0].mxu0
      %v4731 = vadd.f32 0.0, %v4730
      %v4732 = vpop.f32.mrb[0].mxu0
      %v4733 = vadd.f32 0.0, %v4732
      %v4734 = vpop.f32.mrb[0].mxu0
      %v4735 = vadd.f32 0.0, %v4734
      %4736 = vmatprep.mubr.bf16.mxu0 %v1167
      %4737 = vmatmul.mubr.bf16.gmra.mrb[0].mxu0 %v1166
      %v4738 = vpop.f32.mrb[0].mxu0
      %v4739 = vadd.f32 0.0, %v4738
      %v4740 = vpop.f32.mrb[0].mxu0
      %v4741 = vadd.f32 0.0, %v4740
      %v4742 = vpop.f32.mrb[0].mxu0
      %v4743 = vadd.f32 0.0, %v4742
      %v4744 = vpop.f32.mrb[0].mxu0
      %v4745 = vadd.f32 0.0, %v4744
      %4746 = vdwg.mxu0
      %4747 = vmatprep.subr.bf16.mxu0 %v3177
      %4748 = vmatpush1.bf16.msra.mxu0 %v3176
      %4749 = vmatprep.subr.bf16.mxu0 %v3186
      %4750 = vmatpush1.bf16.msra.mxu0 %v3185
      %4751 = vmatprep.subr.bf16.mxu0 %v3195
      %4752 = vmatpush1.bf16.msra.mxu0 %v3194
      %4753 = vmatprep.subr.bf16.mxu0 %v3204
      %4754 = vmatpush1.bf16.msra.mxu0 %v3203
      %4755 = vmatprep.subr.bf16.mxu0 %v3213
      %4756 = vmatpush1.bf16.msra.mxu0 %v3212
      %4757 = vmatprep.subr.bf16.mxu0 %v3222
      %4758 = vmatpush1.bf16.msra.mxu0 %v3221
      %4759 = vmatprep.subr.bf16.mxu0 %v3231
      %4760 = vmatpush1.bf16.msra.mxu0 %v3230
      %4761 = vmatprep.subr.bf16.mxu0 %v3240
      %4762 = vmatpush1.bf16.msra.mxu0 %v3239
      %4763 = vmatprep.subr.bf16.mxu0 %v3249
      %4764 = vmatpush1.bf16.msra.mxu0 %v3248
      %4765 = vmatprep.subr.bf16.mxu0 %v3258
      %4766 = vmatpush1.bf16.msra.mxu0 %v3257
      %4767 = vmatprep.subr.bf16.mxu0 %v3267
      %4768 = vmatpush1.bf16.msra.mxu0 %v3266
      %4769 = vmatprep.subr.bf16.mxu0 %v3276
      %4770 = vmatpush1.bf16.msra.mxu0 %v3275
      %4771 = vmatprep.subr.bf16.mxu0 %v3285
      %4772 = vmatpush1.bf16.msra.mxu0 %v3284
      %4773 = vmatprep.subr.bf16.mxu0 %v3294
      %4774 = vmatpush1.bf16.msra.mxu0 %v3293
      %4775 = vmatprep.subr.bf16.mxu0 %v3303
      %4776 = vmatpush1.bf16.msra.mxu0 %v3302
      %4777 = vmatprep.subr.bf16.mxu0 %v3312
      %4778 = vmatpush1.bf16.msra.mxu0 %v3311
      %4779 = vmatprep.mubr.bf16.mxu0 %v1113
      %4780 = vmatmul.mubr.bf16.gmra.mrb[0].mxu0 %v1112
      %v4781 = vpop.f32.mrb[0].mxu0
      %v4782 = vadd.f32 %v4669, %v4781
      %v4783 = vpop.f32.mrb[0].mxu0
      %v4784 = vadd.f32 %v4671, %v4783
      %v4785 = vpop.f32.mrb[0].mxu0
      %v4786 = vadd.f32 %v4673, %v4785
      %v4787 = vpop.f32.mrb[0].mxu0
      %v4788 = vadd.f32 %v4675, %v4787
      %4789 = vmatprep.mubr.bf16.mxu0 %v1121
      %4790 = vmatmul.mubr.bf16.gmra.mrb[0].mxu0 %v1120
      %v4791 = vpop.f32.mrb[0].mxu0
      %v4792 = vadd.f32 %v4679, %v4791
      %v4793 = vpop.f32.mrb[0].mxu0
      %v4794 = vadd.f32 %v4681, %v4793
      %v4795 = vpop.f32.mrb[0].mxu0
      %v4796 = vadd.f32 %v4683, %v4795
      %v4797 = vpop.f32.mrb[0].mxu0
      %v4798 = vadd.f32 %v4685, %v4797
      %4799 = vmatprep.mubr.bf16.mxu0 %v1129
      %4800 = vmatmul.mubr.bf16.gmra.mrb[0].mxu0 %v1128
      %v4801 = vpop.f32.mrb[0].mxu0
      %v4802 = vadd.f32 %v4689, %v4801
      %v4803 = vpop.f32.mrb[0].mxu0
      %v4804 = vadd.f32 %v4691, %v4803
      %v4805 = vpop.f32.mrb[0].mxu0
      %v4806 = vadd.f32 %v4693, %v4805
      %v4807 = vpop.f32.mrb[0].mxu0
      %v4808 = vadd.f32 %v4695, %v4807
      %4809 = vmatprep.mubr.bf16.mxu0 %v1137
      %4810 = vmatmul.mubr.bf16.gmra.mrb[0].mxu0 %v1136
      %v4811 = vpop.f32.mrb[0].mxu0
      %v4812 = vadd.f32 %v4699, %v4811
      %v4813 = vpop.f32.mrb[0].mxu0
      %v4814 = vadd.f32 %v4701, %v4813
      %v4815 = vpop.f32.mrb[0].mxu0
      %v4816 = vadd.f32 %v4703, %v4815
      %v4817 = vpop.f32.mrb[0].mxu0
      %v4818 = vadd.f32 %v4705, %v4817
      %4819 = vmatprep.mubr.bf16.mxu0 %v1145
      %4820 = vmatmul.mubr.bf16.gmra.mrb[0].mxu0 %v1144
      %v4821 = vpop.f32.mrb[0].mxu0
      %v4822 = vadd.f32 %v4709, %v4821
      %v4823 = vpop.f32.mrb[0].mxu0
      %v4824 = vadd.f32 %v4711, %v4823
      %v4825 = vpop.f32.mrb[0].mxu0
      %v4826 = vadd.f32 %v4713, %v4825
      %v4827 = vpop.f32.mrb[0].mxu0
      %v4828 = vadd.f32 %v4715, %v4827
      %4829 = vmatprep.mubr.bf16.mxu0 %v1153
      %4830 = vmatmul.mubr.bf16.gmra.mrb[0].mxu0 %v1152
      %v4831 = vpop.f32.mrb[0].mxu0
      %v4832 = vadd.f32 %v4719, %v4831
      %v4833 = vpop.f32.mrb[0].mxu0
      %v4834 = vadd.f32 %v4721, %v4833
      %v4835 = vpop.f32.mrb[0].mxu0
      %v4836 = vadd.f32 %v4723, %v4835
      %v4837 = vpop.f32.mrb[0].mxu0
      %v4838 = vadd.f32 %v4725, %v4837
      %4839 = vmatprep.mubr.bf16.mxu0 %v1161
      %4840 = vmatmul.mubr.bf16.gmra.mrb[0].mxu0 %v1160
      %v4841 = vpop.f32.mrb[0].mxu0
      %v4842 = vadd.f32 %v4729, %v4841
      %v4843 = vpop.f32.mrb[0].mxu0
      %v4844 = vadd.f32 %v4731, %v4843
      %v4845 = vpop.f32.mrb[0].mxu0
      %v4846 = vadd.f32 %v4733, %v4845
      %v4847 = vpop.f32.mrb[0].mxu0
      %v4848 = vadd.f32 %v4735, %v4847
      %4849 = vmatprep.mubr.bf16.mxu0 %v1169
      %4850 = vmatmul.mubr.bf16.gmra.mrb[0].mxu0 %v1168
      %v4851 = vpop.f32.mrb[0].mxu0
      %v4852 = vadd.f32 %v4739, %v4851
      %v4853 = vpop.f32.mrb[0].mxu0
      %v4854 = vadd.f32 %v4741, %v4853
      %v4855 = vpop.f32.mrb[0].mxu0
      %v4856 = vadd.f32 %v4743, %v4855
      %v4857 = vpop.f32.mrb[0].mxu0
      %v4858 = vadd.f32 %v4745, %v4857
      %4859 = vdwg.mxu0
      %4860 = vmatprep.subr.bf16.mxu0 %v3321
      %4861 = vmatpush1.bf16.msra.mxu0 %v3320
      %4862 = vmatprep.subr.bf16.mxu0 %v3330
      %4863 = vmatpush1.bf16.msra.mxu0 %v3329
      %4864 = vmatprep.subr.bf16.mxu0 %v3339
      %4865 = vmatpush1.bf16.msra.mxu0 %v3338
      %4866 = vmatprep.subr.bf16.mxu0 %v3348
      %4867 = vmatpush1.bf16.msra.mxu0 %v3347
      %4868 = vmatprep.subr.bf16.mxu0 %v3357
      %4869 = vmatpush1.bf16.msra.mxu0 %v3356
      %4870 = vmatprep.subr.bf16.mxu0 %v3366
      %4871 = vmatpush1.bf16.msra.mxu0 %v3365
      %4872 = vmatprep.subr.bf16.mxu0 %v3375
      %4873 = vmatpush1.bf16.msra.mxu0 %v3374
      %4874 = vmatprep.subr.bf16.mxu0 %v3384
      %4875 = vmatpush1.bf16.msra.mxu0 %v3383
      %4876 = vmatprep.subr.bf16.mxu0 %v3393
      %4877 = vmatpush1.bf16.msra.mxu0 %v3392
      %4878 = vmatprep.subr.bf16.mxu0 %v3402
      %4879 = vmatpush1.bf16.msra.mxu0 %v3401
      %4880 = vmatprep.subr.bf16.mxu0 %v3411
      %4881 = vmatpush1.bf16.msra.mxu0 %v3410
      %4882 = vmatprep.subr.bf16.mxu0 %v3420
      %4883 = vmatpush1.bf16.msra.mxu0 %v3419
      %4884 = vmatprep.subr.bf16.mxu0 %v3429
      %4885 = vmatpush1.bf16.msra.mxu0 %v3428
      %4886 = vmatprep.subr.bf16.mxu0 %v3438
      %4887 = vmatpush1.bf16.msra.mxu0 %v3437
      %4888 = vmatprep.subr.bf16.mxu0 %v3447
      %4889 = vmatpush1.bf16.msra.mxu0 %v3446
      %4890 = vmatprep.subr.bf16.mxu0 %v3456
      %4891 = vmatpush1.bf16.msra.mxu0 %v3455
      %4892 = vmatprep.mubr.bf16.mxu0 %v1115
      %4893 = vmatmul.mubr.bf16.gmra.mrb[0].mxu0 %v1114
      %v4894 = vpop.f32.mrb[0].mxu0
      %v4895 = vadd.f32 %v4782, %v4894
      %v4896 = vpop.f32.mrb[0].mxu0
      %v4897 = vadd.f32 %v4784, %v4896
      %v4898 = vpop.f32.mrb[0].mxu0
      %v4899 = vadd.f32 %v4786, %v4898
      %v4900 = vpop.f32.mrb[0].mxu0
      %v4901 = vadd.f32 %v4788, %v4900
      %4902 = vmatprep.mubr.bf16.mxu0 %v1123
      %4903 = vmatmul.mubr.bf16.gmra.mrb[0].mxu0 %v1122
      %v4904 = vpop.f32.mrb[0].mxu0
      %v4905 = vadd.f32 %v4792, %v4904
      %v4906 = vpop.f32.mrb[0].mxu0
      %v4907 = vadd.f32 %v4794, %v4906
      %v4908 = vpop.f32.mrb[0].mxu0
      %v4909 = vadd.f32 %v4796, %v4908
      %v4910 = vpop.f32.mrb[0].mxu0
      %v4911 = vadd.f32 %v4798, %v4910
      %4912 = vmatprep.mubr.bf16.mxu0 %v1131
      %4913 = vmatmul.mubr.bf16.gmra.mrb[0].mxu0 %v1130
      %v4914 = vpop.f32.mrb[0].mxu0
      %v4915 = vadd.f32 %v4802, %v4914
      %v4916 = vpop.f32.mrb[0].mxu0
      %v4917 = vadd.f32 %v4804, %v4916
      %v4918 = vpop.f32.mrb[0].mxu0
      %v4919 = vadd.f32 %v4806, %v4918
      %v4920 = vpop.f32.mrb[0].mxu0
      %v4921 = vadd.f32 %v4808, %v4920
      %4922 = vmatprep.mubr.bf16.mxu0 %v1139
      %4923 = vmatmul.mubr.bf16.gmra.mrb[0].mxu0 %v1138
      %v4924 = vpop.f32.mrb[0].mxu0
      %v4925 = vadd.f32 %v4812, %v4924
      %v4926 = vpop.f32.mrb[0].mxu0
      %v4927 = vadd.f32 %v4814, %v4926
      %v4928 = vpop.f32.mrb[0].mxu0
      %v4929 = vadd.f32 %v4816, %v4928
      %v4930 = vpop.f32.mrb[0].mxu0
      %v4931 = vadd.f32 %v4818, %v4930
      %4932 = vmatprep.mubr.bf16.mxu0 %v1147
      %4933 = vmatmul.mubr.bf16.gmra.mrb[0].mxu0 %v1146
      %v4934 = vpop.f32.mrb[0].mxu0
      %v4935 = vadd.f32 %v4822, %v4934
      %v4936 = vpop.f32.mrb[0].mxu0
      %v4937 = vadd.f32 %v4824, %v4936
      %v4938 = vpop.f32.mrb[0].mxu0
      %v4939 = vadd.f32 %v4826, %v4938
      %v4940 = vpop.f32.mrb[0].mxu0
      %v4941 = vadd.f32 %v4828, %v4940
      %4942 = vmatprep.mubr.bf16.mxu0 %v1155
      %4943 = vmatmul.mubr.bf16.gmra.mrb[0].mxu0 %v1154
      %v4944 = vpop.f32.mrb[0].mxu0
      %v4945 = vadd.f32 %v4832, %v4944
      %v4946 = vpop.f32.mrb[0].mxu0
      %v4947 = vadd.f32 %v4834, %v4946
      %v4948 = vpop.f32.mrb[0].mxu0
      %v4949 = vadd.f32 %v4836, %v4948
      %v4950 = vpop.f32.mrb[0].mxu0
      %v4951 = vadd.f32 %v4838, %v4950
      %4952 = vmatprep.mubr.bf16.mxu0 %v1163
      %4953 = vmatmul.mubr.bf16.gmra.mrb[0].mxu0 %v1162
      %v4954 = vpop.f32.mrb[0].mxu0
      %v4955 = vadd.f32 %v4842, %v4954
      %v4956 = vpop.f32.mrb[0].mxu0
      %v4957 = vadd.f32 %v4844, %v4956
      %v4958 = vpop.f32.mrb[0].mxu0
      %v4959 = vadd.f32 %v4846, %v4958
      %v4960 = vpop.f32.mrb[0].mxu0
      %v4961 = vadd.f32 %v4848, %v4960
      %4962 = vmatprep.mubr.bf16.mxu0 %v1171
      %4963 = vmatmul.mubr.bf16.gmra.mrb[0].mxu0 %v1170
      %v4964 = vpop.f32.mrb[0].mxu0
      %v4965 = vadd.f32 %v4852, %v4964
      %v4966 = vpop.f32.mrb[0].mxu0
      %v4967 = vadd.f32 %v4854, %v4966
      %v4968 = vpop.f32.mrb[0].mxu0
      %v4969 = vadd.f32 %v4856, %v4968
      %v4970 = vpop.f32.mrb[0].mxu0
      %v4971 = vadd.f32 %v4858, %v4970
      %4972 = vdwg.mxu0
      %4973 = vmatprep.subr.bf16.mxu0 %v3465
      %4974 = vmatpush1.bf16.msra.mxu0 %v3464
      %4975 = vmatprep.subr.bf16.mxu0 %v3474
      %4976 = vmatpush1.bf16.msra.mxu0 %v3473
      %4977 = vmatprep.subr.bf16.mxu0 %v3483
      %4978 = vmatpush1.bf16.msra.mxu0 %v3482
      %4979 = vmatprep.subr.bf16.mxu0 %v3492
      %4980 = vmatpush1.bf16.msra.mxu0 %v3491
      %4981 = vmatprep.subr.bf16.mxu0 %v3501
      %4982 = vmatpush1.bf16.msra.mxu0 %v3500
      %4983 = vmatprep.subr.bf16.mxu0 %v3510
      %4984 = vmatpush1.bf16.msra.mxu0 %v3509
      %4985 = vmatprep.subr.bf16.mxu0 %v3519
      %4986 = vmatpush1.bf16.msra.mxu0 %v3518
      %4987 = vmatprep.subr.bf16.mxu0 %v3528
      %4988 = vmatpush1.bf16.msra.mxu0 %v3527
      %4989 = vmatprep.subr.bf16.mxu0 %v3537
      %4990 = vmatpush1.bf16.msra.mxu0 %v3536
      %4991 = vmatprep.subr.bf16.mxu0 %v3546
      %4992 = vmatpush1.bf16.msra.mxu0 %v3545
      %4993 = vmatprep.subr.bf16.mxu0 %v3555
      %4994 = vmatpush1.bf16.msra.mxu0 %v3554
      %4995 = vmatprep.subr.bf16.mxu0 %v3564
      %4996 = vmatpush1.bf16.msra.mxu0 %v3563
      %4997 = vmatprep.subr.bf16.mxu0 %v3573
      %4998 = vmatpush1.bf16.msra.mxu0 %v3572
      %4999 = vmatprep.subr.bf16.mxu0 %v3582
      %5000 = vmatpush1.bf16.msra.mxu0 %v3581
      %5001 = vmatprep.subr.bf16.mxu0 %v3591
      %5002 = vmatpush1.bf16.msra.mxu0 %v3590
      %5003 = vmatprep.subr.bf16.mxu0 %v3600
      %5004 = vmatpush1.bf16.msra.mxu0 %v3599
      %5005 = vmatprep.mubr.bf16.mxu0 %v1117
      %5006 = vmatmul.mubr.bf16.gmra.mrb[0].mxu0 %v1116
      %v5007 = vpop.f32.mrb[0].mxu0
      %v5008 = vadd.f32 %v4895, %v5007
      %v5009 = vpop.f32.mrb[0].mxu0
      %v5010 = vadd.f32 %v4897, %v5009
      %v5011 = vpop.f32.mrb[0].mxu0
      %v5012 = vadd.f32 %v4899, %v5011
      %v5013 = vpop.f32.mrb[0].mxu0
      %v5014 = vadd.f32 %v4901, %v5013
      %5015 = vmatprep.mubr.bf16.mxu0 %v1125
      %5016 = vmatmul.mubr.bf16.gmra.mrb[0].mxu0 %v1124
      %v5017 = vpop.f32.mrb[0].mxu0
      %v5018 = vadd.f32 %v4905, %v5017
      %v5019 = vpop.f32.mrb[0].mxu0
      %v5020 = vadd.f32 %v4907, %v5019
      %v5021 = vpop.f32.mrb[0].mxu0
      %v5022 = vadd.f32 %v4909, %v5021
      %v5023 = vpop.f32.mrb[0].mxu0
      %v5024 = vadd.f32 %v4911, %v5023
      %5025 = vmatprep.mubr.bf16.mxu0 %v1133
      %5026 = vmatmul.mubr.bf16.gmra.mrb[0].mxu0 %v1132
      %v5027 = vpop.f32.mrb[0].mxu0
      %v5028 = vadd.f32 %v4915, %v5027
      %v5029 = vpop.f32.mrb[0].mxu0
      %v5030 = vadd.f32 %v4917, %v5029
      %v5031 = vpop.f32.mrb[0].mxu0
      %v5032 = vadd.f32 %v4919, %v5031
      %v5033 = vpop.f32.mrb[0].mxu0
      %v5034 = vadd.f32 %v4921, %v5033
      %5035 = vmatprep.mubr.bf16.mxu0 %v1141
      %5036 = vmatmul.mubr.bf16.gmra.mrb[0].mxu0 %v1140
      %v5037 = vpop.f32.mrb[0].mxu0
      %v5038 = vadd.f32 %v4925, %v5037
      %v5039 = vpop.f32.mrb[0].mxu0
      %v5040 = vadd.f32 %v4927, %v5039
      %v5041 = vpop.f32.mrb[0].mxu0
      %v5042 = vadd.f32 %v4929, %v5041
      %v5043 = vpop.f32.mrb[0].mxu0
      %v5044 = vadd.f32 %v4931, %v5043
      %5045 = vmatprep.mubr.bf16.mxu0 %v1149
      %5046 = vmatmul.mubr.bf16.gmra.mrb[0].mxu0 %v1148
      %v5047 = vpop.f32.mrb[0].mxu0
      %v5048 = vadd.f32 %v4935, %v5047
      %v5049 = vpop.f32.mrb[0].mxu0
      %v5050 = vadd.f32 %v4937, %v5049
      %v5051 = vpop.f32.mrb[0].mxu0
      %v5052 = vadd.f32 %v4939, %v5051
      %v5053 = vpop.f32.mrb[0].mxu0
      %v5054 = vadd.f32 %v4941, %v5053
      %5055 = vmatprep.mubr.bf16.mxu0 %v1157
      %5056 = vmatmul.mubr.bf16.gmra.mrb[0].mxu0 %v1156
      %v5057 = vpop.f32.mrb[0].mxu0
      %v5058 = vadd.f32 %v4945, %v5057
      %v5059 = vpop.f32.mrb[0].mxu0
      %v5060 = vadd.f32 %v4947, %v5059
      %v5061 = vpop.f32.mrb[0].mxu0
      %v5062 = vadd.f32 %v4949, %v5061
      %v5063 = vpop.f32.mrb[0].mxu0
      %v5064 = vadd.f32 %v4951, %v5063
      %5065 = vmatprep.mubr.bf16.mxu0 %v1165
      %5066 = vmatmul.mubr.bf16.gmra.mrb[0].mxu0 %v1164
      %v5067 = vpop.f32.mrb[0].mxu0
      %v5068 = vadd.f32 %v4955, %v5067
      %v5069 = vpop.f32.mrb[0].mxu0
      %v5070 = vadd.f32 %v4957, %v5069
      %v5071 = vpop.f32.mrb[0].mxu0
      %v5072 = vadd.f32 %v4959, %v5071
      %v5073 = vpop.f32.mrb[0].mxu0
      %v5074 = vadd.f32 %v4961, %v5073
      %5075 = vmatprep.mubr.bf16.mxu0 %v1173
      %5076 = vmatmul.mubr.bf16.gmra.mrb[0].mxu0 %v1172
      %v5077 = vpop.f32.mrb[0].mxu0
      %v5078 = vadd.f32 %v4965, %v5077
      %v5079 = vpop.f32.mrb[0].mxu0
      %v5080 = vadd.f32 %v4967, %v5079
      %v5081 = vpop.f32.mrb[0].mxu0
      %v5082 = vadd.f32 %v4969, %v5081
      %v5083 = vpop.f32.mrb[0].mxu0
      %v5084 = vadd.f32 %v4971, %v5083
      %5085 = vdwg.mxu0
      %5086 = vmatprep.subr.bf16.mxu0 %v3035
      %5087 = vmatpush1.bf16.msra.mxu0 %v3034
      %5088 = vmatprep.subr.bf16.mxu0 %v3044
      %5089 = vmatpush1.bf16.msra.mxu0 %v3043
      %5090 = vmatprep.subr.bf16.mxu0 %v3053
      %5091 = vmatpush1.bf16.msra.mxu0 %v3052
      %5092 = vmatprep.subr.bf16.mxu0 %v3062
      %5093 = vmatpush1.bf16.msra.mxu0 %v3061
      %5094 = vmatprep.subr.bf16.mxu0 %v3071
      %5095 = vmatpush1.bf16.msra.mxu0 %v3070
      %5096 = vmatprep.subr.bf16.mxu0 %v3080
      %5097 = vmatpush1.bf16.msra.mxu0 %v3079
      %5098 = vmatprep.subr.bf16.mxu0 %v3089
      %5099 = vmatpush1.bf16.msra.mxu0 %v3088
      %5100 = vmatprep.subr.bf16.mxu0 %v3098
      %5101 = vmatpush1.bf16.msra.mxu0 %v3097
      %5102 = vmatprep.subr.bf16.mxu0 %v3107
      %5103 = vmatpush1.bf16.msra.mxu0 %v3106
      %5104 = vmatprep.subr.bf16.mxu0 %v3116
      %5105 = vmatpush1.bf16.msra.mxu0 %v3115
      %5106 = vmatprep.subr.bf16.mxu0 %v3125
      %5107 = vmatpush1.bf16.msra.mxu0 %v3124
      %5108 = vmatprep.subr.bf16.mxu0 %v3134
      %5109 = vmatpush1.bf16.msra.mxu0 %v3133
      %5110 = vmatprep.subr.bf16.mxu0 %v3143
      %5111 = vmatpush1.bf16.msra.mxu0 %v3142
      %5112 = vmatprep.subr.bf16.mxu0 %v3152
      %5113 = vmatpush1.bf16.msra.mxu0 %v3151
      %5114 = vmatprep.subr.bf16.mxu0 %v3161
      %5115 = vmatpush1.bf16.msra.mxu0 %v3160
      %5116 = vmatprep.subr.bf16.mxu0 %v3170
      %5117 = vmatpush1.bf16.msra.mxu0 %v3169
      %5118 = vmatprep.mubr.bf16.mxu0 %v1111
      %5119 = vmatmul.mubr.bf16.gmra.mrb[0].mxu0 %v1110
      %v5120 = vpop.f32.mrb[0].mxu0
      %v5121 = vadd.f32 0.0, %v5120
      %v5122 = vpop.f32.mrb[0].mxu0
      %v5123 = vadd.f32 0.0, %v5122
      %v5124 = vpop.f32.mrb[0].mxu0
      %v5125 = vadd.f32 0.0, %v5124
      %v5126 = vpop.f32.mrb[0].mxu0
      %v5127 = vadd.f32 0.0, %v5126
      %5128 = vmatprep.mubr.bf16.mxu0 %v1119
      %5129 = vmatmul.mubr.bf16.gmra.mrb[0].mxu0 %v1118
      %v5130 = vpop.f32.mrb[0].mxu0
      %v5131 = vadd.f32 0.0, %v5130
      %v5132 = vpop.f32.mrb[0].mxu0
      %v5133 = vadd.f32 0.0, %v5132
      %v5134 = vpop.f32.mrb[0].mxu0
      %v5135 = vadd.f32 0.0, %v5134
      %v5136 = vpop.f32.mrb[0].mxu0
      %v5137 = vadd.f32 0.0, %v5136
      %5138 = vmatprep.mubr.bf16.mxu0 %v1127
      %5139 = vmatmul.mubr.bf16.gmra.mrb[0].mxu0 %v1126
      %v5140 = vpop.f32.mrb[0].mxu0
      %v5141 = vadd.f32 0.0, %v5140
      %v5142 = vpop.f32.mrb[0].mxu0
      %v5143 = vadd.f32 0.0, %v5142
      %v5144 = vpop.f32.mrb[0].mxu0
      %v5145 = vadd.f32 0.0, %v5144
      %v5146 = vpop.f32.mrb[0].mxu0
      %v5147 = vadd.f32 0.0, %v5146
      %5148 = vmatprep.mubr.bf16.mxu0 %v1135
      %5149 = vmatmul.mubr.bf16.gmra.mrb[0].mxu0 %v1134
      %v5150 = vpop.f32.mrb[0].mxu0
      %v5151 = vadd.f32 0.0, %v5150
      %v5152 = vpop.f32.mrb[0].mxu0
      %v5153 = vadd.f32 0.0, %v5152
      %v5154 = vpop.f32.mrb[0].mxu0
      %v5155 = vadd.f32 0.0, %v5154
      %v5156 = vpop.f32.mrb[0].mxu0
      %v5157 = vadd.f32 0.0, %v5156
      %5158 = vmatprep.mubr.bf16.mxu0 %v1143
      %5159 = vmatmul.mubr.bf16.gmra.mrb[0].mxu0 %v1142
      %v5160 = vpop.f32.mrb[0].mxu0
      %v5161 = vadd.f32 0.0, %v5160
      %v5162 = vpop.f32.mrb[0].mxu0
      %v5163 = vadd.f32 0.0, %v5162
      %v5164 = vpop.f32.mrb[0].mxu0
      %v5165 = vadd.f32 0.0, %v5164
      %v5166 = vpop.f32.mrb[0].mxu0
      %v5167 = vadd.f32 0.0, %v5166
      %5168 = vmatprep.mubr.bf16.mxu0 %v1151
      %5169 = vmatmul.mubr.bf16.gmra.mrb[0].mxu0 %v1150
      %v5170 = vpop.f32.mrb[0].mxu0
      %v5171 = vadd.f32 0.0, %v5170
      %v5172 = vpop.f32.mrb[0].mxu0
      %v5173 = vadd.f32 0.0, %v5172
      %v5174 = vpop.f32.mrb[0].mxu0
      %v5175 = vadd.f32 0.0, %v5174
      %v5176 = vpop.f32.mrb[0].mxu0
      %v5177 = vadd.f32 0.0, %v5176
      %5178 = vmatprep.mubr.bf16.mxu0 %v1159
      %5179 = vmatmul.mubr.bf16.gmra.mrb[0].mxu0 %v1158
      %v5180 = vpop.f32.mrb[0].mxu0
      %v5181 = vadd.f32 0.0, %v5180
      %v5182 = vpop.f32.mrb[0].mxu0
      %v5183 = vadd.f32 0.0, %v5182
      %v5184 = vpop.f32.mrb[0].mxu0
      %v5185 = vadd.f32 0.0, %v5184
      %v5186 = vpop.f32.mrb[0].mxu0
      %v5187 = vadd.f32 0.0, %v5186
      %5188 = vmatprep.mubr.bf16.mxu0 %v1167
      %5189 = vmatmul.mubr.bf16.gmra.mrb[0].mxu0 %v1166
      %v5190 = vpop.f32.mrb[0].mxu0
      %v5191 = vadd.f32 0.0, %v5190
      %v5192 = vpop.f32.mrb[0].mxu0
      %v5193 = vadd.f32 0.0, %v5192
      %v5194 = vpop.f32.mrb[0].mxu0
      %v5195 = vadd.f32 0.0, %v5194
      %v5196 = vpop.f32.mrb[0].mxu0
      %v5197 = vadd.f32 0.0, %v5196
      %5198 = vdwg.mxu0
      %5199 = vmatprep.subr.bf16.mxu0 %v3179
      %5200 = vmatpush1.bf16.msra.mxu0 %v3178
      %5201 = vmatprep.subr.bf16.mxu0 %v3188
      %5202 = vmatpush1.bf16.msra.mxu0 %v3187
      %5203 = vmatprep.subr.bf16.mxu0 %v3197
      %5204 = vmatpush1.bf16.msra.mxu0 %v3196
      %5205 = vmatprep.subr.bf16.mxu0 %v3206
      %5206 = vmatpush1.bf16.msra.mxu0 %v3205
      %5207 = vmatprep.subr.bf16.mxu0 %v3215
      %5208 = vmatpush1.bf16.msra.mxu0 %v3214
      %5209 = vmatprep.subr.bf16.mxu0 %v3224
      %5210 = vmatpush1.bf16.msra.mxu0 %v3223
      %5211 = vmatprep.subr.bf16.mxu0 %v3233
      %5212 = vmatpush1.bf16.msra.mxu0 %v3232
      %5213 = vmatprep.subr.bf16.mxu0 %v3242
      %5214 = vmatpush1.bf16.msra.mxu0 %v3241
      %5215 = vmatprep.subr.bf16.mxu0 %v3251
      %5216 = vmatpush1.bf16.msra.mxu0 %v3250
      %5217 = vmatprep.subr.bf16.mxu0 %v3260
      %5218 = vmatpush1.bf16.msra.mxu0 %v3259
      %5219 = vmatprep.subr.bf16.mxu0 %v3269
      %5220 = vmatpush1.bf16.msra.mxu0 %v3268
      %5221 = vmatprep.subr.bf16.mxu0 %v3278
      %5222 = vmatpush1.bf16.msra.mxu0 %v3277
      %5223 = vmatprep.subr.bf16.mxu0 %v3287
      %5224 = vmatpush1.bf16.msra.mxu0 %v3286
      %5225 = vmatprep.subr.bf16.mxu0 %v3296
      %5226 = vmatpush1.bf16.msra.mxu0 %v3295
      %5227 = vmatprep.subr.bf16.mxu0 %v3305
      %5228 = vmatpush1.bf16.msra.mxu0 %v3304
      %5229 = vmatprep.subr.bf16.mxu0 %v3314
      %5230 = vmatpush1.bf16.msra.mxu0 %v3313
      %5231 = vmatprep.mubr.bf16.mxu0 %v1113
      %5232 = vmatmul.mubr.bf16.gmra.mrb[0].mxu0 %v1112
      %v5233 = vpop.f32.mrb[0].mxu0
      %v5234 = vadd.f32 %v5121, %v5233
      %v5235 = vpop.f32.mrb[0].mxu0
      %v5236 = vadd.f32 %v5123, %v5235
      %v5237 = vpop.f32.mrb[0].mxu0
      %v5238 = vadd.f32 %v5125, %v5237
      %v5239 = vpop.f32.mrb[0].mxu0
      %v5240 = vadd.f32 %v5127, %v5239
      %5241 = vmatprep.mubr.bf16.mxu0 %v1121
      %5242 = vmatmul.mubr.bf16.gmra.mrb[0].mxu0 %v1120
      %v5243 = vpop.f32.mrb[0].mxu0
      %v5244 = vadd.f32 %v5131, %v5243
      %v5245 = vpop.f32.mrb[0].mxu0
      %v5246 = vadd.f32 %v5133, %v5245
      %v5247 = vpop.f32.mrb[0].mxu0
      %v5248 = vadd.f32 %v5135, %v5247
      %v5249 = vpop.f32.mrb[0].mxu0
      %v5250 = vadd.f32 %v5137, %v5249
      %5251 = vmatprep.mubr.bf16.mxu0 %v1129
      %5252 = vmatmul.mubr.bf16.gmra.mrb[0].mxu0 %v1128
      %v5253 = vpop.f32.mrb[0].mxu0
      %v5254 = vadd.f32 %v5141, %v5253
      %v5255 = vpop.f32.mrb[0].mxu0
      %v5256 = vadd.f32 %v5143, %v5255
      %v5257 = vpop.f32.mrb[0].mxu0
      %v5258 = vadd.f32 %v5145, %v5257
      %v5259 = vpop.f32.mrb[0].mxu0
      %v5260 = vadd.f32 %v5147, %v5259
      %5261 = vmatprep.mubr.bf16.mxu0 %v1137
      %5262 = vmatmul.mubr.bf16.gmra.mrb[0].mxu0 %v1136
      %v5263 = vpop.f32.mrb[0].mxu0
      %v5264 = vadd.f32 %v5151, %v5263
      %v5265 = vpop.f32.mrb[0].mxu0
      %v5266 = vadd.f32 %v5153, %v5265
      %v5267 = vpop.f32.mrb[0].mxu0
      %v5268 = vadd.f32 %v5155, %v5267
      %v5269 = vpop.f32.mrb[0].mxu0
      %v5270 = vadd.f32 %v5157, %v5269
      %5271 = vmatprep.mubr.bf16.mxu0 %v1145
      %5272 = vmatmul.mubr.bf16.gmra.mrb[0].mxu0 %v1144
      %v5273 = vpop.f32.mrb[0].mxu0
      %v5274 = vadd.f32 %v5161, %v5273
      %v5275 = vpop.f32.mrb[0].mxu0
      %v5276 = vadd.f32 %v5163, %v5275
      %v5277 = vpop.f32.mrb[0].mxu0
      %v5278 = vadd.f32 %v5165, %v5277
      %v5279 = vpop.f32.mrb[0].mxu0
      %v5280 = vadd.f32 %v5167, %v5279
      %5281 = vmatprep.mubr.bf16.mxu0 %v1153
      %5282 = vmatmul.mubr.bf16.gmra.mrb[0].mxu0 %v1152
      %v5283 = vpop.f32.mrb[0].mxu0
      %v5284 = vadd.f32 %v5171, %v5283
      %v5285 = vpop.f32.mrb[0].mxu0
      %v5286 = vadd.f32 %v5173, %v5285
      %v5287 = vpop.f32.mrb[0].mxu0
      %v5288 = vadd.f32 %v5175, %v5287
      %v5289 = vpop.f32.mrb[0].mxu0
      %v5290 = vadd.f32 %v5177, %v5289
      %5291 = vmatprep.mubr.bf16.mxu0 %v1161
      %5292 = vmatmul.mubr.bf16.gmra.mrb[0].mxu0 %v1160
      %v5293 = vpop.f32.mrb[0].mxu0
      %v5294 = vadd.f32 %v5181, %v5293
      %v5295 = vpop.f32.mrb[0].mxu0
      %v5296 = vadd.f32 %v5183, %v5295
      %v5297 = vpop.f32.mrb[0].mxu0
      %v5298 = vadd.f32 %v5185, %v5297
      %v5299 = vpop.f32.mrb[0].mxu0
      %v5300 = vadd.f32 %v5187, %v5299
      %5301 = vmatprep.mubr.bf16.mxu0 %v1169
      %5302 = vmatmul.mubr.bf16.gmra.mrb[0].mxu0 %v1168
      %v5303 = vpop.f32.mrb[0].mxu0
      %v5304 = vadd.f32 %v5191, %v5303
      %v5305 = vpop.f32.mrb[0].mxu0
      %v5306 = vadd.f32 %v5193, %v5305
      %v5307 = vpop.f32.mrb[0].mxu0
      %v5308 = vadd.f32 %v5195, %v5307
      %v5309 = vpop.f32.mrb[0].mxu0
      %v5310 = vadd.f32 %v5197, %v5309
      %5311 = vdwg.mxu0
      %5312 = vmatprep.subr.bf16.mxu0 %v3323
      %5313 = vmatpush1.bf16.msra.mxu0 %v3322
      %5314 = vmatprep.subr.bf16.mxu0 %v3332
      %5315 = vmatpush1.bf16.msra.mxu0 %v3331
      %5316 = vmatprep.subr.bf16.mxu0 %v3341
      %5317 = vmatpush1.bf16.msra.mxu0 %v3340
      %5318 = vmatprep.subr.bf16.mxu0 %v3350
      %5319 = vmatpush1.bf16.msra.mxu0 %v3349
      %5320 = vmatprep.subr.bf16.mxu0 %v3359
      %5321 = vmatpush1.bf16.msra.mxu0 %v3358
      %5322 = vmatprep.subr.bf16.mxu0 %v3368
      %5323 = vmatpush1.bf16.msra.mxu0 %v3367
      %5324 = vmatprep.subr.bf16.mxu0 %v3377
      %5325 = vmatpush1.bf16.msra.mxu0 %v3376
      %5326 = vmatprep.subr.bf16.mxu0 %v3386
      %5327 = vmatpush1.bf16.msra.mxu0 %v3385
      %5328 = vmatprep.subr.bf16.mxu0 %v3395
      %5329 = vmatpush1.bf16.msra.mxu0 %v3394
      %5330 = vmatprep.subr.bf16.mxu0 %v3404
      %5331 = vmatpush1.bf16.msra.mxu0 %v3403
      %5332 = vmatprep.subr.bf16.mxu0 %v3413
      %5333 = vmatpush1.bf16.msra.mxu0 %v3412
      %5334 = vmatprep.subr.bf16.mxu0 %v3422
      %5335 = vmatpush1.bf16.msra.mxu0 %v3421
      %5336 = vmatprep.subr.bf16.mxu0 %v3431
      %5337 = vmatpush1.bf16.msra.mxu0 %v3430
      %5338 = vmatprep.subr.bf16.mxu0 %v3440
      %5339 = vmatpush1.bf16.msra.mxu0 %v3439
      %5340 = vmatprep.subr.bf16.mxu0 %v3449
      %5341 = vmatpush1.bf16.msra.mxu0 %v3448
      %5342 = vmatprep.subr.bf16.mxu0 %v3458
      %5343 = vmatpush1.bf16.msra.mxu0 %v3457
      %5344 = vmatprep.mubr.bf16.mxu0 %v1115
      %5345 = vmatmul.mubr.bf16.gmra.mrb[0].mxu0 %v1114
      %v5346 = vpop.f32.mrb[0].mxu0
      %v5347 = vadd.f32 %v5234, %v5346
      %v5348 = vpop.f32.mrb[0].mxu0
      %v5349 = vadd.f32 %v5236, %v5348
      %v5350 = vpop.f32.mrb[0].mxu0
      %v5351 = vadd.f32 %v5238, %v5350
      %v5352 = vpop.f32.mrb[0].mxu0
      %v5353 = vadd.f32 %v5240, %v5352
      %5354 = vmatprep.mubr.bf16.mxu0 %v1123
      %5355 = vmatmul.mubr.bf16.gmra.mrb[0].mxu0 %v1122
      %v5356 = vpop.f32.mrb[0].mxu0
      %v5357 = vadd.f32 %v5244, %v5356
      %v5358 = vpop.f32.mrb[0].mxu0
      %v5359 = vadd.f32 %v5246, %v5358
      %v5360 = vpop.f32.mrb[0].mxu0
      %v5361 = vadd.f32 %v5248, %v5360
      %v5362 = vpop.f32.mrb[0].mxu0
      %v5363 = vadd.f32 %v5250, %v5362
      %5364 = vmatprep.mubr.bf16.mxu0 %v1131
      %5365 = vmatmul.mubr.bf16.gmra.mrb[0].mxu0 %v1130
      %v5366 = vpop.f32.mrb[0].mxu0
      %v5367 = vadd.f32 %v5254, %v5366
      %v5368 = vpop.f32.mrb[0].mxu0
      %v5369 = vadd.f32 %v5256, %v5368
      %v5370 = vpop.f32.mrb[0].mxu0
      %v5371 = vadd.f32 %v5258, %v5370
      %v5372 = vpop.f32.mrb[0].mxu0
      %v5373 = vadd.f32 %v5260, %v5372
      %5374 = vmatprep.mubr.bf16.mxu0 %v1139
      %5375 = vmatmul.mubr.bf16.gmra.mrb[0].mxu0 %v1138
      %v5376 = vpop.f32.mrb[0].mxu0
      %v5377 = vadd.f32 %v5264, %v5376
      %v5378 = vpop.f32.mrb[0].mxu0
      %v5379 = vadd.f32 %v5266, %v5378
      %v5380 = vpop.f32.mrb[0].mxu0
      %v5381 = vadd.f32 %v5268, %v5380
      %v5382 = vpop.f32.mrb[0].mxu0
      %v5383 = vadd.f32 %v5270, %v5382
      %5384 = vmatprep.mubr.bf16.mxu0 %v1147
      %5385 = vmatmul.mubr.bf16.gmra.mrb[0].mxu0 %v1146
      %v5386 = vpop.f32.mrb[0].mxu0
      %v5387 = vadd.f32 %v5274, %v5386
      %v5388 = vpop.f32.mrb[0].mxu0
      %v5389 = vadd.f32 %v5276, %v5388
      %v5390 = vpop.f32.mrb[0].mxu0
      %v5391 = vadd.f32 %v5278, %v5390
      %v5392 = vpop.f32.mrb[0].mxu0
      %v5393 = vadd.f32 %v5280, %v5392
      %5394 = vmatprep.mubr.bf16.mxu0 %v1155
      %5395 = vmatmul.mubr.bf16.gmra.mrb[0].mxu0 %v1154
      %v5396 = vpop.f32.mrb[0].mxu0
      %v5397 = vadd.f32 %v5284, %v5396
      %v5398 = vpop.f32.mrb[0].mxu0
      %v5399 = vadd.f32 %v5286, %v5398
      %v5400 = vpop.f32.mrb[0].mxu0
      %v5401 = vadd.f32 %v5288, %v5400
      %v5402 = vpop.f32.mrb[0].mxu0
      %v5403 = vadd.f32 %v5290, %v5402
      %5404 = vmatprep.mubr.bf16.mxu0 %v1163
      %5405 = vmatmul.mubr.bf16.gmra.mrb[0].mxu0 %v1162
      %v5406 = vpop.f32.mrb[0].mxu0
      %v5407 = vadd.f32 %v5294, %v5406
      %v5408 = vpop.f32.mrb[0].mxu0
      %v5409 = vadd.f32 %v5296, %v5408
      %v5410 = vpop.f32.mrb[0].mxu0
      %v5411 = vadd.f32 %v5298, %v5410
      %v5412 = vpop.f32.mrb[0].mxu0
      %v5413 = vadd.f32 %v5300, %v5412
      %5414 = vmatprep.mubr.bf16.mxu0 %v1171
      %5415 = vmatmul.mubr.bf16.gmra.mrb[0].mxu0 %v1170
      %v5416 = vpop.f32.mrb[0].mxu0
      %v5417 = vadd.f32 %v5304, %v5416
      %v5418 = vpop.f32.mrb[0].mxu0
      %v5419 = vadd.f32 %v5306, %v5418
      %v5420 = vpop.f32.mrb[0].mxu0
      %v5421 = vadd.f32 %v5308, %v5420
      %v5422 = vpop.f32.mrb[0].mxu0
      %v5423 = vadd.f32 %v5310, %v5422
      %5424 = vdwg.mxu0
      %5425 = vmatprep.subr.bf16.mxu0 %v3467
      %5426 = vmatpush1.bf16.msra.mxu0 %v3466
      %5427 = vmatprep.subr.bf16.mxu0 %v3476
      %5428 = vmatpush1.bf16.msra.mxu0 %v3475
      %5429 = vmatprep.subr.bf16.mxu0 %v3485
      %5430 = vmatpush1.bf16.msra.mxu0 %v3484
      %5431 = vmatprep.subr.bf16.mxu0 %v3494
      %5432 = vmatpush1.bf16.msra.mxu0 %v3493
      %5433 = vmatprep.subr.bf16.mxu0 %v3503
      %5434 = vmatpush1.bf16.msra.mxu0 %v3502
      %5435 = vmatprep.subr.bf16.mxu0 %v3512
      %5436 = vmatpush1.bf16.msra.mxu0 %v3511
      %5437 = vmatprep.subr.bf16.mxu0 %v3521
      %5438 = vmatpush1.bf16.msra.mxu0 %v3520
      %5439 = vmatprep.subr.bf16.mxu0 %v3530
      %5440 = vmatpush1.bf16.msra.mxu0 %v3529
      %5441 = vmatprep.subr.bf16.mxu0 %v3539
      %5442 = vmatpush1.bf16.msra.mxu0 %v3538
      %5443 = vmatprep.subr.bf16.mxu0 %v3548
      %5444 = vmatpush1.bf16.msra.mxu0 %v3547
      %5445 = vmatprep.subr.bf16.mxu0 %v3557
      %5446 = vmatpush1.bf16.msra.mxu0 %v3556
      %5447 = vmatprep.subr.bf16.mxu0 %v3566
      %5448 = vmatpush1.bf16.msra.mxu0 %v3565
      %5449 = vmatprep.subr.bf16.mxu0 %v3575
      %5450 = vmatpush1.bf16.msra.mxu0 %v3574
      %5451 = vmatprep.subr.bf16.mxu0 %v3584
      %5452 = vmatpush1.bf16.msra.mxu0 %v3583
      %5453 = vmatprep.subr.bf16.mxu0 %v3593
      %5454 = vmatpush1.bf16.msra.mxu0 %v3592
      %5455 = vmatprep.subr.bf16.mxu0 %v3602
      %5456 = vmatpush1.bf16.msra.mxu0 %v3601
      %5457 = vmatprep.mubr.bf16.mxu0 %v1117
      %5458 = vmatmul.mubr.bf16.gmra.mrb[0].mxu0 %v1116
      %v5459 = vpop.f32.mrb[0].mxu0
      %v5460 = vadd.f32 %v5347, %v5459
      %v5461 = vpop.f32.mrb[0].mxu0
      %v5462 = vadd.f32 %v5349, %v5461
      %v5463 = vpop.f32.mrb[0].mxu0
      %v5464 = vadd.f32 %v5351, %v5463
      %v5465 = vpop.f32.mrb[0].mxu0
      %v5466 = vadd.f32 %v5353, %v5465
      %5467 = vmatprep.mubr.bf16.mxu0 %v1125
      %5468 = vmatmul.mubr.bf16.gmra.mrb[0].mxu0 %v1124
      %v5469 = vpop.f32.mrb[0].mxu0
      %v5470 = vadd.f32 %v5357, %v5469
      %v5471 = vpop.f32.mrb[0].mxu0
      %v5472 = vadd.f32 %v5359, %v5471
      %v5473 = vpop.f32.mrb[0].mxu0
      %v5474 = vadd.f32 %v5361, %v5473
      %v5475 = vpop.f32.mrb[0].mxu0
      %v5476 = vadd.f32 %v5363, %v5475
      %5477 = vmatprep.mubr.bf16.mxu0 %v1133
      %5478 = vmatmul.mubr.bf16.gmra.mrb[0].mxu0 %v1132
      %v5479 = vpop.f32.mrb[0].mxu0
      %v5480 = vadd.f32 %v5367, %v5479
      %v5481 = vpop.f32.mrb[0].mxu0
      %v5482 = vadd.f32 %v5369, %v5481
      %v5483 = vpop.f32.mrb[0].mxu0
      %v5484 = vadd.f32 %v5371, %v5483
      %v5485 = vpop.f32.mrb[0].mxu0
      %v5486 = vadd.f32 %v5373, %v5485
      %5487 = vmatprep.mubr.bf16.mxu0 %v1141
      %5488 = vmatmul.mubr.bf16.gmra.mrb[0].mxu0 %v1140
      %v5489 = vpop.f32.mrb[0].mxu0
      %v5490 = vadd.f32 %v5377, %v5489
      %v5491 = vpop.f32.mrb[0].mxu0
      %v5492 = vadd.f32 %v5379, %v5491
      %v5493 = vpop.f32.mrb[0].mxu0
      %v5494 = vadd.f32 %v5381, %v5493
      %v5495 = vpop.f32.mrb[0].mxu0
      %v5496 = vadd.f32 %v5383, %v5495
      %5497 = vmatprep.mubr.bf16.mxu0 %v1149
      %5498 = vmatmul.mubr.bf16.gmra.mrb[0].mxu0 %v1148
      %v5499 = vpop.f32.mrb[0].mxu0
      %v5500 = vadd.f32 %v5387, %v5499
      %v5501 = vpop.f32.mrb[0].mxu0
      %v5502 = vadd.f32 %v5389, %v5501
      %v5503 = vpop.f32.mrb[0].mxu0
      %v5504 = vadd.f32 %v5391, %v5503
      %v5505 = vpop.f32.mrb[0].mxu0
      %v5506 = vadd.f32 %v5393, %v5505
      %5507 = vmatprep.mubr.bf16.mxu0 %v1157
      %5508 = vmatmul.mubr.bf16.gmra.mrb[0].mxu0 %v1156
      %v5509 = vpop.f32.mrb[0].mxu0
      %v5510 = vadd.f32 %v5397, %v5509
      %v5511 = vpop.f32.mrb[0].mxu0
      %v5512 = vadd.f32 %v5399, %v5511
      %v5513 = vpop.f32.mrb[0].mxu0
      %v5514 = vadd.f32 %v5401, %v5513
      %v5515 = vpop.f32.mrb[0].mxu0
      %v5516 = vadd.f32 %v5403, %v5515
      %5517 = vmatprep.mubr.bf16.mxu0 %v1165
      %5518 = vmatmul.mubr.bf16.gmra.mrb[0].mxu0 %v1164
      %v5519 = vpop.f32.mrb[0].mxu0
      %v5520 = vadd.f32 %v5407, %v5519
      %v5521 = vpop.f32.mrb[0].mxu0
      %v5522 = vadd.f32 %v5409, %v5521
      %v5523 = vpop.f32.mrb[0].mxu0
      %v5524 = vadd.f32 %v5411, %v5523
      %v5525 = vpop.f32.mrb[0].mxu0
      %v5526 = vadd.f32 %v5413, %v5525
      %5527 = vmatprep.mubr.bf16.mxu0 %v1173
      %5528 = vmatmul.mubr.bf16.gmra.mrb[0].mxu0 %v1172
      %v5529 = vpop.f32.mrb[0].mxu0
      %v5530 = vadd.f32 %v5417, %v5529
      %v5531 = vpop.f32.mrb[0].mxu0
      %v5532 = vadd.f32 %v5419, %v5531
      %v5533 = vpop.f32.mrb[0].mxu0
      %v5534 = vadd.f32 %v5421, %v5533
      %v5535 = vpop.f32.mrb[0].mxu0
      %v5536 = vadd.f32 %v5423, %v5535
      %5537 = vdwg.mxu0
      %5538 = vmatprep.subr.bf16.mxu0 %v3037
      %5539 = vmatpush1.bf16.msra.mxu0 %v3036
      %5540 = vmatprep.subr.bf16.mxu0 %v3046
      %5541 = vmatpush1.bf16.msra.mxu0 %v3045
      %5542 = vmatprep.subr.bf16.mxu0 %v3055
      %5543 = vmatpush1.bf16.msra.mxu0 %v3054
      %5544 = vmatprep.subr.bf16.mxu0 %v3064
      %5545 = vmatpush1.bf16.msra.mxu0 %v3063
      %5546 = vmatprep.subr.bf16.mxu0 %v3073
      %5547 = vmatpush1.bf16.msra.mxu0 %v3072
      %5548 = vmatprep.subr.bf16.mxu0 %v3082
      %5549 = vmatpush1.bf16.msra.mxu0 %v3081
      %5550 = vmatprep.subr.bf16.mxu0 %v3091
      %5551 = vmatpush1.bf16.msra.mxu0 %v3090
      %5552 = vmatprep.subr.bf16.mxu0 %v3100
      %5553 = vmatpush1.bf16.msra.mxu0 %v3099
      %5554 = vmatprep.subr.bf16.mxu0 %v3109
      %5555 = vmatpush1.bf16.msra.mxu0 %v3108
      %5556 = vmatprep.subr.bf16.mxu0 %v3118
      %5557 = vmatpush1.bf16.msra.mxu0 %v3117
      %5558 = vmatprep.subr.bf16.mxu0 %v3127
      %5559 = vmatpush1.bf16.msra.mxu0 %v3126
      %5560 = vmatprep.subr.bf16.mxu0 %v3136
      %5561 = vmatpush1.bf16.msra.mxu0 %v3135
      %5562 = vmatprep.subr.bf16.mxu0 %v3145
      %5563 = vmatpush1.bf16.msra.mxu0 %v3144
      %5564 = vmatprep.subr.bf16.mxu0 %v3154
      %5565 = vmatpush1.bf16.msra.mxu0 %v3153
      %5566 = vmatprep.subr.bf16.mxu0 %v3163
      %5567 = vmatpush1.bf16.msra.mxu0 %v3162
      %5568 = vmatprep.subr.bf16.mxu0 %v3172
      %5569 = vmatpush1.bf16.msra.mxu0 %v3171
      %5570 = vmatprep.mubr.bf16.mxu0 %v1111
      %5571 = vmatmul.mubr.bf16.gmra.mrb[0].mxu0 %v1110
      %v5572 = vpop.f32.mrb[0].mxu0
      %v5573 = vadd.f32 0.0, %v5572
      %v5574 = vpop.f32.mrb[0].mxu0
      %v5575 = vadd.f32 0.0, %v5574
      %v5576 = vpop.f32.mrb[0].mxu0
      %v5577 = vadd.f32 0.0, %v5576
      %v5578 = vpop.f32.mrb[0].mxu0
      %v5579 = vadd.f32 0.0, %v5578
      %5580 = vmatprep.mubr.bf16.mxu0 %v1119
      %5581 = vmatmul.mubr.bf16.gmra.mrb[0].mxu0 %v1118
      %v5582 = vpop.f32.mrb[0].mxu0
      %v5583 = vadd.f32 0.0, %v5582
      %v5584 = vpop.f32.mrb[0].mxu0
      %v5585 = vadd.f32 0.0, %v5584
      %v5586 = vpop.f32.mrb[0].mxu0
      %v5587 = vadd.f32 0.0, %v5586
      %v5588 = vpop.f32.mrb[0].mxu0
      %v5589 = vadd.f32 0.0, %v5588
      %5590 = vmatprep.mubr.bf16.mxu0 %v1127
      %5591 = vmatmul.mubr.bf16.gmra.mrb[0].mxu0 %v1126
      %v5592 = vpop.f32.mrb[0].mxu0
      %v5593 = vadd.f32 0.0, %v5592
      %v5594 = vpop.f32.mrb[0].mxu0
      %v5595 = vadd.f32 0.0, %v5594
      %v5596 = vpop.f32.mrb[0].mxu0
      %v5597 = vadd.f32 0.0, %v5596
      %v5598 = vpop.f32.mrb[0].mxu0
      %v5599 = vadd.f32 0.0, %v5598
      %5600 = vmatprep.mubr.bf16.mxu0 %v1135
      %5601 = vmatmul.mubr.bf16.gmra.mrb[0].mxu0 %v1134
      %v5602 = vpop.f32.mrb[0].mxu0
      %v5603 = vadd.f32 0.0, %v5602
      %v5604 = vpop.f32.mrb[0].mxu0
      %v5605 = vadd.f32 0.0, %v5604
      %v5606 = vpop.f32.mrb[0].mxu0
      %v5607 = vadd.f32 0.0, %v5606
      %v5608 = vpop.f32.mrb[0].mxu0
      %v5609 = vadd.f32 0.0, %v5608
      %5610 = vmatprep.mubr.bf16.mxu0 %v1143
      %5611 = vmatmul.mubr.bf16.gmra.mrb[0].mxu0 %v1142
      %v5612 = vpop.f32.mrb[0].mxu0
      %v5613 = vadd.f32 0.0, %v5612
      %v5614 = vpop.f32.mrb[0].mxu0
      %v5615 = vadd.f32 0.0, %v5614
      %v5616 = vpop.f32.mrb[0].mxu0
      %v5617 = vadd.f32 0.0, %v5616
      %v5618 = vpop.f32.mrb[0].mxu0
      %v5619 = vadd.f32 0.0, %v5618
      %5620 = vmatprep.mubr.bf16.mxu0 %v1151
      %5621 = vmatmul.mubr.bf16.gmra.mrb[0].mxu0 %v1150
      %v5622 = vpop.f32.mrb[0].mxu0
      %v5623 = vadd.f32 0.0, %v5622
      %v5624 = vpop.f32.mrb[0].mxu0
      %v5625 = vadd.f32 0.0, %v5624
      %v5626 = vpop.f32.mrb[0].mxu0
      %v5627 = vadd.f32 0.0, %v5626
      %v5628 = vpop.f32.mrb[0].mxu0
      %v5629 = vadd.f32 0.0, %v5628
      %5630 = vmatprep.mubr.bf16.mxu0 %v1159
      %5631 = vmatmul.mubr.bf16.gmra.mrb[0].mxu0 %v1158
      %v5632 = vpop.f32.mrb[0].mxu0
      %v5633 = vadd.f32 0.0, %v5632
      %v5634 = vpop.f32.mrb[0].mxu0
      %v5635 = vadd.f32 0.0, %v5634
      %v5636 = vpop.f32.mrb[0].mxu0
      %v5637 = vadd.f32 0.0, %v5636
      %v5638 = vpop.f32.mrb[0].mxu0
      %v5639 = vadd.f32 0.0, %v5638
      %5640 = vmatprep.mubr.bf16.mxu0 %v1167
      %5641 = vmatmul.mubr.bf16.gmra.mrb[0].mxu0 %v1166
      %v5642 = vpop.f32.mrb[0].mxu0
      %v5643 = vadd.f32 0.0, %v5642
      %v5644 = vpop.f32.mrb[0].mxu0
      %v5645 = vadd.f32 0.0, %v5644
      %v5646 = vpop.f32.mrb[0].mxu0
      %v5647 = vadd.f32 0.0, %v5646
      %v5648 = vpop.f32.mrb[0].mxu0
      %v5649 = vadd.f32 0.0, %v5648
      %5650 = vdwg.mxu0
      %5651 = vmatprep.subr.bf16.mxu0 %v3181
      %5652 = vmatpush1.bf16.msra.mxu0 %v3180
      %5653 = vmatprep.subr.bf16.mxu0 %v3190
      %5654 = vmatpush1.bf16.msra.mxu0 %v3189
      %5655 = vmatprep.subr.bf16.mxu0 %v3199
      %5656 = vmatpush1.bf16.msra.mxu0 %v3198
      %5657 = vmatprep.subr.bf16.mxu0 %v3208
      %5658 = vmatpush1.bf16.msra.mxu0 %v3207
      %5659 = vmatprep.subr.bf16.mxu0 %v3217
      %5660 = vmatpush1.bf16.msra.mxu0 %v3216
      %5661 = vmatprep.subr.bf16.mxu0 %v3226
      %5662 = vmatpush1.bf16.msra.mxu0 %v3225
      %5663 = vmatprep.subr.bf16.mxu0 %v3235
      %5664 = vmatpush1.bf16.msra.mxu0 %v3234
      %5665 = vmatprep.subr.bf16.mxu0 %v3244
      %5666 = vmatpush1.bf16.msra.mxu0 %v3243
      %5667 = vmatprep.subr.bf16.mxu0 %v3253
      %5668 = vmatpush1.bf16.msra.mxu0 %v3252
      %5669 = vmatprep.subr.bf16.mxu0 %v3262
      %5670 = vmatpush1.bf16.msra.mxu0 %v3261
      %5671 = vmatprep.subr.bf16.mxu0 %v3271
      %5672 = vmatpush1.bf16.msra.mxu0 %v3270
      %5673 = vmatprep.subr.bf16.mxu0 %v3280
      %5674 = vmatpush1.bf16.msra.mxu0 %v3279
      %5675 = vmatprep.subr.bf16.mxu0 %v3289
      %5676 = vmatpush1.bf16.msra.mxu0 %v3288
      %5677 = vmatprep.subr.bf16.mxu0 %v3298
      %5678 = vmatpush1.bf16.msra.mxu0 %v3297
      %5679 = vmatprep.subr.bf16.mxu0 %v3307
      %5680 = vmatpush1.bf16.msra.mxu0 %v3306
      %5681 = vmatprep.subr.bf16.mxu0 %v3316
      %5682 = vmatpush1.bf16.msra.mxu0 %v3315
      %5683 = vmatprep.mubr.bf16.mxu0 %v1113
      %5684 = vmatmul.mubr.bf16.gmra.mrb[0].mxu0 %v1112
      %v5685 = vpop.f32.mrb[0].mxu0
      %v5686 = vadd.f32 %v5573, %v5685
      %v5687 = vpop.f32.mrb[0].mxu0
      %v5688 = vadd.f32 %v5575, %v5687
      %v5689 = vpop.f32.mrb[0].mxu0
      %v5690 = vadd.f32 %v5577, %v5689
      %v5691 = vpop.f32.mrb[0].mxu0
      %v5692 = vadd.f32 %v5579, %v5691
      %5693 = vmatprep.mubr.bf16.mxu0 %v1121
      %5694 = vmatmul.mubr.bf16.gmra.mrb[0].mxu0 %v1120
      %v5695 = vpop.f32.mrb[0].mxu0
      %v5696 = vadd.f32 %v5583, %v5695
      %v5697 = vpop.f32.mrb[0].mxu0
      %v5698 = vadd.f32 %v5585, %v5697
      %v5699 = vpop.f32.mrb[0].mxu0
      %v5700 = vadd.f32 %v5587, %v5699
      %v5701 = vpop.f32.mrb[0].mxu0
      %v5702 = vadd.f32 %v5589, %v5701
      %5703 = vmatprep.mubr.bf16.mxu0 %v1129
      %5704 = vmatmul.mubr.bf16.gmra.mrb[0].mxu0 %v1128
      %v5705 = vpop.f32.mrb[0].mxu0
      %v5706 = vadd.f32 %v5593, %v5705
      %v5707 = vpop.f32.mrb[0].mxu0
      %v5708 = vadd.f32 %v5595, %v5707
      %v5709 = vpop.f32.mrb[0].mxu0
      %v5710 = vadd.f32 %v5597, %v5709
      %v5711 = vpop.f32.mrb[0].mxu0
      %v5712 = vadd.f32 %v5599, %v5711
      %5713 = vmatprep.mubr.bf16.mxu0 %v1137
      %5714 = vmatmul.mubr.bf16.gmra.mrb[0].mxu0 %v1136
      %v5715 = vpop.f32.mrb[0].mxu0
      %v5716 = vadd.f32 %v5603, %v5715
      %v5717 = vpop.f32.mrb[0].mxu0
      %v5718 = vadd.f32 %v5605, %v5717
      %v5719 = vpop.f32.mrb[0].mxu0
      %v5720 = vadd.f32 %v5607, %v5719
      %v5721 = vpop.f32.mrb[0].mxu0
      %v5722 = vadd.f32 %v5609, %v5721
      %5723 = vmatprep.mubr.bf16.mxu0 %v1145
      %5724 = vmatmul.mubr.bf16.gmra.mrb[0].mxu0 %v1144
      %v5725 = vpop.f32.mrb[0].mxu0
      %v5726 = vadd.f32 %v5613, %v5725
      %v5727 = vpop.f32.mrb[0].mxu0
      %v5728 = vadd.f32 %v5615, %v5727
      %v5729 = vpop.f32.mrb[0].mxu0
      %v5730 = vadd.f32 %v5617, %v5729
      %v5731 = vpop.f32.mrb[0].mxu0
      %v5732 = vadd.f32 %v5619, %v5731
      %5733 = vmatprep.mubr.bf16.mxu0 %v1153
      %5734 = vmatmul.mubr.bf16.gmra.mrb[0].mxu0 %v1152
      %v5735 = vpop.f32.mrb[0].mxu0
      %v5736 = vadd.f32 %v5623, %v5735
      %v5737 = vpop.f32.mrb[0].mxu0
      %v5738 = vadd.f32 %v5625, %v5737
      %v5739 = vpop.f32.mrb[0].mxu0
      %v5740 = vadd.f32 %v5627, %v5739
      %v5741 = vpop.f32.mrb[0].mxu0
      %v5742 = vadd.f32 %v5629, %v5741
      %5743 = vmatprep.mubr.bf16.mxu0 %v1161
      %5744 = vmatmul.mubr.bf16.gmra.mrb[0].mxu0 %v1160
      %v5745 = vpop.f32.mrb[0].mxu0
      %v5746 = vadd.f32 %v5633, %v5745
      %v5747 = vpop.f32.mrb[0].mxu0
      %v5748 = vadd.f32 %v5635, %v5747
      %v5749 = vpop.f32.mrb[0].mxu0
      %v5750 = vadd.f32 %v5637, %v5749
      %v5751 = vpop.f32.mrb[0].mxu0
      %v5752 = vadd.f32 %v5639, %v5751
      %5753 = vmatprep.mubr.bf16.mxu0 %v1169
      %5754 = vmatmul.mubr.bf16.gmra.mrb[0].mxu0 %v1168
      %v5755 = vpop.f32.mrb[0].mxu0
      %v5756 = vadd.f32 %v5643, %v5755
      %v5757 = vpop.f32.mrb[0].mxu0
      %v5758 = vadd.f32 %v5645, %v5757
      %v5759 = vpop.f32.mrb[0].mxu0
      %v5760 = vadd.f32 %v5647, %v5759
      %v5761 = vpop.f32.mrb[0].mxu0
      %v5762 = vadd.f32 %v5649, %v5761
      %5763 = vdwg.mxu0
      %5764 = vmatprep.subr.bf16.mxu0 %v3325
      %5765 = vmatpush1.bf16.msra.mxu0 %v3324
      %5766 = vmatprep.subr.bf16.mxu0 %v3334
      %5767 = vmatpush1.bf16.msra.mxu0 %v3333
      %5768 = vmatprep.subr.bf16.mxu0 %v3343
      %5769 = vmatpush1.bf16.msra.mxu0 %v3342
      %5770 = vmatprep.subr.bf16.mxu0 %v3352
      %5771 = vmatpush1.bf16.msra.mxu0 %v3351
      %5772 = vmatprep.subr.bf16.mxu0 %v3361
      %5773 = vmatpush1.bf16.msra.mxu0 %v3360
      %5774 = vmatprep.subr.bf16.mxu0 %v3370
      %5775 = vmatpush1.bf16.msra.mxu0 %v3369
      %5776 = vmatprep.subr.bf16.mxu0 %v3379
      %5777 = vmatpush1.bf16.msra.mxu0 %v3378
      %5778 = vmatprep.subr.bf16.mxu0 %v3388
      %5779 = vmatpush1.bf16.msra.mxu0 %v3387
      %5780 = vmatprep.subr.bf16.mxu0 %v3397
      %5781 = vmatpush1.bf16.msra.mxu0 %v3396
      %5782 = vmatprep.subr.bf16.mxu0 %v3406
      %5783 = vmatpush1.bf16.msra.mxu0 %v3405
      %5784 = vmatprep.subr.bf16.mxu0 %v3415
      %5785 = vmatpush1.bf16.msra.mxu0 %v3414
      %5786 = vmatprep.subr.bf16.mxu0 %v3424
      %5787 = vmatpush1.bf16.msra.mxu0 %v3423
      %5788 = vmatprep.subr.bf16.mxu0 %v3433
      %5789 = vmatpush1.bf16.msra.mxu0 %v3432
      %5790 = vmatprep.subr.bf16.mxu0 %v3442
      %5791 = vmatpush1.bf16.msra.mxu0 %v3441
      %5792 = vmatprep.subr.bf16.mxu0 %v3451
      %5793 = vmatpush1.bf16.msra.mxu0 %v3450
      %5794 = vmatprep.subr.bf16.mxu0 %v3460
      %5795 = vmatpush1.bf16.msra.mxu0 %v3459
      %5796 = vmatprep.mubr.bf16.mxu0 %v1115
      %5797 = vmatmul.mubr.bf16.gmra.mrb[0].mxu0 %v1114
      %v5798 = vpop.f32.mrb[0].mxu0
      %v5799 = vadd.f32 %v5686, %v5798
      %v5800 = vpop.f32.mrb[0].mxu0
      %v5801 = vadd.f32 %v5688, %v5800
      %v5802 = vpop.f32.mrb[0].mxu0
      %v5803 = vadd.f32 %v5690, %v5802
      %v5804 = vpop.f32.mrb[0].mxu0
      %v5805 = vadd.f32 %v5692, %v5804
      %5806 = vmatprep.mubr.bf16.mxu0 %v1123
      %5807 = vmatmul.mubr.bf16.gmra.mrb[0].mxu0 %v1122
      %v5808 = vpop.f32.mrb[0].mxu0
      %v5809 = vadd.f32 %v5696, %v5808
      %v5810 = vpop.f32.mrb[0].mxu0
      %v5811 = vadd.f32 %v5698, %v5810
      %v5812 = vpop.f32.mrb[0].mxu0
      %v5813 = vadd.f32 %v5700, %v5812
      %v5814 = vpop.f32.mrb[0].mxu0
      %v5815 = vadd.f32 %v5702, %v5814
      %5816 = vmatprep.mubr.bf16.mxu0 %v1131
      %5817 = vmatmul.mubr.bf16.gmra.mrb[0].mxu0 %v1130
      %v5818 = vpop.f32.mrb[0].mxu0
      %v5819 = vadd.f32 %v5706, %v5818
      %v5820 = vpop.f32.mrb[0].mxu0
      %v5821 = vadd.f32 %v5708, %v5820
      %v5822 = vpop.f32.mrb[0].mxu0
      %v5823 = vadd.f32 %v5710, %v5822
      %v5824 = vpop.f32.mrb[0].mxu0
      %v5825 = vadd.f32 %v5712, %v5824
      %5826 = vmatprep.mubr.bf16.mxu0 %v1139
      %5827 = vmatmul.mubr.bf16.gmra.mrb[0].mxu0 %v1138
      %v5828 = vpop.f32.mrb[0].mxu0
      %v5829 = vadd.f32 %v5716, %v5828
      %v5830 = vpop.f32.mrb[0].mxu0
      %v5831 = vadd.f32 %v5718, %v5830
      %v5832 = vpop.f32.mrb[0].mxu0
      %v5833 = vadd.f32 %v5720, %v5832
      %v5834 = vpop.f32.mrb[0].mxu0
      %v5835 = vadd.f32 %v5722, %v5834
      %5836 = vmatprep.mubr.bf16.mxu0 %v1147
      %5837 = vmatmul.mubr.bf16.gmra.mrb[0].mxu0 %v1146
      %v5838 = vpop.f32.mrb[0].mxu0
      %v5839 = vadd.f32 %v5726, %v5838
      %v5840 = vpop.f32.mrb[0].mxu0
      %v5841 = vadd.f32 %v5728, %v5840
      %v5842 = vpop.f32.mrb[0].mxu0
      %v5843 = vadd.f32 %v5730, %v5842
      %v5844 = vpop.f32.mrb[0].mxu0
      %v5845 = vadd.f32 %v5732, %v5844
      %5846 = vmatprep.mubr.bf16.mxu0 %v1155
      %5847 = vmatmul.mubr.bf16.gmra.mrb[0].mxu0 %v1154
      %v5848 = vpop.f32.mrb[0].mxu0
      %v5849 = vadd.f32 %v5736, %v5848
      %v5850 = vpop.f32.mrb[0].mxu0
      %v5851 = vadd.f32 %v5738, %v5850
      %v5852 = vpop.f32.mrb[0].mxu0
      %v5853 = vadd.f32 %v5740, %v5852
      %v5854 = vpop.f32.mrb[0].mxu0
      %v5855 = vadd.f32 %v5742, %v5854
      %5856 = vmatprep.mubr.bf16.mxu0 %v1163
      %5857 = vmatmul.mubr.bf16.gmra.mrb[0].mxu0 %v1162
      %v5858 = vpop.f32.mrb[0].mxu0
      %v5859 = vadd.f32 %v5746, %v5858
      %v5860 = vpop.f32.mrb[0].mxu0
      %v5861 = vadd.f32 %v5748, %v5860
      %v5862 = vpop.f32.mrb[0].mxu0
      %v5863 = vadd.f32 %v5750, %v5862
      %v5864 = vpop.f32.mrb[0].mxu0
      %v5865 = vadd.f32 %v5752, %v5864
      %5866 = vmatprep.mubr.bf16.mxu0 %v1171
      %5867 = vmatmul.mubr.bf16.gmra.mrb[0].mxu0 %v1170
      %v5868 = vpop.f32.mrb[0].mxu0
      %v5869 = vadd.f32 %v5756, %v5868
      %v5870 = vpop.f32.mrb[0].mxu0
      %v5871 = vadd.f32 %v5758, %v5870
      %v5872 = vpop.f32.mrb[0].mxu0
      %v5873 = vadd.f32 %v5760, %v5872
      %v5874 = vpop.f32.mrb[0].mxu0
      %v5875 = vadd.f32 %v5762, %v5874
      %5876 = vdwg.mxu0
      %5877 = vmatprep.subr.bf16.mxu0 %v3469
      %5878 = vmatpush1.bf16.msra.mxu0 %v3468
      %5879 = vmatprep.subr.bf16.mxu0 %v3478
      %5880 = vmatpush1.bf16.msra.mxu0 %v3477
      %5881 = vmatprep.subr.bf16.mxu0 %v3487
      %5882 = vmatpush1.bf16.msra.mxu0 %v3486
      %5883 = vmatprep.subr.bf16.mxu0 %v3496
      %5884 = vmatpush1.bf16.msra.mxu0 %v3495
      %5885 = vmatprep.subr.bf16.mxu0 %v3505
      %5886 = vmatpush1.bf16.msra.mxu0 %v3504
      %5887 = vmatprep.subr.bf16.mxu0 %v3514
      %5888 = vmatpush1.bf16.msra.mxu0 %v3513
      %5889 = vmatprep.subr.bf16.mxu0 %v3523
      %5890 = vmatpush1.bf16.msra.mxu0 %v3522
      %5891 = vmatprep.subr.bf16.mxu0 %v3532
      %5892 = vmatpush1.bf16.msra.mxu0 %v3531
      %5893 = vmatprep.subr.bf16.mxu0 %v3541
      %5894 = vmatpush1.bf16.msra.mxu0 %v3540
      %5895 = vmatprep.subr.bf16.mxu0 %v3550
      %5896 = vmatpush1.bf16.msra.mxu0 %v3549
      %5897 = vmatprep.subr.bf16.mxu0 %v3559
      %5898 = vmatpush1.bf16.msra.mxu0 %v3558
      %5899 = vmatprep.subr.bf16.mxu0 %v3568
      %5900 = vmatpush1.bf16.msra.mxu0 %v3567
      %5901 = vmatprep.subr.bf16.mxu0 %v3577
      %5902 = vmatpush1.bf16.msra.mxu0 %v3576
      %5903 = vmatprep.subr.bf16.mxu0 %v3586
      %5904 = vmatpush1.bf16.msra.mxu0 %v3585
      %5905 = vmatprep.subr.bf16.mxu0 %v3595
      %5906 = vmatpush1.bf16.msra.mxu0 %v3594
      %5907 = vmatprep.subr.bf16.mxu0 %v3604
      %5908 = vmatpush1.bf16.msra.mxu0 %v3603
      %5909 = vmatprep.mubr.bf16.mxu0 %v1117
      %5910 = vmatmul.mubr.bf16.gmra.mrb[0].mxu0 %v1116
      %v5911 = vpop.f32.mrb[0].mxu0
      %v5912 = vadd.f32 %v5799, %v5911
      %v5913 = vpop.f32.mrb[0].mxu0
      %v5914 = vadd.f32 %v5801, %v5913
      %v5915 = vpop.f32.mrb[0].mxu0
      %v5916 = vadd.f32 %v5803, %v5915
      %v5917 = vpop.f32.mrb[0].mxu0
      %v5918 = vadd.f32 %v5805, %v5917
      %5919 = vmatprep.mubr.bf16.mxu0 %v1125
      %5920 = vmatmul.mubr.bf16.gmra.mrb[0].mxu0 %v1124
      %v5921 = vpop.f32.mrb[0].mxu0
      %v5922 = vadd.f32 %v5809, %v5921
      %v5923 = vpop.f32.mrb[0].mxu0
      %v5924 = vadd.f32 %v5811, %v5923
      %v5925 = vpop.f32.mrb[0].mxu0
      %v5926 = vadd.f32 %v5813, %v5925
      %v5927 = vpop.f32.mrb[0].mxu0
      %v5928 = vadd.f32 %v5815, %v5927
      %5929 = vmatprep.mubr.bf16.mxu0 %v1133
      %5930 = vmatmul.mubr.bf16.gmra.mrb[0].mxu0 %v1132
      %v5931 = vpop.f32.mrb[0].mxu0
      %v5932 = vadd.f32 %v5819, %v5931
      %v5933 = vpop.f32.mrb[0].mxu0
      %v5934 = vadd.f32 %v5821, %v5933
      %v5935 = vpop.f32.mrb[0].mxu0
      %v5936 = vadd.f32 %v5823, %v5935
      %v5937 = vpop.f32.mrb[0].mxu0
      %v5938 = vadd.f32 %v5825, %v5937
      %5939 = vmatprep.mubr.bf16.mxu0 %v1141
      %5940 = vmatmul.mubr.bf16.gmra.mrb[0].mxu0 %v1140
      %v5941 = vpop.f32.mrb[0].mxu0
      %v5942 = vadd.f32 %v5829, %v5941
      %v5943 = vpop.f32.mrb[0].mxu0
      %v5944 = vadd.f32 %v5831, %v5943
      %v5945 = vpop.f32.mrb[0].mxu0
      %v5946 = vadd.f32 %v5833, %v5945
      %v5947 = vpop.f32.mrb[0].mxu0
      %v5948 = vadd.f32 %v5835, %v5947
      %5949 = vmatprep.mubr.bf16.mxu0 %v1149
      %5950 = vmatmul.mubr.bf16.gmra.mrb[0].mxu0 %v1148
      %v5951 = vpop.f32.mrb[0].mxu0
      %v5952 = vadd.f32 %v5839, %v5951
      %v5953 = vpop.f32.mrb[0].mxu0
      %v5954 = vadd.f32 %v5841, %v5953
      %v5955 = vpop.f32.mrb[0].mxu0
      %v5956 = vadd.f32 %v5843, %v5955
      %v5957 = vpop.f32.mrb[0].mxu0
      %v5958 = vadd.f32 %v5845, %v5957
      %5959 = vmatprep.mubr.bf16.mxu0 %v1157
      %5960 = vmatmul.mubr.bf16.gmra.mrb[0].mxu0 %v1156
      %v5961 = vpop.f32.mrb[0].mxu0
      %v5962 = vadd.f32 %v5849, %v5961
      %v5963 = vpop.f32.mrb[0].mxu0
      %v5964 = vadd.f32 %v5851, %v5963
      %v5965 = vpop.f32.mrb[0].mxu0
      %v5966 = vadd.f32 %v5853, %v5965
      %v5967 = vpop.f32.mrb[0].mxu0
      %v5968 = vadd.f32 %v5855, %v5967
      %5969 = vmatprep.mubr.bf16.mxu0 %v1165
      %5970 = vmatmul.mubr.bf16.gmra.mrb[0].mxu0 %v1164
      %v5971 = vpop.f32.mrb[0].mxu0
      %v5972 = vadd.f32 %v5859, %v5971
      %v5973 = vpop.f32.mrb[0].mxu0
      %v5974 = vadd.f32 %v5861, %v5973
      %v5975 = vpop.f32.mrb[0].mxu0
      %v5976 = vadd.f32 %v5863, %v5975
      %v5977 = vpop.f32.mrb[0].mxu0
      %v5978 = vadd.f32 %v5865, %v5977
      %5979 = vmatprep.mubr.bf16.mxu0 %v1173
      %5980 = vmatmul.mubr.bf16.gmra.mrb[0].mxu0 %v1172
      %v5981 = vpop.f32.mrb[0].mxu0
      %v5982 = vadd.f32 %v5869, %v5981
      %v5983 = vpop.f32.mrb[0].mxu0
      %v5984 = vadd.f32 %v5871, %v5983
      %v5985 = vpop.f32.mrb[0].mxu0
      %v5986 = vadd.f32 %v5873, %v5985
      %v5987 = vpop.f32.mrb[0].mxu0
      %v5988 = vadd.f32 %v5875, %v5987
      %5989 = vdwg.mxu0
      %5990 = vmatprep.subr.bf16.mxu0 0
      %5991 = vmatpush1.bf16.msra.mxu0 %v3038
      %5992 = vmatprep.subr.bf16.mxu0 0
      %5993 = vmatpush1.bf16.msra.mxu0 %v3047
      %5994 = vmatprep.subr.bf16.mxu0 0
      %5995 = vmatpush1.bf16.msra.mxu0 %v3056
      %5996 = vmatprep.subr.bf16.mxu0 0
      %5997 = vmatpush1.bf16.msra.mxu0 %v3065
      %5998 = vmatprep.subr.bf16.mxu0 0
      %5999 = vmatpush1.bf16.msra.mxu0 %v3074
      %6000 = vmatprep.subr.bf16.mxu0 0
      %6001 = vmatpush1.bf16.msra.mxu0 %v3083
      %6002 = vmatprep.subr.bf16.mxu0 0
      %6003 = vmatpush1.bf16.msra.mxu0 %v3092
      %6004 = vmatprep.subr.bf16.mxu0 0
      %6005 = vmatpush1.bf16.msra.mxu0 %v3101
      %6006 = vmatprep.subr.bf16.mxu0 0
      %6007 = vmatpush1.bf16.msra.mxu0 %v3110
      %6008 = vmatprep.subr.bf16.mxu0 0
      %6009 = vmatpush1.bf16.msra.mxu0 %v3119
      %6010 = vmatprep.subr.bf16.mxu0 0
      %6011 = vmatpush1.bf16.msra.mxu0 %v3128
      %6012 = vmatprep.subr.bf16.mxu0 0
      %6013 = vmatpush1.bf16.msra.mxu0 %v3137
      %6014 = vmatprep.subr.bf16.mxu0 0
      %6015 = vmatpush1.bf16.msra.mxu0 %v3146
      %6016 = vmatprep.subr.bf16.mxu0 0
      %6017 = vmatpush1.bf16.msra.mxu0 %v3155
      %6018 = vmatprep.subr.bf16.mxu0 0
      %6019 = vmatpush1.bf16.msra.mxu0 %v3164
      %6020 = vmatprep.subr.bf16.mxu0 0
      %6021 = vmatpush1.bf16.msra.mxu0 %v3173
      %6022 = vmatprep.mubr.bf16.mxu0 %v1111
      %6023 = vmatmul.mubr.bf16.gmra.mrb[0].mxu0 %v1110
      %v6024 = vpop.f32.mrb[0].mxu0
      %v6025 = vadd.f32 0.0, %v6024
      %v6026 = vpop.f32.mrb[0].mxu0
      %v6027 = vpop.f32.mrb[0].mxu0
      %v6028 = vadd.f32 0.0, %v6027
      %v6029 = vpop.f32.mrb[0].mxu0
      %6030 = vmatprep.mubr.bf16.mxu0 %v1119
      %6031 = vmatmul.mubr.bf16.gmra.mrb[0].mxu0 %v1118
      %v6032 = vpop.f32.mrb[0].mxu0
      %v6033 = vadd.f32 0.0, %v6032
      %v6034 = vpop.f32.mrb[0].mxu0
      %v6035 = vpop.f32.mrb[0].mxu0
      %v6036 = vadd.f32 0.0, %v6035
      %v6037 = vpop.f32.mrb[0].mxu0
      %6038 = vmatprep.mubr.bf16.mxu0 %v1127
      %6039 = vmatmul.mubr.bf16.gmra.mrb[0].mxu0 %v1126
      %v6040 = vpop.f32.mrb[0].mxu0
      %v6041 = vadd.f32 0.0, %v6040
      %v6042 = vpop.f32.mrb[0].mxu0
      %v6043 = vpop.f32.mrb[0].mxu0
      %v6044 = vadd.f32 0.0, %v6043
      %v6045 = vpop.f32.mrb[0].mxu0
      %6046 = vmatprep.mubr.bf16.mxu0 %v1135
      %6047 = vmatmul.mubr.bf16.gmra.mrb[0].mxu0 %v1134
      %v6048 = vpop.f32.mrb[0].mxu0
      %v6049 = vadd.f32 0.0, %v6048
      %v6050 = vpop.f32.mrb[0].mxu0
      %v6051 = vpop.f32.mrb[0].mxu0
      %v6052 = vadd.f32 0.0, %v6051
      %v6053 = vpop.f32.mrb[0].mxu0
      %6054 = vmatprep.mubr.bf16.mxu0 %v1143
      %6055 = vmatmul.mubr.bf16.gmra.mrb[0].mxu0 %v1142
      %v6056 = vpop.f32.mrb[0].mxu0
      %v6057 = vadd.f32 0.0, %v6056
      %v6058 = vpop.f32.mrb[0].mxu0
      %v6059 = vpop.f32.mrb[0].mxu0
      %v6060 = vadd.f32 0.0, %v6059
      %v6061 = vpop.f32.mrb[0].mxu0
      %6062 = vmatprep.mubr.bf16.mxu0 %v1151
      %6063 = vmatmul.mubr.bf16.gmra.mrb[0].mxu0 %v1150
      %v6064 = vpop.f32.mrb[0].mxu0
      %v6065 = vadd.f32 0.0, %v6064
      %v6066 = vpop.f32.mrb[0].mxu0
      %v6067 = vpop.f32.mrb[0].mxu0
      %v6068 = vadd.f32 0.0, %v6067
      %v6069 = vpop.f32.mrb[0].mxu0
      %6070 = vmatprep.mubr.bf16.mxu0 %v1159
      %6071 = vmatmul.mubr.bf16.gmra.mrb[0].mxu0 %v1158
      %v6072 = vpop.f32.mrb[0].mxu0
      %v6073 = vadd.f32 0.0, %v6072
      %v6074 = vpop.f32.mrb[0].mxu0
      %v6075 = vpop.f32.mrb[0].mxu0
      %v6076 = vadd.f32 0.0, %v6075
      %v6077 = vpop.f32.mrb[0].mxu0
      %6078 = vmatprep.mubr.bf16.mxu0 %v1167
      %6079 = vmatmul.mubr.bf16.gmra.mrb[0].mxu0 %v1166
      %v6080 = vpop.f32.mrb[0].mxu0
      %v6081 = vadd.f32 0.0, %v6080
      %v6082 = vpop.f32.mrb[0].mxu0
      %v6083 = vpop.f32.mrb[0].mxu0
      %v6084 = vadd.f32 0.0, %v6083
      %v6085 = vpop.f32.mrb[0].mxu0
      %6086 = vdwg.mxu0
      %6087 = vmatprep.subr.bf16.mxu0 0
      %6088 = vmatpush1.bf16.msra.mxu0 %v3182
      %6089 = vmatprep.subr.bf16.mxu0 0
      %6090 = vmatpush1.bf16.msra.mxu0 %v3191
      %6091 = vmatprep.subr.bf16.mxu0 0
      %6092 = vmatpush1.bf16.msra.mxu0 %v3200
      %6093 = vmatprep.subr.bf16.mxu0 0
      %6094 = vmatpush1.bf16.msra.mxu0 %v3209
      %6095 = vmatprep.subr.bf16.mxu0 0
      %6096 = vmatpush1.bf16.msra.mxu0 %v3218
      %6097 = vmatprep.subr.bf16.mxu0 0
      %6098 = vmatpush1.bf16.msra.mxu0 %v3227
      %6099 = vmatprep.subr.bf16.mxu0 0
      %6100 = vmatpush1.bf16.msra.mxu0 %v3236
      %6101 = vmatprep.subr.bf16.mxu0 0
      %6102 = vmatpush1.bf16.msra.mxu0 %v3245
      %6103 = vmatprep.subr.bf16.mxu0 0
      %6104 = vmatpush1.bf16.msra.mxu0 %v3254
      %6105 = vmatprep.subr.bf16.mxu0 0
      %6106 = vmatpush1.bf16.msra.mxu0 %v3263
      %6107 = vmatprep.subr.bf16.mxu0 0
      %6108 = vmatpush1.bf16.msra.mxu0 %v3272
      %6109 = vmatprep.subr.bf16.mxu0 0
      %6110 = vmatpush1.bf16.msra.mxu0 %v3281
      %6111 = vmatprep.subr.bf16.mxu0 0
      %6112 = vmatpush1.bf16.msra.mxu0 %v3290
      %6113 = vmatprep.subr.bf16.mxu0 0
      %6114 = vmatpush1.bf16.msra.mxu0 %v3299
      %6115 = vmatprep.subr.bf16.mxu0 0
      %6116 = vmatpush1.bf16.msra.mxu0 %v3308
      %6117 = vmatprep.subr.bf16.mxu0 0
      %6118 = vmatpush1.bf16.msra.mxu0 %v3317
      %6119 = vmatprep.mubr.bf16.mxu0 %v1113
      %6120 = vmatmul.mubr.bf16.gmra.mrb[0].mxu0 %v1112
      %v6121 = vpop.f32.mrb[0].mxu0
      %v6122 = vadd.f32 %v6025, %v6121
      %v6123 = vpop.f32.mrb[0].mxu0
      %v6124 = vpop.f32.mrb[0].mxu0
      %v6125 = vadd.f32 %v6028, %v6124
      %v6126 = vpop.f32.mrb[0].mxu0
      %6127 = vmatprep.mubr.bf16.mxu0 %v1121
      %6128 = vmatmul.mubr.bf16.gmra.mrb[0].mxu0 %v1120
      %v6129 = vpop.f32.mrb[0].mxu0
      %v6130 = vadd.f32 %v6033, %v6129
      %v6131 = vpop.f32.mrb[0].mxu0
      %v6132 = vpop.f32.mrb[0].mxu0
      %v6133 = vadd.f32 %v6036, %v6132
      %v6134 = vpop.f32.mrb[0].mxu0
      %6135 = vmatprep.mubr.bf16.mxu0 %v1129
      %6136 = vmatmul.mubr.bf16.gmra.mrb[0].mxu0 %v1128
      %v6137 = vpop.f32.mrb[0].mxu0
      %v6138 = vadd.f32 %v6041, %v6137
      %v6139 = vpop.f32.mrb[0].mxu0
      %v6140 = vpop.f32.mrb[0].mxu0
      %v6141 = vadd.f32 %v6044, %v6140
      %v6142 = vpop.f32.mrb[0].mxu0
      %6143 = vmatprep.mubr.bf16.mxu0 %v1137
      %6144 = vmatmul.mubr.bf16.gmra.mrb[0].mxu0 %v1136
      %v6145 = vpop.f32.mrb[0].mxu0
      %v6146 = vadd.f32 %v6049, %v6145
      %v6147 = vpop.f32.mrb[0].mxu0
      %v6148 = vpop.f32.mrb[0].mxu0
      %v6149 = vadd.f32 %v6052, %v6148
      %v6150 = vpop.f32.mrb[0].mxu0
      %6151 = vmatprep.mubr.bf16.mxu0 %v1145
      %6152 = vmatmul.mubr.bf16.gmra.mrb[0].mxu0 %v1144
      %v6153 = vpop.f32.mrb[0].mxu0
      %v6154 = vadd.f32 %v6057, %v6153
      %v6155 = vpop.f32.mrb[0].mxu0
      %v6156 = vpop.f32.mrb[0].mxu0
      %v6157 = vadd.f32 %v6060, %v6156
      %v6158 = vpop.f32.mrb[0].mxu0
      %6159 = vmatprep.mubr.bf16.mxu0 %v1153
      %6160 = vmatmul.mubr.bf16.gmra.mrb[0].mxu0 %v1152
      %v6161 = vpop.f32.mrb[0].mxu0
      %v6162 = vadd.f32 %v6065, %v6161
      %v6163 = vpop.f32.mrb[0].mxu0
      %v6164 = vpop.f32.mrb[0].mxu0
      %v6165 = vadd.f32 %v6068, %v6164
      %v6166 = vpop.f32.mrb[0].mxu0
      %6167 = vmatprep.mubr.bf16.mxu0 %v1161
      %6168 = vmatmul.mubr.bf16.gmra.mrb[0].mxu0 %v1160
      %v6169 = vpop.f32.mrb[0].mxu0
      %v6170 = vadd.f32 %v6073, %v6169
      %v6171 = vpop.f32.mrb[0].mxu0
      %v6172 = vpop.f32.mrb[0].mxu0
      %v6173 = vadd.f32 %v6076, %v6172
      %v6174 = vpop.f32.mrb[0].mxu0
      %6175 = vmatprep.mubr.bf16.mxu0 %v1169
      %6176 = vmatmul.mubr.bf16.gmra.mrb[0].mxu0 %v1168
      %v6177 = vpop.f32.mrb[0].mxu0
      %v6178 = vadd.f32 %v6081, %v6177
      %v6179 = vpop.f32.mrb[0].mxu0
      %v6180 = vpop.f32.mrb[0].mxu0
      %v6181 = vadd.f32 %v6084, %v6180
      %v6182 = vpop.f32.mrb[0].mxu0
      %6183 = vdwg.mxu0
      %6184 = vmatprep.subr.bf16.mxu0 0
      %6185 = vmatpush1.bf16.msra.mxu0 %v3326
      %6186 = vmatprep.subr.bf16.mxu0 0
      %6187 = vmatpush1.bf16.msra.mxu0 %v3335
      %6188 = vmatprep.subr.bf16.mxu0 0
      %6189 = vmatpush1.bf16.msra.mxu0 %v3344
      %6190 = vmatprep.subr.bf16.mxu0 0
      %6191 = vmatpush1.bf16.msra.mxu0 %v3353
      %6192 = vmatprep.subr.bf16.mxu0 0
      %6193 = vmatpush1.bf16.msra.mxu0 %v3362
      %6194 = vmatprep.subr.bf16.mxu0 0
      %6195 = vmatpush1.bf16.msra.mxu0 %v3371
      %6196 = vmatprep.subr.bf16.mxu0 0
      %6197 = vmatpush1.bf16.msra.mxu0 %v3380
      %6198 = vmatprep.subr.bf16.mxu0 0
      %6199 = vmatpush1.bf16.msra.mxu0 %v3389
      %6200 = vmatprep.subr.bf16.mxu0 0
      %6201 = vmatpush1.bf16.msra.mxu0 %v3398
      %6202 = vmatprep.subr.bf16.mxu0 0
      %6203 = vmatpush1.bf16.msra.mxu0 %v3407
      %6204 = vmatprep.subr.bf16.mxu0 0
      %6205 = vmatpush1.bf16.msra.mxu0 %v3416
      %6206 = vmatprep.subr.bf16.mxu0 0
      %6207 = vmatpush1.bf16.msra.mxu0 %v3425
      %6208 = vmatprep.subr.bf16.mxu0 0
      %6209 = vmatpush1.bf16.msra.mxu0 %v3434
      %6210 = vmatprep.subr.bf16.mxu0 0
      %6211 = vmatpush1.bf16.msra.mxu0 %v3443
      %6212 = vmatprep.subr.bf16.mxu0 0
      %6213 = vmatpush1.bf16.msra.mxu0 %v3452
      %6214 = vmatprep.subr.bf16.mxu0 0
      %6215 = vmatpush1.bf16.msra.mxu0 %v3461
      %6216 = vmatprep.mubr.bf16.mxu0 %v1115
      %6217 = vmatmul.mubr.bf16.gmra.mrb[0].mxu0 %v1114
      %v6218 = vpop.f32.mrb[0].mxu0
      %v6219 = vadd.f32 %v6122, %v6218
      %v6220 = vpop.f32.mrb[0].mxu0
      %v6221 = vpop.f32.mrb[0].mxu0
      %v6222 = vadd.f32 %v6125, %v6221
      %v6223 = vpop.f32.mrb[0].mxu0
      %6224 = vmatprep.mubr.bf16.mxu0 %v1123
      %6225 = vmatmul.mubr.bf16.gmra.mrb[0].mxu0 %v1122
      %v6226 = vpop.f32.mrb[0].mxu0
      %v6227 = vadd.f32 %v6130, %v6226
      %v6228 = vpop.f32.mrb[0].mxu0
      %v6229 = vpop.f32.mrb[0].mxu0
      %v6230 = vadd.f32 %v6133, %v6229
      %v6231 = vpop.f32.mrb[0].mxu0
      %6232 = vmatprep.mubr.bf16.mxu0 %v1131
      %6233 = vmatmul.mubr.bf16.gmra.mrb[0].mxu0 %v1130
      %v6234 = vpop.f32.mrb[0].mxu0
      %v6235 = vadd.f32 %v6138, %v6234
      %v6236 = vpop.f32.mrb[0].mxu0
      %v6237 = vpop.f32.mrb[0].mxu0
      %v6238 = vadd.f32 %v6141, %v6237
      %v6239 = vpop.f32.mrb[0].mxu0
      %6240 = vmatprep.mubr.bf16.mxu0 %v1139
      %6241 = vmatmul.mubr.bf16.gmra.mrb[0].mxu0 %v1138
      %v6242 = vpop.f32.mrb[0].mxu0
      %v6243 = vadd.f32 %v6146, %v6242
      %v6244 = vpop.f32.mrb[0].mxu0
      %v6245 = vpop.f32.mrb[0].mxu0
      %v6246 = vadd.f32 %v6149, %v6245
      %v6247 = vpop.f32.mrb[0].mxu0
      %6248 = vmatprep.mubr.bf16.mxu0 %v1147
      %6249 = vmatmul.mubr.bf16.gmra.mrb[0].mxu0 %v1146
      %v6250 = vpop.f32.mrb[0].mxu0
      %v6251 = vadd.f32 %v6154, %v6250
      %v6252 = vpop.f32.mrb[0].mxu0
      %v6253 = vpop.f32.mrb[0].mxu0
      %v6254 = vadd.f32 %v6157, %v6253
      %v6255 = vpop.f32.mrb[0].mxu0
      %6256 = vmatprep.mubr.bf16.mxu0 %v1155
      %6257 = vmatmul.mubr.bf16.gmra.mrb[0].mxu0 %v1154
      %v6258 = vpop.f32.mrb[0].mxu0
      %v6259 = vadd.f32 %v6162, %v6258
      %v6260 = vpop.f32.mrb[0].mxu0
      %v6261 = vpop.f32.mrb[0].mxu0
      %v6262 = vadd.f32 %v6165, %v6261
      %v6263 = vpop.f32.mrb[0].mxu0
      %6264 = vmatprep.mubr.bf16.mxu0 %v1163
      %6265 = vmatmul.mubr.bf16.gmra.mrb[0].mxu0 %v1162
      %v6266 = vpop.f32.mrb[0].mxu0
      %v6267 = vadd.f32 %v6170, %v6266
      %v6268 = vpop.f32.mrb[0].mxu0
      %v6269 = vpop.f32.mrb[0].mxu0
      %v6270 = vadd.f32 %v6173, %v6269
      %v6271 = vpop.f32.mrb[0].mxu0
      %6272 = vmatprep.mubr.bf16.mxu0 %v1171
      %6273 = vmatmul.mubr.bf16.gmra.mrb[0].mxu0 %v1170
      %v6274 = vpop.f32.mrb[0].mxu0
      %v6275 = vadd.f32 %v6178, %v6274
      %v6276 = vpop.f32.mrb[0].mxu0
      %v6277 = vpop.f32.mrb[0].mxu0
      %v6278 = vadd.f32 %v6181, %v6277
      %v6279 = vpop.f32.mrb[0].mxu0
      %6280 = vdwg.mxu0
      %6281 = vmatprep.subr.bf16.mxu0 0
      %6282 = vmatpush1.bf16.msra.mxu0 %v3470
      %6283 = vmatprep.subr.bf16.mxu0 0
      %6284 = vmatpush1.bf16.msra.mxu0 %v3479
      %6285 = vmatprep.subr.bf16.mxu0 0
      %6286 = vmatpush1.bf16.msra.mxu0 %v3488
      %6287 = vmatprep.subr.bf16.mxu0 0
      %6288 = vmatpush1.bf16.msra.mxu0 %v3497
      %6289 = vmatprep.subr.bf16.mxu0 0
      %6290 = vmatpush1.bf16.msra.mxu0 %v3506
      %6291 = vmatprep.subr.bf16.mxu0 0
      %6292 = vmatpush1.bf16.msra.mxu0 %v3515
      %6293 = vmatprep.subr.bf16.mxu0 0
      %6294 = vmatpush1.bf16.msra.mxu0 %v3524
      %6295 = vmatprep.subr.bf16.mxu0 0
      %6296 = vmatpush1.bf16.msra.mxu0 %v3533
      %6297 = vmatprep.subr.bf16.mxu0 0
      %6298 = vmatpush1.bf16.msra.mxu0 %v3542
      %6299 = vmatprep.subr.bf16.mxu0 0
      %6300 = vmatpush1.bf16.msra.mxu0 %v3551
      %6301 = vmatprep.subr.bf16.mxu0 0
      %6302 = vmatpush1.bf16.msra.mxu0 %v3560
      %6303 = vmatprep.subr.bf16.mxu0 0
      %6304 = vmatpush1.bf16.msra.mxu0 %v3569
      %6305 = vmatprep.subr.bf16.mxu0 0
      %6306 = vmatpush1.bf16.msra.mxu0 %v3578
      %6307 = vmatprep.subr.bf16.mxu0 0
      %6308 = vmatpush1.bf16.msra.mxu0 %v3587
      %6309 = vmatprep.subr.bf16.mxu0 0
      %6310 = vmatpush1.bf16.msra.mxu0 %v3596
      %6311 = vmatprep.subr.bf16.mxu0 0
      %6312 = vmatpush1.bf16.msra.mxu0 %v3605
      %6313 = vmatprep.mubr.bf16.mxu0 %v1117
      %6314 = vmatmul.mubr.bf16.gmra.mrb[0].mxu0 %v1116
      %v6315 = vpop.f32.mrb[0].mxu0
      %v6316 = vadd.f32 %v6219, %v6315
      %v6317 = vpop.f32.mrb[0].mxu0
      %v6318 = vpop.f32.mrb[0].mxu0
      %v6319 = vadd.f32 %v6222, %v6318
      %v6320 = vpop.f32.mrb[0].mxu0
      %6321 = vmatprep.mubr.bf16.mxu0 %v1125
      %6322 = vmatmul.mubr.bf16.gmra.mrb[0].mxu0 %v1124
      %v6323 = vpop.f32.mrb[0].mxu0
      %v6324 = vadd.f32 %v6227, %v6323
      %v6325 = vpop.f32.mrb[0].mxu0
      %v6326 = vpop.f32.mrb[0].mxu0
      %v6327 = vadd.f32 %v6230, %v6326
      %v6328 = vpop.f32.mrb[0].mxu0
      %6329 = vmatprep.mubr.bf16.mxu0 %v1133
      %6330 = vmatmul.mubr.bf16.gmra.mrb[0].mxu0 %v1132
      %v6331 = vpop.f32.mrb[0].mxu0
      %v6332 = vadd.f32 %v6235, %v6331
      %v6333 = vpop.f32.mrb[0].mxu0
      %v6334 = vpop.f32.mrb[0].mxu0
      %v6335 = vadd.f32 %v6238, %v6334
      %v6336 = vpop.f32.mrb[0].mxu0
      %6337 = vmatprep.mubr.bf16.mxu0 %v1141
      %6338 = vmatmul.mubr.bf16.gmra.mrb[0].mxu0 %v1140
      %v6339 = vpop.f32.mrb[0].mxu0
      %v6340 = vadd.f32 %v6243, %v6339
      %v6341 = vpop.f32.mrb[0].mxu0
      %v6342 = vpop.f32.mrb[0].mxu0
      %v6343 = vadd.f32 %v6246, %v6342
      %v6344 = vpop.f32.mrb[0].mxu0
      %6345 = vmatprep.mubr.bf16.mxu0 %v1149
      %6346 = vmatmul.mubr.bf16.gmra.mrb[0].mxu0 %v1148
      %v6347 = vpop.f32.mrb[0].mxu0
      %v6348 = vadd.f32 %v6251, %v6347
      %v6349 = vpop.f32.mrb[0].mxu0
      %v6350 = vpop.f32.mrb[0].mxu0
      %v6351 = vadd.f32 %v6254, %v6350
      %v6352 = vpop.f32.mrb[0].mxu0
      %6353 = vmatprep.mubr.bf16.mxu0 %v1157
      %6354 = vmatmul.mubr.bf16.gmra.mrb[0].mxu0 %v1156
      %v6355 = vpop.f32.mrb[0].mxu0
      %v6356 = vadd.f32 %v6259, %v6355
      %v6357 = vpop.f32.mrb[0].mxu0
      %v6358 = vpop.f32.mrb[0].mxu0
      %v6359 = vadd.f32 %v6262, %v6358
      %v6360 = vpop.f32.mrb[0].mxu0
      %6361 = vmatprep.mubr.bf16.mxu0 %v1165
      %6362 = vmatmul.mubr.bf16.gmra.mrb[0].mxu0 %v1164
      %v6363 = vpop.f32.mrb[0].mxu0
      %v6364 = vadd.f32 %v6267, %v6363
      %v6365 = vpop.f32.mrb[0].mxu0
      %v6366 = vpop.f32.mrb[0].mxu0
      %v6367 = vadd.f32 %v6270, %v6366
      %v6368 = vpop.f32.mrb[0].mxu0
      %6369 = vmatprep.mubr.bf16.mxu0 %v1173
      %6370 = vmatmul.mubr.bf16.gmra.mrb[0].mxu0 %v1172
      %v6371 = vpop.f32.mrb[0].mxu0
      %v6372 = vadd.f32 %v6275, %v6371
      %v6373 = vpop.f32.mrb[0].mxu0
      %v6374 = vpop.f32.mrb[0].mxu0
      %v6375 = vadd.f32 %v6278, %v6374
      %v6376 = vpop.f32.mrb[0].mxu0
      %6377 = vdwg.mxu0
      %v6378 = vmul.f32 %v4556, %v4556
      %v6379 = vmul.f32 %v4558, %v4558
      %v6380 = vmul.f32 %v5008, %v5008
      %v6381 = vmul.f32 %v5010, %v5010
      %v6382 = vmul.f32 %v5460, %v5460
      %v6383 = vmul.f32 %v5462, %v5462
      %v6384 = vmul.f32 %v5912, %v5912
      %v6385 = vmul.f32 %v5914, %v5914
      %v6386 = vmul.f32 %v6316, %v6316
      %v6387 = vmul.f32 %v4560, %v4560
      %v6388 = vmul.f32 %v4562, %v4562
      %v6389 = vmul.f32 %v5012, %v5012
      %v6390 = vmul.f32 %v5014, %v5014
      %v6391 = vmul.f32 %v5464, %v5464
      %v6392 = vmul.f32 %v5466, %v5466
      %v6393 = vmul.f32 %v5916, %v5916
      %v6394 = vmul.f32 %v5918, %v5918
      %v6395 = vmul.f32 %v6319, %v6319
      %v6396 = vmul.f32 %v4566, %v4566
      %v6397 = vmul.f32 %v4568, %v4568
      %v6398 = vmul.f32 %v5018, %v5018
      %v6399 = vmul.f32 %v5020, %v5020
      %v6400 = vmul.f32 %v5470, %v5470
      %v6401 = vmul.f32 %v5472, %v5472
      %v6402 = vmul.f32 %v5922, %v5922
      %v6403 = vmul.f32 %v5924, %v5924
      %v6404 = vmul.f32 %v6324, %v6324
      %v6405 = vmul.f32 %v4570, %v4570
      %v6406 = vmul.f32 %v4572, %v4572
      %v6407 = vmul.f32 %v5022, %v5022
      %v6408 = vmul.f32 %v5024, %v5024
      %v6409 = vmul.f32 %v5474, %v5474
      %v6410 = vmul.f32 %v5476, %v5476
      %v6411 = vmul.f32 %v5926, %v5926
      %v6412 = vmul.f32 %v5928, %v5928
      %v6413 = vmul.f32 %v6327, %v6327
      %v6414 = vmul.f32 %v4576, %v4576
      %v6415 = vmul.f32 %v4578, %v4578
      %v6416 = vmul.f32 %v5028, %v5028
      %v6417 = vmul.f32 %v5030, %v5030
      %v6418 = vmul.f32 %v5480, %v5480
      %v6419 = vmul.f32 %v5482, %v5482
      %v6420 = vmul.f32 %v5932, %v5932
      %v6421 = vmul.f32 %v5934, %v5934
      %v6422 = vmul.f32 %v6332, %v6332
      %v6423 = vmul.f32 %v4580, %v4580
      %v6424 = vmul.f32 %v4582, %v4582
      %v6425 = vmul.f32 %v5032, %v5032
      %v6426 = vmul.f32 %v5034, %v5034
      %v6427 = vmul.f32 %v5484, %v5484
      %v6428 = vmul.f32 %v5486, %v5486
      %v6429 = vmul.f32 %v5936, %v5936
      %v6430 = vmul.f32 %v5938, %v5938
      %v6431 = vmul.f32 %v6335, %v6335
      %v6432 = vmul.f32 %v4586, %v4586
      %v6433 = vmul.f32 %v4588, %v4588
      %v6434 = vmul.f32 %v5038, %v5038
      %v6435 = vmul.f32 %v5040, %v5040
      %v6436 = vmul.f32 %v5490, %v5490
      %v6437 = vmul.f32 %v5492, %v5492
      %v6438 = vmul.f32 %v5942, %v5942
      %v6439 = vmul.f32 %v5944, %v5944
      %v6440 = vmul.f32 %v6340, %v6340
      %v6441 = vmul.f32 %v4590, %v4590
      %v6442 = vmul.f32 %v4592, %v4592
      %v6443 = vmul.f32 %v5042, %v5042
      %v6444 = vmul.f32 %v5044, %v5044
      %v6445 = vmul.f32 %v5494, %v5494
      %v6446 = vmul.f32 %v5496, %v5496
      %v6447 = vmul.f32 %v5946, %v5946
      %v6448 = vmul.f32 %v5948, %v5948
      %v6449 = vmul.f32 %v6343, %v6343
      %v6450 = vmul.f32 %v4596, %v4596
      %v6451 = vmul.f32 %v4598, %v4598
      %v6452 = vmul.f32 %v5048, %v5048
      %v6453 = vmul.f32 %v5050, %v5050
      %v6454 = vmul.f32 %v5500, %v5500
      %v6455 = vmul.f32 %v5502, %v5502
      %v6456 = vmul.f32 %v5952, %v5952
      %v6457 = vmul.f32 %v5954, %v5954
      %v6458 = vmul.f32 %v6348, %v6348
      %v6459 = vmul.f32 %v4600, %v4600
      %v6460 = vmul.f32 %v4602, %v4602
      %v6461 = vmul.f32 %v5052, %v5052
      %v6462 = vmul.f32 %v5054, %v5054
      %v6463 = vmul.f32 %v5504, %v5504
      %v6464 = vmul.f32 %v5506, %v5506
      %v6465 = vmul.f32 %v5956, %v5956
      %v6466 = vmul.f32 %v5958, %v5958
      %v6467 = vmul.f32 %v6351, %v6351
      %v6468 = vmul.f32 %v4606, %v4606
      %v6469 = vmul.f32 %v4608, %v4608
      %v6470 = vmul.f32 %v5058, %v5058
      %v6471 = vmul.f32 %v5060, %v5060
      %v6472 = vmul.f32 %v5510, %v5510
      %v6473 = vmul.f32 %v5512, %v5512
      %v6474 = vmul.f32 %v5962, %v5962
      %v6475 = vmul.f32 %v5964, %v5964
      %v6476 = vmul.f32 %v6356, %v6356
      %v6477 = vmul.f32 %v4610, %v4610
      %v6478 = vmul.f32 %v4612, %v4612
      %v6479 = vmul.f32 %v5062, %v5062
      %v6480 = vmul.f32 %v5064, %v5064
      %v6481 = vmul.f32 %v5514, %v5514
      %v6482 = vmul.f32 %v5516, %v5516
      %v6483 = vmul.f32 %v5966, %v5966
      %v6484 = vmul.f32 %v5968, %v5968
      %v6485 = vmul.f32 %v6359, %v6359
      %v6486 = vmul.f32 %v4616, %v4616
      %v6487 = vmul.f32 %v4618, %v4618
      %v6488 = vmul.f32 %v5068, %v5068
      %v6489 = vmul.f32 %v5070, %v5070
      %v6490 = vmul.f32 %v5520, %v5520
      %v6491 = vmul.f32 %v5522, %v5522
      %v6492 = vmul.f32 %v5972, %v5972
      %v6493 = vmul.f32 %v5974, %v5974
      %v6494 = vmul.f32 %v6364, %v6364
      %v6495 = vmul.f32 %v4620, %v4620
      %v6496 = vmul.f32 %v4622, %v4622
      %v6497 = vmul.f32 %v5072, %v5072
      %v6498 = vmul.f32 %v5074, %v5074
      %v6499 = vmul.f32 %v5524, %v5524
      %v6500 = vmul.f32 %v5526, %v5526
      %v6501 = vmul.f32 %v5976, %v5976
      %v6502 = vmul.f32 %v5978, %v5978
      %v6503 = vmul.f32 %v6367, %v6367
      %v6504 = vmul.f32 %v4626, %v4626
      %v6505 = vmul.f32 %v4628, %v4628
      %v6506 = vmul.f32 %v5078, %v5078
      %v6507 = vmul.f32 %v5080, %v5080
      %v6508 = vmul.f32 %v5530, %v5530
      %v6509 = vmul.f32 %v5532, %v5532
      %v6510 = vmul.f32 %v5982, %v5982
      %v6511 = vmul.f32 %v5984, %v5984
      %v6512 = vmul.f32 %v6372, %v6372
      %v6513 = vmul.f32 %v4630, %v4630
      %v6514 = vmul.f32 %v4632, %v4632
      %v6515 = vmul.f32 %v5082, %v5082
      %v6516 = vmul.f32 %v5084, %v5084
      %v6517 = vmul.f32 %v5534, %v5534
      %v6518 = vmul.f32 %v5536, %v5536
      %v6519 = vmul.f32 %v5986, %v5986
      %v6520 = vmul.f32 %v5988, %v5988
      %v6521 = vmul.f32 %v6375, %v6375
      %v6522 = vpack.c.bf16 %v6387, %v6378
      %v6523 = vpack.c.bf16 %v6388, %v6379
      %v6524 = vpack.c.bf16 %v6389, %v6380
      %v6525 = vpack.c.bf16 %v6390, %v6381
      %v6526 = vpack.c.bf16 %v6391, %v6382
      %v6527 = vpack.c.bf16 %v6392, %v6383
      %v6528 = vpack.c.bf16 %v6393, %v6384
      %v6529 = vpack.c.bf16 %v6394, %v6385
      %v6530 = vpack.c.bf16 %v6395, %v6386
      %v6531 = vpack.c.bf16 %v6405, %v6396
      %v6532 = vpack.c.bf16 %v6406, %v6397
      %v6533 = vpack.c.bf16 %v6407, %v6398
      %v6534 = vpack.c.bf16 %v6408, %v6399
      %v6535 = vpack.c.bf16 %v6409, %v6400
      %v6536 = vpack.c.bf16 %v6410, %v6401
      %v6537 = vpack.c.bf16 %v6411, %v6402
      %v6538 = vpack.c.bf16 %v6412, %v6403
      %v6539 = vpack.c.bf16 %v6413, %v6404
      %v6540 = vpack.c.bf16 %v6423, %v6414
      %v6541 = vpack.c.bf16 %v6424, %v6415
      %v6542 = vpack.c.bf16 %v6425, %v6416
      %v6543 = vpack.c.bf16 %v6426, %v6417
      %v6544 = vpack.c.bf16 %v6427, %v6418
      %v6545 = vpack.c.bf16 %v6428, %v6419
      %v6546 = vpack.c.bf16 %v6429, %v6420
      %v6547 = vpack.c.bf16 %v6430, %v6421
      %v6548 = vpack.c.bf16 %v6431, %v6422
      %v6549 = vpack.c.bf16 %v6441, %v6432
      %v6550 = vpack.c.bf16 %v6442, %v6433
      %v6551 = vpack.c.bf16 %v6443, %v6434
      %v6552 = vpack.c.bf16 %v6444, %v6435
      %v6553 = vpack.c.bf16 %v6445, %v6436
      %v6554 = vpack.c.bf16 %v6446, %v6437
      %v6555 = vpack.c.bf16 %v6447, %v6438
      %v6556 = vpack.c.bf16 %v6448, %v6439
      %v6557 = vpack.c.bf16 %v6449, %v6440
      %v6558 = vpack.c.bf16 %v6459, %v6450
      %v6559 = vpack.c.bf16 %v6460, %v6451
      %v6560 = vpack.c.bf16 %v6461, %v6452
      %v6561 = vpack.c.bf16 %v6462, %v6453
      %v6562 = vpack.c.bf16 %v6463, %v6454
      %v6563 = vpack.c.bf16 %v6464, %v6455
      %v6564 = vpack.c.bf16 %v6465, %v6456
      %v6565 = vpack.c.bf16 %v6466, %v6457
      %v6566 = vpack.c.bf16 %v6467, %v6458
      %v6567 = vpack.c.bf16 %v6477, %v6468
      %v6568 = vpack.c.bf16 %v6478, %v6469
      %v6569 = vpack.c.bf16 %v6479, %v6470
      %v6570 = vpack.c.bf16 %v6480, %v6471
      %v6571 = vpack.c.bf16 %v6481, %v6472
      %v6572 = vpack.c.bf16 %v6482, %v6473
      %v6573 = vpack.c.bf16 %v6483, %v6474
      %v6574 = vpack.c.bf16 %v6484, %v6475
      %v6575 = vpack.c.bf16 %v6485, %v6476
      %v6576 = vpack.c.bf16 %v6495, %v6486
      %v6577 = vpack.c.bf16 %v6496, %v6487
      %v6578 = vpack.c.bf16 %v6497, %v6488
      %v6579 = vpack.c.bf16 %v6498, %v6489
      %v6580 = vpack.c.bf16 %v6499, %v6490
      %v6581 = vpack.c.bf16 %v6500, %v6491
      %v6582 = vpack.c.bf16 %v6501, %v6492
      %v6583 = vpack.c.bf16 %v6502, %v6493
      %v6584 = vpack.c.bf16 %v6503, %v6494
      %v6585 = vpack.c.bf16 %v6513, %v6504
      %v6586 = vpack.c.bf16 %v6514, %v6505
      %v6587 = vpack.c.bf16 %v6515, %v6506
      %v6588 = vpack.c.bf16 %v6516, %v6507
      %v6589 = vpack.c.bf16 %v6517, %v6508
      %v6590 = vpack.c.bf16 %v6518, %v6509
      %v6591 = vpack.c.bf16 %v6519, %v6510
      %v6592 = vpack.c.bf16 %v6520, %v6511
      %v6593 = vpack.c.bf16 %v6521, %v6512
      %v6594 = vld [vmem:[%s2] sm:$0xf]
      %v6595 = vld [vmem:[%s2 + $0x4] sm:$0xf]
      %v6596 = vld [vmem:[%s2 + $0x8] sm:$0xf]
      %v6597 = vld [vmem:[%s2 + $0xc] sm:$0xf]
      %v6598 = vld [vmem:[%s2 + $0x10] sm:$0xf]
      %v6599 = vld [vmem:[%s2 + $0x14] sm:$0xf]
      %v6600 = vld [vmem:[%s2 + $0x18] sm:$0xf]
      %v6601 = vld [vmem:[%s2 + $0x1c] sm:$0xf]
      %v6602 = vld [vmem:[%s2 + $0x20] sm:$0xf]
      %v6603 = vld [vmem:[%s2 + $0x24] sm:$0xf]
      %v6604 = vld [vmem:[%s2 + $0x28] sm:$0xf]
      %v6605 = vld [vmem:[%s2 + $0x2c] sm:$0xf]
      %v6606 = vld [vmem:[%s2 + $0x30] sm:$0xf]
      %v6607 = vld [vmem:[%s2 + $0x34] sm:$0xf]
      %v6608 = vld [vmem:[%s2 + $0x38] sm:$0xf]
      %v6609 = vld [vmem:[%s2 + $0x3c] sm:$0xf]
      %v6610 = vld [vmem:[%s2 + $0x40] sm:$0xf]
      %v6611 = vld [vmem:[%s2 + $0x44] sm:$0xf]
      %v6612 = vld [vmem:[%s2 + $0x48] sm:$0xf]
      %v6613 = vld [vmem:[%s2 + $0x4c] sm:$0xf]
      %v6614 = vld [vmem:[%s2 + $0x50] sm:$0xf]
      %v6615 = vld [vmem:[%s2 + $0x54] sm:$0xf]
      %v6616 = vld [vmem:[%s2 + $0x58] sm:$0xf]
      %v6617 = vld [vmem:[%s2 + $0x5c] sm:$0xf]
      %v6618 = vld [vmem:[%s2 + $0x60] sm:$0xf]
      %v6619 = vld [vmem:[%s2 + $0x64] sm:$0xf]
      %v6620 = vld [vmem:[%s2 + $0x68] sm:$0xf]
      %v6621 = vld [vmem:[%s2 + $0x6c] sm:$0xf]
      %v6622 = vld [vmem:[%s2 + $0x70] sm:$0xf]
      %v6623 = vld [vmem:[%s2 + $0x74] sm:$0xf]
      %v6624 = vld [vmem:[%s2 + $0x78] sm:$0xf]
      %v6625 = vld [vmem:[%s2 + $0x7c] sm:$0xf]
      %v6626 = vld [vmem:[%s2 + $0x80] sm:$0xf]
      %v6627 = vld [vmem:[%s2 + $0x84] sm:$0xf]
      %v6628 = vld [vmem:[%s2 + $0x88] sm:$0xf]
      %v6629 = vld [vmem:[%s2 + $0x8c] sm:$0xf]
      %v6630 = vld [vmem:[%s2 + $0x90] sm:$0xf]
      %v6631 = vld [vmem:[%s2 + $0x94] sm:$0xf]
      %v6632 = vld [vmem:[%s2 + $0x98] sm:$0xf]
      %v6633 = vld [vmem:[%s2 + $0x9c] sm:$0xf]
      %v6634 = vld [vmem:[%s2 + $0xa0] sm:$0xf]
      %v6635 = vld [vmem:[%s2 + $0xa4] sm:$0xf]
      %v6636 = vld [vmem:[%s2 + $0xa8] sm:$0xf]
      %v6637 = vld [vmem:[%s2 + $0xac] sm:$0xf]
      %v6638 = vld [vmem:[%s2 + $0xb0] sm:$0xf]
      %v6639 = vld [vmem:[%s2 + $0xb4] sm:$0xf]
      %v6640 = vld [vmem:[%s2 + $0xb8] sm:$0xf]
      %v6641 = vld [vmem:[%s2 + $0xbc] sm:$0xf]
      %v6642 = vld [vmem:[%s2 + $0xc0] sm:$0xf]
      %v6643 = vld [vmem:[%s2 + $0xc4] sm:$0xf]
      %v6644 = vld [vmem:[%s2 + $0xc8] sm:$0xf]
      %v6645 = vld [vmem:[%s2 + $0xcc] sm:$0xf]
      %v6646 = vld [vmem:[%s2 + $0xd0] sm:$0xf]
      %v6647 = vld [vmem:[%s2 + $0xd4] sm:$0xf]
      %v6648 = vld [vmem:[%s2 + $0xd8] sm:$0xf]
      %v6649 = vld [vmem:[%s2 + $0xdc] sm:$0xf]
      %v6650 = vld [vmem:[%s2 + $0xe0] sm:$0xf]
      %v6651 = vld [vmem:[%s2 + $0xe4] sm:$0xf]
      %v6652 = vld [vmem:[%s2 + $0xe8] sm:$0xf]
      %v6653 = vld [vmem:[%s2 + $0xec] sm:$0xf]
      %v6654 = vld [vmem:[%s2 + $0xf0] sm:$0xf]
      %v6655 = vld [vmem:[%s2 + $0xf4] sm:$0xf]
      %v6656 = vld [vmem:[%s2 + $0xf8] sm:$0xf]
      %v6657 = vld [vmem:[%s2 + $0xfc] sm:$0xf]
      %v6658 = vld [vmem:[%s2 + $0x100] sm:$0xf]
      %v6659 = vld [vmem:[%s2 + $0x104] sm:$0xf]
      %v6660 = vld [vmem:[%s2 + $0x108] sm:$0xf]
      %v6661 = vld [vmem:[%s2 + $0x10c] sm:$0xf]
      %v6662 = vld [vmem:[%s2 + $0x110] sm:$0xf]
      %v6663 = vld [vmem:[%s2 + $0x114] sm:$0xf]
      %v6664 = vld [vmem:[%s2 + $0x118] sm:$0xf]
      %v6665 = vld [vmem:[%s2 + $0x11c] sm:$0xf]
      %v6666 = vld [vmem:[%s2 + $0x120] sm:$0xf]
      %v6667 = vld [vmem:[%s2 + $0x124] sm:$0xf]
      %v6668 = vld [vmem:[%s2 + $0x128] sm:$0xf]
      %v6669 = vld [vmem:[%s2 + $0x12c] sm:$0xf]
      %v6670 = vld [vmem:[%s2 + $0x130] sm:$0xf]
      %v6671 = vld [vmem:[%s2 + $0x134] sm:$0xf]
      %v6672 = vld [vmem:[%s2 + $0x138] sm:$0xf]
      %v6673 = vld [vmem:[%s2 + $0x13c] sm:$0xf]
      %v6674 = vld [vmem:[%s2 + $0x140] sm:$0xf]
      %v6675 = vld [vmem:[%s2 + $0x144] sm:$0xf]
      %v6676 = vld [vmem:[%s2 + $0x148] sm:$0xf]
      %v6677 = vld [vmem:[%s2 + $0x14c] sm:$0xf]
      %v6678 = vld [vmem:[%s2 + $0x150] sm:$0xf]
      %v6679 = vld [vmem:[%s2 + $0x154] sm:$0xf]
      %v6680 = vld [vmem:[%s2 + $0x158] sm:$0xf]
      %v6681 = vld [vmem:[%s2 + $0x15c] sm:$0xf]
      %v6682 = vld [vmem:[%s2 + $0x160] sm:$0xf]
      %v6683 = vld [vmem:[%s2 + $0x164] sm:$0xf]
      %v6684 = vld [vmem:[%s2 + $0x168] sm:$0xf]
      %v6685 = vld [vmem:[%s2 + $0x16c] sm:$0xf]
      %v6686 = vld [vmem:[%s2 + $0x170] sm:$0xf]
      %v6687 = vld [vmem:[%s2 + $0x174] sm:$0xf]
      %v6688 = vld [vmem:[%s2 + $0x178] sm:$0xf]
      %v6689 = vld [vmem:[%s2 + $0x17c] sm:$0xf]
      %v6690 = vld [vmem:[%s2 + $0x180] sm:$0xf]
      %v6691 = vld [vmem:[%s2 + $0x184] sm:$0xf]
      %v6692 = vld [vmem:[%s2 + $0x188] sm:$0xf]
      %v6693 = vld [vmem:[%s2 + $0x18c] sm:$0xf]
      %v6694 = vld [vmem:[%s2 + $0x190] sm:$0xf]
      %v6695 = vld [vmem:[%s2 + $0x194] sm:$0xf]
      %v6696 = vld [vmem:[%s2 + $0x198] sm:$0xf]
      %v6697 = vld [vmem:[%s2 + $0x19c] sm:$0xf]
      %v6698 = vld [vmem:[%s2 + $0x1a0] sm:$0xf]
      %v6699 = vld [vmem:[%s2 + $0x1a4] sm:$0xf]
      %v6700 = vld [vmem:[%s2 + $0x1a8] sm:$0xf]
      %v6701 = vld [vmem:[%s2 + $0x1ac] sm:$0xf]
      %v6702 = vld [vmem:[%s2 + $0x1b0] sm:$0xf]
      %v6703 = vld [vmem:[%s2 + $0x1b4] sm:$0xf]
      %v6704 = vld [vmem:[%s2 + $0x1b8] sm:$0xf]
      %v6705 = vld [vmem:[%s2 + $0x1bc] sm:$0xf]
      %v6706 = vld [vmem:[%s2 + $0x1c0] sm:$0xf]
      %v6707 = vld [vmem:[%s2 + $0x1c4] sm:$0xf]
      %v6708 = vld [vmem:[%s2 + $0x1c8] sm:$0xf]
      %v6709 = vld [vmem:[%s2 + $0x1cc] sm:$0xf]
      %v6710 = vld [vmem:[%s2 + $0x1d0] sm:$0xf]
      %v6711 = vld [vmem:[%s2 + $0x1d4] sm:$0xf]
      %v6712 = vld [vmem:[%s2 + $0x1d8] sm:$0xf]
      %v6713 = vld [vmem:[%s2 + $0x1dc] sm:$0xf]
      %v6714 = vld [vmem:[%s2 + $0x1e0] sm:$0xf]
      %v6715 = vld [vmem:[%s2 + $0x1e4] sm:$0xf]
      %v6716 = vld [vmem:[%s2 + $0x1e8] sm:$0xf]
      %v6717 = vld [vmem:[%s2 + $0x1ec] sm:$0xf]
      %v6718 = vld [vmem:[%s2 + $0x1f0] sm:$0xf]
      %v6719 = vld [vmem:[%s2 + $0x1f4] sm:$0xf]
      %v6720 = vld [vmem:[%s2 + $0x1f8] sm:$0xf]
      %v6721 = vld [vmem:[%s2 + $0x1fc] sm:$0xf]
      %v6722 = vld [vmem:[%s2 + $0x200] sm:$0x1]
      %v6852 = vunpack.c.l.b16 %v6594
      %v6853 = vunpack.c.l.b16 %v6595
      %v6854 = vunpack.c.l.b16 %v6596
      %v6855 = vunpack.c.l.b16 %v6597
      %v6856 = vunpack.c.l.b16 %v6598
      %v6857 = vunpack.c.l.b16 %v6599
      %v6858 = vunpack.c.l.b16 %v6600
      %v6859 = vunpack.c.l.b16 %v6601
      %v6860 = vunpack.c.l.b16 %v6602
      %v6861 = vunpack.c.l.b16 %v6603
      %v6862 = vunpack.c.l.b16 %v6604
      %v6863 = vunpack.c.l.b16 %v6605
      %v6864 = vunpack.c.l.b16 %v6606
      %v6865 = vunpack.c.l.b16 %v6607
      %v6866 = vunpack.c.l.b16 %v6608
      %v6867 = vunpack.c.l.b16 %v6609
      %v6868 = vunpack.c.l.b16 %v6610
      %v6869 = vunpack.c.l.b16 %v6611
      %v6870 = vunpack.c.l.b16 %v6612
      %v6871 = vunpack.c.l.b16 %v6613
      %v6872 = vunpack.c.l.b16 %v6614
      %v6873 = vunpack.c.l.b16 %v6615
      %v6874 = vunpack.c.l.b16 %v6616
      %v6875 = vunpack.c.l.b16 %v6617
      %v6876 = vunpack.c.l.b16 %v6618
      %v6877 = vunpack.c.l.b16 %v6619
      %v6878 = vunpack.c.l.b16 %v6620
      %v6879 = vunpack.c.l.b16 %v6621
      %v6880 = vunpack.c.l.b16 %v6622
      %v6881 = vunpack.c.l.b16 %v6623
      %v6882 = vunpack.c.l.b16 %v6624
      %v6883 = vunpack.c.l.b16 %v6625
      %v6884 = vunpack.c.l.b16 %v6626
      %v6885 = vunpack.c.l.b16 %v6627
      %v6886 = vunpack.c.l.b16 %v6628
      %v6887 = vunpack.c.l.b16 %v6629
      %v6888 = vunpack.c.l.b16 %v6630
      %v6889 = vunpack.c.l.b16 %v6631
      %v6890 = vunpack.c.l.b16 %v6632
      %v6891 = vunpack.c.l.b16 %v6633
      %v6892 = vunpack.c.l.b16 %v6634
      %v6893 = vunpack.c.l.b16 %v6635
      %v6894 = vunpack.c.l.b16 %v6636
      %v6895 = vunpack.c.l.b16 %v6637
      %v6896 = vunpack.c.l.b16 %v6638
      %v6897 = vunpack.c.l.b16 %v6639
      %v6898 = vunpack.c.l.b16 %v6640
      %v6899 = vunpack.c.l.b16 %v6641
      %v6900 = vunpack.c.l.b16 %v6642
      %v6901 = vunpack.c.l.b16 %v6643
      %v6902 = vunpack.c.l.b16 %v6644
      %v6903 = vunpack.c.l.b16 %v6645
      %v6904 = vunpack.c.l.b16 %v6646
      %v6905 = vunpack.c.l.b16 %v6647
      %v6906 = vunpack.c.l.b16 %v6648
      %v6907 = vunpack.c.l.b16 %v6649
      %v6908 = vunpack.c.l.b16 %v6650
      %v6909 = vunpack.c.l.b16 %v6651
      %v6910 = vunpack.c.l.b16 %v6652
      %v6911 = vunpack.c.l.b16 %v6653
      %v6912 = vunpack.c.l.b16 %v6654
      %v6913 = vunpack.c.l.b16 %v6655
      %v6914 = vunpack.c.l.b16 %v6656
      %v6915 = vunpack.c.l.b16 %v6657
      %v6916 = vunpack.c.l.b16 %v6658
      %v6917 = vunpack.c.l.b16 %v6659
      %v6918 = vunpack.c.l.b16 %v6660
      %v6919 = vunpack.c.l.b16 %v6661
      %v6920 = vunpack.c.l.b16 %v6662
      %v6921 = vunpack.c.l.b16 %v6663
      %v6922 = vunpack.c.l.b16 %v6664
      %v6923 = vunpack.c.l.b16 %v6665
      %v6924 = vunpack.c.l.b16 %v6666
      %v6925 = vunpack.c.l.b16 %v6667
      %v6926 = vunpack.c.l.b16 %v6668
      %v6927 = vunpack.c.l.b16 %v6669
      %v6928 = vunpack.c.l.b16 %v6670
      %v6929 = vunpack.c.l.b16 %v6671
      %v6930 = vunpack.c.l.b16 %v6672
      %v6931 = vunpack.c.l.b16 %v6673
      %v6932 = vunpack.c.l.b16 %v6674
      %v6933 = vunpack.c.l.b16 %v6675
      %v6934 = vunpack.c.l.b16 %v6676
      %v6935 = vunpack.c.l.b16 %v6677
      %v6936 = vunpack.c.l.b16 %v6678
      %v6937 = vunpack.c.l.b16 %v6679
      %v6938 = vunpack.c.l.b16 %v6680
      %v6939 = vunpack.c.l.b16 %v6681
      %v6940 = vunpack.c.l.b16 %v6682
      %v6941 = vunpack.c.l.b16 %v6683
      %v6942 = vunpack.c.l.b16 %v6684
      %v6943 = vunpack.c.l.b16 %v6685
      %v6944 = vunpack.c.l.b16 %v6686
      %v6945 = vunpack.c.l.b16 %v6687
      %v6946 = vunpack.c.l.b16 %v6688
      %v6947 = vunpack.c.l.b16 %v6689
      %v6948 = vunpack.c.l.b16 %v6690
      %v6949 = vunpack.c.l.b16 %v6691
      %v6950 = vunpack.c.l.b16 %v6692
      %v6951 = vunpack.c.l.b16 %v6693
      %v6952 = vunpack.c.l.b16 %v6694
      %v6953 = vunpack.c.l.b16 %v6695
      %v6954 = vunpack.c.l.b16 %v6696
      %v6955 = vunpack.c.l.b16 %v6697
      %v6956 = vunpack.c.l.b16 %v6698
      %v6957 = vunpack.c.l.b16 %v6699
      %v6958 = vunpack.c.l.b16 %v6700
      %v6959 = vunpack.c.l.b16 %v6701
      %v6960 = vunpack.c.l.b16 %v6702
      %v6961 = vunpack.c.l.b16 %v6703
      %v6962 = vunpack.c.l.b16 %v6704
      %v6963 = vunpack.c.l.b16 %v6705
      %v6964 = vunpack.c.l.b16 %v6706
      %v6965 = vunpack.c.l.b16 %v6707
      %v6966 = vunpack.c.l.b16 %v6708
      %v6967 = vunpack.c.l.b16 %v6709
      %v6968 = vunpack.c.l.b16 %v6710
      %v6969 = vunpack.c.l.b16 %v6711
      %v6970 = vunpack.c.l.b16 %v6712
      %v6971 = vunpack.c.l.b16 %v6713
      %v6972 = vunpack.c.l.b16 %v6714
      %v6973 = vunpack.c.l.b16 %v6715
      %v6974 = vunpack.c.l.b16 %v6716
      %v6975 = vunpack.c.l.b16 %v6717
      %v6976 = vunpack.c.l.b16 %v6718
      %v6977 = vunpack.c.l.b16 %v6719
      %v6978 = vunpack.c.l.b16 %v6720
      %v6979 = vunpack.c.l.b16 %v6721
      %v6980 = vunpack.c.l.b16 %v6722
      %v6981 = vpack.c.b16 %v6853, %v6852
      %v6982 = vpack.c.b16 %v6855, %v6854
      %v6983 = vpack.c.b16 %v6857, %v6856
      %v6984 = vpack.c.b16 %v6859, %v6858
      %v6985 = vpack.c.b16 %v6861, %v6860
      %v6986 = vpack.c.b16 %v6863, %v6862
      %v6987 = vpack.c.b16 %v6865, %v6864
      %v6988 = vpack.c.b16 %v6867, %v6866
      %v6989 = vpack.c.b16 %v6869, %v6868
      %v6990 = vpack.c.b16 %v6871, %v6870
      %v6991 = vpack.c.b16 %v6873, %v6872
      %v6992 = vpack.c.b16 %v6875, %v6874
      %v6993 = vpack.c.b16 %v6877, %v6876
      %v6994 = vpack.c.b16 %v6879, %v6878
      %v6995 = vpack.c.b16 %v6881, %v6880
      %v6996 = vpack.c.b16 %v6883, %v6882
      %v6997 = vpack.c.b16 %v6885, %v6884
      %v6998 = vpack.c.b16 %v6887, %v6886
      %v6999 = vpack.c.b16 %v6889, %v6888
      %v7000 = vpack.c.b16 %v6891, %v6890
      %v7001 = vpack.c.b16 %v6893, %v6892
      %v7002 = vpack.c.b16 %v6895, %v6894
      %v7003 = vpack.c.b16 %v6897, %v6896
      %v7004 = vpack.c.b16 %v6899, %v6898
      %v7005 = vpack.c.b16 %v6901, %v6900
      %v7006 = vpack.c.b16 %v6903, %v6902
      %v7007 = vpack.c.b16 %v6905, %v6904
      %v7008 = vpack.c.b16 %v6907, %v6906
      %v7009 = vpack.c.b16 %v6909, %v6908
      %v7010 = vpack.c.b16 %v6911, %v6910
      %v7011 = vpack.c.b16 %v6913, %v6912
      %v7012 = vpack.c.b16 %v6915, %v6914
      %v7013 = vpack.c.b16 %v6917, %v6916
      %v7014 = vpack.c.b16 %v6919, %v6918
      %v7015 = vpack.c.b16 %v6921, %v6920
      %v7016 = vpack.c.b16 %v6923, %v6922
      %v7017 = vpack.c.b16 %v6925, %v6924
      %v7018 = vpack.c.b16 %v6927, %v6926
      %v7019 = vpack.c.b16 %v6929, %v6928
      %v7020 = vpack.c.b16 %v6931, %v6930
      %v7021 = vpack.c.b16 %v6933, %v6932
      %v7022 = vpack.c.b16 %v6935, %v6934
      %v7023 = vpack.c.b16 %v6937, %v6936
      %v7024 = vpack.c.b16 %v6939, %v6938
      %v7025 = vpack.c.b16 %v6941, %v6940
      %v7026 = vpack.c.b16 %v6943, %v6942
      %v7027 = vpack.c.b16 %v6945, %v6944
      %v7028 = vpack.c.b16 %v6947, %v6946
      %v7029 = vpack.c.b16 %v6949, %v6948
      %v7030 = vpack.c.b16 %v6951, %v6950
      %v7031 = vpack.c.b16 %v6953, %v6952
      %v7032 = vpack.c.b16 %v6955, %v6954
      %v7033 = vpack.c.b16 %v6957, %v6956
      %v7034 = vpack.c.b16 %v6959, %v6958
      %v7035 = vpack.c.b16 %v6961, %v6960
      %v7036 = vpack.c.b16 %v6963, %v6962
      %v7037 = vpack.c.b16 %v6965, %v6964
      %v7038 = vpack.c.b16 %v6967, %v6966
      %v7039 = vpack.c.b16 %v6969, %v6968
      %v7040 = vpack.c.b16 %v6971, %v6970
      %v7041 = vpack.c.b16 %v6973, %v6972
      %v7042 = vpack.c.b16 %v6975, %v6974
      %v7043 = vpack.c.b16 %v6977, %v6976
      %v7044 = vpack.c.b16 %v6979, %v6978
      %v7045 = vpack.c.b16 %v6980, %v6980
      %vm7110 = vcmask 15360
      %v7112 = vsel %vm7110, %v6530, 0
      %v7115 = vsel %vm7110, %v6539, 0
      %v7118 = vsel %vm7110, %v6548, 0
      %v7121 = vsel %vm7110, %v6557, 0
      %v7124 = vsel %vm7110, %v6566, 0
      %v7127 = vsel %vm7110, %v6575, 0
      %v7130 = vsel %vm7110, %v6584, 0
      %v7133 = vsel %vm7110, %v6593, 0
      %vm7135 = vcmask 1040384
      %v7137 = vsel %vm7135, %v7045, 0
      %7139 = vmatprep.subr.bf16.mxu0 0
      %7140 = vmatpush1.bf16.msra.mxu0 %v6981
      %7141 = vmatprep.subr.bf16.mxu0 0
      %7142 = vmatpush1.bf16.msra.mxu0 %v6982
      %7143 = vmatprep.subr.bf16.mxu0 0
      %7144 = vmatpush1.bf16.msra.mxu0 %v6983
      %7145 = vmatprep.subr.bf16.mxu0 0
      %7146 = vmatpush1.bf16.msra.mxu0 %v6984
      %7147 = vmatprep.subr.bf16.mxu0 0
      %7148 = vmatpush1.bf16.msra.mxu0 %v6985
      %7149 = vmatprep.subr.bf16.mxu0 0
      %7150 = vmatpush1.bf16.msra.mxu0 %v6986
      %7151 = vmatprep.subr.bf16.mxu0 0
      %7152 = vmatpush1.bf16.msra.mxu0 %v6987
      %7153 = vmatprep.subr.bf16.mxu0 0
      %7154 = vmatpush1.bf16.msra.mxu0 %v6988
      %7155 = vmatprep.subr.bf16.mxu0 0
      %7156 = vmatpush1.bf16.msra.mxu0 %v6989
      %7157 = vmatprep.subr.bf16.mxu0 0
      %7158 = vmatpush1.bf16.msra.mxu0 %v6990
      %7159 = vmatprep.subr.bf16.mxu0 0
      %7160 = vmatpush1.bf16.msra.mxu0 %v6991
      %7161 = vmatprep.subr.bf16.mxu0 0
      %7162 = vmatpush1.bf16.msra.mxu0 %v6992
      %7163 = vmatprep.subr.bf16.mxu0 0
      %7164 = vmatpush1.bf16.msra.mxu0 %v6993
      %7165 = vmatprep.subr.bf16.mxu0 0
      %7166 = vmatpush1.bf16.msra.mxu0 %v6994
      %7167 = vmatprep.subr.bf16.mxu0 0
      %7168 = vmatpush1.bf16.msra.mxu0 %v6995
      %7169 = vmatprep.subr.bf16.mxu0 0
      %7170 = vmatpush1.bf16.msra.mxu0 %v6996
      %7171 = vmatprep.mubr.bf16.mxu0 %v6523
      %7172 = vmatmul.mubr.bf16.gmra.mrb[0].mxu0 %v6522
      %v7173 = vpop.f32.mrb[0].mxu0
      %v7174 = vadd.f32 1e-09, %v7173
      %v7175 = vpop.f32.mrb[0].mxu0
      %v7176 = vpop.f32.mrb[0].mxu0
      %v7177 = vadd.f32 1e-09, %v7176
      %v7178 = vpop.f32.mrb[0].mxu0
      %7179 = vmatprep.mubr.bf16.mxu0 %v6532
      %7180 = vmatmul.mubr.bf16.gmra.mrb[0].mxu0 %v6531
      %v7181 = vpop.f32.mrb[0].mxu0
      %v7182 = vadd.f32 1e-09, %v7181
      %v7183 = vpop.f32.mrb[0].mxu0
      %v7184 = vpop.f32.mrb[0].mxu0
      %v7185 = vadd.f32 1e-09, %v7184
      %v7186 = vpop.f32.mrb[0].mxu0
      %7187 = vmatprep.mubr.bf16.mxu0 %v6541
      %7188 = vmatmul.mubr.bf16.gmra.mrb[0].mxu0 %v6540
      %v7189 = vpop.f32.mrb[0].mxu0
      %v7190 = vadd.f32 1e-09, %v7189
      %v7191 = vpop.f32.mrb[0].mxu0
      %v7192 = vpop.f32.mrb[0].mxu0
      %v7193 = vadd.f32 1e-09, %v7192
      %v7194 = vpop.f32.mrb[0].mxu0
      %7195 = vmatprep.mubr.bf16.mxu0 %v6550
      %7196 = vmatmul.mubr.bf16.gmra.mrb[0].mxu0 %v6549
      %v7197 = vpop.f32.mrb[0].mxu0
      %v7198 = vadd.f32 1e-09, %v7197
      %v7199 = vpop.f32.mrb[0].mxu0
      %v7200 = vpop.f32.mrb[0].mxu0
      %v7201 = vadd.f32 1e-09, %v7200
      %v7202 = vpop.f32.mrb[0].mxu0
      %7203 = vmatprep.mubr.bf16.mxu0 %v6559
      %7204 = vmatmul.mubr.bf16.gmra.mrb[0].mxu0 %v6558
      %v7205 = vpop.f32.mrb[0].mxu0
      %v7206 = vadd.f32 1e-09, %v7205
      %v7207 = vpop.f32.mrb[0].mxu0
      %v7208 = vpop.f32.mrb[0].mxu0
      %v7209 = vadd.f32 1e-09, %v7208
      %v7210 = vpop.f32.mrb[0].mxu0
      %7211 = vmatprep.mubr.bf16.mxu0 %v6568
      %7212 = vmatmul.mubr.bf16.gmra.mrb[0].mxu0 %v6567
      %v7213 = vpop.f32.mrb[0].mxu0
      %v7214 = vadd.f32 1e-09, %v7213
      %v7215 = vpop.f32.mrb[0].mxu0
      %v7216 = vpop.f32.mrb[0].mxu0
      %v7217 = vadd.f32 1e-09, %v7216
      %v7218 = vpop.f32.mrb[0].mxu0
      %7219 = vmatprep.mubr.bf16.mxu0 %v6577
      %7220 = vmatmul.mubr.bf16.gmra.mrb[0].mxu0 %v6576
      %v7221 = vpop.f32.mrb[0].mxu0
      %v7222 = vadd.f32 1e-09, %v7221
      %v7223 = vpop.f32.mrb[0].mxu0
      %v7224 = vpop.f32.mrb[0].mxu0
      %v7225 = vadd.f32 1e-09, %v7224
      %v7226 = vpop.f32.mrb[0].mxu0
      %7227 = vmatprep.mubr.bf16.mxu0 %v6586
      %7228 = vmatmul.mubr.bf16.gmra.mrb[0].mxu0 %v6585
      %v7229 = vpop.f32.mrb[0].mxu0
      %v7230 = vadd.f32 1e-09, %v7229
      %v7231 = vpop.f32.mrb[0].mxu0
      %v7232 = vpop.f32.mrb[0].mxu0
      %v7233 = vadd.f32 1e-09, %v7232
      %v7234 = vpop.f32.mrb[0].mxu0
      %7235 = vdwg.mxu0
      %7236 = vmatprep.subr.bf16.mxu0 0
      %7237 = vmatpush1.bf16.msra.mxu0 %v6997
      %7238 = vmatprep.subr.bf16.mxu0 0
      %7239 = vmatpush1.bf16.msra.mxu0 %v6998
      %7240 = vmatprep.subr.bf16.mxu0 0
      %7241 = vmatpush1.bf16.msra.mxu0 %v6999
      %7242 = vmatprep.subr.bf16.mxu0 0
      %7243 = vmatpush1.bf16.msra.mxu0 %v7000
      %7244 = vmatprep.subr.bf16.mxu0 0
      %7245 = vmatpush1.bf16.msra.mxu0 %v7001
      %7246 = vmatprep.subr.bf16.mxu0 0
      %7247 = vmatpush1.bf16.msra.mxu0 %v7002
      %7248 = vmatprep.subr.bf16.mxu0 0
      %7249 = vmatpush1.bf16.msra.mxu0 %v7003
      %7250 = vmatprep.subr.bf16.mxu0 0
      %7251 = vmatpush1.bf16.msra.mxu0 %v7004
      %7252 = vmatprep.subr.bf16.mxu0 0
      %7253 = vmatpush1.bf16.msra.mxu0 %v7005
      %7254 = vmatprep.subr.bf16.mxu0 0
      %7255 = vmatpush1.bf16.msra.mxu0 %v7006
      %7256 = vmatprep.subr.bf16.mxu0 0
      %7257 = vmatpush1.bf16.msra.mxu0 %v7007
      %7258 = vmatprep.subr.bf16.mxu0 0
      %7259 = vmatpush1.bf16.msra.mxu0 %v7008
      %7260 = vmatprep.subr.bf16.mxu0 0
      %7261 = vmatpush1.bf16.msra.mxu0 %v7009
      %7262 = vmatprep.subr.bf16.mxu0 0
      %7263 = vmatpush1.bf16.msra.mxu0 %v7010
      %7264 = vmatprep.subr.bf16.mxu0 0
      %7265 = vmatpush1.bf16.msra.mxu0 %v7011
      %7266 = vmatprep.subr.bf16.mxu0 0
      %7267 = vmatpush1.bf16.msra.mxu0 %v7012
      %7268 = vmatprep.mubr.bf16.mxu0 %v6525
      %7269 = vmatmul.mubr.bf16.gmra.mrb[0].mxu0 %v6524
      %v7270 = vpop.f32.mrb[0].mxu0
      %v7271 = vadd.f32 %v7174, %v7270
      %v7272 = vpop.f32.mrb[0].mxu0
      %v7273 = vpop.f32.mrb[0].mxu0
      %v7274 = vadd.f32 %v7177, %v7273
      %v7275 = vpop.f32.mrb[0].mxu0
      %7276 = vmatprep.mubr.bf16.mxu0 %v6534
      %7277 = vmatmul.mubr.bf16.gmra.mrb[0].mxu0 %v6533
      %v7278 = vpop.f32.mrb[0].mxu0
      %v7279 = vadd.f32 %v7182, %v7278
      %v7280 = vpop.f32.mrb[0].mxu0
      %v7281 = vpop.f32.mrb[0].mxu0
      %v7282 = vadd.f32 %v7185, %v7281
      %v7283 = vpop.f32.mrb[0].mxu0
      %7284 = vmatprep.mubr.bf16.mxu0 %v6543
      %7285 = vmatmul.mubr.bf16.gmra.mrb[0].mxu0 %v6542
      %v7286 = vpop.f32.mrb[0].mxu0
      %v7287 = vadd.f32 %v7190, %v7286
      %v7288 = vpop.f32.mrb[0].mxu0
      %v7289 = vpop.f32.mrb[0].mxu0
      %v7290 = vadd.f32 %v7193, %v7289
      %v7291 = vpop.f32.mrb[0].mxu0
      %7292 = vmatprep.mubr.bf16.mxu0 %v6552
      %7293 = vmatmul.mubr.bf16.gmra.mrb[0].mxu0 %v6551
      %v7294 = vpop.f32.mrb[0].mxu0
      %v7295 = vadd.f32 %v7198, %v7294
      %v7296 = vpop.f32.mrb[0].mxu0
      %v7297 = vpop.f32.mrb[0].mxu0
      %v7298 = vadd.f32 %v7201, %v7297
      %v7299 = vpop.f32.mrb[0].mxu0
      %7300 = vmatprep.mubr.bf16.mxu0 %v6561
      %7301 = vmatmul.mubr.bf16.gmra.mrb[0].mxu0 %v6560
      %v7302 = vpop.f32.mrb[0].mxu0
      %v7303 = vadd.f32 %v7206, %v7302
      %v7304 = vpop.f32.mrb[0].mxu0
      %v7305 = vpop.f32.mrb[0].mxu0
      %v7306 = vadd.f32 %v7209, %v7305
      %v7307 = vpop.f32.mrb[0].mxu0
      %7308 = vmatprep.mubr.bf16.mxu0 %v6570
      %7309 = vmatmul.mubr.bf16.gmra.mrb[0].mxu0 %v6569
      %v7310 = vpop.f32.mrb[0].mxu0
      %v7311 = vadd.f32 %v7214, %v7310
      %v7312 = vpop.f32.mrb[0].mxu0
      %v7313 = vpop.f32.mrb[0].mxu0
      %v7314 = vadd.f32 %v7217, %v7313
      %v7315 = vpop.f32.mrb[0].mxu0
      %7316 = vmatprep.mubr.bf16.mxu0 %v6579
      %7317 = vmatmul.mubr.bf16.gmra.mrb[0].mxu0 %v6578
      %v7318 = vpop.f32.mrb[0].mxu0
      %v7319 = vadd.f32 %v7222, %v7318
      %v7320 = vpop.f32.mrb[0].mxu0
      %v7321 = vpop.f32.mrb[0].mxu0
      %v7322 = vadd.f32 %v7225, %v7321
      %v7323 = vpop.f32.mrb[0].mxu0
      %7324 = vmatprep.mubr.bf16.mxu0 %v6588
      %7325 = vmatmul.mubr.bf16.gmra.mrb[0].mxu0 %v6587
      %v7326 = vpop.f32.mrb[0].mxu0
      %v7327 = vadd.f32 %v7230, %v7326
      %v7328 = vpop.f32.mrb[0].mxu0
      %v7329 = vpop.f32.mrb[0].mxu0
      %v7330 = vadd.f32 %v7233, %v7329
      %v7331 = vpop.f32.mrb[0].mxu0
      %7332 = vdwg.mxu0
      %7333 = vmatprep.subr.bf16.mxu0 0
      %7334 = vmatpush1.bf16.msra.mxu0 %v7013
      %7335 = vmatprep.subr.bf16.mxu0 0
      %7336 = vmatpush1.bf16.msra.mxu0 %v7014
      %7337 = vmatprep.subr.bf16.mxu0 0
      %7338 = vmatpush1.bf16.msra.mxu0 %v7015
      %7339 = vmatprep.subr.bf16.mxu0 0
      %7340 = vmatpush1.bf16.msra.mxu0 %v7016
      %7341 = vmatprep.subr.bf16.mxu0 0
      %7342 = vmatpush1.bf16.msra.mxu0 %v7017
      %7343 = vmatprep.subr.bf16.mxu0 0
      %7344 = vmatpush1.bf16.msra.mxu0 %v7018
      %7345 = vmatprep.subr.bf16.mxu0 0
      %7346 = vmatpush1.bf16.msra.mxu0 %v7019
      %7347 = vmatprep.subr.bf16.mxu0 0
      %7348 = vmatpush1.bf16.msra.mxu0 %v7020
      %7349 = vmatprep.subr.bf16.mxu0 0
      %7350 = vmatpush1.bf16.msra.mxu0 %v7021
      %7351 = vmatprep.subr.bf16.mxu0 0
      %7352 = vmatpush1.bf16.msra.mxu0 %v7022
      %7353 = vmatprep.subr.bf16.mxu0 0
      %7354 = vmatpush1.bf16.msra.mxu0 %v7023
      %7355 = vmatprep.subr.bf16.mxu0 0
      %7356 = vmatpush1.bf16.msra.mxu0 %v7024
      %7357 = vmatprep.subr.bf16.mxu0 0
      %7358 = vmatpush1.bf16.msra.mxu0 %v7025
      %7359 = vmatprep.subr.bf16.mxu0 0
      %7360 = vmatpush1.bf16.msra.mxu0 %v7026
      %7361 = vmatprep.subr.bf16.mxu0 0
      %7362 = vmatpush1.bf16.msra.mxu0 %v7027
      %7363 = vmatprep.subr.bf16.mxu0 0
      %7364 = vmatpush1.bf16.msra.mxu0 %v7028
      %7365 = vmatprep.mubr.bf16.mxu0 %v6527
      %7366 = vmatmul.mubr.bf16.gmra.mrb[0].mxu0 %v6526
      %v7367 = vpop.f32.mrb[0].mxu0
      %v7368 = vadd.f32 %v7271, %v7367
      %v7369 = vpop.f32.mrb[0].mxu0
      %v7370 = vpop.f32.mrb[0].mxu0
      %v7371 = vadd.f32 %v7274, %v7370
      %v7372 = vpop.f32.mrb[0].mxu0
      %7373 = vmatprep.mubr.bf16.mxu0 %v6536
      %7374 = vmatmul.mubr.bf16.gmra.mrb[0].mxu0 %v6535
      %v7375 = vpop.f32.mrb[0].mxu0
      %v7376 = vadd.f32 %v7279, %v7375
      %v7377 = vpop.f32.mrb[0].mxu0
      %v7378 = vpop.f32.mrb[0].mxu0
      %v7379 = vadd.f32 %v7282, %v7378
      %v7380 = vpop.f32.mrb[0].mxu0
      %7381 = vmatprep.mubr.bf16.mxu0 %v6545
      %7382 = vmatmul.mubr.bf16.gmra.mrb[0].mxu0 %v6544
      %v7383 = vpop.f32.mrb[0].mxu0
      %v7384 = vadd.f32 %v7287, %v7383
      %v7385 = vpop.f32.mrb[0].mxu0
      %v7386 = vpop.f32.mrb[0].mxu0
      %v7387 = vadd.f32 %v7290, %v7386
      %v7388 = vpop.f32.mrb[0].mxu0
      %7389 = vmatprep.mubr.bf16.mxu0 %v6554
      %7390 = vmatmul.mubr.bf16.gmra.mrb[0].mxu0 %v6553
      %v7391 = vpop.f32.mrb[0].mxu0
      %v7392 = vadd.f32 %v7295, %v7391
      %v7393 = vpop.f32.mrb[0].mxu0
      %v7394 = vpop.f32.mrb[0].mxu0
      %v7395 = vadd.f32 %v7298, %v7394
      %v7396 = vpop.f32.mrb[0].mxu0
      %7397 = vmatprep.mubr.bf16.mxu0 %v6563
      %7398 = vmatmul.mubr.bf16.gmra.mrb[0].mxu0 %v6562
      %v7399 = vpop.f32.mrb[0].mxu0
      %v7400 = vadd.f32 %v7303, %v7399
      %v7401 = vpop.f32.mrb[0].mxu0
      %v7402 = vpop.f32.mrb[0].mxu0
      %v7403 = vadd.f32 %v7306, %v7402
      %v7404 = vpop.f32.mrb[0].mxu0
      %7405 = vmatprep.mubr.bf16.mxu0 %v6572
      %7406 = vmatmul.mubr.bf16.gmra.mrb[0].mxu0 %v6571
      %v7407 = vpop.f32.mrb[0].mxu0
      %v7408 = vadd.f32 %v7311, %v7407
      %v7409 = vpop.f32.mrb[0].mxu0
      %v7410 = vpop.f32.mrb[0].mxu0
      %v7411 = vadd.f32 %v7314, %v7410
      %v7412 = vpop.f32.mrb[0].mxu0
      %7413 = vmatprep.mubr.bf16.mxu0 %v6581
      %7414 = vmatmul.mubr.bf16.gmra.mrb[0].mxu0 %v6580
      %v7415 = vpop.f32.mrb[0].mxu0
      %v7416 = vadd.f32 %v7319, %v7415
      %v7417 = vpop.f32.mrb[0].mxu0
      %v7418 = vpop.f32.mrb[0].mxu0
      %v7419 = vadd.f32 %v7322, %v7418
      %v7420 = vpop.f32.mrb[0].mxu0
      %7421 = vmatprep.mubr.bf16.mxu0 %v6590
      %7422 = vmatmul.mubr.bf16.gmra.mrb[0].mxu0 %v6589
      %v7423 = vpop.f32.mrb[0].mxu0
      %v7424 = vadd.f32 %v7327, %v7423
      %v7425 = vpop.f32.mrb[0].mxu0
      %v7426 = vpop.f32.mrb[0].mxu0
      %v7427 = vadd.f32 %v7330, %v7426
      %v7428 = vpop.f32.mrb[0].mxu0
      %7429 = vdwg.mxu0
      %7430 = vmatprep.subr.bf16.mxu0 0
      %7431 = vmatpush1.bf16.msra.mxu0 %v7029
      %7432 = vmatprep.subr.bf16.mxu0 0
      %7433 = vmatpush1.bf16.msra.mxu0 %v7030
      %7434 = vmatprep.subr.bf16.mxu0 0
      %7435 = vmatpush1.bf16.msra.mxu0 %v7031
      %7436 = vmatprep.subr.bf16.mxu0 0
      %7437 = vmatpush1.bf16.msra.mxu0 %v7032
      %7438 = vmatprep.subr.bf16.mxu0 0
      %7439 = vmatpush1.bf16.msra.mxu0 %v7033
      %7440 = vmatprep.subr.bf16.mxu0 0
      %7441 = vmatpush1.bf16.msra.mxu0 %v7034
      %7442 = vmatprep.subr.bf16.mxu0 0
      %7443 = vmatpush1.bf16.msra.mxu0 %v7035
      %7444 = vmatprep.subr.bf16.mxu0 0
      %7445 = vmatpush1.bf16.msra.mxu0 %v7036
      %7446 = vmatprep.subr.bf16.mxu0 0
      %7447 = vmatpush1.bf16.msra.mxu0 %v7037
      %7448 = vmatprep.subr.bf16.mxu0 0
      %7449 = vmatpush1.bf16.msra.mxu0 %v7038
      %7450 = vmatprep.subr.bf16.mxu0 0
      %7451 = vmatpush1.bf16.msra.mxu0 %v7039
      %7452 = vmatprep.subr.bf16.mxu0 0
      %7453 = vmatpush1.bf16.msra.mxu0 %v7040
      %7454 = vmatprep.subr.bf16.mxu0 0
      %7455 = vmatpush1.bf16.msra.mxu0 %v7041
      %7456 = vmatprep.subr.bf16.mxu0 0
      %7457 = vmatpush1.bf16.msra.mxu0 %v7042
      %7458 = vmatprep.subr.bf16.mxu0 0
      %7459 = vmatpush1.bf16.msra.mxu0 %v7043
      %7460 = vmatprep.subr.bf16.mxu0 0
      %7461 = vmatpush1.bf16.msra.mxu0 %v7044
      %7462 = vmatprep.mubr.bf16.mxu0 %v6529
      %7463 = vmatmul.mubr.bf16.gmra.mrb[0].mxu0 %v6528
      %v7464 = vpop.f32.mrb[0].mxu0
      %v7465 = vadd.f32 %v7368, %v7464
      %v7466 = vpop.f32.mrb[0].mxu0
      %v7467 = vpop.f32.mrb[0].mxu0
      %v7468 = vadd.f32 %v7371, %v7467
      %v7469 = vpop.f32.mrb[0].mxu0
      %7470 = vmatprep.mubr.bf16.mxu0 %v6538
      %7471 = vmatmul.mubr.bf16.gmra.mrb[0].mxu0 %v6537
      %v7472 = vpop.f32.mrb[0].mxu0
      %v7473 = vadd.f32 %v7376, %v7472
      %v7474 = vpop.f32.mrb[0].mxu0
      %v7475 = vpop.f32.mrb[0].mxu0
      %v7476 = vadd.f32 %v7379, %v7475
      %v7477 = vpop.f32.mrb[0].mxu0
      %7478 = vmatprep.mubr.bf16.mxu0 %v6547
      %7479 = vmatmul.mubr.bf16.gmra.mrb[0].mxu0 %v6546
      %v7480 = vpop.f32.mrb[0].mxu0
      %v7481 = vadd.f32 %v7384, %v7480
      %v7482 = vpop.f32.mrb[0].mxu0
      %v7483 = vpop.f32.mrb[0].mxu0
      %v7484 = vadd.f32 %v7387, %v7483
      %v7485 = vpop.f32.mrb[0].mxu0
      %7486 = vmatprep.mubr.bf16.mxu0 %v6556
      %7487 = vmatmul.mubr.bf16.gmra.mrb[0].mxu0 %v6555
      %v7488 = vpop.f32.mrb[0].mxu0
      %v7489 = vadd.f32 %v7392, %v7488
      %v7490 = vpop.f32.mrb[0].mxu0
      %v7491 = vpop.f32.mrb[0].mxu0
      %v7492 = vadd.f32 %v7395, %v7491
      %v7493 = vpop.f32.mrb[0].mxu0
      %7494 = vmatprep.mubr.bf16.mxu0 %v6565
      %7495 = vmatmul.mubr.bf16.gmra.mrb[0].mxu0 %v6564
      %v7496 = vpop.f32.mrb[0].mxu0
      %v7497 = vadd.f32 %v7400, %v7496
      %v7498 = vpop.f32.mrb[0].mxu0
      %v7499 = vpop.f32.mrb[0].mxu0
      %v7500 = vadd.f32 %v7403, %v7499
      %v7501 = vpop.f32.mrb[0].mxu0
      %7502 = vmatprep.mubr.bf16.mxu0 %v6574
      %7503 = vmatmul.mubr.bf16.gmra.mrb[0].mxu0 %v6573
      %v7504 = vpop.f32.mrb[0].mxu0
      %v7505 = vadd.f32 %v7408, %v7504
      %v7506 = vpop.f32.mrb[0].mxu0
      %v7507 = vpop.f32.mrb[0].mxu0
      %v7508 = vadd.f32 %v7411, %v7507
      %v7509 = vpop.f32.mrb[0].mxu0
      %7510 = vmatprep.mubr.bf16.mxu0 %v6583
      %7511 = vmatmul.mubr.bf16.gmra.mrb[0].mxu0 %v6582
      %v7512 = vpop.f32.mrb[0].mxu0
      %v7513 = vadd.f32 %v7416, %v7512
      %v7514 = vpop.f32.mrb[0].mxu0
      %v7515 = vpop.f32.mrb[0].mxu0
      %v7516 = vadd.f32 %v7419, %v7515
      %v7517 = vpop.f32.mrb[0].mxu0
      %7518 = vmatprep.mubr.bf16.mxu0 %v6592
      %7519 = vmatmul.mubr.bf16.gmra.mrb[0].mxu0 %v6591
      %v7520 = vpop.f32.mrb[0].mxu0
      %v7521 = vadd.f32 %v7424, %v7520
      %v7522 = vpop.f32.mrb[0].mxu0
      %v7523 = vpop.f32.mrb[0].mxu0
      %v7524 = vadd.f32 %v7427, %v7523
      %v7525 = vpop.f32.mrb[0].mxu0
      %7526 = vdwg.mxu0
      %7527 = vmatprep.subr.bf16.mxu0 0
      %7528 = vmatpush1.bf16.msra.mxu0 %v7137
      %7529 = vmatprep.subr.bf16.mxu0 0
      %7530 = vmatpush1.bf16.msra.mxu0 0
      %7531 = vmatprep.subr.bf16.mxu0 0
      %7532 = vmatpush1.bf16.msra.mxu0 0
      %7533 = vmatprep.subr.bf16.mxu0 0
      %7534 = vmatpush1.bf16.msra.mxu0 0
      %7535 = vmatprep.subr.bf16.mxu0 0
      %7536 = vmatpush1.bf16.msra.mxu0 0
      %7537 = vmatprep.subr.bf16.mxu0 0
      %7538 = vmatpush1.bf16.msra.mxu0 0
      %7539 = vmatprep.subr.bf16.mxu0 0
      %7540 = vmatpush1.bf16.msra.mxu0 0
      %7541 = vmatprep.subr.bf16.mxu0 0
      %7542 = vmatpush1.bf16.msra.mxu0 0
      %7543 = vmatprep.subr.bf16.mxu0 0
      %7544 = vmatpush1.bf16.msra.mxu0 0
      %7545 = vmatprep.subr.bf16.mxu0 0
      %7546 = vmatpush1.bf16.msra.mxu0 0
      %7547 = vmatprep.subr.bf16.mxu0 0
      %7548 = vmatpush1.bf16.msra.mxu0 0
      %7549 = vmatprep.subr.bf16.mxu0 0
      %7550 = vmatpush1.bf16.msra.mxu0 0
      %7551 = vmatprep.subr.bf16.mxu0 0
      %7552 = vmatpush1.bf16.msra.mxu0 0
      %7553 = vmatprep.subr.bf16.mxu0 0
      %7554 = vmatpush1.bf16.msra.mxu0 0
      %7555 = vmatprep.subr.bf16.mxu0 0
      %7556 = vmatpush1.bf16.msra.mxu0 0
      %7557 = vmatprep.subr.bf16.mxu0 0
      %7558 = vmatpush1.bf16.msra.mxu0 0
      %7559 = vmatprep.mubr.bf16.mxu0 0
      %7560 = vmatmul.mubr.bf16.gmra.mrb[0].mxu0 %v7112
      %v7561 = vpop.f32.mrb[0].mxu0
      %v7562 = vadd.f32 %v7465, %v7561
      %v7563 = vpop.f32.mrb[0].mxu0
      %v7564 = vpop.f32.mrb[0].mxu0
      %v7565 = vadd.f32 %v7468, %v7564
      %v7566 = vpop.f32.mrb[0].mxu0
      %7567 = vmatprep.mubr.bf16.mxu0 0
      %7568 = vmatmul.mubr.bf16.gmra.mrb[0].mxu0 %v7115
      %v7569 = vpop.f32.mrb[0].mxu0
      %v7570 = vadd.f32 %v7473, %v7569
      %v7571 = vpop.f32.mrb[0].mxu0
      %v7572 = vpop.f32.mrb[0].mxu0
      %v7573 = vadd.f32 %v7476, %v7572
      %v7574 = vpop.f32.mrb[0].mxu0
      %7575 = vmatprep.mubr.bf16.mxu0 0
      %7576 = vmatmul.mubr.bf16.gmra.mrb[0].mxu0 %v7118
      %v7577 = vpop.f32.mrb[0].mxu0
      %v7578 = vadd.f32 %v7481, %v7577
      %v7579 = vpop.f32.mrb[0].mxu0
      %v7580 = vpop.f32.mrb[0].mxu0
      %v7581 = vadd.f32 %v7484, %v7580
      %v7582 = vpop.f32.mrb[0].mxu0
      %7583 = vmatprep.mubr.bf16.mxu0 0
      %7584 = vmatmul.mubr.bf16.gmra.mrb[0].mxu0 %v7121
      %v7585 = vpop.f32.mrb[0].mxu0
      %v7586 = vadd.f32 %v7489, %v7585
      %v7587 = vpop.f32.mrb[0].mxu0
      %v7588 = vpop.f32.mrb[0].mxu0
      %v7589 = vadd.f32 %v7492, %v7588
      %v7590 = vpop.f32.mrb[0].mxu0
      %7591 = vmatprep.mubr.bf16.mxu0 0
      %7592 = vmatmul.mubr.bf16.gmra.mrb[0].mxu0 %v7124
      %v7593 = vpop.f32.mrb[0].mxu0
      %v7594 = vadd.f32 %v7497, %v7593
      %v7595 = vpop.f32.mrb[0].mxu0
      %v7596 = vpop.f32.mrb[0].mxu0
      %v7597 = vadd.f32 %v7500, %v7596
      %v7598 = vpop.f32.mrb[0].mxu0
      %7599 = vmatprep.mubr.bf16.mxu0 0
      %7600 = vmatmul.mubr.bf16.gmra.mrb[0].mxu0 %v7127
      %v7601 = vpop.f32.mrb[0].mxu0
      %v7602 = vadd.f32 %v7505, %v7601
      %v7603 = vpop.f32.mrb[0].mxu0
      %v7604 = vpop.f32.mrb[0].mxu0
      %v7605 = vadd.f32 %v7508, %v7604
      %v7606 = vpop.f32.mrb[0].mxu0
      %7607 = vmatprep.mubr.bf16.mxu0 0
      %7608 = vmatmul.mubr.bf16.gmra.mrb[0].mxu0 %v7130
      %v7609 = vpop.f32.mrb[0].mxu0
      %v7610 = vadd.f32 %v7513, %v7609
      %v7611 = vpop.f32.mrb[0].mxu0
      %v7612 = vpop.f32.mrb[0].mxu0
      %v7613 = vadd.f32 %v7516, %v7612
      %v7614 = vpop.f32.mrb[0].mxu0
      %7615 = vmatprep.mubr.bf16.mxu0 0
      %7616 = vmatmul.mubr.bf16.gmra.mrb[0].mxu0 %v7133
      %v7617 = vpop.f32.mrb[0].mxu0
      %v7618 = vadd.f32 %v7521, %v7617
      %v7619 = vpop.f32.mrb[0].mxu0
      %v7620 = vpop.f32.mrb[0].mxu0
      %v7621 = vadd.f32 %v7524, %v7620
      %v7622 = vpop.f32.mrb[0].mxu0
      %7623 = vdwg.mxu0
      %v7624 = vlog2.pop %v7562
      %v7625 = vmul.f32 %v7624, 0.6931472
      %v7626 = vlog2.pop %v7565
      %v7627 = vmul.f32 %v7626, 0.6931472
      %v7628 = vlog2.pop %v7570
      %v7629 = vmul.f32 %v7628, 0.6931472
      %v7630 = vlog2.pop %v7573
      %v7631 = vmul.f32 %v7630, 0.6931472
      %v7632 = vlog2.pop %v7578
      %v7633 = vmul.f32 %v7632, 0.6931472
      %v7634 = vlog2.pop %v7581
      %v7635 = vmul.f32 %v7634, 0.6931472
      %v7636 = vlog2.pop %v7586
      %v7637 = vmul.f32 %v7636, 0.6931472
      %v7638 = vlog2.pop %v7589
      %v7639 = vmul.f32 %v7638, 0.6931472
      %v7640 = vlog2.pop %v7594
      %v7641 = vmul.f32 %v7640, 0.6931472
      %v7642 = vlog2.pop %v7597
      %v7643 = vmul.f32 %v7642, 0.6931472
      %v7644 = vlog2.pop %v7602
      %v7645 = vmul.f32 %v7644, 0.6931472
      %v7646 = vlog2.pop %v7605
      %v7647 = vmul.f32 %v7646, 0.6931472
      %v7648 = vlog2.pop %v7610
      %v7649 = vmul.f32 %v7648, 0.6931472
      %v7650 = vlog2.pop %v7613
      %v7651 = vmul.f32 %v7650, 0.6931472
      %v7652 = vlog2.pop %v7618
      %v7653 = vmul.f32 %v7652, 0.6931472
      %v7654 = vlog2.pop %v7621
      %v7655 = vmul.f32 %v7654, 0.6931472
      %vm7656 = vcmask 326656
      %v7657 = vsel %vm7656, %v7625, 0.0
      %7658 = vadd.xlane.f32.xlu0 %v7657
      %v7659 = vpop.xlane.xlu0 %7658
      %v7660 = vsel %vm7656, %v7627, 0.0
      %7661 = vadd.xlane.f32.xlu0 %v7660
      %v7662 = vpop.xlane.xlu0 %7661
      %v7663 = vsel %vm7656, %v7629, 0.0
      %7664 = vadd.xlane.f32.xlu0 %v7663
      %v7665 = vpop.xlane.xlu0 %7664
      %v7666 = vsel %vm7656, %v7631, 0.0
      %7667 = vadd.xlane.f32.xlu0 %v7666
      %v7668 = vpop.xlane.xlu0 %7667
      %v7669 = vsel %vm7656, %v7633, 0.0
      %7670 = vadd.xlane.f32.xlu0 %v7669
      %v7671 = vpop.xlane.xlu0 %7670
      %v7672 = vsel %vm7656, %v7635, 0.0
      %7673 = vadd.xlane.f32.xlu0 %v7672
      %v7674 = vpop.xlane.xlu0 %7673
      %v7675 = vsel %vm7656, %v7637, 0.0
      %7676 = vadd.xlane.f32.xlu0 %v7675
      %v7677 = vpop.xlane.xlu0 %7676
      %v7678 = vsel %vm7656, %v7639, 0.0
      %7679 = vadd.xlane.f32.xlu0 %v7678
      %v7680 = vpop.xlane.xlu0 %7679
      %v7681 = vsel %vm7656, %v7641, 0.0
      %7682 = vadd.xlane.f32.xlu0 %v7681
      %v7683 = vpop.xlane.xlu0 %7682
      %v7684 = vsel %vm7656, %v7643, 0.0
      %7685 = vadd.xlane.f32.xlu0 %v7684
      %v7686 = vpop.xlane.xlu0 %7685
      %v7687 = vsel %vm7656, %v7645, 0.0
      %7688 = vadd.xlane.f32.xlu0 %v7687
      %v7689 = vpop.xlane.xlu0 %7688
      %v7690 = vsel %vm7656, %v7647, 0.0
      %7691 = vadd.xlane.f32.xlu0 %v7690
      %v7692 = vpop.xlane.xlu0 %7691
      %v7693 = vsel %vm7656, %v7649, 0.0
      %7694 = vadd.xlane.f32.xlu0 %v7693
      %v7695 = vpop.xlane.xlu0 %7694
      %v7696 = vsel %vm7656, %v7651, 0.0
      %7697 = vadd.xlane.f32.xlu0 %v7696
      %v7698 = vpop.xlane.xlu0 %7697
      %v7699 = vsel %vm7656, %v7653, 0.0
      %7700 = vadd.xlane.f32.xlu0 %v7699
      %v7701 = vpop.xlane.xlu0 %7700
      %v7702 = vsel %vm7656, %v7655, 0.0
      %7703 = vadd.xlane.f32.xlu0 %v7702
      %v7704 = vpop.xlane.xlu0 %7703
      %v7705 = vrcp.pop 40.0
      %v7706 = vmul.f32 %v7659, %v7705
      %v7707 = vmul.f32 %v7662, %v7705
      %v7708 = vmul.f32 %v7665, %v7705
      %v7709 = vmul.f32 %v7668, %v7705
      %v7710 = vmul.f32 %v7671, %v7705
      %v7711 = vmul.f32 %v7674, %v7705
      %v7712 = vmul.f32 %v7677, %v7705
      %v7713 = vmul.f32 %v7680, %v7705
      %v7714 = vmul.f32 %v7683, %v7705
      %v7715 = vmul.f32 %v7686, %v7705
      %v7716 = vmul.f32 %v7689, %v7705
      %v7717 = vmul.f32 %v7692, %v7705
      %v7718 = vmul.f32 %v7695, %v7705
      %v7719 = vmul.f32 %v7698, %v7705
      %v7720 = vmul.f32 %v7701, %v7705
      %v7721 = vmul.f32 %v7704, %v7705
      %v7722 = vsub.f32 %v7625, %v7706
      %v7723 = vsub.f32 %v7627, %v7707
      %v7724 = vsub.f32 %v7629, %v7708
      %v7725 = vsub.f32 %v7631, %v7709
      %v7726 = vsub.f32 %v7633, %v7710
      %v7727 = vsub.f32 %v7635, %v7711
      %v7728 = vsub.f32 %v7637, %v7712
      %v7729 = vsub.f32 %v7639, %v7713
      %v7730 = vsub.f32 %v7641, %v7714
      %v7731 = vsub.f32 %v7643, %v7715
      %v7732 = vsub.f32 %v7645, %v7716
      %v7733 = vsub.f32 %v7647, %v7717
      %v7734 = vsub.f32 %v7649, %v7718
      %v7735 = vsub.f32 %v7651, %v7719
      %v7736 = vsub.f32 %v7653, %v7720
      %v7737 = vsub.f32 %v7655, %v7721
      %v7738 = vmul.f32 %v7722, %v7722
      %v7739 = vmul.f32 %v7723, %v7723
      %v7740 = vmul.f32 %v7724, %v7724
      %v7741 = vmul.f32 %v7725, %v7725
      %v7742 = vmul.f32 %v7726, %v7726
      %v7743 = vmul.f32 %v7727, %v7727
      %v7744 = vmul.f32 %v7728, %v7728
      %v7745 = vmul.f32 %v7729, %v7729
      %v7746 = vmul.f32 %v7730, %v7730
      %v7747 = vmul.f32 %v7731, %v7731
      %v7748 = vmul.f32 %v7732, %v7732
      %v7749 = vmul.f32 %v7733, %v7733
      %v7750 = vmul.f32 %v7734, %v7734
      %v7751 = vmul.f32 %v7735, %v7735
      %v7752 = vmul.f32 %v7736, %v7736
      %v7753 = vmul.f32 %v7737, %v7737
      %v7754 = vsel %vm7656, %v7738, 0.0
      %7755 = vadd.xlane.f32.xlu0 %v7754
      %v7756 = vpop.xlane.xlu0 %7755
      %v7757 = vsel %vm7656, %v7739, 0.0
      %7758 = vadd.xlane.f32.xlu0 %v7757
      %v7759 = vpop.xlane.xlu0 %7758
      %v7760 = vsel %vm7656, %v7740, 0.0
      %7761 = vadd.xlane.f32.xlu0 %v7760
      %v7762 = vpop.xlane.xlu0 %7761
      %v7763 = vsel %vm7656, %v7741, 0.0
      %7764 = vadd.xlane.f32.xlu0 %v7763
      %v7765 = vpop.xlane.xlu0 %7764
      %v7766 = vsel %vm7656, %v7742, 0.0
      %7767 = vadd.xlane.f32.xlu0 %v7766
      %v7768 = vpop.xlane.xlu0 %7767
      %v7769 = vsel %vm7656, %v7743, 0.0
      %7770 = vadd.xlane.f32.xlu0 %v7769
      %v7771 = vpop.xlane.xlu0 %7770
      %v7772 = vsel %vm7656, %v7744, 0.0
      %7773 = vadd.xlane.f32.xlu0 %v7772
      %v7774 = vpop.xlane.xlu0 %7773
      %v7775 = vsel %vm7656, %v7745, 0.0
      %7776 = vadd.xlane.f32.xlu0 %v7775
      %v7777 = vpop.xlane.xlu0 %7776
      %v7778 = vsel %vm7656, %v7746, 0.0
      %7779 = vadd.xlane.f32.xlu0 %v7778
      %v7780 = vpop.xlane.xlu0 %7779
      %v7781 = vsel %vm7656, %v7747, 0.0
      %7782 = vadd.xlane.f32.xlu0 %v7781
      %v7783 = vpop.xlane.xlu0 %7782
      %v7784 = vsel %vm7656, %v7748, 0.0
      %7785 = vadd.xlane.f32.xlu0 %v7784
      %v7786 = vpop.xlane.xlu0 %7785
      %v7787 = vsel %vm7656, %v7749, 0.0
      %7788 = vadd.xlane.f32.xlu0 %v7787
      %v7789 = vpop.xlane.xlu0 %7788
      %v7790 = vsel %vm7656, %v7750, 0.0
      %7791 = vadd.xlane.f32.xlu0 %v7790
      %v7792 = vpop.xlane.xlu0 %7791
      %v7793 = vsel %vm7656, %v7751, 0.0
      %7794 = vadd.xlane.f32.xlu0 %v7793
      %v7795 = vpop.xlane.xlu0 %7794
      %v7796 = vsel %vm7656, %v7752, 0.0
      %7797 = vadd.xlane.f32.xlu0 %v7796
      %v7798 = vpop.xlane.xlu0 %7797
      %v7799 = vsel %vm7656, %v7753, 0.0
      %7800 = vadd.xlane.f32.xlu0 %v7799
      %v7801 = vpop.xlane.xlu0 %7800
      %v7802 = vmul.f32 %v7756, 0.025641026
      %v7803 = vmul.f32 %v7759, 0.025641026
      %v7804 = vmul.f32 %v7762, 0.025641026
      %v7805 = vmul.f32 %v7765, 0.025641026
      %v7806 = vmul.f32 %v7768, 0.025641026
      %v7807 = vmul.f32 %v7771, 0.025641026
      %v7808 = vmul.f32 %v7774, 0.025641026
      %v7809 = vmul.f32 %v7777, 0.025641026
      %v7810 = vmul.f32 %v7780, 0.025641026
      %v7811 = vmul.f32 %v7783, 0.025641026
      %v7812 = vmul.f32 %v7786, 0.025641026
      %v7813 = vmul.f32 %v7789, 0.025641026
      %v7814 = vmul.f32 %v7792, 0.025641026
      %v7815 = vmul.f32 %v7795, 0.025641026
      %v7816 = vmul.f32 %v7798, 0.025641026
      %v7817 = vmul.f32 %v7801, 0.025641026
      %v7818 = vrsqrt.pop %v7802
      %v7819 = vmul.f32 %v7802, %v7818
      %vm7820 = vcmp.eq.f32.partialorder %v7802, inf
      %v7821 = vsel %vm7820, %v7802, %v7819
      %vm7822 = vcmp.eq.f32.partialorder %v7802, 0.0
      %v7823 = vand.u32 %v7802, 2147483648
      %v7824 = vsel %vm7822, %v7823, %v7821
      %v7825 = vrsqrt.pop %v7803
      %v7826 = vmul.f32 %v7803, %v7825
      %vm7827 = vcmp.eq.f32.partialorder %v7803, inf
      %v7828 = vsel %vm7827, %v7803, %v7826
      %vm7829 = vcmp.eq.f32.partialorder %v7803, 0.0
      %v7830 = vand.u32 %v7803, 2147483648
      %v7831 = vsel %vm7829, %v7830, %v7828
      %v7832 = vrsqrt.pop %v7804
      %v7833 = vmul.f32 %v7804, %v7832
      %vm7834 = vcmp.eq.f32.partialorder %v7804, inf
      %v7835 = vsel %vm7834, %v7804, %v7833
      %vm7836 = vcmp.eq.f32.partialorder %v7804, 0.0
      %v7837 = vand.u32 %v7804, 2147483648
      %v7838 = vsel %vm7836, %v7837, %v7835
      %v7839 = vrsqrt.pop %v7805
      %v7840 = vmul.f32 %v7805, %v7839
      %vm7841 = vcmp.eq.f32.partialorder %v7805, inf
      %v7842 = vsel %vm7841, %v7805, %v7840
      %vm7843 = vcmp.eq.f32.partialorder %v7805, 0.0
      %v7844 = vand.u32 %v7805, 2147483648
      %v7845 = vsel %vm7843, %v7844, %v7842
      %v7846 = vrsqrt.pop %v7806
      %v7847 = vmul.f32 %v7806, %v7846
      %vm7848 = vcmp.eq.f32.partialorder %v7806, inf
      %v7849 = vsel %vm7848, %v7806, %v7847
      %vm7850 = vcmp.eq.f32.partialorder %v7806, 0.0
      %v7851 = vand.u32 %v7806, 2147483648
      %v7852 = vsel %vm7850, %v7851, %v7849
      %v7853 = vrsqrt.pop %v7807
      %v7854 = vmul.f32 %v7807, %v7853
      %vm7855 = vcmp.eq.f32.partialorder %v7807, inf
      %v7856 = vsel %vm7855, %v7807, %v7854
      %vm7857 = vcmp.eq.f32.partialorder %v7807, 0.0
      %v7858 = vand.u32 %v7807, 2147483648
      %v7859 = vsel %vm7857, %v7858, %v7856
      %v7860 = vrsqrt.pop %v7808
      %v7861 = vmul.f32 %v7808, %v7860
      %vm7862 = vcmp.eq.f32.partialorder %v7808, inf
      %v7863 = vsel %vm7862, %v7808, %v7861
      %vm7864 = vcmp.eq.f32.partialorder %v7808, 0.0
      %v7865 = vand.u32 %v7808, 2147483648
      %v7866 = vsel %vm7864, %v7865, %v7863
      %v7867 = vrsqrt.pop %v7809
      %v7868 = vmul.f32 %v7809, %v7867
      %vm7869 = vcmp.eq.f32.partialorder %v7809, inf
      %v7870 = vsel %vm7869, %v7809, %v7868
      %vm7871 = vcmp.eq.f32.partialorder %v7809, 0.0
      %v7872 = vand.u32 %v7809, 2147483648
      %v7873 = vsel %vm7871, %v7872, %v7870
      %v7874 = vrsqrt.pop %v7810
      %v7875 = vmul.f32 %v7810, %v7874
      %vm7876 = vcmp.eq.f32.partialorder %v7810, inf
      %v7877 = vsel %vm7876, %v7810, %v7875
      %vm7878 = vcmp.eq.f32.partialorder %v7810, 0.0
      %v7879 = vand.u32 %v7810, 2147483648
      %v7880 = vsel %vm7878, %v7879, %v7877
      %v7881 = vrsqrt.pop %v7811
      %v7882 = vmul.f32 %v7811, %v7881
      %vm7883 = vcmp.eq.f32.partialorder %v7811, inf
      %v7884 = vsel %vm7883, %v7811, %v7882
      %vm7885 = vcmp.eq.f32.partialorder %v7811, 0.0
      %v7886 = vand.u32 %v7811, 2147483648
      %v7887 = vsel %vm7885, %v7886, %v7884
      %v7888 = vrsqrt.pop %v7812
      %v7889 = vmul.f32 %v7812, %v7888
      %vm7890 = vcmp.eq.f32.partialorder %v7812, inf
      %v7891 = vsel %vm7890, %v7812, %v7889
      %vm7892 = vcmp.eq.f32.partialorder %v7812, 0.0
      %v7893 = vand.u32 %v7812, 2147483648
      %v7894 = vsel %vm7892, %v7893, %v7891
      %v7895 = vrsqrt.pop %v7813
      %v7896 = vmul.f32 %v7813, %v7895
      %vm7897 = vcmp.eq.f32.partialorder %v7813, inf
      %v7898 = vsel %vm7897, %v7813, %v7896
      %vm7899 = vcmp.eq.f32.partialorder %v7813, 0.0
      %v7900 = vand.u32 %v7813, 2147483648
      %v7901 = vsel %vm7899, %v7900, %v7898
      %v7902 = vrsqrt.pop %v7814
      %v7903 = vmul.f32 %v7814, %v7902
      %vm7904 = vcmp.eq.f32.partialorder %v7814, inf
      %v7905 = vsel %vm7904, %v7814, %v7903
      %vm7906 = vcmp.eq.f32.partialorder %v7814, 0.0
      %v7907 = vand.u32 %v7814, 2147483648
      %v7908 = vsel %vm7906, %v7907, %v7905
      %v7909 = vrsqrt.pop %v7815
      %v7910 = vmul.f32 %v7815, %v7909
      %vm7911 = vcmp.eq.f32.partialorder %v7815, inf
      %v7912 = vsel %vm7911, %v7815, %v7910
      %vm7913 = vcmp.eq.f32.partialorder %v7815, 0.0
      %v7914 = vand.u32 %v7815, 2147483648
      %v7915 = vsel %vm7913, %v7914, %v7912
      %v7916 = vrsqrt.pop %v7816
      %v7917 = vmul.f32 %v7816, %v7916
      %vm7918 = vcmp.eq.f32.partialorder %v7816, inf
      %v7919 = vsel %vm7918, %v7816, %v7917
      %vm7920 = vcmp.eq.f32.partialorder %v7816, 0.0
      %v7921 = vand.u32 %v7816, 2147483648
      %v7922 = vsel %vm7920, %v7921, %v7919
      %v7923 = vrsqrt.pop %v7817
      %v7924 = vmul.f32 %v7817, %v7923
      %vm7925 = vcmp.eq.f32.partialorder %v7817, inf
      %v7926 = vsel %vm7925, %v7817, %v7924
      %vm7927 = vcmp.eq.f32.partialorder %v7817, 0.0
      %v7928 = vand.u32 %v7817, 2147483648
      %v7929 = vsel %vm7927, %v7928, %v7926
      %v7930 = vadd.f32 %v7824, 1e-09
      %v7931 = vadd.f32 %v7831, 1e-09
      %v7932 = vadd.f32 %v7838, 1e-09
      %v7933 = vadd.f32 %v7845, 1e-09
      %v7934 = vadd.f32 %v7852, 1e-09
      %v7935 = vadd.f32 %v7859, 1e-09
      %v7936 = vadd.f32 %v7866, 1e-09
      %v7937 = vadd.f32 %v7873, 1e-09
      %v7938 = vadd.f32 %v7880, 1e-09
      %v7939 = vadd.f32 %v7887, 1e-09
      %v7940 = vadd.f32 %v7894, 1e-09
      %v7941 = vadd.f32 %v7901, 1e-09
      %v7942 = vadd.f32 %v7908, 1e-09
      %v7943 = vadd.f32 %v7915, 1e-09
      %v7944 = vadd.f32 %v7922, 1e-09
      %v7945 = vadd.f32 %v7929, 1e-09
      %v7946 = vrcp.pop %v7930
      %v7947 = vmul.f32 1.0, %v7946
      %v7948 = vrcp.pop %v7931
      %v7949 = vmul.f32 1.0, %v7948
      %v7950 = vrcp.pop %v7932
      %v7951 = vmul.f32 1.0, %v7950
      %v7952 = vrcp.pop %v7933
      %v7953 = vmul.f32 1.0, %v7952
      %v7954 = vrcp.pop %v7934
      %v7955 = vmul.f32 1.0, %v7954
      %v7956 = vrcp.pop %v7935
      %v7957 = vmul.f32 1.0, %v7956
      %v7958 = vrcp.pop %v7936
      %v7959 = vmul.f32 1.0, %v7958
      %v7960 = vrcp.pop %v7937
      %v7961 = vmul.f32 1.0, %v7960
      %v7962 = vrcp.pop %v7938
      %v7963 = vmul.f32 1.0, %v7962
      %v7964 = vrcp.pop %v7939
      %v7965 = vmul.f32 1.0, %v7964
      %v7966 = vrcp.pop %v7940
      %v7967 = vmul.f32 1.0, %v7966
      %v7968 = vrcp.pop %v7941
      %v7969 = vmul.f32 1.0, %v7968
      %v7970 = vrcp.pop %v7942
      %v7971 = vmul.f32 1.0, %v7970
      %v7972 = vrcp.pop %v7943
      %v7973 = vmul.f32 1.0, %v7972
      %v7974 = vrcp.pop %v7944
      %v7975 = vmul.f32 1.0, %v7974
      %v7976 = vrcp.pop %v7945
      %v7977 = vmul.f32 1.0, %v7976
      %v7978 = vmul.f32 %v7722, %v7947
      %v7979 = vmul.f32 %v7723, %v7949
      %v7980 = vmul.f32 %v7724, %v7951
      %v7981 = vmul.f32 %v7725, %v7953
      %v7982 = vmul.f32 %v7726, %v7955
      %v7983 = vmul.f32 %v7727, %v7957
      %v7984 = vmul.f32 %v7728, %v7959
      %v7985 = vmul.f32 %v7729, %v7961
      %v7986 = vmul.f32 %v7730, %v7963
      %v7987 = vmul.f32 %v7731, %v7965
      %v7988 = vmul.f32 %v7732, %v7967
      %v7989 = vmul.f32 %v7733, %v7969
      %v7990 = vmul.f32 %v7734, %v7971
      %v7991 = vmul.f32 %v7735, %v7973
      %v7992 = vmul.f32 %v7736, %v7975
      %v7993 = vmul.f32 %v7737, %v7977
      %7994 = vst.msk [vmem:[%s211] sm:$0xff] %vm7656, %v7978
      %7995 = vst.msk [vmem:[%s211 + $0x8] sm:$0xff] %vm7656, %v7979
      %7996 = vst.msk [vmem:[%s211 + $0x10] sm:$0xff] %vm7656, %v7980
      %7997 = vst.msk [vmem:[%s211 + $0x18] sm:$0xff] %vm7656, %v7981
      %7998 = vst.msk [vmem:[%s211 + $0x20] sm:$0xff] %vm7656, %v7982
      %7999 = vst.msk [vmem:[%s211 + $0x28] sm:$0xff] %vm7656, %v7983
      %8000 = vst.msk [vmem:[%s211 + $0x30] sm:$0xff] %vm7656, %v7984
      %8001 = vst.msk [vmem:[%s211 + $0x38] sm:$0xff] %vm7656, %v7985
      %8002 = vst.msk [vmem:[%s211 + $0x40] sm:$0xff] %vm7656, %v7986
      %8003 = vst.msk [vmem:[%s211 + $0x48] sm:$0xff] %vm7656, %v7987
      %8004 = vst.msk [vmem:[%s211 + $0x50] sm:$0xff] %vm7656, %v7988
      %8005 = vst.msk [vmem:[%s211 + $0x58] sm:$0xff] %vm7656, %v7989
      %8006 = vst.msk [vmem:[%s211 + $0x60] sm:$0xff] %vm7656, %v7990
      %8007 = vst.msk [vmem:[%s211 + $0x68] sm:$0xff] %vm7656, %v7991
      %8008 = vst.msk [vmem:[%s211 + $0x70] sm:$0xff] %vm7656, %v7992
      %8009 = vst.msk [vmem:[%s211 + $0x78] sm:$0xff] %vm7656, %v7993
      %s8010 = smul.u32 16, %s19
      %p8011 = scmp.lt.s32.totalorder %s18, 1
      %s8012 = scalar_select %p8011, %s18, 1
      %p8013 = scmp.lt.s32.totalorder %s8010, 15
      %s8014 = scalar_select %p8013, %s8010, 15
      %s8015 = smul.addr %s8012, 16
      %s8016 = sadd.s32 %s8014, %s8015
      %s8017 = smul.addr %s8016, 8
      %s8018 = scalar_lea.vmem %s3, %s8017
      // Predicated region
      $region33: #{tpu_custom_call.1} parent=31 // pred_check
        %p8019 = pneg %p116
      $region34: #{tpu_custom_call.1} parent=31 // pred_check_branch
        %8021 = sbr.rel (%p8019) target = $region36
      $region35: #{tpu_custom_call.1} parent=31 // pred_region
        %s8022 = smul.u32 16, %s19
      $region36: #{tpu_custom_call.1} parent=31 // pred_fallthru
        _
    $region32: #{tpu_custom_call.1} parent=5 // pred_fallthru
      _
    %p8023 = scmp.le.s32.totalorder 2, %s9
    // Predicated region
    $region37: #{tpu_custom_call.1} parent=5 // pred_check
      %p8024 = pneg %p8023
    $region38: #{tpu_custom_call.1} parent=5 // pred_check_branch
      %8026 = sbr.rel (%p8024) target = $region40
    $region39: #{tpu_custom_call.1} parent=5 // pred_region
      %s8027 = ssub.s32 %s9, 2
      // Predicated region
      $region41: #{tpu_custom_call.1} parent=39 // pred_check
        %p8028 = pneg %p122
      $region42: #{tpu_custom_call.1} parent=39 // pred_check_branch
        %8030 = sbr.rel (%p8028) target = $region44
      $region43: #{tpu_custom_call.1} parent=39 // pred_region
        %s8031 = smul.u32 16, %s21
        %p8032 = scmp.lt.s32.totalorder %s20, 1
        %s8033 = scalar_select %p8032, %s20, 1
        %p8034 = scmp.lt.s32.totalorder %s8031, 15
        %s8035 = scalar_select %p8034, %s8031, 15
        %s8036 = smul.addr %s8033, 16
        %s8037 = sadd.s32 %s8035, %s8036
        %s8038 = smul.addr %s8037, 8
        %s8039 = scalar_lea.vmem %s3, %s8038
      $region44: #{tpu_custom_call.1} parent=39 // pred_fallthru
        _
    $region40: #{tpu_custom_call.1} parent=5 // pred_fallthru
      _
  $region6: #{tpu_custom_call.1} parent=0 // loop_footer
    %s13 = sadd.s32 1, %s9
  $region7: #{tpu_custom_call.1} parent=0 // loop_footer_branch
    %8 = sbr.rel target = $region3
  $region8: #{tpu_custom_call.1} parent=0 // loop_exit
    _

</llo_original>
